<compile_context>
chip_gen: v7x
topology: tpu7x:2x2x1
jax: 0.10.0
libtpu: 0.0.40
codegen_flags: <defaults>
</compile_context>

<pallas_src>
import functools

import jax
import jax.numpy as jnp
from jax.experimental import pallas as pl
from jax.experimental.pallas import tpu as pltpu

NEG_SLOPE = 0.2
BN_EPS = 1e-5


def _round_up(x, m):
    return ((x + m - 1) // m) * m


# ----------------------------- Pallas kernels ------------------------------

def _conv_bn_lrelu_kernel(p_ref, w_ref, b_ref, o_ref):
    # p_ref: [TM, K] bf16 im2col patches; w_ref: [K, Cout] bf16 (BN-folded).
    acc = jnp.dot(p_ref[...], w_ref[...], preferred_element_type=jnp.float32)
    y = acc + b_ref[...]                            # folded BatchNorm shift
    y = jnp.where(y >= 0, y, NEG_SLOPE * y)         # LeakyReLU(0.2), f32 VPU
    o_ref[...] = y.astype(o_ref.dtype)              # bf16 store


def _head_kernel(feat_ref, w1_ref, b1_ref, w2_ref, b2_ref, o_ref):
    # feat_ref: [N, S, 512] bf16 -> AdaptiveAvgPool2d(1) == mean over S.
    s = feat_ref.shape[1]
    f = jnp.sum(feat_ref[...].astype(jnp.float32), axis=1) * (1.0 / s)  # [N,512]
    h = jnp.dot(f.astype(jnp.bfloat16), w1_ref[...],
                preferred_element_type=jnp.float32) + b1_ref[...]
    h = jnp.where(h >= 0, h, NEG_SLOPE * h)          # LeakyReLU(0.2)
    o = jnp.dot(h.astype(jnp.bfloat16), w2_ref[...],
                preferred_element_type=jnp.float32) + b2_ref[...]
    o_ref[...] = o.astype(o_ref.dtype)


_VMEM = pl.BlockSpec(memory_space=pltpu.MemorySpace.VMEM)


def _pick_tm(m, k, cout, budget_bytes=12 << 20):
    """Largest row tile (<=2048) s.t. 2x patches + 2x out + 2x weight fit."""
    tm = 2048
    while tm > 256:
        need = 2 * tm * (k + cout) * 2 + 2 * k * cout * 2   # bf16 bytes
        if need <= budget_bytes:
            break
        tm //= 2
    return min(tm, _round_up(m, 8))


def conv_bn_lrelu(patches, w_mat, bias):
    """Fused (im2col-matmul + folded-BN bias + LeakyReLU), tiled over rows."""
    M, K = patches.shape
    cout = w_mat.shape[1]
    tm = _pick_tm(M, K, cout)
    m_pad = _round_up(M, tm)
    if m_pad != M:
        patches = jnp.pad(patches, ((0, m_pad - M), (0, 0)))
    grid = (m_pad // tm,)
    flops = 2 * m_pad * K * cout
    bytes_accessed = (m_pad * K + K * cout + m_pad * cout) * 2 + 4 * cout
    out = pl.pallas_call(
        _conv_bn_lrelu_kernel,
        out_shape=jax.ShapeDtypeStruct((m_pad, cout), jnp.bfloat16),
        grid_spec=pltpu.PrefetchScalarGridSpec(
            num_scalar_prefetch=0,
            grid=grid,
            in_specs=[
                pl.BlockSpec((tm, K), lambda i: (i, 0)),     # patches: tiled M
                pl.BlockSpec((K, cout), lambda i: (0, 0)),   # weights: resident
                pl.BlockSpec((1, cout), lambda i: (0, 0)),   # bias: resident
            ],
            out_specs=pl.BlockSpec((tm, cout), lambda i: (i, 0)),
        ),
        compiler_params=pltpu.CompilerParams(
            dimension_semantics=("parallel",)),              # megacore split
        cost_estimate=pl.CostEstimate(
            flops=flops, transcendentals=0, bytes_accessed=bytes_accessed),
    )(patches, w_mat, bias)
    return out[:M] if m_pad != M else out


def classifier_head(feat, w1, b1, w2, b2):
    n = feat.shape[0]
    return pl.pallas_call(
        _head_kernel,
        out_shape=jax.ShapeDtypeStruct((n, 1), jnp.float32),
        in_specs=[_VMEM] * 5,
        out_specs=_VMEM,
    )(feat, w1, b1, w2, b2)


# ------------------------------- JAX glue ----------------------------------

# TODO(synk): fuse this 3x3/stride-2 im2col into the conv kernel (halo-carrying
# in-kernel shifted reads) so the [M, 9C] patch matrix never round-trips HBM.
def im2col_3x3(x_nhwc, stride):
    """3x3 / pad=1 / given-stride patch extraction. Returns [N*OH*OW, 9*C]."""
    N, H, W, C = x_nhwc.shape
    xp = jnp.pad(x_nhwc, ((0, 0), (1, 1), (1, 1), (0, 0)))
    OH = (H + 2 - 3) // stride + 1
    OW = (W + 2 - 3) // stride + 1
    taps = []
    for kh in range(3):
        for kw in range(3):
            taps.append(
                xp[:, kh:kh + stride * (OH - 1) + 1:stride,
                      kw:kw + stride * (OW - 1) + 1:stride, :]
            )
    p = jnp.stack(taps, axis=3)                 # [N, OH, OW, 9, C]
    return p.reshape(N * OH * OW, 9 * C), (N, OH, OW)


def init_params(key):
    ks = jax.random.split(key, 6)

    def conv_w(k, cin, cout):
        w = jax.random.normal(k, (3, 3, cin, cout), jnp.float32)
        return w * (1.0 / jnp.sqrt(9.0 * cin))

    def bn_scale_shift(c):
        # BatchNorm2d __init__ statistics, eval-mode semantics.
        gamma = jnp.ones((c,), jnp.float32)
        beta = jnp.zeros((c,), jnp.float32)
        mean = jnp.zeros((c,), jnp.float32)
        var = jnp.ones((c,), jnp.float32)
        scale = gamma / jnp.sqrt(var + BN_EPS)
        shift = beta - mean * scale
        return scale, shift

    params = {}

    # Layer 1: Conv(1->64), no BN.
    w1 = conv_w(ks[0], 1, 64)                                    # [3,3,1,64]
    params["w1"] = w1.reshape(9 * 1, 64).astype(jnp.bfloat16)
    params["b1"] = jnp.zeros((1, 64), jnp.float32)

    # Layer 2: Conv(64->128) + BN.
    w2 = conv_w(ks[1], 64, 128)                                  # [3,3,64,128]
    s2, t2 = bn_scale_shift(128)
    params["w2"] = (w2 * s2).reshape(9 * 64, 128).astype(jnp.bfloat16)
    params["b2"] = t2.reshape(1, 128)

    # Layer 3: Conv(128->256) + BN.
    w3 = conv_w(ks[2], 128, 256)
    s3, t3 = bn_scale_shift(256)
    params["w3"] = (w3 * s3).reshape(9 * 128, 256).astype(jnp.bfloat16)
    params["b3"] = t3.reshape(1, 256)

    # Layer 4: Conv(256->512) + BN.
    w4 = conv_w(ks[3], 256, 512)
    s4, t4 = bn_scale_shift(512)
    params["w4"] = (w4 * s4).reshape(9 * 256, 512).astype(jnp.bfloat16)
    params["b4"] = t4.reshape(1, 512)

    # Classifier head: Linear(512,1024) + LeakyReLU + Linear(1024,1).
    params["fc1_w"] = (jax.random.normal(ks[4], (512, 1024), jnp.float32)
                       / jnp.sqrt(512.0)).astype(jnp.bfloat16)
    params["fc1_b"] = jnp.zeros((1, 1024), jnp.float32)
    params["fc2_w"] = (jax.random.normal(ks[5], (1024, 1), jnp.float32)
                       / jnp.sqrt(1024.0)).astype(jnp.bfloat16)
    params["fc2_b"] = jnp.zeros((1, 1), jnp.float32)
    return params


def discriminator_forward(params, x_nchw):
    # NCHW (PyTorch) -> NHWC bf16 (kernel layout).
    x = jnp.transpose(x_nchw, (0, 2, 3, 1)).astype(jnp.bfloat16)

    for i in range(1, 5):
        p, (N, OH, OW) = im2col_3x3(x, stride=2)
        y = conv_bn_lrelu(p, params[f"w{i}"], params[f"b{i}"])
        x = y.reshape(N, OH, OW, y.shape[1])   # bf16 intermediate activations

    N, OH, OW, C = x.shape
    feat = x.reshape(N, OH * OW, C)            # pooled inside the head kernel
    return classifier_head(feat, params["fc1_w"], params["fc1_b"],
                           params["fc2_w"], params["fc2_b"])


if __name__ == "__main__":
    key = jax.random.PRNGKey(0)
    pkey, xkey = jax.random.split(key)
    params = init_params(pkey)

    # Discriminator expects a single input channel (Conv2d(1, 64, ...)).
    x = jax.random.normal(xkey, (2, 1, 32, 32), jnp.float32)

    fwd = jax.jit(functools.partial(discriminator_forward, params))
    out = jax.block_until_ready(fwd(x))

    assert out.shape == (2, 1), out.shape
    assert out.dtype == jnp.float32
    print("KERNEL_OK")
</pallas_src>

<mosaic_0001>
module attributes {stable_mosaic.version = 11 : i64} {
  func.func @_conv_bn_lrelu_kernel(%arg0: i32, %arg1: memref<512x9xbf16, #tpu.memory_space<vmem>>, %arg2: memref<9x64xbf16, #tpu.memory_space<vmem>>, %arg3: memref<1x64xf32, #tpu.memory_space<vmem>>, %arg4: memref<512x64xbf16, #tpu.memory_space<vmem>>) attributes {dimension_semantics = [#tpu.dimension_semantics<parallel>], iteration_bounds = array<i64: 1>, scalar_prefetch = 0 : i64, scratch_operands = 0 : i64, tpu.core_type = #tpu.core_type<tc>, window_params = [{transform_indices = @transform_0, window_bounds = array<i64: 512, 9>}, {pipeline_mode = #tpu.pipeline_mode<synchronous>, transform_indices = @transform_1, window_bounds = array<i64: 9, 64>}, {pipeline_mode = #tpu.pipeline_mode<synchronous>, transform_indices = @transform_2, window_bounds = array<i64: 1, 64>}, {transform_indices = @transform_3, window_bounds = array<i64: 512, 64>}]} {
    %c0 = arith.constant 0 : index
    %c0_0 = arith.constant 0 : index
    %0 = vector.load %arg1[%c0, %c0_0] : memref<512x9xbf16, #tpu.memory_space<vmem>>, vector<512x9xbf16>
    %c0_1 = arith.constant 0 : index
    %c0_2 = arith.constant 0 : index
    %1 = vector.load %arg2[%c0_1, %c0_2] : memref<9x64xbf16, #tpu.memory_space<vmem>>, vector<9x64xbf16>
    %cst = arith.constant dense<0.000000e+00> : vector<512x64xf32>
    %2 = tpu.matmul %0, %1, %cst {dimension_numbers = #tpu.dot_dimension_numbers<[1], [0], [0], [1], [0, 0, 1, 1], [], []>} : vector<512x9xbf16>, vector<9x64xbf16>, vector<512x64xf32> -> vector<512x64xf32>
    %c0_3 = arith.constant 0 : index
    %c0_4 = arith.constant 0 : index
    %3 = vector.load %arg3[%c0_3, %c0_4] : memref<1x64xf32, #tpu.memory_space<vmem>>, vector<1x64xf32>
    %4 = vector.broadcast %3 : vector<1x64xf32> to vector<512x64xf32>
    %5 = arith.addf %2, %4 : vector<512x64xf32>
    %cst_5 = arith.constant 0.000000e+00 : f32
    %6 = vector.broadcast %cst_5 : f32 to vector<512x64xf32>
    %7 = arith.cmpf oge, %5, %6 : vector<512x64xf32>
    %cst_6 = arith.constant 2.000000e-01 : f32
    %8 = vector.broadcast %cst_6 : f32 to vector<512x64xf32>
    %9 = arith.mulf %8, %5 : vector<512x64xf32>
    %10 = arith.select %7, %5, %9 : vector<512x64xi1>, vector<512x64xf32>
    %11 = arith.truncf %10 : vector<512x64xf32> to vector<512x64xbf16>
    %c0_7 = arith.constant 0 : index
    %c0_8 = arith.constant 0 : index
    %12 = vector.load %arg4[%c0_7, %c0_8] : memref<512x64xbf16, #tpu.memory_space<vmem>>, vector<512x64xbf16>
    tpu.vector_store %arg4[%c0_7, %c0_8], %11 {strides = array<i32>} : memref<512x64xbf16, #tpu.memory_space<vmem>>, vector<512x64xbf16>,
    return
  }
  func.func @transform_0(%arg0: i32) -> (i32, i32) {
    %c0_i32 = arith.constant 0 : i32
    %c0_i32_0 = arith.constant 0 : i32
    return %arg0, %c0_i32 : i32, i32
  }
  func.func @transform_1(%arg0: i32) -> (i32, i32) {
    %c0_i32 = arith.constant 0 : i32
    %c0_i32_0 = arith.constant 0 : i32
    %c0_i32_1 = arith.constant 0 : i32
    return %c0_i32, %c0_i32_0 : i32, i32
  }
  func.func @transform_2(%arg0: i32) -> (i32, i32) {
    %c0_i32 = arith.constant 0 : i32
    %c0_i32_0 = arith.constant 0 : i32
    %c0_i32_1 = arith.constant 0 : i32
    return %c0_i32, %c0_i32_0 : i32, i32
  }
  func.func @transform_3(%arg0: i32) -> (i32, i32) {
    %c0_i32 = arith.constant 0 : i32
    %c0_i32_0 = arith.constant 0 : i32
    return %arg0, %c0_i32 : i32, i32
  }
}

module attributes {stable_mosaic.version = 11 : i64} {
  func.func @_conv_bn_lrelu_kernel(%arg0: i32, %arg1: memref<128x576xbf16, #tpu.memory_space<vmem>>, %arg2: memref<576x128xbf16, #tpu.memory_space<vmem>>, %arg3: memref<1x128xf32, #tpu.memory_space<vmem>>, %arg4: memref<128x128xbf16, #tpu.memory_space<vmem>>) attributes {dimension_semantics = [#tpu.dimension_semantics<parallel>], iteration_bounds = array<i64: 1>, scalar_prefetch = 0 : i64, scratch_operands = 0 : i64, tpu.core_type = #tpu.core_type<tc>, window_params = [{transform_indices = @transform_0, window_bounds = array<i64: 128, 576>}, {pipeline_mode = #tpu.pipeline_mode<synchronous>, transform_indices = @transform_1, window_bounds = array<i64: 576, 128>}, {pipeline_mode = #tpu.pipeline_mode<synchronous>, transform_indices = @transform_2, window_bounds = array<i64: 1, 128>}, {transform_indices = @transform_3, window_bounds = array<i64: 128, 128>}]} {
    %c0 = arith.constant 0 : index
    %c0_0 = arith.constant 0 : index
    %0 = vector.load %arg1[%c0, %c0_0] : memref<128x576xbf16, #tpu.memory_space<vmem>>, vector<128x576xbf16>
    %c0_1 = arith.constant 0 : index
    %c0_2 = arith.constant 0 : index
    %1 = vector.load %arg2[%c0_1, %c0_2] : memref<576x128xbf16, #tpu.memory_space<vmem>>, vector<576x128xbf16>
    %cst = arith.constant dense<0.000000e+00> : vector<128x128xf32>
    %2 = tpu.matmul %0, %1, %cst {dimension_numbers = #tpu.dot_dimension_numbers<[1], [0], [0], [1], [0, 0, 1, 1], [], []>} : vector<128x576xbf16>, vector<576x128xbf16>, vector<128x128xf32> -> vector<128x128xf32>
    %c0_3 = arith.constant 0 : index
    %c0_4 = arith.constant 0 : index
    %3 = vector.load %arg3[%c0_3, %c0_4] : memref<1x128xf32, #tpu.memory_space<vmem>>, vector<1x128xf32>
    %4 = vector.broadcast %3 : vector<1x128xf32> to vector<128x128xf32>
    %5 = arith.addf %2, %4 : vector<128x128xf32>
    %cst_5 = arith.constant 0.000000e+00 : f32
    %6 = vector.broadcast %cst_5 : f32 to vector<128x128xf32>
    %7 = arith.cmpf oge, %5, %6 : vector<128x128xf32>
    %cst_6 = arith.constant 2.000000e-01 : f32
    %8 = vector.broadcast %cst_6 : f32 to vector<128x128xf32>
    %9 = arith.mulf %8, %5 : vector<128x128xf32>
    %10 = arith.select %7, %5, %9 : vector<128x128xi1>, vector<128x128xf32>
    %11 = arith.truncf %10 : vector<128x128xf32> to vector<128x128xbf16>
    %c0_7 = arith.constant 0 : index
    %c0_8 = arith.constant 0 : index
    %12 = vector.load %arg4[%c0_7, %c0_8] : memref<128x128xbf16, #tpu.memory_space<vmem>>, vector<128x128xbf16>
    tpu.vector_store %arg4[%c0_7, %c0_8], %11 {strides = array<i32>} : memref<128x128xbf16, #tpu.memory_space<vmem>>, vector<128x128xbf16>,
    return
  }
  func.func @transform_0(%arg0: i32) -> (i32, i32) {
    %c0_i32 = arith.constant 0 : i32
    %c0_i32_0 = arith.constant 0 : i32
    return %arg0, %c0_i32 : i32, i32
  }
  func.func @transform_1(%arg0: i32) -> (i32, i32) {
    %c0_i32 = arith.constant 0 : i32
    %c0_i32_0 = arith.constant 0 : i32
    %c0_i32_1 = arith.constant 0 : i32
    return %c0_i32, %c0_i32_0 : i32, i32
  }
  func.func @transform_2(%arg0: i32) -> (i32, i32) {
    %c0_i32 = arith.constant 0 : i32
    %c0_i32_0 = arith.constant 0 : i32
    %c0_i32_1 = arith.constant 0 : i32
    return %c0_i32, %c0_i32_0 : i32, i32
  }
  func.func @transform_3(%arg0: i32) -> (i32, i32) {
    %c0_i32 = arith.constant 0 : i32
    %c0_i32_0 = arith.constant 0 : i32
    return %arg0, %c0_i32 : i32, i32
  }
}

module attributes {stable_mosaic.version = 11 : i64} {
  func.func @_conv_bn_lrelu_kernel(%arg0: i32, %arg1: memref<32x1152xbf16, #tpu.memory_space<vmem>>, %arg2: memref<1152x256xbf16, #tpu.memory_space<vmem>>, %arg3: memref<1x256xf32, #tpu.memory_space<vmem>>, %arg4: memref<32x256xbf16, #tpu.memory_space<vmem>>) attributes {dimension_semantics = [#tpu.dimension_semantics<parallel>], iteration_bounds = array<i64: 1>, scalar_prefetch = 0 : i64, scratch_operands = 0 : i64, tpu.core_type = #tpu.core_type<tc>, window_params = [{transform_indices = @transform_0, window_bounds = array<i64: 32, 1152>}, {pipeline_mode = #tpu.pipeline_mode<synchronous>, transform_indices = @transform_1, window_bounds = array<i64: 1152, 256>}, {pipeline_mode = #tpu.pipeline_mode<synchronous>, transform_indices = @transform_2, window_bounds = array<i64: 1, 256>}, {transform_indices = @transform_3, window_bounds = array<i64: 32, 256>}]} {
    %c0 = arith.constant 0 : index
    %c0_0 = arith.constant 0 : index
    %0 = vector.load %arg1[%c0, %c0_0] : memref<32x1152xbf16, #tpu.memory_space<vmem>>, vector<32x1152xbf16>
    %c0_1 = arith.constant 0 : index
    %c0_2 = arith.constant 0 : index
    %1 = vector.load %arg2[%c0_1, %c0_2] : memref<1152x256xbf16, #tpu.memory_space<vmem>>, vector<1152x256xbf16>
    %cst = arith.constant dense<0.000000e+00> : vector<32x256xf32>
    %2 = tpu.matmul %0, %1, %cst {dimension_numbers = #tpu.dot_dimension_numbers<[1], [0], [0], [1], [0, 0, 1, 1], [], []>} : vector<32x1152xbf16>, vector<1152x256xbf16>, vector<32x256xf32> -> vector<32x256xf32>
    %c0_3 = arith.constant 0 : index
    %c0_4 = arith.constant 0 : index
    %3 = vector.load %arg3[%c0_3, %c0_4] : memref<1x256xf32, #tpu.memory_space<vmem>>, vector<1x256xf32>
    %4 = vector.broadcast %3 : vector<1x256xf32> to vector<32x256xf32>
    %5 = arith.addf %2, %4 : vector<32x256xf32>
    %cst_5 = arith.constant 0.000000e+00 : f32
    %6 = vector.broadcast %cst_5 : f32 to vector<32x256xf32>
    %7 = arith.cmpf oge, %5, %6 : vector<32x256xf32>
    %cst_6 = arith.constant 2.000000e-01 : f32
    %8 = vector.broadcast %cst_6 : f32 to vector<32x256xf32>
    %9 = arith.mulf %8, %5 : vector<32x256xf32>
    %10 = arith.select %7, %5, %9 : vector<32x256xi1>, vector<32x256xf32>
    %11 = arith.truncf %10 : vector<32x256xf32> to vector<32x256xbf16>
    %c0_7 = arith.constant 0 : index
    %c0_8 = arith.constant 0 : index
    %12 = vector.load %arg4[%c0_7, %c0_8] : memref<32x256xbf16, #tpu.memory_space<vmem>>, vector<32x256xbf16>
    tpu.vector_store %arg4[%c0_7, %c0_8], %11 {strides = array<i32>} : memref<32x256xbf16, #tpu.memory_space<vmem>>, vector<32x256xbf16>,
    return
  }
  func.func @transform_0(%arg0: i32) -> (i32, i32) {
    %c0_i32 = arith.constant 0 : i32
    %c0_i32_0 = arith.constant 0 : i32
    return %arg0, %c0_i32 : i32, i32
  }
  func.func @transform_1(%arg0: i32) -> (i32, i32) {
    %c0_i32 = arith.constant 0 : i32
    %c0_i32_0 = arith.constant 0 : i32
    %c0_i32_1 = arith.constant 0 : i32
    return %c0_i32, %c0_i32_0 : i32, i32
  }
  func.func @transform_2(%arg0: i32) -> (i32, i32) {
    %c0_i32 = arith.constant 0 : i32
    %c0_i32_0 = arith.constant 0 : i32
    %c0_i32_1 = arith.constant 0 : i32
    return %c0_i32, %c0_i32_0 : i32, i32
  }
  func.func @transform_3(%arg0: i32) -> (i32, i32) {
    %c0_i32 = arith.constant 0 : i32
    %c0_i32_0 = arith.constant 0 : i32
    return %arg0, %c0_i32 : i32, i32
  }
}

module attributes {stable_mosaic.version = 11 : i64} {
  func.func @_head_kernel(%arg0: memref<2x4x512xbf16, #tpu.memory_space<vmem>>, %arg1: memref<512x1024xbf16, #tpu.memory_space<vmem>>, %arg2: memref<1x1024xf32, #tpu.memory_space<vmem>>, %arg3: memref<1024x1xbf16, #tpu.memory_space<vmem>>, %arg4: memref<1x1xf32, #tpu.memory_space<vmem>>, %arg5: memref<2x1xf32, #tpu.memory_space<vmem>>) attributes {dimension_semantics = [], scalar_prefetch = 0 : i64, scratch_operands = 0 : i64, tpu.core_type = #tpu.core_type<tc>} {
    %c0 = arith.constant 0 : index
    %c0_0 = arith.constant 0 : index
    %c0_1 = arith.constant 0 : index
    %0 = vector.load %arg0[%c0, %c0_0, %c0_1] : memref<2x4x512xbf16, #tpu.memory_space<vmem>>, vector<2x4x512xbf16>
    %1 = arith.extf %0 : vector<2x4x512xbf16> to vector<2x4x512xf32>
    %cst = arith.constant dense<0.000000e+00> : vector<2x512xf32>
    %2 = vector.multi_reduction <add>, %1, %cst [1] : vector<2x4x512xf32> to vector<2x512xf32>
    %cst_2 = arith.constant 2.500000e-01 : f32
    %3 = vector.broadcast %cst_2 : f32 to vector<2x512xf32>
    %4 = arith.mulf %2, %3 : vector<2x512xf32>
    %5 = arith.truncf %4 : vector<2x512xf32> to vector<2x512xbf16>
    %c0_3 = arith.constant 0 : index
    %c0_4 = arith.constant 0 : index
    %6 = vector.load %arg1[%c0_3, %c0_4] : memref<512x1024xbf16, #tpu.memory_space<vmem>>, vector<512x1024xbf16>
    %cst_5 = arith.constant dense<0.000000e+00> : vector<2x1024xf32>
    %7 = tpu.matmul %5, %6, %cst_5 {dimension_numbers = #tpu.dot_dimension_numbers<[1], [0], [0], [1], [0, 0, 1, 1], [], []>} : vector<2x512xbf16>, vector<512x1024xbf16>, vector<2x1024xf32> -> vector<2x1024xf32>
    %c0_6 = arith.constant 0 : index
    %c0_7 = arith.constant 0 : index
    %8 = vector.load %arg2[%c0_6, %c0_7] : memref<1x1024xf32, #tpu.memory_space<vmem>>, vector<1x1024xf32>
    %9 = vector.broadcast %8 : vector<1x1024xf32> to vector<2x1024xf32>
    %10 = arith.addf %7, %9 : vector<2x1024xf32>
    %cst_8 = arith.constant 0.000000e+00 : f32
    %11 = vector.broadcast %cst_8 : f32 to vector<2x1024xf32>
    %12 = arith.cmpf oge, %10, %11 : vector<2x1024xf32>
    %cst_9 = arith.constant 2.000000e-01 : f32
    %13 = vector.broadcast %cst_9 : f32 to vector<2x1024xf32>
    %14 = arith.mulf %13, %10 : vector<2x1024xf32>
    %15 = arith.select %12, %10, %14 : vector<2x1024xi1>, vector<2x1024xf32>
    %16 = arith.truncf %15 : vector<2x1024xf32> to vector<2x1024xbf16>
    %c0_10 = arith.constant 0 : index
    %c0_11 = arith.constant 0 : index
    %17 = vector.load %arg3[%c0_10, %c0_11] : memref<1024x1xbf16, #tpu.memory_space<vmem>>, vector<1024x1xbf16>
    %cst_12 = arith.constant dense<0.000000e+00> : vector<2x1xf32>
    %18 = tpu.matmul %16, %17, %cst_12 {dimension_numbers = #tpu.dot_dimension_numbers<[1], [0], [0], [1], [0, 0, 1, 1], [], []>} : vector<2x1024xbf16>, vector<1024x1xbf16>, vector<2x1xf32> -> vector<2x1xf32>
    %c0_13 = arith.constant 0 : index
    %c0_14 = arith.constant 0 : index
    %19 = vector.load %arg4[%c0_13, %c0_14] : memref<1x1xf32, #tpu.memory_space<vmem>>, vector<1x1xf32>
    %20 = vector.broadcast %19 : vector<1x1xf32> to vector<2x1xf32>
    %21 = arith.addf %18, %20 : vector<2x1xf32>
    %c0_15 = arith.constant 0 : index
    %c0_16 = arith.constant 0 : index
    %22 = vector.load %arg5[%c0_15, %c0_16] : memref<2x1xf32, #tpu.memory_space<vmem>>, vector<2x1xf32>
    tpu.vector_store %arg5[%c0_15, %c0_16], %21 {strides = array<i32>} : memref<2x1xf32, #tpu.memory_space<vmem>>, vector<2x1xf32>,
    return
  }
}

module attributes {stable_mosaic.version = 11 : i64} {
  func.func @_conv_bn_lrelu_kernel(%arg0: i32, %arg1: memref<8x2304xbf16, #tpu.memory_space<vmem>>, %arg2: memref<2304x512xbf16, #tpu.memory_space<vmem>>, %arg3: memref<1x512xf32, #tpu.memory_space<vmem>>, %arg4: memref<8x512xbf16, #tpu.memory_space<vmem>>) attributes {dimension_semantics = [#tpu.dimension_semantics<parallel>], iteration_bounds = array<i64: 1>, scalar_prefetch = 0 : i64, scratch_operands = 0 : i64, tpu.core_type = #tpu.core_type<tc>, window_params = [{transform_indices = @transform_0, window_bounds = array<i64: 8, 2304>}, {pipeline_mode = #tpu.pipeline_mode<synchronous>, transform_indices = @transform_1, window_bounds = array<i64: 2304, 512>}, {pipeline_mode = #tpu.pipeline_mode<synchronous>, transform_indices = @transform_2, window_bounds = array<i64: 1, 512>}, {transform_indices = @transform_3, window_bounds = array<i64: 8, 512>}]} {
    %c0 = arith.constant 0 : index
    %c0_0 = arith.constant 0 : index
    %0 = vector.load %arg1[%c0, %c0_0] : memref<8x2304xbf16, #tpu.memory_space<vmem>>, vector<8x2304xbf16>
    %c0_1 = arith.constant 0 : index
    %c0_2 = arith.constant 0 : index
    %1 = vector.load %arg2[%c0_1, %c0_2] : memref<2304x512xbf16, #tpu.memory_space<vmem>>, vector<2304x512xbf16>
    %cst = arith.constant dense<0.000000e+00> : vector<8x512xf32>
    %2 = tpu.matmul %0, %1, %cst {dimension_numbers = #tpu.dot_dimension_numbers<[1], [0], [0], [1], [0, 0, 1, 1], [], []>} : vector<8x2304xbf16>, vector<2304x512xbf16>, vector<8x512xf32> -> vector<8x512xf32>
    %c0_3 = arith.constant 0 : index
    %c0_4 = arith.constant 0 : index
    %3 = vector.load %arg3[%c0_3, %c0_4] : memref<1x512xf32, #tpu.memory_space<vmem>>, vector<1x512xf32>
    %4 = vector.broadcast %3 : vector<1x512xf32> to vector<8x512xf32>
    %5 = arith.addf %2, %4 : vector<8x512xf32>
    %cst_5 = arith.constant 0.000000e+00 : f32
    %6 = vector.broadcast %cst_5 : f32 to vector<8x512xf32>
    %7 = arith.cmpf oge, %5, %6 : vector<8x512xf32>
    %cst_6 = arith.constant 2.000000e-01 : f32
    %8 = vector.broadcast %cst_6 : f32 to vector<8x512xf32>
    %9 = arith.mulf %8, %5 : vector<8x512xf32>
    %10 = arith.select %7, %5, %9 : vector<8x512xi1>, vector<8x512xf32>
    %11 = arith.truncf %10 : vector<8x512xf32> to vector<8x512xbf16>
    %c0_7 = arith.constant 0 : index
    %c0_8 = arith.constant 0 : index
    %12 = vector.load %arg4[%c0_7, %c0_8] : memref<8x512xbf16, #tpu.memory_space<vmem>>, vector<8x512xbf16>
    tpu.vector_store %arg4[%c0_7, %c0_8], %11 {strides = array<i32>} : memref<8x512xbf16, #tpu.memory_space<vmem>>, vector<8x512xbf16>,
    return
  }
  func.func @transform_0(%arg0: i32) -> (i32, i32) {
    %c0_i32 = arith.constant 0 : i32
    %c0_i32_0 = arith.constant 0 : i32
    return %arg0, %c0_i32 : i32, i32
  }
  func.func @transform_1(%arg0: i32) -> (i32, i32) {
    %c0_i32 = arith.constant 0 : i32
    %c0_i32_0 = arith.constant 0 : i32
    %c0_i32_1 = arith.constant 0 : i32
    return %c0_i32, %c0_i32_0 : i32, i32
  }
  func.func @transform_2(%arg0: i32) -> (i32, i32) {
    %c0_i32 = arith.constant 0 : i32
    %c0_i32_0 = arith.constant 0 : i32
    %c0_i32_1 = arith.constant 0 : i32
    return %c0_i32, %c0_i32_0 : i32, i32
  }
  func.func @transform_3(%arg0: i32) -> (i32, i32) {
    %c0_i32 = arith.constant 0 : i32
    %c0_i32_0 = arith.constant 0 : i32
    return %arg0, %c0_i32 : i32, i32
  }
}

</mosaic_0001>

<llo_original>
// kernel: discriminator_forward.5
$region0: #{discriminator_forward.5}
  #allocation0 [shape = 'u32[]', space=smem, size = 0x4, offset = 0x4, fixed_abs, tag = 'smem constant byte address 0x4 - core index']
  #allocation1 [shape = 'u32[144,128]{1,0:T(1,128)}', space=vmem, size = 0x12000, scoped, tag = 'internal scratch']
  %s0 = inlined_call_operand.vmem [shape: bf16[512,9], index: 0, kind: input, shape index: {}]
  %s1 = inlined_call_operand.hbm [shape: bf16[9,64], index: 1, kind: input, shape index: {}]
  %s2 = inlined_call_operand.vmem [shape: f32[1,64], index: 2, kind: input, shape index: {}]
  %s3 = inlined_call_operand.vmem [shape: bf16[512,64], index: 3, kind: output, shape index: {}]
  %s4 = sld [smem:[#allocation0]]
  $region26: #{discriminator_forward.5} parent=0
    _
  %s6 = ssub.s32 1, %s4
  %s7 = scalar_select 0, %s6, %s4
  $region1: #{discriminator_forward.5} parent=0
    #allocation2 [shape = 'u8[4096]{0}', space=vmem, size = 0x1000, scoped, tag = 'input window, operand 1, single buffered']
    #allocation3 [shape = 's32[1]{0}', space=sflag, size = 0x4, scoped, tag = 'scoped memory for discriminator_forward.5']
    %8 = vsyncpa [#allocation3], 0
    // Predicated region
    $region2: #{discriminator_forward.5} parent=1 // pred_check
      _
    $region3: #{discriminator_forward.5} parent=1 // pred_check_branch
      %10 = sbr.rel (0) target = $region5
    $region4: #{discriminator_forward.5} parent=1 // pred_region
      _
    $region5: #{discriminator_forward.5} parent=1 // pred_fallthru
      _
    // Predicated region
    $region6: #{discriminator_forward.5} parent=1 // pred_check
      _
    $region7: #{discriminator_forward.5} parent=1 // pred_check_branch
      %12 = sbr.rel (0) target = $region9
    $region8: #{discriminator_forward.5} parent=1 // pred_region
      %s14 = ssub.s32 128, 128
      %15 = vsyncadd [#allocation3], %s14
      %s16 = sshll.u32 [#allocation2], 4
      %s17 = int_to_ptr.vmem [resolvable:$true] %s16
      %22 = dma.hbm_to_vmem [thread:$0]  %s1, 128, %s17, [#allocation3], 64, 64, 4
    $region9: #{discriminator_forward.5} parent=1 // pred_fallthru
      _
    // Predicated region
    $region10: #{discriminator_forward.5} parent=1 // pred_check
      _
    $region11: #{discriminator_forward.5} parent=1 // pred_check_branch
      %24 = sbr.rel (0) target = $region13
    $region12: #{discriminator_forward.5} parent=1 // pred_region
      _
    $region13: #{discriminator_forward.5} parent=1 // pred_fallthru
      _
    // Predicated region
    $region14: #{discriminator_forward.5} parent=1 // pred_check
      _
    $region15: #{discriminator_forward.5} parent=1 // pred_check_branch
      %26 = sbr.rel (0) target = $region17
    $region16: #{discriminator_forward.5} parent=1 // pred_region
      %27 = dma.done [#allocation3], 128
    $region17: #{discriminator_forward.5} parent=1 // pred_fallthru
      _
    %v29 = vld [vmem:[%s0] sm:$0xf]
    %v30 = vld [vmem:[%s0 + $0x4] sm:$0xf]
    %v31 = vld [vmem:[%s0 + $0x8] sm:$0xf]
    %v32 = vld [vmem:[%s0 + $0xc] sm:$0xf]
    %v33 = vld [vmem:[%s0 + $0x10] sm:$0xf]
    %v34 = vld [vmem:[%s0 + $0x14] sm:$0xf]
    %v35 = vld [vmem:[%s0 + $0x18] sm:$0xf]
    %v36 = vld [vmem:[%s0 + $0x1c] sm:$0xf]
    %v37 = vld [vmem:[%s0 + $0x20] sm:$0xf]
    %v38 = vld [vmem:[%s0 + $0x24] sm:$0xf]
    %v39 = vld [vmem:[%s0 + $0x28] sm:$0xf]
    %v40 = vld [vmem:[%s0 + $0x2c] sm:$0xf]
    %v41 = vld [vmem:[%s0 + $0x30] sm:$0xf]
    %v42 = vld [vmem:[%s0 + $0x34] sm:$0xf]
    %v43 = vld [vmem:[%s0 + $0x38] sm:$0xf]
    %v44 = vld [vmem:[%s0 + $0x3c] sm:$0xf]
    %v45 = vld [vmem:[%s0 + $0x40] sm:$0xf]
    %v46 = vld [vmem:[%s0 + $0x44] sm:$0xf]
    %v47 = vld [vmem:[%s0 + $0x48] sm:$0xf]
    %v48 = vld [vmem:[%s0 + $0x4c] sm:$0xf]
    %v49 = vld [vmem:[%s0 + $0x50] sm:$0xf]
    %v50 = vld [vmem:[%s0 + $0x54] sm:$0xf]
    %v51 = vld [vmem:[%s0 + $0x58] sm:$0xf]
    %v52 = vld [vmem:[%s0 + $0x5c] sm:$0xf]
    %v53 = vld [vmem:[%s0 + $0x60] sm:$0xf]
    %v54 = vld [vmem:[%s0 + $0x64] sm:$0xf]
    %v55 = vld [vmem:[%s0 + $0x68] sm:$0xf]
    %v56 = vld [vmem:[%s0 + $0x6c] sm:$0xf]
    %v57 = vld [vmem:[%s0 + $0x70] sm:$0xf]
    %v58 = vld [vmem:[%s0 + $0x74] sm:$0xf]
    %v59 = vld [vmem:[%s0 + $0x78] sm:$0xf]
    %v60 = vld [vmem:[%s0 + $0x7c] sm:$0xf]
    %v61 = vld [vmem:[%s0 + $0x80] sm:$0xf]
    %v62 = vld [vmem:[%s0 + $0x84] sm:$0xf]
    %v63 = vld [vmem:[%s0 + $0x88] sm:$0xf]
    %v64 = vld [vmem:[%s0 + $0x8c] sm:$0xf]
    %v65 = vld [vmem:[%s0 + $0x90] sm:$0xf]
    %v66 = vld [vmem:[%s0 + $0x94] sm:$0xf]
    %v67 = vld [vmem:[%s0 + $0x98] sm:$0xf]
    %v68 = vld [vmem:[%s0 + $0x9c] sm:$0xf]
    %v69 = vld [vmem:[%s0 + $0xa0] sm:$0xf]
    %v70 = vld [vmem:[%s0 + $0xa4] sm:$0xf]
    %v71 = vld [vmem:[%s0 + $0xa8] sm:$0xf]
    %v72 = vld [vmem:[%s0 + $0xac] sm:$0xf]
    %v73 = vld [vmem:[%s0 + $0xb0] sm:$0xf]
    %v74 = vld [vmem:[%s0 + $0xb4] sm:$0xf]
    %v75 = vld [vmem:[%s0 + $0xb8] sm:$0xf]
    %v76 = vld [vmem:[%s0 + $0xbc] sm:$0xf]
    %v77 = vld [vmem:[%s0 + $0xc0] sm:$0xf]
    %v78 = vld [vmem:[%s0 + $0xc4] sm:$0xf]
    %v79 = vld [vmem:[%s0 + $0xc8] sm:$0xf]
    %v80 = vld [vmem:[%s0 + $0xcc] sm:$0xf]
    %v81 = vld [vmem:[%s0 + $0xd0] sm:$0xf]
    %v82 = vld [vmem:[%s0 + $0xd4] sm:$0xf]
    %v83 = vld [vmem:[%s0 + $0xd8] sm:$0xf]
    %v84 = vld [vmem:[%s0 + $0xdc] sm:$0xf]
    %v85 = vld [vmem:[%s0 + $0xe0] sm:$0xf]
    %v86 = vld [vmem:[%s0 + $0xe4] sm:$0xf]
    %v87 = vld [vmem:[%s0 + $0xe8] sm:$0xf]
    %v88 = vld [vmem:[%s0 + $0xec] sm:$0xf]
    %v89 = vld [vmem:[%s0 + $0xf0] sm:$0xf]
    %v90 = vld [vmem:[%s0 + $0xf4] sm:$0xf]
    %v91 = vld [vmem:[%s0 + $0xf8] sm:$0xf]
    %v92 = vld [vmem:[%s0 + $0xfc] sm:$0xf]
    %v93 = vld [vmem:[#allocation2] sm:$0xf]
    %v94 = vld [vmem:[#allocation2 + $0x4] sm:$0x1]
    %v95 = vld [vmem:[%s2] sm:$0x1]
    %v97 = vlaneseq
    %v98 = vshrl.u32 %v97, 7
    %v99 = vsub.s32 0, %v98
    %v100 = vrot.slane %v95, %v99
    %v166 = vunpack.c.l.b16 %v29
    %v167 = vunpack.c.l.b16 %v30
    %v168 = vunpack.c.l.b16 %v31
    %v169 = vunpack.c.l.b16 %v32
    %v170 = vunpack.c.l.b16 %v33
    %v171 = vunpack.c.l.b16 %v34
    %v172 = vunpack.c.l.b16 %v35
    %v173 = vunpack.c.l.b16 %v36
    %v174 = vunpack.c.l.b16 %v37
    %v175 = vunpack.c.l.b16 %v38
    %v176 = vunpack.c.l.b16 %v39
    %v177 = vunpack.c.l.b16 %v40
    %v178 = vunpack.c.l.b16 %v41
    %v179 = vunpack.c.l.b16 %v42
    %v180 = vunpack.c.l.b16 %v43
    %v181 = vunpack.c.l.b16 %v44
    %v182 = vunpack.c.l.b16 %v45
    %v183 = vunpack.c.l.b16 %v46
    %v184 = vunpack.c.l.b16 %v47
    %v185 = vunpack.c.l.b16 %v48
    %v186 = vunpack.c.l.b16 %v49
    %v187 = vunpack.c.l.b16 %v50
    %v188 = vunpack.c.l.b16 %v51
    %v189 = vunpack.c.l.b16 %v52
    %v190 = vunpack.c.l.b16 %v53
    %v191 = vunpack.c.l.b16 %v54
    %v192 = vunpack.c.l.b16 %v55
    %v193 = vunpack.c.l.b16 %v56
    %v194 = vunpack.c.l.b16 %v57
    %v195 = vunpack.c.l.b16 %v58
    %v196 = vunpack.c.l.b16 %v59
    %v197 = vunpack.c.l.b16 %v60
    %v198 = vunpack.c.l.b16 %v61
    %v199 = vunpack.c.l.b16 %v62
    %v200 = vunpack.c.l.b16 %v63
    %v201 = vunpack.c.l.b16 %v64
    %v202 = vunpack.c.l.b16 %v65
    %v203 = vunpack.c.l.b16 %v66
    %v204 = vunpack.c.l.b16 %v67
    %v205 = vunpack.c.l.b16 %v68
    %v206 = vunpack.c.l.b16 %v69
    %v207 = vunpack.c.l.b16 %v70
    %v208 = vunpack.c.l.b16 %v71
    %v209 = vunpack.c.l.b16 %v72
    %v210 = vunpack.c.l.b16 %v73
    %v211 = vunpack.c.l.b16 %v74
    %v212 = vunpack.c.l.b16 %v75
    %v213 = vunpack.c.l.b16 %v76
    %v214 = vunpack.c.l.b16 %v77
    %v215 = vunpack.c.l.b16 %v78
    %v216 = vunpack.c.l.b16 %v79
    %v217 = vunpack.c.l.b16 %v80
    %v218 = vunpack.c.l.b16 %v81
    %v219 = vunpack.c.l.b16 %v82
    %v220 = vunpack.c.l.b16 %v83
    %v221 = vunpack.c.l.b16 %v84
    %v222 = vunpack.c.l.b16 %v85
    %v223 = vunpack.c.l.b16 %v86
    %v224 = vunpack.c.l.b16 %v87
    %v225 = vunpack.c.l.b16 %v88
    %v226 = vunpack.c.l.b16 %v89
    %v227 = vunpack.c.l.b16 %v90
    %v228 = vunpack.c.l.b16 %v91
    %v229 = vunpack.c.l.b16 %v92
    %v230 = vpack.c.b16 %v167, %v166
    %v231 = vpack.c.b16 %v169, %v168
    %v232 = vpack.c.b16 %v171, %v170
    %v233 = vpack.c.b16 %v173, %v172
    %v234 = vpack.c.b16 %v175, %v174
    %v235 = vpack.c.b16 %v177, %v176
    %v236 = vpack.c.b16 %v179, %v178
    %v237 = vpack.c.b16 %v181, %v180
    %v238 = vpack.c.b16 %v183, %v182
    %v239 = vpack.c.b16 %v185, %v184
    %v240 = vpack.c.b16 %v187, %v186
    %v241 = vpack.c.b16 %v189, %v188
    %v242 = vpack.c.b16 %v191, %v190
    %v243 = vpack.c.b16 %v193, %v192
    %v244 = vpack.c.b16 %v195, %v194
    %v245 = vpack.c.b16 %v197, %v196
    %v246 = vpack.c.b16 %v199, %v198
    %v247 = vpack.c.b16 %v201, %v200
    %v248 = vpack.c.b16 %v203, %v202
    %v249 = vpack.c.b16 %v205, %v204
    %v250 = vpack.c.b16 %v207, %v206
    %v251 = vpack.c.b16 %v209, %v208
    %v252 = vpack.c.b16 %v211, %v210
    %v253 = vpack.c.b16 %v213, %v212
    %v254 = vpack.c.b16 %v215, %v214
    %v255 = vpack.c.b16 %v217, %v216
    %v256 = vpack.c.b16 %v219, %v218
    %v257 = vpack.c.b16 %v221, %v220
    %v258 = vpack.c.b16 %v223, %v222
    %v259 = vpack.c.b16 %v225, %v224
    %v260 = vpack.c.b16 %v227, %v226
    %v261 = vpack.c.b16 %v229, %v228
    %v264 = vunpack.c.l.b16 %v93
    %v265 = vunpack.c.l.b16 %v94
    %v266 = vpack.c.b16 %v265, %v264
    %vm267 = vcmask 72704
    %v269 = vsel %vm267, %v230, 0
    %v272 = vsel %vm267, %v231, 0
    %v275 = vsel %vm267, %v232, 0
    %v278 = vsel %vm267, %v233, 0
    %v281 = vsel %vm267, %v234, 0
    %v284 = vsel %vm267, %v235, 0
    %v287 = vsel %vm267, %v236, 0
    %v290 = vsel %vm267, %v237, 0
    %v293 = vsel %vm267, %v238, 0
    %v296 = vsel %vm267, %v239, 0
    %v299 = vsel %vm267, %v240, 0
    %v302 = vsel %vm267, %v241, 0
    %v305 = vsel %vm267, %v242, 0
    %v308 = vsel %vm267, %v243, 0
    %v311 = vsel %vm267, %v244, 0
    %v314 = vsel %vm267, %v245, 0
    %v317 = vsel %vm267, %v246, 0
    %v320 = vsel %vm267, %v247, 0
    %v323 = vsel %vm267, %v248, 0
    %v326 = vsel %vm267, %v249, 0
    %v329 = vsel %vm267, %v250, 0
    %v332 = vsel %vm267, %v251, 0
    %v335 = vsel %vm267, %v252, 0
    %v338 = vsel %vm267, %v253, 0
    %v341 = vsel %vm267, %v254, 0
    %v344 = vsel %vm267, %v255, 0
    %v347 = vsel %vm267, %v256, 0
    %v350 = vsel %vm267, %v257, 0
    %v353 = vsel %vm267, %v258, 0
    %v356 = vsel %vm267, %v259, 0
    %v359 = vsel %vm267, %v260, 0
    %v362 = vsel %vm267, %v261, 0
    %vm364 = vcmask 1043456
    %vm365 = vcmask 1044480
    %v366 = vsel %vm364, 4294967295, 65535
    %v367 = vsel %vm365, %v366, 0
    %v369 = vand.u32 %v266, %v367
    %371 = vmatprep.subr.bf16.mxu0 0
    %372 = vmatpush1.bf16.msra.mxu0 %v369
    %373 = vmatprep.subr.bf16.mxu0 0
    %374 = vmatpush1.bf16.msra.mxu0 0
    %375 = vmatprep.subr.bf16.mxu0 0
    %376 = vmatpush1.bf16.msra.mxu0 0
    %377 = vmatprep.subr.bf16.mxu0 0
    %378 = vmatpush1.bf16.msra.mxu0 0
    %379 = vmatprep.subr.bf16.mxu0 0
    %380 = vmatpush1.bf16.msra.mxu0 0
    %381 = vmatprep.subr.bf16.mxu0 0
    %382 = vmatpush1.bf16.msra.mxu0 0
    %383 = vmatprep.subr.bf16.mxu0 0
    %384 = vmatpush1.bf16.msra.mxu0 0
    %385 = vmatprep.subr.bf16.mxu0 0
    %386 = vmatpush1.bf16.msra.mxu0 0
    %387 = vmatprep.subr.bf16.mxu0 0
    %388 = vmatpush1.bf16.msra.mxu0 0
    %389 = vmatprep.subr.bf16.mxu0 0
    %390 = vmatpush1.bf16.msra.mxu0 0
    %391 = vmatprep.subr.bf16.mxu0 0
    %392 = vmatpush1.bf16.msra.mxu0 0
    %393 = vmatprep.subr.bf16.mxu0 0
    %394 = vmatpush1.bf16.msra.mxu0 0
    %395 = vmatprep.subr.bf16.mxu0 0
    %396 = vmatpush1.bf16.msra.mxu0 0
    %397 = vmatprep.subr.bf16.mxu0 0
    %398 = vmatpush1.bf16.msra.mxu0 0
    %399 = vmatprep.subr.bf16.mxu0 0
    %400 = vmatpush1.bf16.msra.mxu0 0
    %401 = vmatprep.subr.bf16.mxu0 0
    %402 = vmatpush1.bf16.msra.mxu0 0
    %403 = vmatprep.mubr.bf16.mxu0 0
    %404 = vmatmul.mubr.bf16.gmra.mrb[0].mxu0 %v269
    %v405 = vpop.f32.mrb[0].mxu0
    %v406 = vadd.f32 %v100, %v405
    %v407 = vpop.f32.mrb[0].mxu0
    %v408 = vpop.f32.mrb[0].mxu0
    %v409 = vadd.f32 %v100, %v408
    %v410 = vpop.f32.mrb[0].mxu0
    %411 = vmatprep.mubr.bf16.mxu0 0
    %412 = vmatmul.mubr.bf16.gmra.mrb[0].mxu0 %v272
    %v413 = vpop.f32.mrb[0].mxu0
    %v414 = vadd.f32 %v100, %v413
    %v415 = vpop.f32.mrb[0].mxu0
    %v416 = vpop.f32.mrb[0].mxu0
    %v417 = vadd.f32 %v100, %v416
    %v418 = vpop.f32.mrb[0].mxu0
    %419 = vmatprep.mubr.bf16.mxu0 0
    %420 = vmatmul.mubr.bf16.gmra.mrb[0].mxu0 %v275
    %v421 = vpop.f32.mrb[0].mxu0
    %v422 = vadd.f32 %v100, %v421
    %v423 = vpop.f32.mrb[0].mxu0
    %v424 = vpop.f32.mrb[0].mxu0
    %v425 = vadd.f32 %v100, %v424
    %v426 = vpop.f32.mrb[0].mxu0
    %427 = vmatprep.mubr.bf16.mxu0 0
    %428 = vmatmul.mubr.bf16.gmra.mrb[0].mxu0 %v278
    %v429 = vpop.f32.mrb[0].mxu0
    %v430 = vadd.f32 %v100, %v429
    %v431 = vpop.f32.mrb[0].mxu0
    %v432 = vpop.f32.mrb[0].mxu0
    %v433 = vadd.f32 %v100, %v432
    %v434 = vpop.f32.mrb[0].mxu0
    %435 = vmatprep.mubr.bf16.mxu0 0
    %436 = vmatmul.mubr.bf16.gmra.mrb[0].mxu0 %v281
    %v437 = vpop.f32.mrb[0].mxu0
    %v438 = vadd.f32 %v100, %v437
    %v439 = vpop.f32.mrb[0].mxu0
    %v440 = vpop.f32.mrb[0].mxu0
    %v441 = vadd.f32 %v100, %v440
    %v442 = vpop.f32.mrb[0].mxu0
    %443 = vmatprep.mubr.bf16.mxu0 0
    %444 = vmatmul.mubr.bf16.gmra.mrb[0].mxu0 %v284
    %v445 = vpop.f32.mrb[0].mxu0
    %v446 = vadd.f32 %v100, %v445
    %v447 = vpop.f32.mrb[0].mxu0
    %v448 = vpop.f32.mrb[0].mxu0
    %v449 = vadd.f32 %v100, %v448
    %v450 = vpop.f32.mrb[0].mxu0
    %451 = vmatprep.mubr.bf16.mxu0 0
    %452 = vmatmul.mubr.bf16.gmra.mrb[0].mxu0 %v287
    %v453 = vpop.f32.mrb[0].mxu0
    %v454 = vadd.f32 %v100, %v453
    %v455 = vpop.f32.mrb[0].mxu0
    %v456 = vpop.f32.mrb[0].mxu0
    %v457 = vadd.f32 %v100, %v456
    %v458 = vpop.f32.mrb[0].mxu0
    %459 = vmatprep.mubr.bf16.mxu0 0
    %460 = vmatmul.mubr.bf16.gmra.mrb[0].mxu0 %v290
    %v461 = vpop.f32.mrb[0].mxu0
    %v462 = vadd.f32 %v100, %v461
    %v463 = vpop.f32.mrb[0].mxu0
    %v464 = vpop.f32.mrb[0].mxu0
    %v465 = vadd.f32 %v100, %v464
    %v466 = vpop.f32.mrb[0].mxu0
    %467 = vmatprep.mubr.bf16.mxu0 0
    %468 = vmatmul.mubr.bf16.gmra.mrb[0].mxu0 %v293
    %v469 = vpop.f32.mrb[0].mxu0
    %v470 = vadd.f32 %v100, %v469
    %v471 = vpop.f32.mrb[0].mxu0
    %v472 = vpop.f32.mrb[0].mxu0
    %v473 = vadd.f32 %v100, %v472
    %v474 = vpop.f32.mrb[0].mxu0
    %475 = vmatprep.mubr.bf16.mxu0 0
    %476 = vmatmul.mubr.bf16.gmra.mrb[0].mxu0 %v296
    %v477 = vpop.f32.mrb[0].mxu0
    %v478 = vadd.f32 %v100, %v477
    %v479 = vpop.f32.mrb[0].mxu0
    %v480 = vpop.f32.mrb[0].mxu0
    %v481 = vadd.f32 %v100, %v480
    %v482 = vpop.f32.mrb[0].mxu0
    %483 = vmatprep.mubr.bf16.mxu0 0
    %484 = vmatmul.mubr.bf16.gmra.mrb[0].mxu0 %v299
    %v485 = vpop.f32.mrb[0].mxu0
    %v486 = vadd.f32 %v100, %v485
    %v487 = vpop.f32.mrb[0].mxu0
    %v488 = vpop.f32.mrb[0].mxu0
    %v489 = vadd.f32 %v100, %v488
    %v490 = vpop.f32.mrb[0].mxu0
    %491 = vmatprep.mubr.bf16.mxu0 0
    %492 = vmatmul.mubr.bf16.gmra.mrb[0].mxu0 %v302
    %v493 = vpop.f32.mrb[0].mxu0
    %v494 = vadd.f32 %v100, %v493
    %v495 = vpop.f32.mrb[0].mxu0
    %v496 = vpop.f32.mrb[0].mxu0
    %v497 = vadd.f32 %v100, %v496
    %v498 = vpop.f32.mrb[0].mxu0
    %499 = vmatprep.mubr.bf16.mxu0 0
    %500 = vmatmul.mubr.bf16.gmra.mrb[0].mxu0 %v305
    %v501 = vpop.f32.mrb[0].mxu0
    %v502 = vadd.f32 %v100, %v501
    %v503 = vpop.f32.mrb[0].mxu0
    %v504 = vpop.f32.mrb[0].mxu0
    %v505 = vadd.f32 %v100, %v504
    %v506 = vpop.f32.mrb[0].mxu0
    %507 = vmatprep.mubr.bf16.mxu0 0
    %508 = vmatmul.mubr.bf16.gmra.mrb[0].mxu0 %v308
    %v509 = vpop.f32.mrb[0].mxu0
    %v510 = vadd.f32 %v100, %v509
    %v511 = vpop.f32.mrb[0].mxu0
    %v512 = vpop.f32.mrb[0].mxu0
    %v513 = vadd.f32 %v100, %v512
    %v514 = vpop.f32.mrb[0].mxu0
    %515 = vmatprep.mubr.bf16.mxu0 0
    %516 = vmatmul.mubr.bf16.gmra.mrb[0].mxu0 %v311
    %v517 = vpop.f32.mrb[0].mxu0
    %v518 = vadd.f32 %v100, %v517
    %v519 = vpop.f32.mrb[0].mxu0
    %v520 = vpop.f32.mrb[0].mxu0
    %v521 = vadd.f32 %v100, %v520
    %v522 = vpop.f32.mrb[0].mxu0
    %523 = vmatprep.mubr.bf16.mxu0 0
    %524 = vmatmul.mubr.bf16.gmra.mrb[0].mxu0 %v314
    %v525 = vpop.f32.mrb[0].mxu0
    %v526 = vadd.f32 %v100, %v525
    %v527 = vpop.f32.mrb[0].mxu0
    %v528 = vpop.f32.mrb[0].mxu0
    %v529 = vadd.f32 %v100, %v528
    %v530 = vpop.f32.mrb[0].mxu0
    %531 = vmatprep.mubr.bf16.mxu0 0
    %532 = vmatmul.mubr.bf16.gmra.mrb[0].mxu0 %v317
    %v533 = vpop.f32.mrb[0].mxu0
    %v534 = vadd.f32 %v100, %v533
    %v535 = vpop.f32.mrb[0].mxu0
    %v536 = vpop.f32.mrb[0].mxu0
    %v537 = vadd.f32 %v100, %v536
    %v538 = vpop.f32.mrb[0].mxu0
    %539 = vmatprep.mubr.bf16.mxu0 0
    %540 = vmatmul.mubr.bf16.gmra.mrb[0].mxu0 %v320
    %v541 = vpop.f32.mrb[0].mxu0
    %v542 = vadd.f32 %v100, %v541
    %v543 = vpop.f32.mrb[0].mxu0
    %v544 = vpop.f32.mrb[0].mxu0
    %v545 = vadd.f32 %v100, %v544
    %v546 = vpop.f32.mrb[0].mxu0
    %547 = vmatprep.mubr.bf16.mxu0 0
    %548 = vmatmul.mubr.bf16.gmra.mrb[0].mxu0 %v323
    %v549 = vpop.f32.mrb[0].mxu0
    %v550 = vadd.f32 %v100, %v549
    %v551 = vpop.f32.mrb[0].mxu0
    %v552 = vpop.f32.mrb[0].mxu0
    %v553 = vadd.f32 %v100, %v552
    %v554 = vpop.f32.mrb[0].mxu0
    %555 = vmatprep.mubr.bf16.mxu0 0
    %556 = vmatmul.mubr.bf16.gmra.mrb[0].mxu0 %v326
    %v557 = vpop.f32.mrb[0].mxu0
    %v558 = vadd.f32 %v100, %v557
    %v559 = vpop.f32.mrb[0].mxu0
    %v560 = vpop.f32.mrb[0].mxu0
    %v561 = vadd.f32 %v100, %v560
    %v562 = vpop.f32.mrb[0].mxu0
    %563 = vmatprep.mubr.bf16.mxu0 0
    %564 = vmatmul.mubr.bf16.gmra.mrb[0].mxu0 %v329
    %v565 = vpop.f32.mrb[0].mxu0
    %v566 = vadd.f32 %v100, %v565
    %v567 = vpop.f32.mrb[0].mxu0
    %v568 = vpop.f32.mrb[0].mxu0
    %v569 = vadd.f32 %v100, %v568
    %v570 = vpop.f32.mrb[0].mxu0
    %571 = vmatprep.mubr.bf16.mxu0 0
    %572 = vmatmul.mubr.bf16.gmra.mrb[0].mxu0 %v332
    %v573 = vpop.f32.mrb[0].mxu0
    %v574 = vadd.f32 %v100, %v573
    %v575 = vpop.f32.mrb[0].mxu0
    %v576 = vpop.f32.mrb[0].mxu0
    %v577 = vadd.f32 %v100, %v576
    %v578 = vpop.f32.mrb[0].mxu0
    %579 = vmatprep.mubr.bf16.mxu0 0
    %580 = vmatmul.mubr.bf16.gmra.mrb[0].mxu0 %v335
    %v581 = vpop.f32.mrb[0].mxu0
    %v582 = vadd.f32 %v100, %v581
    %v583 = vpop.f32.mrb[0].mxu0
    %v584 = vpop.f32.mrb[0].mxu0
    %v585 = vadd.f32 %v100, %v584
    %v586 = vpop.f32.mrb[0].mxu0
    %587 = vmatprep.mubr.bf16.mxu0 0
    %588 = vmatmul.mubr.bf16.gmra.mrb[0].mxu0 %v338
    %v589 = vpop.f32.mrb[0].mxu0
    %v590 = vadd.f32 %v100, %v589
    %v591 = vpop.f32.mrb[0].mxu0
    %v592 = vpop.f32.mrb[0].mxu0
    %v593 = vadd.f32 %v100, %v592
    %v594 = vpop.f32.mrb[0].mxu0
    %595 = vmatprep.mubr.bf16.mxu0 0
    %596 = vmatmul.mubr.bf16.gmra.mrb[0].mxu0 %v341
    %v597 = vpop.f32.mrb[0].mxu0
    %v598 = vadd.f32 %v100, %v597
    %v599 = vpop.f32.mrb[0].mxu0
    %v600 = vpop.f32.mrb[0].mxu0
    %v601 = vadd.f32 %v100, %v600
    %v602 = vpop.f32.mrb[0].mxu0
    %603 = vmatprep.mubr.bf16.mxu0 0
    %604 = vmatmul.mubr.bf16.gmra.mrb[0].mxu0 %v344
    %v605 = vpop.f32.mrb[0].mxu0
    %v606 = vadd.f32 %v100, %v605
    %v607 = vpop.f32.mrb[0].mxu0
    %v608 = vpop.f32.mrb[0].mxu0
    %v609 = vadd.f32 %v100, %v608
    %v610 = vpop.f32.mrb[0].mxu0
    %611 = vmatprep.mubr.bf16.mxu0 0
    %612 = vmatmul.mubr.bf16.gmra.mrb[0].mxu0 %v347
    %v613 = vpop.f32.mrb[0].mxu0
    %v614 = vadd.f32 %v100, %v613
    %v615 = vpop.f32.mrb[0].mxu0
    %v616 = vpop.f32.mrb[0].mxu0
    %v617 = vadd.f32 %v100, %v616
    %v618 = vpop.f32.mrb[0].mxu0
    %619 = vmatprep.mubr.bf16.mxu0 0
    %620 = vmatmul.mubr.bf16.gmra.mrb[0].mxu0 %v350
    %v621 = vpop.f32.mrb[0].mxu0
    %v622 = vadd.f32 %v100, %v621
    %v623 = vpop.f32.mrb[0].mxu0
    %v624 = vpop.f32.mrb[0].mxu0
    %v625 = vadd.f32 %v100, %v624
    %v626 = vpop.f32.mrb[0].mxu0
    %627 = vmatprep.mubr.bf16.mxu0 0
    %628 = vmatmul.mubr.bf16.gmra.mrb[0].mxu0 %v353
    %v629 = vpop.f32.mrb[0].mxu0
    %v630 = vadd.f32 %v100, %v629
    %v631 = vpop.f32.mrb[0].mxu0
    %v632 = vpop.f32.mrb[0].mxu0
    %v633 = vadd.f32 %v100, %v632
    %v634 = vpop.f32.mrb[0].mxu0
    %635 = vmatprep.mubr.bf16.mxu0 0
    %636 = vmatmul.mubr.bf16.gmra.mrb[0].mxu0 %v356
    %v637 = vpop.f32.mrb[0].mxu0
    %v638 = vadd.f32 %v100, %v637
    %v639 = vpop.f32.mrb[0].mxu0
    %v640 = vpop.f32.mrb[0].mxu0
    %v641 = vadd.f32 %v100, %v640
    %v642 = vpop.f32.mrb[0].mxu0
    %643 = vmatprep.mubr.bf16.mxu0 0
    %644 = vmatmul.mubr.bf16.gmra.mrb[0].mxu0 %v359
    %v645 = vpop.f32.mrb[0].mxu0
    %v646 = vadd.f32 %v100, %v645
    %v647 = vpop.f32.mrb[0].mxu0
    %v648 = vpop.f32.mrb[0].mxu0
    %v649 = vadd.f32 %v100, %v648
    %v650 = vpop.f32.mrb[0].mxu0
    %651 = vmatprep.mubr.bf16.mxu0 0
    %652 = vmatmul.mubr.bf16.gmra.mrb[0].mxu0 %v362
    %v653 = vpop.f32.mrb[0].mxu0
    %v654 = vadd.f32 %v100, %v653
    %v655 = vpop.f32.mrb[0].mxu0
    %v656 = vpop.f32.mrb[0].mxu0
    %v657 = vadd.f32 %v100, %v656
    %v658 = vpop.f32.mrb[0].mxu0
    %659 = vdwg.mxu0
    %vm660 = vcmp.ge.f32.partialorder %v406, 0.0
    %vm661 = vcmp.ge.f32.partialorder %v409, 0.0
    %vm662 = vcmp.ge.f32.partialorder %v414, 0.0
    %vm663 = vcmp.ge.f32.partialorder %v417, 0.0
    %vm664 = vcmp.ge.f32.partialorder %v422, 0.0
    %vm665 = vcmp.ge.f32.partialorder %v425, 0.0
    %vm666 = vcmp.ge.f32.partialorder %v430, 0.0
    %vm667 = vcmp.ge.f32.partialorder %v433, 0.0
    %vm668 = vcmp.ge.f32.partialorder %v438, 0.0
    %vm669 = vcmp.ge.f32.partialorder %v441, 0.0
    %vm670 = vcmp.ge.f32.partialorder %v446, 0.0
    %vm671 = vcmp.ge.f32.partialorder %v449, 0.0
    %vm672 = vcmp.ge.f32.partialorder %v454, 0.0
    %vm673 = vcmp.ge.f32.partialorder %v457, 0.0
    %vm674 = vcmp.ge.f32.partialorder %v462, 0.0
    %vm675 = vcmp.ge.f32.partialorder %v465, 0.0
    %vm676 = vcmp.ge.f32.partialorder %v470, 0.0
    %vm677 = vcmp.ge.f32.partialorder %v473, 0.0
    %vm678 = vcmp.ge.f32.partialorder %v478, 0.0
    %vm679 = vcmp.ge.f32.partialorder %v481, 0.0
    %vm680 = vcmp.ge.f32.partialorder %v486, 0.0
    %vm681 = vcmp.ge.f32.partialorder %v489, 0.0
    %vm682 = vcmp.ge.f32.partialorder %v494, 0.0
    %vm683 = vcmp.ge.f32.partialorder %v497, 0.0
    %vm684 = vcmp.ge.f32.partialorder %v502, 0.0
    %vm685 = vcmp.ge.f32.partialorder %v505, 0.0
    %vm686 = vcmp.ge.f32.partialorder %v510, 0.0
    %vm687 = vcmp.ge.f32.partialorder %v513, 0.0
    %vm688 = vcmp.ge.f32.partialorder %v518, 0.0
    %vm689 = vcmp.ge.f32.partialorder %v521, 0.0
    %vm690 = vcmp.ge.f32.partialorder %v526, 0.0
    %vm691 = vcmp.ge.f32.partialorder %v529, 0.0
    %vm692 = vcmp.ge.f32.partialorder %v534, 0.0
    %vm693 = vcmp.ge.f32.partialorder %v537, 0.0
    %vm694 = vcmp.ge.f32.partialorder %v542, 0.0
    %vm695 = vcmp.ge.f32.partialorder %v545, 0.0
    %vm696 = vcmp.ge.f32.partialorder %v550, 0.0
    %vm697 = vcmp.ge.f32.partialorder %v553, 0.0
    %vm698 = vcmp.ge.f32.partialorder %v558, 0.0
    %vm699 = vcmp.ge.f32.partialorder %v561, 0.0
    %vm700 = vcmp.ge.f32.partialorder %v566, 0.0
    %vm701 = vcmp.ge.f32.partialorder %v569, 0.0
    %vm702 = vcmp.ge.f32.partialorder %v574, 0.0
    %vm703 = vcmp.ge.f32.partialorder %v577, 0.0
    %vm704 = vcmp.ge.f32.partialorder %v582, 0.0
    %vm705 = vcmp.ge.f32.partialorder %v585, 0.0
    %vm706 = vcmp.ge.f32.partialorder %v590, 0.0
    %vm707 = vcmp.ge.f32.partialorder %v593, 0.0
    %vm708 = vcmp.ge.f32.partialorder %v598, 0.0
    %vm709 = vcmp.ge.f32.partialorder %v601, 0.0
    %vm710 = vcmp.ge.f32.partialorder %v606, 0.0
    %vm711 = vcmp.ge.f32.partialorder %v609, 0.0
    %vm712 = vcmp.ge.f32.partialorder %v614, 0.0
    %vm713 = vcmp.ge.f32.partialorder %v617, 0.0
    %vm714 = vcmp.ge.f32.partialorder %v622, 0.0
    %vm715 = vcmp.ge.f32.partialorder %v625, 0.0
    %vm716 = vcmp.ge.f32.partialorder %v630, 0.0
    %vm717 = vcmp.ge.f32.partialorder %v633, 0.0
    %vm718 = vcmp.ge.f32.partialorder %v638, 0.0
    %vm719 = vcmp.ge.f32.partialorder %v641, 0.0
    %vm720 = vcmp.ge.f32.partialorder %v646, 0.0
    %vm721 = vcmp.ge.f32.partialorder %v649, 0.0
    %vm722 = vcmp.ge.f32.partialorder %v654, 0.0
    %vm723 = vcmp.ge.f32.partialorder %v657, 0.0
    %v724 = vmul.f32 %v406, 0.2
    %v725 = vmul.f32 %v409, 0.2
    %v726 = vmul.f32 %v414, 0.2
    %v727 = vmul.f32 %v417, 0.2
    %v728 = vmul.f32 %v422, 0.2
    %v729 = vmul.f32 %v425, 0.2
    %v730 = vmul.f32 %v430, 0.2
    %v731 = vmul.f32 %v433, 0.2
    %v732 = vmul.f32 %v438, 0.2
    %v733 = vmul.f32 %v441, 0.2
    %v734 = vmul.f32 %v446, 0.2
    %v735 = vmul.f32 %v449, 0.2
    %v736 = vmul.f32 %v454, 0.2
    %v737 = vmul.f32 %v457, 0.2
    %v738 = vmul.f32 %v462, 0.2
    %v739 = vmul.f32 %v465, 0.2
    %v740 = vmul.f32 %v470, 0.2
    %v741 = vmul.f32 %v473, 0.2
    %v742 = vmul.f32 %v478, 0.2
    %v743 = vmul.f32 %v481, 0.2
    %v744 = vmul.f32 %v486, 0.2
    %v745 = vmul.f32 %v489, 0.2
    %v746 = vmul.f32 %v494, 0.2
    %v747 = vmul.f32 %v497, 0.2
    %v748 = vmul.f32 %v502, 0.2
    %v749 = vmul.f32 %v505, 0.2
    %v750 = vmul.f32 %v510, 0.2
    %v751 = vmul.f32 %v513, 0.2
    %v752 = vmul.f32 %v518, 0.2
    %v753 = vmul.f32 %v521, 0.2
    %v754 = vmul.f32 %v526, 0.2
    %v755 = vmul.f32 %v529, 0.2
    %v756 = vmul.f32 %v534, 0.2
    %v757 = vmul.f32 %v537, 0.2
    %v758 = vmul.f32 %v542, 0.2
    %v759 = vmul.f32 %v545, 0.2
    %v760 = vmul.f32 %v550, 0.2
    %v761 = vmul.f32 %v553, 0.2
    %v762 = vmul.f32 %v558, 0.2
    %v763 = vmul.f32 %v561, 0.2
    %v764 = vmul.f32 %v566, 0.2
    %v765 = vmul.f32 %v569, 0.2
    %v766 = vmul.f32 %v574, 0.2
    %v767 = vmul.f32 %v577, 0.2
    %v768 = vmul.f32 %v582, 0.2
    %v769 = vmul.f32 %v585, 0.2
    %v770 = vmul.f32 %v590, 0.2
    %v771 = vmul.f32 %v593, 0.2
    %v772 = vmul.f32 %v598, 0.2
    %v773 = vmul.f32 %v601, 0.2
    %v774 = vmul.f32 %v606, 0.2
    %v775 = vmul.f32 %v609, 0.2
    %v776 = vmul.f32 %v614, 0.2
    %v777 = vmul.f32 %v617, 0.2
    %v778 = vmul.f32 %v622, 0.2
    %v779 = vmul.f32 %v625, 0.2
    %v780 = vmul.f32 %v630, 0.2
    %v781 = vmul.f32 %v633, 0.2
    %v782 = vmul.f32 %v638, 0.2
    %v783 = vmul.f32 %v641, 0.2
    %v784 = vmul.f32 %v646, 0.2
    %v785 = vmul.f32 %v649, 0.2
    %v786 = vmul.f32 %v654, 0.2
    %v787 = vmul.f32 %v657, 0.2
    %v788 = vsel %vm660, %v406, %v724
    %v789 = vsel %vm661, %v409, %v725
    %v790 = vsel %vm662, %v414, %v726
    %v791 = vsel %vm663, %v417, %v727
    %v792 = vsel %vm664, %v422, %v728
    %v793 = vsel %vm665, %v425, %v729
    %v794 = vsel %vm666, %v430, %v730
    %v795 = vsel %vm667, %v433, %v731
    %v796 = vsel %vm668, %v438, %v732
    %v797 = vsel %vm669, %v441, %v733
    %v798 = vsel %vm670, %v446, %v734
    %v799 = vsel %vm671, %v449, %v735
    %v800 = vsel %vm672, %v454, %v736
    %v801 = vsel %vm673, %v457, %v737
    %v802 = vsel %vm674, %v462, %v738
    %v803 = vsel %vm675, %v465, %v739
    %v804 = vsel %vm676, %v470, %v740
    %v805 = vsel %vm677, %v473, %v741
    %v806 = vsel %vm678, %v478, %v742
    %v807 = vsel %vm679, %v481, %v743
    %v808 = vsel %vm680, %v486, %v744
    %v809 = vsel %vm681, %v489, %v745
    %v810 = vsel %vm682, %v494, %v746
    %v811 = vsel %vm683, %v497, %v747
    %v812 = vsel %vm684, %v502, %v748
    %v813 = vsel %vm685, %v505, %v749
    %v814 = vsel %vm686, %v510, %v750
    %v815 = vsel %vm687, %v513, %v751
    %v816 = vsel %vm688, %v518, %v752
    %v817 = vsel %vm689, %v521, %v753
    %v818 = vsel %vm690, %v526, %v754
    %v819 = vsel %vm691, %v529, %v755
    %v820 = vsel %vm692, %v534, %v756
    %v821 = vsel %vm693, %v537, %v757
    %v822 = vsel %vm694, %v542, %v758
    %v823 = vsel %vm695, %v545, %v759
    %v824 = vsel %vm696, %v550, %v760
    %v825 = vsel %vm697, %v553, %v761
    %v826 = vsel %vm698, %v558, %v762
    %v827 = vsel %vm699, %v561, %v763
    %v828 = vsel %vm700, %v566, %v764
    %v829 = vsel %vm701, %v569, %v765
    %v830 = vsel %vm702, %v574, %v766
    %v831 = vsel %vm703, %v577, %v767
    %v832 = vsel %vm704, %v582, %v768
    %v833 = vsel %vm705, %v585, %v769
    %v834 = vsel %vm706, %v590, %v770
    %v835 = vsel %vm707, %v593, %v771
    %v836 = vsel %vm708, %v598, %v772
    %v837 = vsel %vm709, %v601, %v773
    %v838 = vsel %vm710, %v606, %v774
    %v839 = vsel %vm711, %v609, %v775
    %v840 = vsel %vm712, %v614, %v776
    %v841 = vsel %vm713, %v617, %v777
    %v842 = vsel %vm714, %v622, %v778
    %v843 = vsel %vm715, %v625, %v779
    %v844 = vsel %vm716, %v630, %v780
    %v845 = vsel %vm717, %v633, %v781
    %v846 = vsel %vm718, %v638, %v782
    %v847 = vsel %vm719, %v641, %v783
    %v848 = vsel %vm720, %v646, %v784
    %v849 = vsel %vm721, %v649, %v785
    %v850 = vsel %vm722, %v654, %v786
    %v851 = vsel %vm723, %v657, %v787
    %v852 = vpack.c.bf16 %v789, %v788
    %v853 = vpack.c.bf16 %v791, %v790
    %v854 = vpack.c.bf16 %v793, %v792
    %v855 = vpack.c.bf16 %v795, %v794
    %v856 = vpack.c.bf16 %v797, %v796
    %v857 = vpack.c.bf16 %v799, %v798
    %v858 = vpack.c.bf16 %v801, %v800
    %v859 = vpack.c.bf16 %v803, %v802
    %v860 = vpack.c.bf16 %v805, %v804
    %v861 = vpack.c.bf16 %v807, %v806
    %v862 = vpack.c.bf16 %v809, %v808
    %v863 = vpack.c.bf16 %v811, %v810
    %v864 = vpack.c.bf16 %v813, %v812
    %v865 = vpack.c.bf16 %v815, %v814
    %v866 = vpack.c.bf16 %v817, %v816
    %v867 = vpack.c.bf16 %v819, %v818
    %v868 = vpack.c.bf16 %v821, %v820
    %v869 = vpack.c.bf16 %v823, %v822
    %v870 = vpack.c.bf16 %v825, %v824
    %v871 = vpack.c.bf16 %v827, %v826
    %v872 = vpack.c.bf16 %v829, %v828
    %v873 = vpack.c.bf16 %v831, %v830
    %v874 = vpack.c.bf16 %v833, %v832
    %v875 = vpack.c.bf16 %v835, %v834
    %v876 = vpack.c.bf16 %v837, %v836
    %v877 = vpack.c.bf16 %v839, %v838
    %v878 = vpack.c.bf16 %v841, %v840
    %v879 = vpack.c.bf16 %v843, %v842
    %v880 = vpack.c.bf16 %v845, %v844
    %v881 = vpack.c.bf16 %v847, %v846
    %v882 = vpack.c.bf16 %v849, %v848
    %v883 = vpack.c.bf16 %v851, %v850
    %v916 = vunpack.c.l.b16 %v852
    %v917 = vunpack.c.h.b16 %v852
    %v918 = vunpack.c.l.b16 %v853
    %v919 = vunpack.c.h.b16 %v853
    %v920 = vunpack.c.l.b16 %v854
    %v921 = vunpack.c.h.b16 %v854
    %v922 = vunpack.c.l.b16 %v855
    %v923 = vunpack.c.h.b16 %v855
    %v924 = vunpack.c.l.b16 %v856
    %v925 = vunpack.c.h.b16 %v856
    %v926 = vunpack.c.l.b16 %v857
    %v927 = vunpack.c.h.b16 %v857
    %v928 = vunpack.c.l.b16 %v858
    %v929 = vunpack.c.h.b16 %v858
    %v930 = vunpack.c.l.b16 %v859
    %v931 = vunpack.c.h.b16 %v859
    %v932 = vunpack.c.l.b16 %v860
    %v933 = vunpack.c.h.b16 %v860
    %v934 = vunpack.c.l.b16 %v861
    %v935 = vunpack.c.h.b16 %v861
    %v936 = vunpack.c.l.b16 %v862
    %v937 = vunpack.c.h.b16 %v862
    %v938 = vunpack.c.l.b16 %v863
    %v939 = vunpack.c.h.b16 %v863
    %v940 = vunpack.c.l.b16 %v864
    %v941 = vunpack.c.h.b16 %v864
    %v942 = vunpack.c.l.b16 %v865
    %v943 = vunpack.c.h.b16 %v865
    %v944 = vunpack.c.l.b16 %v866
    %v945 = vunpack.c.h.b16 %v866
    %v946 = vunpack.c.l.b16 %v867
    %v947 = vunpack.c.h.b16 %v867
    %v948 = vunpack.c.l.b16 %v868
    %v949 = vunpack.c.h.b16 %v868
    %v950 = vunpack.c.l.b16 %v869
    %v951 = vunpack.c.h.b16 %v869
    %v952 = vunpack.c.l.b16 %v870
    %v953 = vunpack.c.h.b16 %v870
    %v954 = vunpack.c.l.b16 %v871
    %v955 = vunpack.c.h.b16 %v871
    %v956 = vunpack.c.l.b16 %v872
    %v957 = vunpack.c.h.b16 %v872
    %v958 = vunpack.c.l.b16 %v873
    %v959 = vunpack.c.h.b16 %v873
    %v960 = vunpack.c.l.b16 %v874
    %v961 = vunpack.c.h.b16 %v874
    %v962 = vunpack.c.l.b16 %v875
    %v963 = vunpack.c.h.b16 %v875
    %v964 = vunpack.c.l.b16 %v876
    %v965 = vunpack.c.h.b16 %v876
    %v966 = vunpack.c.l.b16 %v877
    %v967 = vunpack.c.h.b16 %v877
    %v968 = vunpack.c.l.b16 %v878
    %v969 = vunpack.c.h.b16 %v878
    %v970 = vunpack.c.l.b16 %v879
    %v971 = vunpack.c.h.b16 %v879
    %v972 = vunpack.c.l.b16 %v880
    %v973 = vunpack.c.h.b16 %v880
    %v974 = vunpack.c.l.b16 %v881
    %v975 = vunpack.c.h.b16 %v881
    %v976 = vunpack.c.l.b16 %v882
    %v977 = vunpack.c.h.b16 %v882
    %v978 = vunpack.c.l.b16 %v883
    %v979 = vunpack.c.h.b16 %v883
    %v980 = vpack.c.b16 %v916, %v916
    %v981 = vpack.c.b16 %v917, %v917
    %v982 = vpack.c.b16 %v918, %v918
    %v983 = vpack.c.b16 %v919, %v919
    %v984 = vpack.c.b16 %v920, %v920
    %v985 = vpack.c.b16 %v921, %v921
    %v986 = vpack.c.b16 %v922, %v922
    %v987 = vpack.c.b16 %v923, %v923
    %v988 = vpack.c.b16 %v924, %v924
    %v989 = vpack.c.b16 %v925, %v925
    %v990 = vpack.c.b16 %v926, %v926
    %v991 = vpack.c.b16 %v927, %v927
    %v992 = vpack.c.b16 %v928, %v928
    %v993 = vpack.c.b16 %v929, %v929
    %v994 = vpack.c.b16 %v930, %v930
    %v995 = vpack.c.b16 %v931, %v931
    %v996 = vpack.c.b16 %v932, %v932
    %v997 = vpack.c.b16 %v933, %v933
    %v998 = vpack.c.b16 %v934, %v934
    %v999 = vpack.c.b16 %v935, %v935
    %v1000 = vpack.c.b16 %v936, %v936
    %v1001 = vpack.c.b16 %v937, %v937
    %v1002 = vpack.c.b16 %v938, %v938
    %v1003 = vpack.c.b16 %v939, %v939
    %v1004 = vpack.c.b16 %v940, %v940
    %v1005 = vpack.c.b16 %v941, %v941
    %v1006 = vpack.c.b16 %v942, %v942
    %v1007 = vpack.c.b16 %v943, %v943
    %v1008 = vpack.c.b16 %v944, %v944
    %v1009 = vpack.c.b16 %v945, %v945
    %v1010 = vpack.c.b16 %v946, %v946
    %v1011 = vpack.c.b16 %v947, %v947
    %v1012 = vpack.c.b16 %v948, %v948
    %v1013 = vpack.c.b16 %v949, %v949
    %v1014 = vpack.c.b16 %v950, %v950
    %v1015 = vpack.c.b16 %v951, %v951
    %v1016 = vpack.c.b16 %v952, %v952
    %v1017 = vpack.c.b16 %v953, %v953
    %v1018 = vpack.c.b16 %v954, %v954
    %v1019 = vpack.c.b16 %v955, %v955
    %v1020 = vpack.c.b16 %v956, %v956
    %v1021 = vpack.c.b16 %v957, %v957
    %v1022 = vpack.c.b16 %v958, %v958
    %v1023 = vpack.c.b16 %v959, %v959
    %v1024 = vpack.c.b16 %v960, %v960
    %v1025 = vpack.c.b16 %v961, %v961
    %v1026 = vpack.c.b16 %v962, %v962
    %v1027 = vpack.c.b16 %v963, %v963
    %v1028 = vpack.c.b16 %v964, %v964
    %v1029 = vpack.c.b16 %v965, %v965
    %v1030 = vpack.c.b16 %v966, %v966
    %v1031 = vpack.c.b16 %v967, %v967
    %v1032 = vpack.c.b16 %v968, %v968
    %v1033 = vpack.c.b16 %v969, %v969
    %v1034 = vpack.c.b16 %v970, %v970
    %v1035 = vpack.c.b16 %v971, %v971
    %v1036 = vpack.c.b16 %v972, %v972
    %v1037 = vpack.c.b16 %v973, %v973
    %v1038 = vpack.c.b16 %v974, %v974
    %v1039 = vpack.c.b16 %v975, %v975
    %v1040 = vpack.c.b16 %v976, %v976
    %v1041 = vpack.c.b16 %v977, %v977
    %v1042 = vpack.c.b16 %v978, %v978
    %v1043 = vpack.c.b16 %v979, %v979
    %vm1108 = vcmask 519168
    %1109 = vst.msk [vmem:[%s3] sm:$0xf] %vm1108, %v980
    %1110 = vst.msk [vmem:[%s3 + $0x4] sm:$0xf] %vm1108, %v981
    %1111 = vst.msk [vmem:[%s3 + $0x8] sm:$0xf] %vm1108, %v982
    %1112 = vst.msk [vmem:[%s3 + $0xc] sm:$0xf] %vm1108, %v983
    %1113 = vst.msk [vmem:[%s3 + $0x10] sm:$0xf] %vm1108, %v984
    %1114 = vst.msk [vmem:[%s3 + $0x14] sm:$0xf] %vm1108, %v985
    %1115 = vst.msk [vmem:[%s3 + $0x18] sm:$0xf] %vm1108, %v986
    %1116 = vst.msk [vmem:[%s3 + $0x1c] sm:$0xf] %vm1108, %v987
    %1117 = vst.msk [vmem:[%s3 + $0x20] sm:$0xf] %vm1108, %v988
    %1118 = vst.msk [vmem:[%s3 + $0x24] sm:$0xf] %vm1108, %v989
    %1119 = vst.msk [vmem:[%s3 + $0x28] sm:$0xf] %vm1108, %v990
    %1120 = vst.msk [vmem:[%s3 + $0x2c] sm:$0xf] %vm1108, %v991
    %1121 = vst.msk [vmem:[%s3 + $0x30] sm:$0xf] %vm1108, %v992
    %1122 = vst.msk [vmem:[%s3 + $0x34] sm:$0xf] %vm1108, %v993
    %1123 = vst.msk [vmem:[%s3 + $0x38] sm:$0xf] %vm1108, %v994
    %1124 = vst.msk [vmem:[%s3 + $0x3c] sm:$0xf] %vm1108, %v995
    %1125 = vst.msk [vmem:[%s3 + $0x40] sm:$0xf] %vm1108, %v996
    %1126 = vst.msk [vmem:[%s3 + $0x44] sm:$0xf] %vm1108, %v997
    %1127 = vst.msk [vmem:[%s3 + $0x48] sm:$0xf] %vm1108, %v998
    %1128 = vst.msk [vmem:[%s3 + $0x4c] sm:$0xf] %vm1108, %v999
    %1129 = vst.msk [vmem:[%s3 + $0x50] sm:$0xf] %vm1108, %v1000
    %1130 = vst.msk [vmem:[%s3 + $0x54] sm:$0xf] %vm1108, %v1001
    %1131 = vst.msk [vmem:[%s3 + $0x58] sm:$0xf] %vm1108, %v1002
    %1132 = vst.msk [vmem:[%s3 + $0x5c] sm:$0xf] %vm1108, %v1003
    %1133 = vst.msk [vmem:[%s3 + $0x60] sm:$0xf] %vm1108, %v1004
    %1134 = vst.msk [vmem:[%s3 + $0x64] sm:$0xf] %vm1108, %v1005
    %1135 = vst.msk [vmem:[%s3 + $0x68] sm:$0xf] %vm1108, %v1006
    %1136 = vst.msk [vmem:[%s3 + $0x6c] sm:$0xf] %vm1108, %v1007
    %1137 = vst.msk [vmem:[%s3 + $0x70] sm:$0xf] %vm1108, %v1008
    %1138 = vst.msk [vmem:[%s3 + $0x74] sm:$0xf] %vm1108, %v1009
    %1139 = vst.msk [vmem:[%s3 + $0x78] sm:$0xf] %vm1108, %v1010
    %1140 = vst.msk [vmem:[%s3 + $0x7c] sm:$0xf] %vm1108, %v1011
    %1141 = vst.msk [vmem:[%s3 + $0x80] sm:$0xf] %vm1108, %v1012
    %1142 = vst.msk [vmem:[%s3 + $0x84] sm:$0xf] %vm1108, %v1013
    %1143 = vst.msk [vmem:[%s3 + $0x88] sm:$0xf] %vm1108, %v1014
    %1144 = vst.msk [vmem:[%s3 + $0x8c] sm:$0xf] %vm1108, %v1015
    %1145 = vst.msk [vmem:[%s3 + $0x90] sm:$0xf] %vm1108, %v1016
    %1146 = vst.msk [vmem:[%s3 + $0x94] sm:$0xf] %vm1108, %v1017
    %1147 = vst.msk [vmem:[%s3 + $0x98] sm:$0xf] %vm1108, %v1018
    %1148 = vst.msk [vmem:[%s3 + $0x9c] sm:$0xf] %vm1108, %v1019
    %1149 = vst.msk [vmem:[%s3 + $0xa0] sm:$0xf] %vm1108, %v1020
    %1150 = vst.msk [vmem:[%s3 + $0xa4] sm:$0xf] %vm1108, %v1021
    %1151 = vst.msk [vmem:[%s3 + $0xa8] sm:$0xf] %vm1108, %v1022
    %1152 = vst.msk [vmem:[%s3 + $0xac] sm:$0xf] %vm1108, %v1023
    %1153 = vst.msk [vmem:[%s3 + $0xb0] sm:$0xf] %vm1108, %v1024
    %1154 = vst.msk [vmem:[%s3 + $0xb4] sm:$0xf] %vm1108, %v1025
    %1155 = vst.msk [vmem:[%s3 + $0xb8] sm:$0xf] %vm1108, %v1026
    %1156 = vst.msk [vmem:[%s3 + $0xbc] sm:$0xf] %vm1108, %v1027
    %1157 = vst.msk [vmem:[%s3 + $0xc0] sm:$0xf] %vm1108, %v1028
    %1158 = vst.msk [vmem:[%s3 + $0xc4] sm:$0xf] %vm1108, %v1029
    %1159 = vst.msk [vmem:[%s3 + $0xc8] sm:$0xf] %vm1108, %v1030
    %1160 = vst.msk [vmem:[%s3 + $0xcc] sm:$0xf] %vm1108, %v1031
    %1161 = vst.msk [vmem:[%s3 + $0xd0] sm:$0xf] %vm1108, %v1032
    %1162 = vst.msk [vmem:[%s3 + $0xd4] sm:$0xf] %vm1108, %v1033
    %1163 = vst.msk [vmem:[%s3 + $0xd8] sm:$0xf] %vm1108, %v1034
    %1164 = vst.msk [vmem:[%s3 + $0xdc] sm:$0xf] %vm1108, %v1035
    %1165 = vst.msk [vmem:[%s3 + $0xe0] sm:$0xf] %vm1108, %v1036
    %1166 = vst.msk [vmem:[%s3 + $0xe4] sm:$0xf] %vm1108, %v1037
    %1167 = vst.msk [vmem:[%s3 + $0xe8] sm:$0xf] %vm1108, %v1038
    %1168 = vst.msk [vmem:[%s3 + $0xec] sm:$0xf] %vm1108, %v1039
    %1169 = vst.msk [vmem:[%s3 + $0xf0] sm:$0xf] %vm1108, %v1040
    %1170 = vst.msk [vmem:[%s3 + $0xf4] sm:$0xf] %vm1108, %v1041
    %1171 = vst.msk [vmem:[%s3 + $0xf8] sm:$0xf] %vm1108, %v1042
    %1172 = vst.msk [vmem:[%s3 + $0xfc] sm:$0xf] %vm1108, %v1043
    // Predicated region
    $region18: #{discriminator_forward.5} parent=1 // pred_check
      _
    $region19: #{discriminator_forward.5} parent=1 // pred_check_branch
      %1174 = sbr.rel (0) target = $region21
    $region20: #{discriminator_forward.5} parent=1 // pred_region
      _
    $region21: #{discriminator_forward.5} parent=1 // pred_fallthru
      _
    // Predicated region
    $region22: #{discriminator_forward.5} parent=1 // pred_check
      _
    $region23: #{discriminator_forward.5} parent=1 // pred_check_branch
      %1176 = sbr.rel (0) target = $region25
    $region24: #{discriminator_forward.5} parent=1 // pred_region
      _
    $region25: #{discriminator_forward.5} parent=1 // pred_fallthru
      _
    %1177 = vsyncpa [#allocation3], 1

// kernel: discriminator_forward.6
$region0: #{discriminator_forward.6}
  #allocation0 [shape = 'u32[]', space=smem, size = 0x4, offset = 0x4, fixed_abs, tag = 'smem constant byte address 0x4 - core index']
  #allocation1 [shape = 'u32[144,128]{1,0:T(1,128)}', space=vmem, size = 0x12000, scoped, tag = 'internal scratch']
  %s0 = inlined_call_operand.vmem [shape: bf16[128,576], index: 0, kind: input, shape index: {}]
  %s1 = inlined_call_operand.vmem [shape: bf16[576,128], index: 1, kind: input, shape index: {}]
  %s2 = inlined_call_operand.vmem [shape: f32[1,128], index: 2, kind: input, shape index: {}]
  %s3 = inlined_call_operand.vmem [shape: bf16[128,128], index: 3, kind: output, shape index: {}]
  %s4 = sld [smem:[#allocation0]]
  $region22: #{discriminator_forward.6} parent=0
    _
  %s6 = ssub.s32 1, %s4
  %s7 = scalar_select 0, %s6, %s4
  // Predicated region
  $region2: #{discriminator_forward.6} parent=0 // pred_check
    _
  $region3: #{discriminator_forward.6} parent=0 // pred_check_branch
    %9 = sbr.rel (0) target = $region5
  $region4: #{discriminator_forward.6} parent=0 // pred_region
    _
  $region5: #{discriminator_forward.6} parent=0 // pred_fallthru
    _
  // Predicated region
  $region6: #{discriminator_forward.6} parent=0 // pred_check
    _
  $region7: #{discriminator_forward.6} parent=0 // pred_check_branch
    %11 = sbr.rel (0) target = $region9
  $region8: #{discriminator_forward.6} parent=0 // pred_region
    _
  $region9: #{discriminator_forward.6} parent=0 // pred_fallthru
    _
  // Predicated region
  $region10: #{discriminator_forward.6} parent=0 // pred_check
    _
  $region11: #{discriminator_forward.6} parent=0 // pred_check_branch
    %13 = sbr.rel (0) target = $region13
  $region12: #{discriminator_forward.6} parent=0 // pred_region
    _
  $region13: #{discriminator_forward.6} parent=0 // pred_fallthru
    _
  %v15 = vld [vmem:[%s0] sm:$0xff]
  %v16 = vld [vmem:[%s0 + $0x8] sm:$0xff]
  %v17 = vld [vmem:[%s0 + $0x10] sm:$0xf]
  %v18 = vld [vmem:[%s0 + $0x14] sm:$0xff]
  %v19 = vld [vmem:[%s0 + $0x1c] sm:$0xff]
  %v20 = vld [vmem:[%s0 + $0x24] sm:$0xf]
  %v21 = vld [vmem:[%s0 + $0x28] sm:$0xff]
  %v22 = vld [vmem:[%s0 + $0x30] sm:$0xff]
  %v23 = vld [vmem:[%s0 + $0x38] sm:$0xf]
  %v24 = vld [vmem:[%s0 + $0x3c] sm:$0xff]
  %v25 = vld [vmem:[%s0 + $0x44] sm:$0xff]
  %v26 = vld [vmem:[%s0 + $0x4c] sm:$0xf]
  %v27 = vld [vmem:[%s0 + $0x50] sm:$0xff]
  %v28 = vld [vmem:[%s0 + $0x58] sm:$0xff]
  %v29 = vld [vmem:[%s0 + $0x60] sm:$0xf]
  %v30 = vld [vmem:[%s0 + $0x64] sm:$0xff]
  %v31 = vld [vmem:[%s0 + $0x6c] sm:$0xff]
  %v32 = vld [vmem:[%s0 + $0x74] sm:$0xf]
  %v33 = vld [vmem:[%s0 + $0x78] sm:$0xff]
  %v34 = vld [vmem:[%s0 + $0x80] sm:$0xff]
  %v35 = vld [vmem:[%s0 + $0x88] sm:$0xf]
  %v36 = vld [vmem:[%s0 + $0x8c] sm:$0xff]
  %v37 = vld [vmem:[%s0 + $0x94] sm:$0xff]
  %v38 = vld [vmem:[%s0 + $0x9c] sm:$0xf]
  %v39 = vld [vmem:[%s0 + $0xa0] sm:$0xff]
  %v40 = vld [vmem:[%s0 + $0xa8] sm:$0xff]
  %v41 = vld [vmem:[%s0 + $0xb0] sm:$0xf]
  %v42 = vld [vmem:[%s0 + $0xb4] sm:$0xff]
  %v43 = vld [vmem:[%s0 + $0xbc] sm:$0xff]
  %v44 = vld [vmem:[%s0 + $0xc4] sm:$0xf]
  %v45 = vld [vmem:[%s0 + $0xc8] sm:$0xff]
  %v46 = vld [vmem:[%s0 + $0xd0] sm:$0xff]
  %v47 = vld [vmem:[%s0 + $0xd8] sm:$0xf]
  %v48 = vld [vmem:[%s0 + $0xdc] sm:$0xff]
  %v49 = vld [vmem:[%s0 + $0xe4] sm:$0xff]
  %v50 = vld [vmem:[%s0 + $0xec] sm:$0xf]
  %v51 = vld [vmem:[%s0 + $0xf0] sm:$0xff]
  %v52 = vld [vmem:[%s0 + $0xf8] sm:$0xff]
  %v53 = vld [vmem:[%s0 + $0x100] sm:$0xf]
  %v54 = vld [vmem:[%s0 + $0x104] sm:$0xff]
  %v55 = vld [vmem:[%s0 + $0x10c] sm:$0xff]
  %v56 = vld [vmem:[%s0 + $0x114] sm:$0xf]
  %v57 = vld [vmem:[%s0 + $0x118] sm:$0xff]
  %v58 = vld [vmem:[%s0 + $0x120] sm:$0xff]
  %v59 = vld [vmem:[%s0 + $0x128] sm:$0xf]
  %v60 = vld [vmem:[%s0 + $0x12c] sm:$0xff]
  %v61 = vld [vmem:[%s0 + $0x134] sm:$0xff]
  %v62 = vld [vmem:[%s0 + $0x13c] sm:$0xf]
  %v63 = vld [vmem:[%s1] sm:$0xf]
  %v64 = vld [vmem:[%s1 + $0x4] sm:$0xf]
  %v65 = vld [vmem:[%s1 + $0x8] sm:$0xf]
  %v66 = vld [vmem:[%s1 + $0xc] sm:$0xf]
  %v67 = vld [vmem:[%s1 + $0x10] sm:$0xf]
  %v68 = vld [vmem:[%s1 + $0x14] sm:$0xf]
  %v69 = vld [vmem:[%s1 + $0x18] sm:$0xf]
  %v70 = vld [vmem:[%s1 + $0x1c] sm:$0xf]
  %v71 = vld [vmem:[%s1 + $0x20] sm:$0xf]
  %v72 = vld [vmem:[%s1 + $0x24] sm:$0xf]
  %v73 = vld [vmem:[%s1 + $0x28] sm:$0xf]
  %v74 = vld [vmem:[%s1 + $0x2c] sm:$0xf]
  %v75 = vld [vmem:[%s1 + $0x30] sm:$0xf]
  %v76 = vld [vmem:[%s1 + $0x34] sm:$0xf]
  %v77 = vld [vmem:[%s1 + $0x38] sm:$0xf]
  %v78 = vld [vmem:[%s1 + $0x3c] sm:$0xf]
  %v79 = vld [vmem:[%s1 + $0x40] sm:$0xf]
  %v80 = vld [vmem:[%s1 + $0x44] sm:$0xf]
  %v81 = vld [vmem:[%s1 + $0x48] sm:$0xf]
  %v82 = vld [vmem:[%s1 + $0x4c] sm:$0xf]
  %v83 = vld [vmem:[%s1 + $0x50] sm:$0xf]
  %v84 = vld [vmem:[%s1 + $0x54] sm:$0xf]
  %v85 = vld [vmem:[%s1 + $0x58] sm:$0xf]
  %v86 = vld [vmem:[%s1 + $0x5c] sm:$0xf]
  %v87 = vld [vmem:[%s1 + $0x60] sm:$0xf]
  %v88 = vld [vmem:[%s1 + $0x64] sm:$0xf]
  %v89 = vld [vmem:[%s1 + $0x68] sm:$0xf]
  %v90 = vld [vmem:[%s1 + $0x6c] sm:$0xf]
  %v91 = vld [vmem:[%s1 + $0x70] sm:$0xf]
  %v92 = vld [vmem:[%s1 + $0x74] sm:$0xf]
  %v93 = vld [vmem:[%s1 + $0x78] sm:$0xf]
  %v94 = vld [vmem:[%s1 + $0x7c] sm:$0xf]
  %v95 = vld [vmem:[%s1 + $0x80] sm:$0xf]
  %v96 = vld [vmem:[%s1 + $0x84] sm:$0xf]
  %v97 = vld [vmem:[%s1 + $0x88] sm:$0xf]
  %v98 = vld [vmem:[%s1 + $0x8c] sm:$0xf]
  %v99 = vld [vmem:[%s1 + $0x90] sm:$0xf]
  %v100 = vld [vmem:[%s1 + $0x94] sm:$0xf]
  %v101 = vld [vmem:[%s1 + $0x98] sm:$0xf]
  %v102 = vld [vmem:[%s1 + $0x9c] sm:$0xf]
  %v103 = vld [vmem:[%s1 + $0xa0] sm:$0xf]
  %v104 = vld [vmem:[%s1 + $0xa4] sm:$0xf]
  %v105 = vld [vmem:[%s1 + $0xa8] sm:$0xf]
  %v106 = vld [vmem:[%s1 + $0xac] sm:$0xf]
  %v107 = vld [vmem:[%s1 + $0xb0] sm:$0xf]
  %v108 = vld [vmem:[%s1 + $0xb4] sm:$0xf]
  %v109 = vld [vmem:[%s1 + $0xb8] sm:$0xf]
  %v110 = vld [vmem:[%s1 + $0xbc] sm:$0xf]
  %v111 = vld [vmem:[%s1 + $0xc0] sm:$0xf]
  %v112 = vld [vmem:[%s1 + $0xc4] sm:$0xf]
  %v113 = vld [vmem:[%s1 + $0xc8] sm:$0xf]
  %v114 = vld [vmem:[%s1 + $0xcc] sm:$0xf]
  %v115 = vld [vmem:[%s1 + $0xd0] sm:$0xf]
  %v116 = vld [vmem:[%s1 + $0xd4] sm:$0xf]
  %v117 = vld [vmem:[%s1 + $0xd8] sm:$0xf]
  %v118 = vld [vmem:[%s1 + $0xdc] sm:$0xf]
  %v119 = vld [vmem:[%s1 + $0xe0] sm:$0xf]
  %v120 = vld [vmem:[%s1 + $0xe4] sm:$0xf]
  %v121 = vld [vmem:[%s1 + $0xe8] sm:$0xf]
  %v122 = vld [vmem:[%s1 + $0xec] sm:$0xf]
  %v123 = vld [vmem:[%s1 + $0xf0] sm:$0xf]
  %v124 = vld [vmem:[%s1 + $0xf4] sm:$0xf]
  %v125 = vld [vmem:[%s1 + $0xf8] sm:$0xf]
  %v126 = vld [vmem:[%s1 + $0xfc] sm:$0xf]
  %v127 = vld [vmem:[%s1 + $0x100] sm:$0xf]
  %v128 = vld [vmem:[%s1 + $0x104] sm:$0xf]
  %v129 = vld [vmem:[%s1 + $0x108] sm:$0xf]
  %v130 = vld [vmem:[%s1 + $0x10c] sm:$0xf]
  %v131 = vld [vmem:[%s1 + $0x110] sm:$0xf]
  %v132 = vld [vmem:[%s1 + $0x114] sm:$0xf]
  %v133 = vld [vmem:[%s1 + $0x118] sm:$0xf]
  %v134 = vld [vmem:[%s1 + $0x11c] sm:$0xf]
  %v135 = vld [vmem:[%s2] sm:$0x1]
  %v137 = vlaneseq
  %v138 = vshrl.u32 %v137, 7
  %v139 = vsub.s32 0, %v138
  %v140 = vrot.slane %v135, %v139
  %v190 = vunpack.c.l.b16 %v15
  %v191 = vunpack.c.h.b16 %v15
  %v192 = vunpack.c.l.b16 %v16
  %v193 = vunpack.c.h.b16 %v16
  %v194 = vunpack.c.l.b16 %v17
  %v195 = vunpack.c.l.b16 %v18
  %v196 = vunpack.c.h.b16 %v18
  %v197 = vunpack.c.l.b16 %v19
  %v198 = vunpack.c.h.b16 %v19
  %v199 = vunpack.c.l.b16 %v20
  %v200 = vunpack.c.l.b16 %v21
  %v201 = vunpack.c.h.b16 %v21
  %v202 = vunpack.c.l.b16 %v22
  %v203 = vunpack.c.h.b16 %v22
  %v204 = vunpack.c.l.b16 %v23
  %v205 = vunpack.c.l.b16 %v24
  %v206 = vunpack.c.h.b16 %v24
  %v207 = vunpack.c.l.b16 %v25
  %v208 = vunpack.c.h.b16 %v25
  %v209 = vunpack.c.l.b16 %v26
  %v210 = vunpack.c.l.b16 %v27
  %v211 = vunpack.c.h.b16 %v27
  %v212 = vunpack.c.l.b16 %v28
  %v213 = vunpack.c.h.b16 %v28
  %v214 = vunpack.c.l.b16 %v29
  %v215 = vunpack.c.l.b16 %v30
  %v216 = vunpack.c.h.b16 %v30
  %v217 = vunpack.c.l.b16 %v31
  %v218 = vunpack.c.h.b16 %v31
  %v219 = vunpack.c.l.b16 %v32
  %v220 = vunpack.c.l.b16 %v33
  %v221 = vunpack.c.h.b16 %v33
  %v222 = vunpack.c.l.b16 %v34
  %v223 = vunpack.c.h.b16 %v34
  %v224 = vunpack.c.l.b16 %v35
  %v225 = vunpack.c.l.b16 %v36
  %v226 = vunpack.c.h.b16 %v36
  %v227 = vunpack.c.l.b16 %v37
  %v228 = vunpack.c.h.b16 %v37
  %v229 = vunpack.c.l.b16 %v38
  %v230 = vunpack.c.l.b16 %v39
  %v231 = vunpack.c.h.b16 %v39
  %v232 = vunpack.c.l.b16 %v40
  %v233 = vunpack.c.h.b16 %v40
  %v234 = vunpack.c.l.b16 %v41
  %v235 = vunpack.c.l.b16 %v42
  %v236 = vunpack.c.h.b16 %v42
  %v237 = vunpack.c.l.b16 %v43
  %v238 = vunpack.c.h.b16 %v43
  %v239 = vunpack.c.l.b16 %v44
  %v240 = vunpack.c.l.b16 %v45
  %v241 = vunpack.c.h.b16 %v45
  %v242 = vunpack.c.l.b16 %v46
  %v243 = vunpack.c.h.b16 %v46
  %v244 = vunpack.c.l.b16 %v47
  %v245 = vunpack.c.l.b16 %v48
  %v246 = vunpack.c.h.b16 %v48
  %v247 = vunpack.c.l.b16 %v49
  %v248 = vunpack.c.h.b16 %v49
  %v249 = vunpack.c.l.b16 %v50
  %v250 = vunpack.c.l.b16 %v51
  %v251 = vunpack.c.h.b16 %v51
  %v252 = vunpack.c.l.b16 %v52
  %v253 = vunpack.c.h.b16 %v52
  %v254 = vunpack.c.l.b16 %v53
  %v255 = vunpack.c.l.b16 %v54
  %v256 = vunpack.c.h.b16 %v54
  %v257 = vunpack.c.l.b16 %v55
  %v258 = vunpack.c.h.b16 %v55
  %v259 = vunpack.c.l.b16 %v56
  %v260 = vunpack.c.l.b16 %v57
  %v261 = vunpack.c.h.b16 %v57
  %v262 = vunpack.c.l.b16 %v58
  %v263 = vunpack.c.h.b16 %v58
  %v264 = vunpack.c.l.b16 %v59
  %v265 = vunpack.c.l.b16 %v60
  %v266 = vunpack.c.h.b16 %v60
  %v267 = vunpack.c.l.b16 %v61
  %v268 = vunpack.c.h.b16 %v61
  %v269 = vunpack.c.l.b16 %v62
  %v270 = vpack.c.b16 %v195, %v190
  %v271 = vpack.c.b16 %v196, %v191
  %v272 = vpack.c.b16 %v197, %v192
  %v273 = vpack.c.b16 %v198, %v193
  %v274 = vpack.c.b16 %v199, %v194
  %v275 = vpack.c.b16 %v205, %v200
  %v276 = vpack.c.b16 %v206, %v201
  %v277 = vpack.c.b16 %v207, %v202
  %v278 = vpack.c.b16 %v208, %v203
  %v279 = vpack.c.b16 %v209, %v204
  %v280 = vpack.c.b16 %v215, %v210
  %v281 = vpack.c.b16 %v216, %v211
  %v282 = vpack.c.b16 %v217, %v212
  %v283 = vpack.c.b16 %v218, %v213
  %v284 = vpack.c.b16 %v219, %v214
  %v285 = vpack.c.b16 %v225, %v220
  %v286 = vpack.c.b16 %v226, %v221
  %v287 = vpack.c.b16 %v227, %v222
  %v288 = vpack.c.b16 %v228, %v223
  %v289 = vpack.c.b16 %v229, %v224
  %v290 = vpack.c.b16 %v235, %v230
  %v291 = vpack.c.b16 %v236, %v231
  %v292 = vpack.c.b16 %v237, %v232
  %v293 = vpack.c.b16 %v238, %v233
  %v294 = vpack.c.b16 %v239, %v234
  %v295 = vpack.c.b16 %v245, %v240
  %v296 = vpack.c.b16 %v246, %v241
  %v297 = vpack.c.b16 %v247, %v242
  %v298 = vpack.c.b16 %v248, %v243
  %v299 = vpack.c.b16 %v249, %v244
  %v300 = vpack.c.b16 %v255, %v250
  %v301 = vpack.c.b16 %v256, %v251
  %v302 = vpack.c.b16 %v257, %v252
  %v303 = vpack.c.b16 %v258, %v253
  %v304 = vpack.c.b16 %v259, %v254
  %v305 = vpack.c.b16 %v265, %v260
  %v306 = vpack.c.b16 %v266, %v261
  %v307 = vpack.c.b16 %v267, %v262
  %v308 = vpack.c.b16 %v268, %v263
  %v309 = vpack.c.b16 %v269, %v264
  %v414 = vunpack.c.l.b16 %v63
  %v415 = vunpack.c.l.b16 %v64
  %v416 = vunpack.c.l.b16 %v65
  %v417 = vunpack.c.l.b16 %v66
  %v418 = vunpack.c.l.b16 %v67
  %v419 = vunpack.c.l.b16 %v68
  %v420 = vunpack.c.l.b16 %v69
  %v421 = vunpack.c.l.b16 %v70
  %v422 = vunpack.c.l.b16 %v71
  %v423 = vunpack.c.l.b16 %v72
  %v424 = vunpack.c.l.b16 %v73
  %v425 = vunpack.c.l.b16 %v74
  %v426 = vunpack.c.l.b16 %v75
  %v427 = vunpack.c.l.b16 %v76
  %v428 = vunpack.c.l.b16 %v77
  %v429 = vunpack.c.l.b16 %v78
  %v430 = vunpack.c.l.b16 %v79
  %v431 = vunpack.c.l.b16 %v80
  %v432 = vunpack.c.l.b16 %v81
  %v433 = vunpack.c.l.b16 %v82
  %v434 = vunpack.c.l.b16 %v83
  %v435 = vunpack.c.l.b16 %v84
  %v436 = vunpack.c.l.b16 %v85
  %v437 = vunpack.c.l.b16 %v86
  %v438 = vunpack.c.l.b16 %v87
  %v439 = vunpack.c.l.b16 %v88
  %v440 = vunpack.c.l.b16 %v89
  %v441 = vunpack.c.l.b16 %v90
  %v442 = vunpack.c.l.b16 %v91
  %v443 = vunpack.c.l.b16 %v92
  %v444 = vunpack.c.l.b16 %v93
  %v445 = vunpack.c.l.b16 %v94
  %v446 = vunpack.c.l.b16 %v95
  %v447 = vunpack.c.l.b16 %v96
  %v448 = vunpack.c.l.b16 %v97
  %v449 = vunpack.c.l.b16 %v98
  %v450 = vunpack.c.l.b16 %v99
  %v451 = vunpack.c.l.b16 %v100
  %v452 = vunpack.c.l.b16 %v101
  %v453 = vunpack.c.l.b16 %v102
  %v454 = vunpack.c.l.b16 %v103
  %v455 = vunpack.c.l.b16 %v104
  %v456 = vunpack.c.l.b16 %v105
  %v457 = vunpack.c.l.b16 %v106
  %v458 = vunpack.c.l.b16 %v107
  %v459 = vunpack.c.l.b16 %v108
  %v460 = vunpack.c.l.b16 %v109
  %v461 = vunpack.c.l.b16 %v110
  %v462 = vunpack.c.l.b16 %v111
  %v463 = vunpack.c.l.b16 %v112
  %v464 = vunpack.c.l.b16 %v113
  %v465 = vunpack.c.l.b16 %v114
  %v466 = vunpack.c.l.b16 %v115
  %v467 = vunpack.c.l.b16 %v116
  %v468 = vunpack.c.l.b16 %v117
  %v469 = vunpack.c.l.b16 %v118
  %v470 = vunpack.c.l.b16 %v119
  %v471 = vunpack.c.l.b16 %v120
  %v472 = vunpack.c.l.b16 %v121
  %v473 = vunpack.c.l.b16 %v122
  %v474 = vunpack.c.l.b16 %v123
  %v475 = vunpack.c.l.b16 %v124
  %v476 = vunpack.c.l.b16 %v125
  %v477 = vunpack.c.l.b16 %v126
  %v478 = vunpack.c.l.b16 %v127
  %v479 = vunpack.c.l.b16 %v128
  %v480 = vunpack.c.l.b16 %v129
  %v481 = vunpack.c.l.b16 %v130
  %v482 = vunpack.c.l.b16 %v131
  %v483 = vunpack.c.l.b16 %v132
  %v484 = vunpack.c.l.b16 %v133
  %v485 = vunpack.c.l.b16 %v134
  %v486 = vpack.c.b16 %v415, %v414
  %v487 = vpack.c.b16 %v417, %v416
  %v488 = vpack.c.b16 %v419, %v418
  %v489 = vpack.c.b16 %v421, %v420
  %v490 = vpack.c.b16 %v423, %v422
  %v491 = vpack.c.b16 %v425, %v424
  %v492 = vpack.c.b16 %v427, %v426
  %v493 = vpack.c.b16 %v429, %v428
  %v494 = vpack.c.b16 %v431, %v430
  %v495 = vpack.c.b16 %v433, %v432
  %v496 = vpack.c.b16 %v435, %v434
  %v497 = vpack.c.b16 %v437, %v436
  %v498 = vpack.c.b16 %v439, %v438
  %v499 = vpack.c.b16 %v441, %v440
  %v500 = vpack.c.b16 %v443, %v442
  %v501 = vpack.c.b16 %v445, %v444
  %v502 = vpack.c.b16 %v447, %v446
  %v503 = vpack.c.b16 %v449, %v448
  %v504 = vpack.c.b16 %v451, %v450
  %v505 = vpack.c.b16 %v453, %v452
  %v506 = vpack.c.b16 %v455, %v454
  %v507 = vpack.c.b16 %v457, %v456
  %v508 = vpack.c.b16 %v459, %v458
  %v509 = vpack.c.b16 %v461, %v460
  %v510 = vpack.c.b16 %v463, %v462
  %v511 = vpack.c.b16 %v465, %v464
  %v512 = vpack.c.b16 %v467, %v466
  %v513 = vpack.c.b16 %v469, %v468
  %v514 = vpack.c.b16 %v471, %v470
  %v515 = vpack.c.b16 %v473, %v472
  %v516 = vpack.c.b16 %v475, %v474
  %v517 = vpack.c.b16 %v477, %v476
  %v518 = vpack.c.b16 %v479, %v478
  %v519 = vpack.c.b16 %v481, %v480
  %v520 = vpack.c.b16 %v483, %v482
  %v521 = vpack.c.b16 %v485, %v484
  %vm558 = vcmask 523264
  %v560 = vsel %vm558, %v274, 0
  %v563 = vsel %vm558, %v279, 0
  %v566 = vsel %vm558, %v284, 0
  %v569 = vsel %vm558, %v289, 0
  %v572 = vsel %vm558, %v294, 0
  %v575 = vsel %vm558, %v299, 0
  %v578 = vsel %vm558, %v304, 0
  %v581 = vsel %vm558, %v309, 0
  %583 = vmatprep.subr.bf16.mxu0 0
  %584 = vmatpush1.bf16.msra.mxu0 %v486
  %585 = vmatprep.subr.bf16.mxu0 0
  %586 = vmatpush1.bf16.msra.mxu0 %v487
  %587 = vmatprep.subr.bf16.mxu0 0
  %588 = vmatpush1.bf16.msra.mxu0 %v488
  %589 = vmatprep.subr.bf16.mxu0 0
  %590 = vmatpush1.bf16.msra.mxu0 %v489
  %591 = vmatprep.subr.bf16.mxu0 0
  %592 = vmatpush1.bf16.msra.mxu0 %v490
  %593 = vmatprep.subr.bf16.mxu0 0
  %594 = vmatpush1.bf16.msra.mxu0 %v491
  %595 = vmatprep.subr.bf16.mxu0 0
  %596 = vmatpush1.bf16.msra.mxu0 %v492
  %597 = vmatprep.subr.bf16.mxu0 0
  %598 = vmatpush1.bf16.msra.mxu0 %v493
  %599 = vmatprep.subr.bf16.mxu0 0
  %600 = vmatpush1.bf16.msra.mxu0 %v494
  %601 = vmatprep.subr.bf16.mxu0 0
  %602 = vmatpush1.bf16.msra.mxu0 %v495
  %603 = vmatprep.subr.bf16.mxu0 0
  %604 = vmatpush1.bf16.msra.mxu0 %v496
  %605 = vmatprep.subr.bf16.mxu0 0
  %606 = vmatpush1.bf16.msra.mxu0 %v497
  %607 = vmatprep.subr.bf16.mxu0 0
  %608 = vmatpush1.bf16.msra.mxu0 %v498
  %609 = vmatprep.subr.bf16.mxu0 0
  %610 = vmatpush1.bf16.msra.mxu0 %v499
  %611 = vmatprep.subr.bf16.mxu0 0
  %612 = vmatpush1.bf16.msra.mxu0 %v500
  %613 = vmatprep.subr.bf16.mxu0 0
  %614 = vmatpush1.bf16.msra.mxu0 %v501
  %615 = vmatprep.mubr.bf16.mxu0 %v271
  %616 = vmatmul.mubr.bf16.gmra.mrb[0].mxu0 %v270
  %v617 = vpop.f32.mrb[0].mxu0
  %v618 = vadd.f32 %v140, %v617
  %v619 = vpop.f32.mrb[0].mxu0
  %v620 = vpop.f32.mrb[0].mxu0
  %v621 = vadd.f32 %v140, %v620
  %v622 = vpop.f32.mrb[0].mxu0
  %623 = vmatprep.mubr.bf16.mxu0 %v276
  %624 = vmatmul.mubr.bf16.gmra.mrb[0].mxu0 %v275
  %v625 = vpop.f32.mrb[0].mxu0
  %v626 = vadd.f32 %v140, %v625
  %v627 = vpop.f32.mrb[0].mxu0
  %v628 = vpop.f32.mrb[0].mxu0
  %v629 = vadd.f32 %v140, %v628
  %v630 = vpop.f32.mrb[0].mxu0
  %631 = vmatprep.mubr.bf16.mxu0 %v281
  %632 = vmatmul.mubr.bf16.gmra.mrb[0].mxu0 %v280
  %v633 = vpop.f32.mrb[0].mxu0
  %v634 = vadd.f32 %v140, %v633
  %v635 = vpop.f32.mrb[0].mxu0
  %v636 = vpop.f32.mrb[0].mxu0
  %v637 = vadd.f32 %v140, %v636
  %v638 = vpop.f32.mrb[0].mxu0
  %639 = vmatprep.mubr.bf16.mxu0 %v286
  %640 = vmatmul.mubr.bf16.gmra.mrb[0].mxu0 %v285
  %v641 = vpop.f32.mrb[0].mxu0
  %v642 = vadd.f32 %v140, %v641
  %v643 = vpop.f32.mrb[0].mxu0
  %v644 = vpop.f32.mrb[0].mxu0
  %v645 = vadd.f32 %v140, %v644
  %v646 = vpop.f32.mrb[0].mxu0
  %647 = vmatprep.mubr.bf16.mxu0 %v291
  %648 = vmatmul.mubr.bf16.gmra.mrb[0].mxu0 %v290
  %v649 = vpop.f32.mrb[0].mxu0
  %v650 = vadd.f32 %v140, %v649
  %v651 = vpop.f32.mrb[0].mxu0
  %v652 = vpop.f32.mrb[0].mxu0
  %v653 = vadd.f32 %v140, %v652
  %v654 = vpop.f32.mrb[0].mxu0
  %655 = vmatprep.mubr.bf16.mxu0 %v296
  %656 = vmatmul.mubr.bf16.gmra.mrb[0].mxu0 %v295
  %v657 = vpop.f32.mrb[0].mxu0
  %v658 = vadd.f32 %v140, %v657
  %v659 = vpop.f32.mrb[0].mxu0
  %v660 = vpop.f32.mrb[0].mxu0
  %v661 = vadd.f32 %v140, %v660
  %v662 = vpop.f32.mrb[0].mxu0
  %663 = vmatprep.mubr.bf16.mxu0 %v301
  %664 = vmatmul.mubr.bf16.gmra.mrb[0].mxu0 %v300
  %v665 = vpop.f32.mrb[0].mxu0
  %v666 = vadd.f32 %v140, %v665
  %v667 = vpop.f32.mrb[0].mxu0
  %v668 = vpop.f32.mrb[0].mxu0
  %v669 = vadd.f32 %v140, %v668
  %v670 = vpop.f32.mrb[0].mxu0
  %671 = vmatprep.mubr.bf16.mxu0 %v306
  %672 = vmatmul.mubr.bf16.gmra.mrb[0].mxu0 %v305
  %v673 = vpop.f32.mrb[0].mxu0
  %v674 = vadd.f32 %v140, %v673
  %v675 = vpop.f32.mrb[0].mxu0
  %v676 = vpop.f32.mrb[0].mxu0
  %v677 = vadd.f32 %v140, %v676
  %v678 = vpop.f32.mrb[0].mxu0
  %679 = vdwg.mxu0
  %680 = vmatprep.subr.bf16.mxu0 0
  %681 = vmatpush1.bf16.msra.mxu0 %v502
  %682 = vmatprep.subr.bf16.mxu0 0
  %683 = vmatpush1.bf16.msra.mxu0 %v503
  %684 = vmatprep.subr.bf16.mxu0 0
  %685 = vmatpush1.bf16.msra.mxu0 %v504
  %686 = vmatprep.subr.bf16.mxu0 0
  %687 = vmatpush1.bf16.msra.mxu0 %v505
  %688 = vmatprep.subr.bf16.mxu0 0
  %689 = vmatpush1.bf16.msra.mxu0 %v506
  %690 = vmatprep.subr.bf16.mxu0 0
  %691 = vmatpush1.bf16.msra.mxu0 %v507
  %692 = vmatprep.subr.bf16.mxu0 0
  %693 = vmatpush1.bf16.msra.mxu0 %v508
  %694 = vmatprep.subr.bf16.mxu0 0
  %695 = vmatpush1.bf16.msra.mxu0 %v509
  %696 = vmatprep.subr.bf16.mxu0 0
  %697 = vmatpush1.bf16.msra.mxu0 %v510
  %698 = vmatprep.subr.bf16.mxu0 0
  %699 = vmatpush1.bf16.msra.mxu0 %v511
  %700 = vmatprep.subr.bf16.mxu0 0
  %701 = vmatpush1.bf16.msra.mxu0 %v512
  %702 = vmatprep.subr.bf16.mxu0 0
  %703 = vmatpush1.bf16.msra.mxu0 %v513
  %704 = vmatprep.subr.bf16.mxu0 0
  %705 = vmatpush1.bf16.msra.mxu0 %v514
  %706 = vmatprep.subr.bf16.mxu0 0
  %707 = vmatpush1.bf16.msra.mxu0 %v515
  %708 = vmatprep.subr.bf16.mxu0 0
  %709 = vmatpush1.bf16.msra.mxu0 %v516
  %710 = vmatprep.subr.bf16.mxu0 0
  %711 = vmatpush1.bf16.msra.mxu0 %v517
  %712 = vmatprep.mubr.bf16.mxu0 %v273
  %713 = vmatmul.mubr.bf16.gmra.mrb[0].mxu0 %v272
  %v714 = vpop.f32.mrb[0].mxu0
  %v715 = vadd.f32 %v618, %v714
  %v716 = vpop.f32.mrb[0].mxu0
  %v717 = vpop.f32.mrb[0].mxu0
  %v718 = vadd.f32 %v621, %v717
  %v719 = vpop.f32.mrb[0].mxu0
  %720 = vmatprep.mubr.bf16.mxu0 %v278
  %721 = vmatmul.mubr.bf16.gmra.mrb[0].mxu0 %v277
  %v722 = vpop.f32.mrb[0].mxu0
  %v723 = vadd.f32 %v626, %v722
  %v724 = vpop.f32.mrb[0].mxu0
  %v725 = vpop.f32.mrb[0].mxu0
  %v726 = vadd.f32 %v629, %v725
  %v727 = vpop.f32.mrb[0].mxu0
  %728 = vmatprep.mubr.bf16.mxu0 %v283
  %729 = vmatmul.mubr.bf16.gmra.mrb[0].mxu0 %v282
  %v730 = vpop.f32.mrb[0].mxu0
  %v731 = vadd.f32 %v634, %v730
  %v732 = vpop.f32.mrb[0].mxu0
  %v733 = vpop.f32.mrb[0].mxu0
  %v734 = vadd.f32 %v637, %v733
  %v735 = vpop.f32.mrb[0].mxu0
  %736 = vmatprep.mubr.bf16.mxu0 %v288
  %737 = vmatmul.mubr.bf16.gmra.mrb[0].mxu0 %v287
  %v738 = vpop.f32.mrb[0].mxu0
  %v739 = vadd.f32 %v642, %v738
  %v740 = vpop.f32.mrb[0].mxu0
  %v741 = vpop.f32.mrb[0].mxu0
  %v742 = vadd.f32 %v645, %v741
  %v743 = vpop.f32.mrb[0].mxu0
  %744 = vmatprep.mubr.bf16.mxu0 %v293
  %745 = vmatmul.mubr.bf16.gmra.mrb[0].mxu0 %v292
  %v746 = vpop.f32.mrb[0].mxu0
  %v747 = vadd.f32 %v650, %v746
  %v748 = vpop.f32.mrb[0].mxu0
  %v749 = vpop.f32.mrb[0].mxu0
  %v750 = vadd.f32 %v653, %v749
  %v751 = vpop.f32.mrb[0].mxu0
  %752 = vmatprep.mubr.bf16.mxu0 %v298
  %753 = vmatmul.mubr.bf16.gmra.mrb[0].mxu0 %v297
  %v754 = vpop.f32.mrb[0].mxu0
  %v755 = vadd.f32 %v658, %v754
  %v756 = vpop.f32.mrb[0].mxu0
  %v757 = vpop.f32.mrb[0].mxu0
  %v758 = vadd.f32 %v661, %v757
  %v759 = vpop.f32.mrb[0].mxu0
  %760 = vmatprep.mubr.bf16.mxu0 %v303
  %761 = vmatmul.mubr.bf16.gmra.mrb[0].mxu0 %v302
  %v762 = vpop.f32.mrb[0].mxu0
  %v763 = vadd.f32 %v666, %v762
  %v764 = vpop.f32.mrb[0].mxu0
  %v765 = vpop.f32.mrb[0].mxu0
  %v766 = vadd.f32 %v669, %v765
  %v767 = vpop.f32.mrb[0].mxu0
  %768 = vmatprep.mubr.bf16.mxu0 %v308
  %769 = vmatmul.mubr.bf16.gmra.mrb[0].mxu0 %v307
  %v770 = vpop.f32.mrb[0].mxu0
  %v771 = vadd.f32 %v674, %v770
  %v772 = vpop.f32.mrb[0].mxu0
  %v773 = vpop.f32.mrb[0].mxu0
  %v774 = vadd.f32 %v677, %v773
  %v775 = vpop.f32.mrb[0].mxu0
  %776 = vdwg.mxu0
  %777 = vmatprep.subr.bf16.mxu0 0
  %778 = vmatpush1.bf16.msra.mxu0 %v518
  %779 = vmatprep.subr.bf16.mxu0 0
  %780 = vmatpush1.bf16.msra.mxu0 %v519
  %781 = vmatprep.subr.bf16.mxu0 0
  %782 = vmatpush1.bf16.msra.mxu0 %v520
  %783 = vmatprep.subr.bf16.mxu0 0
  %784 = vmatpush1.bf16.msra.mxu0 %v521
  %785 = vmatprep.subr.bf16.mxu0 0
  %786 = vmatpush1.bf16.msra.mxu0 0
  %787 = vmatprep.subr.bf16.mxu0 0
  %788 = vmatpush1.bf16.msra.mxu0 0
  %789 = vmatprep.subr.bf16.mxu0 0
  %790 = vmatpush1.bf16.msra.mxu0 0
  %791 = vmatprep.subr.bf16.mxu0 0
  %792 = vmatpush1.bf16.msra.mxu0 0
  %793 = vmatprep.subr.bf16.mxu0 0
  %794 = vmatpush1.bf16.msra.mxu0 0
  %795 = vmatprep.subr.bf16.mxu0 0
  %796 = vmatpush1.bf16.msra.mxu0 0
  %797 = vmatprep.subr.bf16.mxu0 0
  %798 = vmatpush1.bf16.msra.mxu0 0
  %799 = vmatprep.subr.bf16.mxu0 0
  %800 = vmatpush1.bf16.msra.mxu0 0
  %801 = vmatprep.subr.bf16.mxu0 0
  %802 = vmatpush1.bf16.msra.mxu0 0
  %803 = vmatprep.subr.bf16.mxu0 0
  %804 = vmatpush1.bf16.msra.mxu0 0
  %805 = vmatprep.subr.bf16.mxu0 0
  %806 = vmatpush1.bf16.msra.mxu0 0
  %807 = vmatprep.subr.bf16.mxu0 0
  %808 = vmatpush1.bf16.msra.mxu0 0
  %809 = vmatprep.mubr.bf16.mxu0 0
  %810 = vmatmul.mubr.bf16.gmra.mrb[0].mxu0 %v560
  %v811 = vpop.f32.mrb[0].mxu0
  %v812 = vadd.f32 %v715, %v811
  %v813 = vpop.f32.mrb[0].mxu0
  %v814 = vpop.f32.mrb[0].mxu0
  %v815 = vadd.f32 %v718, %v814
  %v816 = vpop.f32.mrb[0].mxu0
  %817 = vmatprep.mubr.bf16.mxu0 0
  %818 = vmatmul.mubr.bf16.gmra.mrb[0].mxu0 %v563
  %v819 = vpop.f32.mrb[0].mxu0
  %v820 = vadd.f32 %v723, %v819
  %v821 = vpop.f32.mrb[0].mxu0
  %v822 = vpop.f32.mrb[0].mxu0
  %v823 = vadd.f32 %v726, %v822
  %v824 = vpop.f32.mrb[0].mxu0
  %825 = vmatprep.mubr.bf16.mxu0 0
  %826 = vmatmul.mubr.bf16.gmra.mrb[0].mxu0 %v566
  %v827 = vpop.f32.mrb[0].mxu0
  %v828 = vadd.f32 %v731, %v827
  %v829 = vpop.f32.mrb[0].mxu0
  %v830 = vpop.f32.mrb[0].mxu0
  %v831 = vadd.f32 %v734, %v830
  %v832 = vpop.f32.mrb[0].mxu0
  %833 = vmatprep.mubr.bf16.mxu0 0
  %834 = vmatmul.mubr.bf16.gmra.mrb[0].mxu0 %v569
  %v835 = vpop.f32.mrb[0].mxu0
  %v836 = vadd.f32 %v739, %v835
  %v837 = vpop.f32.mrb[0].mxu0
  %v838 = vpop.f32.mrb[0].mxu0
  %v839 = vadd.f32 %v742, %v838
  %v840 = vpop.f32.mrb[0].mxu0
  %841 = vmatprep.mubr.bf16.mxu0 0
  %842 = vmatmul.mubr.bf16.gmra.mrb[0].mxu0 %v572
  %v843 = vpop.f32.mrb[0].mxu0
  %v844 = vadd.f32 %v747, %v843
  %v845 = vpop.f32.mrb[0].mxu0
  %v846 = vpop.f32.mrb[0].mxu0
  %v847 = vadd.f32 %v750, %v846
  %v848 = vpop.f32.mrb[0].mxu0
  %849 = vmatprep.mubr.bf16.mxu0 0
  %850 = vmatmul.mubr.bf16.gmra.mrb[0].mxu0 %v575
  %v851 = vpop.f32.mrb[0].mxu0
  %v852 = vadd.f32 %v755, %v851
  %v853 = vpop.f32.mrb[0].mxu0
  %v854 = vpop.f32.mrb[0].mxu0
  %v855 = vadd.f32 %v758, %v854
  %v856 = vpop.f32.mrb[0].mxu0
  %857 = vmatprep.mubr.bf16.mxu0 0
  %858 = vmatmul.mubr.bf16.gmra.mrb[0].mxu0 %v578
  %v859 = vpop.f32.mrb[0].mxu0
  %v860 = vadd.f32 %v763, %v859
  %v861 = vpop.f32.mrb[0].mxu0
  %v862 = vpop.f32.mrb[0].mxu0
  %v863 = vadd.f32 %v766, %v862
  %v864 = vpop.f32.mrb[0].mxu0
  %865 = vmatprep.mubr.bf16.mxu0 0
  %866 = vmatmul.mubr.bf16.gmra.mrb[0].mxu0 %v581
  %v867 = vpop.f32.mrb[0].mxu0
  %v868 = vadd.f32 %v771, %v867
  %v869 = vpop.f32.mrb[0].mxu0
  %v870 = vpop.f32.mrb[0].mxu0
  %v871 = vadd.f32 %v774, %v870
  %v872 = vpop.f32.mrb[0].mxu0
  %873 = vdwg.mxu0
  %vm874 = vcmp.ge.f32.partialorder %v812, 0.0
  %vm875 = vcmp.ge.f32.partialorder %v815, 0.0
  %vm876 = vcmp.ge.f32.partialorder %v820, 0.0
  %vm877 = vcmp.ge.f32.partialorder %v823, 0.0
  %vm878 = vcmp.ge.f32.partialorder %v828, 0.0
  %vm879 = vcmp.ge.f32.partialorder %v831, 0.0
  %vm880 = vcmp.ge.f32.partialorder %v836, 0.0
  %vm881 = vcmp.ge.f32.partialorder %v839, 0.0
  %vm882 = vcmp.ge.f32.partialorder %v844, 0.0
  %vm883 = vcmp.ge.f32.partialorder %v847, 0.0
  %vm884 = vcmp.ge.f32.partialorder %v852, 0.0
  %vm885 = vcmp.ge.f32.partialorder %v855, 0.0
  %vm886 = vcmp.ge.f32.partialorder %v860, 0.0
  %vm887 = vcmp.ge.f32.partialorder %v863, 0.0
  %vm888 = vcmp.ge.f32.partialorder %v868, 0.0
  %vm889 = vcmp.ge.f32.partialorder %v871, 0.0
  %v890 = vmul.f32 %v812, 0.2
  %v891 = vmul.f32 %v815, 0.2
  %v892 = vmul.f32 %v820, 0.2
  %v893 = vmul.f32 %v823, 0.2
  %v894 = vmul.f32 %v828, 0.2
  %v895 = vmul.f32 %v831, 0.2
  %v896 = vmul.f32 %v836, 0.2
  %v897 = vmul.f32 %v839, 0.2
  %v898 = vmul.f32 %v844, 0.2
  %v899 = vmul.f32 %v847, 0.2
  %v900 = vmul.f32 %v852, 0.2
  %v901 = vmul.f32 %v855, 0.2
  %v902 = vmul.f32 %v860, 0.2
  %v903 = vmul.f32 %v863, 0.2
  %v904 = vmul.f32 %v868, 0.2
  %v905 = vmul.f32 %v871, 0.2
  %v906 = vsel %vm874, %v812, %v890
  %v907 = vsel %vm875, %v815, %v891
  %v908 = vsel %vm876, %v820, %v892
  %v909 = vsel %vm877, %v823, %v893
  %v910 = vsel %vm878, %v828, %v894
  %v911 = vsel %vm879, %v831, %v895
  %v912 = vsel %vm880, %v836, %v896
  %v913 = vsel %vm881, %v839, %v897
  %v914 = vsel %vm882, %v844, %v898
  %v915 = vsel %vm883, %v847, %v899
  %v916 = vsel %vm884, %v852, %v900
  %v917 = vsel %vm885, %v855, %v901
  %v918 = vsel %vm886, %v860, %v902
  %v919 = vsel %vm887, %v863, %v903
  %v920 = vsel %vm888, %v868, %v904
  %v921 = vsel %vm889, %v871, %v905
  %v922 = vpack.c.bf16 %v907, %v906
  %v923 = vpack.c.bf16 %v909, %v908
  %v924 = vpack.c.bf16 %v911, %v910
  %v925 = vpack.c.bf16 %v913, %v912
  %v926 = vpack.c.bf16 %v915, %v914
  %v927 = vpack.c.bf16 %v917, %v916
  %v928 = vpack.c.bf16 %v919, %v918
  %v929 = vpack.c.bf16 %v921, %v920
  %v938 = vunpack.c.l.b16 %v922
  %v939 = vunpack.c.h.b16 %v922
  %v940 = vunpack.c.l.b16 %v923
  %v941 = vunpack.c.h.b16 %v923
  %v942 = vunpack.c.l.b16 %v924
  %v943 = vunpack.c.h.b16 %v924
  %v944 = vunpack.c.l.b16 %v925
  %v945 = vunpack.c.h.b16 %v925
  %v946 = vunpack.c.l.b16 %v926
  %v947 = vunpack.c.h.b16 %v926
  %v948 = vunpack.c.l.b16 %v927
  %v949 = vunpack.c.h.b16 %v927
  %v950 = vunpack.c.l.b16 %v928
  %v951 = vunpack.c.h.b16 %v928
  %v952 = vunpack.c.l.b16 %v929
  %v953 = vunpack.c.h.b16 %v929
  %v954 = vpack.c.b16 %v938, %v938
  %v955 = vpack.c.b16 %v939, %v939
  %v956 = vpack.c.b16 %v940, %v940
  %v957 = vpack.c.b16 %v941, %v941
  %v958 = vpack.c.b16 %v942, %v942
  %v959 = vpack.c.b16 %v943, %v943
  %v960 = vpack.c.b16 %v944, %v944
  %v961 = vpack.c.b16 %v945, %v945
  %v962 = vpack.c.b16 %v946, %v946
  %v963 = vpack.c.b16 %v947, %v947
  %v964 = vpack.c.b16 %v948, %v948
  %v965 = vpack.c.b16 %v949, %v949
  %v966 = vpack.c.b16 %v950, %v950
  %v967 = vpack.c.b16 %v951, %v951
  %v968 = vpack.c.b16 %v952, %v952
  %v969 = vpack.c.b16 %v953, %v953
  %986 = vst [vmem:[%s3] sm:$0xf] %v954
  %987 = vst [vmem:[%s3 + $0x4] sm:$0xf] %v955
  %988 = vst [vmem:[%s3 + $0x8] sm:$0xf] %v956
  %989 = vst [vmem:[%s3 + $0xc] sm:$0xf] %v957
  %990 = vst [vmem:[%s3 + $0x10] sm:$0xf] %v958
  %991 = vst [vmem:[%s3 + $0x14] sm:$0xf] %v959
  %992 = vst [vmem:[%s3 + $0x18] sm:$0xf] %v960
  %993 = vst [vmem:[%s3 + $0x1c] sm:$0xf] %v961
  %994 = vst [vmem:[%s3 + $0x20] sm:$0xf] %v962
  %995 = vst [vmem:[%s3 + $0x24] sm:$0xf] %v963
  %996 = vst [vmem:[%s3 + $0x28] sm:$0xf] %v964
  %997 = vst [vmem:[%s3 + $0x2c] sm:$0xf] %v965
  %998 = vst [vmem:[%s3 + $0x30] sm:$0xf] %v966
  %999 = vst [vmem:[%s3 + $0x34] sm:$0xf] %v967
  %1000 = vst [vmem:[%s3 + $0x38] sm:$0xf] %v968
  %1001 = vst [vmem:[%s3 + $0x3c] sm:$0xf] %v969
  // Predicated region
  $region14: #{discriminator_forward.6} parent=0 // pred_check
    _
  $region15: #{discriminator_forward.6} parent=0 // pred_check_branch
    %1003 = sbr.rel (0) target = $region17
  $region16: #{discriminator_forward.6} parent=0 // pred_region
    _
  $region17: #{discriminator_forward.6} parent=0 // pred_fallthru
    _
  // Predicated region
  $region18: #{discriminator_forward.6} parent=0 // pred_check
    _
  $region19: #{discriminator_forward.6} parent=0 // pred_check_branch
    %1005 = sbr.rel (0) target = $region21
  $region20: #{discriminator_forward.6} parent=0 // pred_region
    _
  $region21: #{discriminator_forward.6} parent=0 // pred_fallthru
    _

// kernel: discriminator_forward.7
$region0: #{discriminator_forward.7}
  #allocation0 [shape = 'u32[]', space=smem, size = 0x4, offset = 0x4, fixed_abs, tag = 'smem constant byte address 0x4 - core index']
  #allocation1 [shape = 'u32[144,128]{1,0:T(1,128)}', space=vmem, size = 0x12000, scoped, tag = 'internal scratch']
  %s0 = inlined_call_operand.vmem [shape: bf16[32,1152], index: 0, kind: input, shape index: {}]
  %s1 = inlined_call_operand.vmem [shape: bf16[1152,256], index: 1, kind: input, shape index: {}]
  %s2 = inlined_call_operand.vmem [shape: f32[1,256], index: 2, kind: input, shape index: {}]
  %s3 = inlined_call_operand.vmem [shape: bf16[32,256], index: 3, kind: output, shape index: {}]
  %s4 = sld [smem:[#allocation0]]
  $region22: #{discriminator_forward.7} parent=0
    _
  %s6 = ssub.s32 1, %s4
  %s7 = scalar_select 0, %s6, %s4
  // Predicated region
  $region2: #{discriminator_forward.7} parent=0 // pred_check
    _
  $region3: #{discriminator_forward.7} parent=0 // pred_check_branch
    %9 = sbr.rel (0) target = $region5
  $region4: #{discriminator_forward.7} parent=0 // pred_region
    _
  $region5: #{discriminator_forward.7} parent=0 // pred_fallthru
    _
  // Predicated region
  $region6: #{discriminator_forward.7} parent=0 // pred_check
    _
  $region7: #{discriminator_forward.7} parent=0 // pred_check_branch
    %11 = sbr.rel (0) target = $region9
  $region8: #{discriminator_forward.7} parent=0 // pred_region
    _
  $region9: #{discriminator_forward.7} parent=0 // pred_fallthru
    _
  // Predicated region
  $region10: #{discriminator_forward.7} parent=0 // pred_check
    _
  $region11: #{discriminator_forward.7} parent=0 // pred_check_branch
    %13 = sbr.rel (0) target = $region13
  $region12: #{discriminator_forward.7} parent=0 // pred_region
    _
  $region13: #{discriminator_forward.7} parent=0 // pred_fallthru
    _
  %v15 = vld [vmem:[%s0] sm:$0xff]
  %v16 = vld [vmem:[%s0 + $0x8] sm:$0xff]
  %v17 = vld [vmem:[%s0 + $0x10] sm:$0xff]
  %v18 = vld [vmem:[%s0 + $0x18] sm:$0xff]
  %v19 = vld [vmem:[%s0 + $0x20] sm:$0xf]
  %v20 = vld [vmem:[%s0 + $0x24] sm:$0xff]
  %v21 = vld [vmem:[%s0 + $0x2c] sm:$0xff]
  %v22 = vld [vmem:[%s0 + $0x34] sm:$0xff]
  %v23 = vld [vmem:[%s0 + $0x3c] sm:$0xff]
  %v24 = vld [vmem:[%s0 + $0x44] sm:$0xf]
  %v25 = vld [vmem:[%s0 + $0x48] sm:$0xff]
  %v26 = vld [vmem:[%s0 + $0x50] sm:$0xff]
  %v27 = vld [vmem:[%s0 + $0x58] sm:$0xff]
  %v28 = vld [vmem:[%s0 + $0x60] sm:$0xff]
  %v29 = vld [vmem:[%s0 + $0x68] sm:$0xf]
  %v30 = vld [vmem:[%s0 + $0x6c] sm:$0xff]
  %v31 = vld [vmem:[%s0 + $0x74] sm:$0xff]
  %v32 = vld [vmem:[%s0 + $0x7c] sm:$0xff]
  %v33 = vld [vmem:[%s0 + $0x84] sm:$0xff]
  %v34 = vld [vmem:[%s0 + $0x8c] sm:$0xf]
  %v35 = vld [vmem:[%s1] sm:$0xff]
  %v36 = vld [vmem:[%s1 + $0x8] sm:$0xff]
  %v37 = vld [vmem:[%s1 + $0x10] sm:$0xff]
  %v38 = vld [vmem:[%s1 + $0x18] sm:$0xff]
  %v39 = vld [vmem:[%s1 + $0x20] sm:$0xff]
  %v40 = vld [vmem:[%s1 + $0x28] sm:$0xff]
  %v41 = vld [vmem:[%s1 + $0x30] sm:$0xff]
  %v42 = vld [vmem:[%s1 + $0x38] sm:$0xff]
  %v43 = vld [vmem:[%s1 + $0x40] sm:$0xff]
  %v44 = vld [vmem:[%s1 + $0x48] sm:$0xff]
  %v45 = vld [vmem:[%s1 + $0x50] sm:$0xff]
  %v46 = vld [vmem:[%s1 + $0x58] sm:$0xff]
  %v47 = vld [vmem:[%s1 + $0x60] sm:$0xff]
  %v48 = vld [vmem:[%s1 + $0x68] sm:$0xff]
  %v49 = vld [vmem:[%s1 + $0x70] sm:$0xff]
  %v50 = vld [vmem:[%s1 + $0x78] sm:$0xff]
  %v51 = vld [vmem:[%s1 + $0x80] sm:$0xff]
  %v52 = vld [vmem:[%s1 + $0x88] sm:$0xff]
  %v53 = vld [vmem:[%s1 + $0x90] sm:$0xff]
  %v54 = vld [vmem:[%s1 + $0x98] sm:$0xff]
  %v55 = vld [vmem:[%s1 + $0xa0] sm:$0xff]
  %v56 = vld [vmem:[%s1 + $0xa8] sm:$0xff]
  %v57 = vld [vmem:[%s1 + $0xb0] sm:$0xff]
  %v58 = vld [vmem:[%s1 + $0xb8] sm:$0xff]
  %v59 = vld [vmem:[%s1 + $0xc0] sm:$0xff]
  %v60 = vld [vmem:[%s1 + $0xc8] sm:$0xff]
  %v61 = vld [vmem:[%s1 + $0xd0] sm:$0xff]
  %v62 = vld [vmem:[%s1 + $0xd8] sm:$0xff]
  %v63 = vld [vmem:[%s1 + $0xe0] sm:$0xff]
  %v64 = vld [vmem:[%s1 + $0xe8] sm:$0xff]
  %v65 = vld [vmem:[%s1 + $0xf0] sm:$0xff]
  %v66 = vld [vmem:[%s1 + $0xf8] sm:$0xff]
  %v67 = vld [vmem:[%s1 + $0x100] sm:$0xff]
  %v68 = vld [vmem:[%s1 + $0x108] sm:$0xff]
  %v69 = vld [vmem:[%s1 + $0x110] sm:$0xff]
  %v70 = vld [vmem:[%s1 + $0x118] sm:$0xff]
  %v71 = vld [vmem:[%s1 + $0x120] sm:$0xff]
  %v72 = vld [vmem:[%s1 + $0x128] sm:$0xff]
  %v73 = vld [vmem:[%s1 + $0x130] sm:$0xff]
  %v74 = vld [vmem:[%s1 + $0x138] sm:$0xff]
  %v75 = vld [vmem:[%s1 + $0x140] sm:$0xff]
  %v76 = vld [vmem:[%s1 + $0x148] sm:$0xff]
  %v77 = vld [vmem:[%s1 + $0x150] sm:$0xff]
  %v78 = vld [vmem:[%s1 + $0x158] sm:$0xff]
  %v79 = vld [vmem:[%s1 + $0x160] sm:$0xff]
  %v80 = vld [vmem:[%s1 + $0x168] sm:$0xff]
  %v81 = vld [vmem:[%s1 + $0x170] sm:$0xff]
  %v82 = vld [vmem:[%s1 + $0x178] sm:$0xff]
  %v83 = vld [vmem:[%s1 + $0x180] sm:$0xff]
  %v84 = vld [vmem:[%s1 + $0x188] sm:$0xff]
  %v85 = vld [vmem:[%s1 + $0x190] sm:$0xff]
  %v86 = vld [vmem:[%s1 + $0x198] sm:$0xff]
  %v87 = vld [vmem:[%s1 + $0x1a0] sm:$0xff]
  %v88 = vld [vmem:[%s1 + $0x1a8] sm:$0xff]
  %v89 = vld [vmem:[%s1 + $0x1b0] sm:$0xff]
  %v90 = vld [vmem:[%s1 + $0x1b8] sm:$0xff]
  %v91 = vld [vmem:[%s1 + $0x1c0] sm:$0xff]
  %v92 = vld [vmem:[%s1 + $0x1c8] sm:$0xff]
  %v93 = vld [vmem:[%s1 + $0x1d0] sm:$0xff]
  %v94 = vld [vmem:[%s1 + $0x1d8] sm:$0xff]
  %v95 = vld [vmem:[%s1 + $0x1e0] sm:$0xff]
  %v96 = vld [vmem:[%s1 + $0x1e8] sm:$0xff]
  %v97 = vld [vmem:[%s1 + $0x1f0] sm:$0xff]
  %v98 = vld [vmem:[%s1 + $0x1f8] sm:$0xff]
  %v99 = vld [vmem:[%s1 + $0x200] sm:$0xff]
  %v100 = vld [vmem:[%s1 + $0x208] sm:$0xff]
  %v101 = vld [vmem:[%s1 + $0x210] sm:$0xff]
  %v102 = vld [vmem:[%s1 + $0x218] sm:$0xff]
  %v103 = vld [vmem:[%s1 + $0x220] sm:$0xff]
  %v104 = vld [vmem:[%s1 + $0x228] sm:$0xff]
  %v105 = vld [vmem:[%s1 + $0x230] sm:$0xff]
  %v106 = vld [vmem:[%s1 + $0x238] sm:$0xff]
  %v107 = vld [vmem:[%s1 + $0x240] sm:$0xff]
  %v108 = vld [vmem:[%s1 + $0x248] sm:$0xff]
  %v109 = vld [vmem:[%s1 + $0x250] sm:$0xff]
  %v110 = vld [vmem:[%s1 + $0x258] sm:$0xff]
  %v111 = vld [vmem:[%s1 + $0x260] sm:$0xff]
  %v112 = vld [vmem:[%s1 + $0x268] sm:$0xff]
  %v113 = vld [vmem:[%s1 + $0x270] sm:$0xff]
  %v114 = vld [vmem:[%s1 + $0x278] sm:$0xff]
  %v115 = vld [vmem:[%s1 + $0x280] sm:$0xff]
  %v116 = vld [vmem:[%s1 + $0x288] sm:$0xff]
  %v117 = vld [vmem:[%s1 + $0x290] sm:$0xff]
  %v118 = vld [vmem:[%s1 + $0x298] sm:$0xff]
  %v119 = vld [vmem:[%s1 + $0x2a0] sm:$0xff]
  %v120 = vld [vmem:[%s1 + $0x2a8] sm:$0xff]
  %v121 = vld [vmem:[%s1 + $0x2b0] sm:$0xff]
  %v122 = vld [vmem:[%s1 + $0x2b8] sm:$0xff]
  %v123 = vld [vmem:[%s1 + $0x2c0] sm:$0xff]
  %v124 = vld [vmem:[%s1 + $0x2c8] sm:$0xff]
  %v125 = vld [vmem:[%s1 + $0x2d0] sm:$0xff]
  %v126 = vld [vmem:[%s1 + $0x2d8] sm:$0xff]
  %v127 = vld [vmem:[%s1 + $0x2e0] sm:$0xff]
  %v128 = vld [vmem:[%s1 + $0x2e8] sm:$0xff]
  %v129 = vld [vmem:[%s1 + $0x2f0] sm:$0xff]
  %v130 = vld [vmem:[%s1 + $0x2f8] sm:$0xff]
  %v131 = vld [vmem:[%s1 + $0x300] sm:$0xff]
  %v132 = vld [vmem:[%s1 + $0x308] sm:$0xff]
  %v133 = vld [vmem:[%s1 + $0x310] sm:$0xff]
  %v134 = vld [vmem:[%s1 + $0x318] sm:$0xff]
  %v135 = vld [vmem:[%s1 + $0x320] sm:$0xff]
  %v136 = vld [vmem:[%s1 + $0x328] sm:$0xff]
  %v137 = vld [vmem:[%s1 + $0x330] sm:$0xff]
  %v138 = vld [vmem:[%s1 + $0x338] sm:$0xff]
  %v139 = vld [vmem:[%s1 + $0x340] sm:$0xff]
  %v140 = vld [vmem:[%s1 + $0x348] sm:$0xff]
  %v141 = vld [vmem:[%s1 + $0x350] sm:$0xff]
  %v142 = vld [vmem:[%s1 + $0x358] sm:$0xff]
  %v143 = vld [vmem:[%s1 + $0x360] sm:$0xff]
  %v144 = vld [vmem:[%s1 + $0x368] sm:$0xff]
  %v145 = vld [vmem:[%s1 + $0x370] sm:$0xff]
  %v146 = vld [vmem:[%s1 + $0x378] sm:$0xff]
  %v147 = vld [vmem:[%s1 + $0x380] sm:$0xff]
  %v148 = vld [vmem:[%s1 + $0x388] sm:$0xff]
  %v149 = vld [vmem:[%s1 + $0x390] sm:$0xff]
  %v150 = vld [vmem:[%s1 + $0x398] sm:$0xff]
  %v151 = vld [vmem:[%s1 + $0x3a0] sm:$0xff]
  %v152 = vld [vmem:[%s1 + $0x3a8] sm:$0xff]
  %v153 = vld [vmem:[%s1 + $0x3b0] sm:$0xff]
  %v154 = vld [vmem:[%s1 + $0x3b8] sm:$0xff]
  %v155 = vld [vmem:[%s1 + $0x3c0] sm:$0xff]
  %v156 = vld [vmem:[%s1 + $0x3c8] sm:$0xff]
  %v157 = vld [vmem:[%s1 + $0x3d0] sm:$0xff]
  %v158 = vld [vmem:[%s1 + $0x3d8] sm:$0xff]
  %v159 = vld [vmem:[%s1 + $0x3e0] sm:$0xff]
  %v160 = vld [vmem:[%s1 + $0x3e8] sm:$0xff]
  %v161 = vld [vmem:[%s1 + $0x3f0] sm:$0xff]
  %v162 = vld [vmem:[%s1 + $0x3f8] sm:$0xff]
  %v163 = vld [vmem:[%s1 + $0x400] sm:$0xff]
  %v164 = vld [vmem:[%s1 + $0x408] sm:$0xff]
  %v165 = vld [vmem:[%s1 + $0x410] sm:$0xff]
  %v166 = vld [vmem:[%s1 + $0x418] sm:$0xff]
  %v167 = vld [vmem:[%s1 + $0x420] sm:$0xff]
  %v168 = vld [vmem:[%s1 + $0x428] sm:$0xff]
  %v169 = vld [vmem:[%s1 + $0x430] sm:$0xff]
  %v170 = vld [vmem:[%s1 + $0x438] sm:$0xff]
  %v171 = vld [vmem:[%s1 + $0x440] sm:$0xff]
  %v172 = vld [vmem:[%s1 + $0x448] sm:$0xff]
  %v173 = vld [vmem:[%s1 + $0x450] sm:$0xff]
  %v174 = vld [vmem:[%s1 + $0x458] sm:$0xff]
  %v175 = vld [vmem:[%s1 + $0x460] sm:$0xff]
  %v176 = vld [vmem:[%s1 + $0x468] sm:$0xff]
  %v177 = vld [vmem:[%s1 + $0x470] sm:$0xff]
  %v178 = vld [vmem:[%s1 + $0x478] sm:$0xff]
  %v179 = vld [vmem:[%s2] sm:$0x3]
  %v181 = vlaneseq
  %v182 = vshrl.u32 %v181, 7
  %v183 = vsub.s32 0, %v182
  %v184 = vrot.slane %v179, %v183
  %v185 = vlaneseq
  %v186 = vshrl.u32 %v185, 7
  %v187 = vsub.s32 1, %v186
  %v188 = vrot.slane %v179, %v187
  %v211 = vunpack.c.l.b16 %v15
  %v212 = vunpack.c.h.b16 %v15
  %v213 = vunpack.c.l.b16 %v16
  %v214 = vunpack.c.h.b16 %v16
  %v215 = vunpack.c.l.b16 %v17
  %v216 = vunpack.c.h.b16 %v17
  %v217 = vunpack.c.l.b16 %v18
  %v218 = vunpack.c.h.b16 %v18
  %v219 = vunpack.c.l.b16 %v19
  %v220 = vunpack.c.l.b16 %v20
  %v221 = vunpack.c.h.b16 %v20
  %v222 = vunpack.c.l.b16 %v21
  %v223 = vunpack.c.h.b16 %v21
  %v224 = vunpack.c.l.b16 %v22
  %v225 = vunpack.c.h.b16 %v22
  %v226 = vunpack.c.l.b16 %v23
  %v227 = vunpack.c.h.b16 %v23
  %v228 = vunpack.c.l.b16 %v24
  %v229 = vunpack.c.l.b16 %v25
  %v230 = vunpack.c.h.b16 %v25
  %v231 = vunpack.c.l.b16 %v26
  %v232 = vunpack.c.h.b16 %v26
  %v233 = vunpack.c.l.b16 %v27
  %v234 = vunpack.c.h.b16 %v27
  %v235 = vunpack.c.l.b16 %v28
  %v236 = vunpack.c.h.b16 %v28
  %v237 = vunpack.c.l.b16 %v29
  %v238 = vunpack.c.l.b16 %v30
  %v239 = vunpack.c.h.b16 %v30
  %v240 = vunpack.c.l.b16 %v31
  %v241 = vunpack.c.h.b16 %v31
  %v242 = vunpack.c.l.b16 %v32
  %v243 = vunpack.c.h.b16 %v32
  %v244 = vunpack.c.l.b16 %v33
  %v245 = vunpack.c.h.b16 %v33
  %v246 = vunpack.c.l.b16 %v34
  %v247 = vpack.c.b16 %v220, %v211
  %v248 = vpack.c.b16 %v221, %v212
  %v249 = vpack.c.b16 %v222, %v213
  %v250 = vpack.c.b16 %v223, %v214
  %v251 = vpack.c.b16 %v224, %v215
  %v252 = vpack.c.b16 %v225, %v216
  %v253 = vpack.c.b16 %v226, %v217
  %v254 = vpack.c.b16 %v227, %v218
  %v255 = vpack.c.b16 %v228, %v219
  %v256 = vpack.c.b16 %v238, %v229
  %v257 = vpack.c.b16 %v239, %v230
  %v258 = vpack.c.b16 %v240, %v231
  %v259 = vpack.c.b16 %v241, %v232
  %v260 = vpack.c.b16 %v242, %v233
  %v261 = vpack.c.b16 %v243, %v234
  %v262 = vpack.c.b16 %v244, %v235
  %v263 = vpack.c.b16 %v245, %v236
  %v264 = vpack.c.b16 %v246, %v237
  %v427 = vunpack.c.l.b16 %v35
  %v428 = vunpack.c.h.b16 %v35
  %v429 = vunpack.c.l.b16 %v36
  %v430 = vunpack.c.h.b16 %v36
  %v431 = vunpack.c.l.b16 %v37
  %v432 = vunpack.c.h.b16 %v37
  %v433 = vunpack.c.l.b16 %v38
  %v434 = vunpack.c.h.b16 %v38
  %v435 = vunpack.c.l.b16 %v39
  %v436 = vunpack.c.h.b16 %v39
  %v437 = vunpack.c.l.b16 %v40
  %v438 = vunpack.c.h.b16 %v40
  %v439 = vunpack.c.l.b16 %v41
  %v440 = vunpack.c.h.b16 %v41
  %v441 = vunpack.c.l.b16 %v42
  %v442 = vunpack.c.h.b16 %v42
  %v443 = vunpack.c.l.b16 %v43
  %v444 = vunpack.c.h.b16 %v43
  %v445 = vunpack.c.l.b16 %v44
  %v446 = vunpack.c.h.b16 %v44
  %v447 = vunpack.c.l.b16 %v45
  %v448 = vunpack.c.h.b16 %v45
  %v449 = vunpack.c.l.b16 %v46
  %v450 = vunpack.c.h.b16 %v46
  %v451 = vunpack.c.l.b16 %v47
  %v452 = vunpack.c.h.b16 %v47
  %v453 = vunpack.c.l.b16 %v48
  %v454 = vunpack.c.h.b16 %v48
  %v455 = vunpack.c.l.b16 %v49
  %v456 = vunpack.c.h.b16 %v49
  %v457 = vunpack.c.l.b16 %v50
  %v458 = vunpack.c.h.b16 %v50
  %v459 = vunpack.c.l.b16 %v51
  %v460 = vunpack.c.h.b16 %v51
  %v461 = vunpack.c.l.b16 %v52
  %v462 = vunpack.c.h.b16 %v52
  %v463 = vunpack.c.l.b16 %v53
  %v464 = vunpack.c.h.b16 %v53
  %v465 = vunpack.c.l.b16 %v54
  %v466 = vunpack.c.h.b16 %v54
  %v467 = vunpack.c.l.b16 %v55
  %v468 = vunpack.c.h.b16 %v55
  %v469 = vunpack.c.l.b16 %v56
  %v470 = vunpack.c.h.b16 %v56
  %v471 = vunpack.c.l.b16 %v57
  %v472 = vunpack.c.h.b16 %v57
  %v473 = vunpack.c.l.b16 %v58
  %v474 = vunpack.c.h.b16 %v58
  %v475 = vunpack.c.l.b16 %v59
  %v476 = vunpack.c.h.b16 %v59
  %v477 = vunpack.c.l.b16 %v60
  %v478 = vunpack.c.h.b16 %v60
  %v479 = vunpack.c.l.b16 %v61
  %v480 = vunpack.c.h.b16 %v61
  %v481 = vunpack.c.l.b16 %v62
  %v482 = vunpack.c.h.b16 %v62
  %v483 = vunpack.c.l.b16 %v63
  %v484 = vunpack.c.h.b16 %v63
  %v485 = vunpack.c.l.b16 %v64
  %v486 = vunpack.c.h.b16 %v64
  %v487 = vunpack.c.l.b16 %v65
  %v488 = vunpack.c.h.b16 %v65
  %v489 = vunpack.c.l.b16 %v66
  %v490 = vunpack.c.h.b16 %v66
  %v491 = vunpack.c.l.b16 %v67
  %v492 = vunpack.c.h.b16 %v67
  %v493 = vunpack.c.l.b16 %v68
  %v494 = vunpack.c.h.b16 %v68
  %v495 = vunpack.c.l.b16 %v69
  %v496 = vunpack.c.h.b16 %v69
  %v497 = vunpack.c.l.b16 %v70
  %v498 = vunpack.c.h.b16 %v70
  %v499 = vunpack.c.l.b16 %v71
  %v500 = vunpack.c.h.b16 %v71
  %v501 = vunpack.c.l.b16 %v72
  %v502 = vunpack.c.h.b16 %v72
  %v503 = vunpack.c.l.b16 %v73
  %v504 = vunpack.c.h.b16 %v73
  %v505 = vunpack.c.l.b16 %v74
  %v506 = vunpack.c.h.b16 %v74
  %v507 = vunpack.c.l.b16 %v75
  %v508 = vunpack.c.h.b16 %v75
  %v509 = vunpack.c.l.b16 %v76
  %v510 = vunpack.c.h.b16 %v76
  %v511 = vunpack.c.l.b16 %v77
  %v512 = vunpack.c.h.b16 %v77
  %v513 = vunpack.c.l.b16 %v78
  %v514 = vunpack.c.h.b16 %v78
  %v515 = vunpack.c.l.b16 %v79
  %v516 = vunpack.c.h.b16 %v79
  %v517 = vunpack.c.l.b16 %v80
  %v518 = vunpack.c.h.b16 %v80
  %v519 = vunpack.c.l.b16 %v81
  %v520 = vunpack.c.h.b16 %v81
  %v521 = vunpack.c.l.b16 %v82
  %v522 = vunpack.c.h.b16 %v82
  %v523 = vunpack.c.l.b16 %v83
  %v524 = vunpack.c.h.b16 %v83
  %v525 = vunpack.c.l.b16 %v84
  %v526 = vunpack.c.h.b16 %v84
  %v527 = vunpack.c.l.b16 %v85
  %v528 = vunpack.c.h.b16 %v85
  %v529 = vunpack.c.l.b16 %v86
  %v530 = vunpack.c.h.b16 %v86
  %v531 = vunpack.c.l.b16 %v87
  %v532 = vunpack.c.h.b16 %v87
  %v533 = vunpack.c.l.b16 %v88
  %v534 = vunpack.c.h.b16 %v88
  %v535 = vunpack.c.l.b16 %v89
  %v536 = vunpack.c.h.b16 %v89
  %v537 = vunpack.c.l.b16 %v90
  %v538 = vunpack.c.h.b16 %v90
  %v539 = vunpack.c.l.b16 %v91
  %v540 = vunpack.c.h.b16 %v91
  %v541 = vunpack.c.l.b16 %v92
  %v542 = vunpack.c.h.b16 %v92
  %v543 = vunpack.c.l.b16 %v93
  %v544 = vunpack.c.h.b16 %v93
  %v545 = vunpack.c.l.b16 %v94
  %v546 = vunpack.c.h.b16 %v94
  %v547 = vunpack.c.l.b16 %v95
  %v548 = vunpack.c.h.b16 %v95
  %v549 = vunpack.c.l.b16 %v96
  %v550 = vunpack.c.h.b16 %v96
  %v551 = vunpack.c.l.b16 %v97
  %v552 = vunpack.c.h.b16 %v97
  %v553 = vunpack.c.l.b16 %v98
  %v554 = vunpack.c.h.b16 %v98
  %v555 = vunpack.c.l.b16 %v99
  %v556 = vunpack.c.h.b16 %v99
  %v557 = vunpack.c.l.b16 %v100
  %v558 = vunpack.c.h.b16 %v100
  %v559 = vunpack.c.l.b16 %v101
  %v560 = vunpack.c.h.b16 %v101
  %v561 = vunpack.c.l.b16 %v102
  %v562 = vunpack.c.h.b16 %v102
  %v563 = vunpack.c.l.b16 %v103
  %v564 = vunpack.c.h.b16 %v103
  %v565 = vunpack.c.l.b16 %v104
  %v566 = vunpack.c.h.b16 %v104
  %v567 = vunpack.c.l.b16 %v105
  %v568 = vunpack.c.h.b16 %v105
  %v569 = vunpack.c.l.b16 %v106
  %v570 = vunpack.c.h.b16 %v106
  %v571 = vunpack.c.l.b16 %v107
  %v572 = vunpack.c.h.b16 %v107
  %v573 = vunpack.c.l.b16 %v108
  %v574 = vunpack.c.h.b16 %v108
  %v575 = vunpack.c.l.b16 %v109
  %v576 = vunpack.c.h.b16 %v109
  %v577 = vunpack.c.l.b16 %v110
  %v578 = vunpack.c.h.b16 %v110
  %v579 = vunpack.c.l.b16 %v111
  %v580 = vunpack.c.h.b16 %v111
  %v581 = vunpack.c.l.b16 %v112
  %v582 = vunpack.c.h.b16 %v112
  %v583 = vunpack.c.l.b16 %v113
  %v584 = vunpack.c.h.b16 %v113
  %v585 = vunpack.c.l.b16 %v114
  %v586 = vunpack.c.h.b16 %v114
  %v587 = vunpack.c.l.b16 %v115
  %v588 = vunpack.c.h.b16 %v115
  %v589 = vunpack.c.l.b16 %v116
  %v590 = vunpack.c.h.b16 %v116
  %v591 = vunpack.c.l.b16 %v117
  %v592 = vunpack.c.h.b16 %v117
  %v593 = vunpack.c.l.b16 %v118
  %v594 = vunpack.c.h.b16 %v118
  %v595 = vunpack.c.l.b16 %v119
  %v596 = vunpack.c.h.b16 %v119
  %v597 = vunpack.c.l.b16 %v120
  %v598 = vunpack.c.h.b16 %v120
  %v599 = vunpack.c.l.b16 %v121
  %v600 = vunpack.c.h.b16 %v121
  %v601 = vunpack.c.l.b16 %v122
  %v602 = vunpack.c.h.b16 %v122
  %v603 = vunpack.c.l.b16 %v123
  %v604 = vunpack.c.h.b16 %v123
  %v605 = vunpack.c.l.b16 %v124
  %v606 = vunpack.c.h.b16 %v124
  %v607 = vunpack.c.l.b16 %v125
  %v608 = vunpack.c.h.b16 %v125
  %v609 = vunpack.c.l.b16 %v126
  %v610 = vunpack.c.h.b16 %v126
  %v611 = vunpack.c.l.b16 %v127
  %v612 = vunpack.c.h.b16 %v127
  %v613 = vunpack.c.l.b16 %v128
  %v614 = vunpack.c.h.b16 %v128
  %v615 = vunpack.c.l.b16 %v129
  %v616 = vunpack.c.h.b16 %v129
  %v617 = vunpack.c.l.b16 %v130
  %v618 = vunpack.c.h.b16 %v130
  %v619 = vunpack.c.l.b16 %v131
  %v620 = vunpack.c.h.b16 %v131
  %v621 = vunpack.c.l.b16 %v132
  %v622 = vunpack.c.h.b16 %v132
  %v623 = vunpack.c.l.b16 %v133
  %v624 = vunpack.c.h.b16 %v133
  %v625 = vunpack.c.l.b16 %v134
  %v626 = vunpack.c.h.b16 %v134
  %v627 = vunpack.c.l.b16 %v135
  %v628 = vunpack.c.h.b16 %v135
  %v629 = vunpack.c.l.b16 %v136
  %v630 = vunpack.c.h.b16 %v136
  %v631 = vunpack.c.l.b16 %v137
  %v632 = vunpack.c.h.b16 %v137
  %v633 = vunpack.c.l.b16 %v138
  %v634 = vunpack.c.h.b16 %v138
  %v635 = vunpack.c.l.b16 %v139
  %v636 = vunpack.c.h.b16 %v139
  %v637 = vunpack.c.l.b16 %v140
  %v638 = vunpack.c.h.b16 %v140
  %v639 = vunpack.c.l.b16 %v141
  %v640 = vunpack.c.h.b16 %v141
  %v641 = vunpack.c.l.b16 %v142
  %v642 = vunpack.c.h.b16 %v142
  %v643 = vunpack.c.l.b16 %v143
  %v644 = vunpack.c.h.b16 %v143
  %v645 = vunpack.c.l.b16 %v144
  %v646 = vunpack.c.h.b16 %v144
  %v647 = vunpack.c.l.b16 %v145
  %v648 = vunpack.c.h.b16 %v145
  %v649 = vunpack.c.l.b16 %v146
  %v650 = vunpack.c.h.b16 %v146
  %v651 = vunpack.c.l.b16 %v147
  %v652 = vunpack.c.h.b16 %v147
  %v653 = vunpack.c.l.b16 %v148
  %v654 = vunpack.c.h.b16 %v148
  %v655 = vunpack.c.l.b16 %v149
  %v656 = vunpack.c.h.b16 %v149
  %v657 = vunpack.c.l.b16 %v150
  %v658 = vunpack.c.h.b16 %v150
  %v659 = vunpack.c.l.b16 %v151
  %v660 = vunpack.c.h.b16 %v151
  %v661 = vunpack.c.l.b16 %v152
  %v662 = vunpack.c.h.b16 %v152
  %v663 = vunpack.c.l.b16 %v153
  %v664 = vunpack.c.h.b16 %v153
  %v665 = vunpack.c.l.b16 %v154
  %v666 = vunpack.c.h.b16 %v154
  %v667 = vunpack.c.l.b16 %v155
  %v668 = vunpack.c.h.b16 %v155
  %v669 = vunpack.c.l.b16 %v156
  %v670 = vunpack.c.h.b16 %v156
  %v671 = vunpack.c.l.b16 %v157
  %v672 = vunpack.c.h.b16 %v157
  %v673 = vunpack.c.l.b16 %v158
  %v674 = vunpack.c.h.b16 %v158
  %v675 = vunpack.c.l.b16 %v159
  %v676 = vunpack.c.h.b16 %v159
  %v677 = vunpack.c.l.b16 %v160
  %v678 = vunpack.c.h.b16 %v160
  %v679 = vunpack.c.l.b16 %v161
  %v680 = vunpack.c.h.b16 %v161
  %v681 = vunpack.c.l.b16 %v162
  %v682 = vunpack.c.h.b16 %v162
  %v683 = vunpack.c.l.b16 %v163
  %v684 = vunpack.c.h.b16 %v163
  %v685 = vunpack.c.l.b16 %v164
  %v686 = vunpack.c.h.b16 %v164
  %v687 = vunpack.c.l.b16 %v165
  %v688 = vunpack.c.h.b16 %v165
  %v689 = vunpack.c.l.b16 %v166
  %v690 = vunpack.c.h.b16 %v166
  %v691 = vunpack.c.l.b16 %v167
  %v692 = vunpack.c.h.b16 %v167
  %v693 = vunpack.c.l.b16 %v168
  %v694 = vunpack.c.h.b16 %v168
  %v695 = vunpack.c.l.b16 %v169
  %v696 = vunpack.c.h.b16 %v169
  %v697 = vunpack.c.l.b16 %v170
  %v698 = vunpack.c.h.b16 %v170
  %v699 = vunpack.c.l.b16 %v171
  %v700 = vunpack.c.h.b16 %v171
  %v701 = vunpack.c.l.b16 %v172
  %v702 = vunpack.c.h.b16 %v172
  %v703 = vunpack.c.l.b16 %v173
  %v704 = vunpack.c.h.b16 %v173
  %v705 = vunpack.c.l.b16 %v174
  %v706 = vunpack.c.h.b16 %v174
  %v707 = vunpack.c.l.b16 %v175
  %v708 = vunpack.c.h.b16 %v175
  %v709 = vunpack.c.l.b16 %v176
  %v710 = vunpack.c.h.b16 %v176
  %v711 = vunpack.c.l.b16 %v177
  %v712 = vunpack.c.h.b16 %v177
  %v713 = vunpack.c.l.b16 %v178
  %v714 = vunpack.c.h.b16 %v178
  %v715 = vpack.c.b16 %v429, %v427
  %v716 = vpack.c.b16 %v430, %v428
  %v717 = vpack.c.b16 %v433, %v431
  %v718 = vpack.c.b16 %v434, %v432
  %v719 = vpack.c.b16 %v437, %v435
  %v720 = vpack.c.b16 %v438, %v436
  %v721 = vpack.c.b16 %v441, %v439
  %v722 = vpack.c.b16 %v442, %v440
  %v723 = vpack.c.b16 %v445, %v443
  %v724 = vpack.c.b16 %v446, %v444
  %v725 = vpack.c.b16 %v449, %v447
  %v726 = vpack.c.b16 %v450, %v448
  %v727 = vpack.c.b16 %v453, %v451
  %v728 = vpack.c.b16 %v454, %v452
  %v729 = vpack.c.b16 %v457, %v455
  %v730 = vpack.c.b16 %v458, %v456
  %v731 = vpack.c.b16 %v461, %v459
  %v732 = vpack.c.b16 %v462, %v460
  %v733 = vpack.c.b16 %v465, %v463
  %v734 = vpack.c.b16 %v466, %v464
  %v735 = vpack.c.b16 %v469, %v467
  %v736 = vpack.c.b16 %v470, %v468
  %v737 = vpack.c.b16 %v473, %v471
  %v738 = vpack.c.b16 %v474, %v472
  %v739 = vpack.c.b16 %v477, %v475
  %v740 = vpack.c.b16 %v478, %v476
  %v741 = vpack.c.b16 %v481, %v479
  %v742 = vpack.c.b16 %v482, %v480
  %v743 = vpack.c.b16 %v485, %v483
  %v744 = vpack.c.b16 %v486, %v484
  %v745 = vpack.c.b16 %v489, %v487
  %v746 = vpack.c.b16 %v490, %v488
  %v747 = vpack.c.b16 %v493, %v491
  %v748 = vpack.c.b16 %v494, %v492
  %v749 = vpack.c.b16 %v497, %v495
  %v750 = vpack.c.b16 %v498, %v496
  %v751 = vpack.c.b16 %v501, %v499
  %v752 = vpack.c.b16 %v502, %v500
  %v753 = vpack.c.b16 %v505, %v503
  %v754 = vpack.c.b16 %v506, %v504
  %v755 = vpack.c.b16 %v509, %v507
  %v756 = vpack.c.b16 %v510, %v508
  %v757 = vpack.c.b16 %v513, %v511
  %v758 = vpack.c.b16 %v514, %v512
  %v759 = vpack.c.b16 %v517, %v515
  %v760 = vpack.c.b16 %v518, %v516
  %v761 = vpack.c.b16 %v521, %v519
  %v762 = vpack.c.b16 %v522, %v520
  %v763 = vpack.c.b16 %v525, %v523
  %v764 = vpack.c.b16 %v526, %v524
  %v765 = vpack.c.b16 %v529, %v527
  %v766 = vpack.c.b16 %v530, %v528
  %v767 = vpack.c.b16 %v533, %v531
  %v768 = vpack.c.b16 %v534, %v532
  %v769 = vpack.c.b16 %v537, %v535
  %v770 = vpack.c.b16 %v538, %v536
  %v771 = vpack.c.b16 %v541, %v539
  %v772 = vpack.c.b16 %v542, %v540
  %v773 = vpack.c.b16 %v545, %v543
  %v774 = vpack.c.b16 %v546, %v544
  %v775 = vpack.c.b16 %v549, %v547
  %v776 = vpack.c.b16 %v550, %v548
  %v777 = vpack.c.b16 %v553, %v551
  %v778 = vpack.c.b16 %v554, %v552
  %v779 = vpack.c.b16 %v557, %v555
  %v780 = vpack.c.b16 %v558, %v556
  %v781 = vpack.c.b16 %v561, %v559
  %v782 = vpack.c.b16 %v562, %v560
  %v783 = vpack.c.b16 %v565, %v563
  %v784 = vpack.c.b16 %v566, %v564
  %v785 = vpack.c.b16 %v569, %v567
  %v786 = vpack.c.b16 %v570, %v568
  %v787 = vpack.c.b16 %v573, %v571
  %v788 = vpack.c.b16 %v574, %v572
  %v789 = vpack.c.b16 %v577, %v575
  %v790 = vpack.c.b16 %v578, %v576
  %v791 = vpack.c.b16 %v581, %v579
  %v792 = vpack.c.b16 %v582, %v580
  %v793 = vpack.c.b16 %v585, %v583
  %v794 = vpack.c.b16 %v586, %v584
  %v795 = vpack.c.b16 %v589, %v587
  %v796 = vpack.c.b16 %v590, %v588
  %v797 = vpack.c.b16 %v593, %v591
  %v798 = vpack.c.b16 %v594, %v592
  %v799 = vpack.c.b16 %v597, %v595
  %v800 = vpack.c.b16 %v598, %v596
  %v801 = vpack.c.b16 %v601, %v599
  %v802 = vpack.c.b16 %v602, %v600
  %v803 = vpack.c.b16 %v605, %v603
  %v804 = vpack.c.b16 %v606, %v604
  %v805 = vpack.c.b16 %v609, %v607
  %v806 = vpack.c.b16 %v610, %v608
  %v807 = vpack.c.b16 %v613, %v611
  %v808 = vpack.c.b16 %v614, %v612
  %v809 = vpack.c.b16 %v617, %v615
  %v810 = vpack.c.b16 %v618, %v616
  %v811 = vpack.c.b16 %v621, %v619
  %v812 = vpack.c.b16 %v622, %v620
  %v813 = vpack.c.b16 %v625, %v623
  %v814 = vpack.c.b16 %v626, %v624
  %v815 = vpack.c.b16 %v629, %v627
  %v816 = vpack.c.b16 %v630, %v628
  %v817 = vpack.c.b16 %v633, %v631
  %v818 = vpack.c.b16 %v634, %v632
  %v819 = vpack.c.b16 %v637, %v635
  %v820 = vpack.c.b16 %v638, %v636
  %v821 = vpack.c.b16 %v641, %v639
  %v822 = vpack.c.b16 %v642, %v640
  %v823 = vpack.c.b16 %v645, %v643
  %v824 = vpack.c.b16 %v646, %v644
  %v825 = vpack.c.b16 %v649, %v647
  %v826 = vpack.c.b16 %v650, %v648
  %v827 = vpack.c.b16 %v653, %v651
  %v828 = vpack.c.b16 %v654, %v652
  %v829 = vpack.c.b16 %v657, %v655
  %v830 = vpack.c.b16 %v658, %v656
  %v831 = vpack.c.b16 %v661, %v659
  %v832 = vpack.c.b16 %v662, %v660
  %v833 = vpack.c.b16 %v665, %v663
  %v834 = vpack.c.b16 %v666, %v664
  %v835 = vpack.c.b16 %v669, %v667
  %v836 = vpack.c.b16 %v670, %v668
  %v837 = vpack.c.b16 %v673, %v671
  %v838 = vpack.c.b16 %v674, %v672
  %v839 = vpack.c.b16 %v677, %v675
  %v840 = vpack.c.b16 %v678, %v676
  %v841 = vpack.c.b16 %v681, %v679
  %v842 = vpack.c.b16 %v682, %v680
  %v843 = vpack.c.b16 %v685, %v683
  %v844 = vpack.c.b16 %v686, %v684
  %v845 = vpack.c.b16 %v689, %v687
  %v846 = vpack.c.b16 %v690, %v688
  %v847 = vpack.c.b16 %v693, %v691
  %v848 = vpack.c.b16 %v694, %v692
  %v849 = vpack.c.b16 %v697, %v695
  %v850 = vpack.c.b16 %v698, %v696
  %v851 = vpack.c.b16 %v701, %v699
  %v852 = vpack.c.b16 %v702, %v700
  %v853 = vpack.c.b16 %v705, %v703
  %v854 = vpack.c.b16 %v706, %v704
  %v855 = vpack.c.b16 %v709, %v707
  %v856 = vpack.c.b16 %v710, %v708
  %v857 = vpack.c.b16 %v713, %v711
  %v858 = vpack.c.b16 %v714, %v712
  %1003 = vmatprep.subr.bf16.mxu0 %v716
  %1004 = vmatpush1.bf16.msra.mxu0 %v715
  %1005 = vmatprep.subr.bf16.mxu0 %v718
  %1006 = vmatpush1.bf16.msra.mxu0 %v717
  %1007 = vmatprep.subr.bf16.mxu0 %v720
  %1008 = vmatpush1.bf16.msra.mxu0 %v719
  %1009 = vmatprep.subr.bf16.mxu0 %v722
  %1010 = vmatpush1.bf16.msra.mxu0 %v721
  %1011 = vmatprep.subr.bf16.mxu0 %v724
  %1012 = vmatpush1.bf16.msra.mxu0 %v723
  %1013 = vmatprep.subr.bf16.mxu0 %v726
  %1014 = vmatpush1.bf16.msra.mxu0 %v725
  %1015 = vmatprep.subr.bf16.mxu0 %v728
  %1016 = vmatpush1.bf16.msra.mxu0 %v727
  %1017 = vmatprep.subr.bf16.mxu0 %v730
  %1018 = vmatpush1.bf16.msra.mxu0 %v729
  %1019 = vmatprep.subr.bf16.mxu0 %v732
  %1020 = vmatpush1.bf16.msra.mxu0 %v731
  %1021 = vmatprep.subr.bf16.mxu0 %v734
  %1022 = vmatpush1.bf16.msra.mxu0 %v733
  %1023 = vmatprep.subr.bf16.mxu0 %v736
  %1024 = vmatpush1.bf16.msra.mxu0 %v735
  %1025 = vmatprep.subr.bf16.mxu0 %v738
  %1026 = vmatpush1.bf16.msra.mxu0 %v737
  %1027 = vmatprep.subr.bf16.mxu0 %v740
  %1028 = vmatpush1.bf16.msra.mxu0 %v739
  %1029 = vmatprep.subr.bf16.mxu0 %v742
  %1030 = vmatpush1.bf16.msra.mxu0 %v741
  %1031 = vmatprep.subr.bf16.mxu0 %v744
  %1032 = vmatpush1.bf16.msra.mxu0 %v743
  %1033 = vmatprep.subr.bf16.mxu0 %v746
  %1034 = vmatpush1.bf16.msra.mxu0 %v745
  %1035 = vmatprep.mubr.bf16.mxu0 %v248
  %1036 = vmatmul.mubr.bf16.gmra.mrb[0].mxu0 %v247
  %v1037 = vpop.f32.mrb[0].mxu0
  %v1038 = vadd.f32 %v184, %v1037
  %v1039 = vpop.f32.mrb[0].mxu0
  %v1040 = vadd.f32 %v188, %v1039
  %v1041 = vpop.f32.mrb[0].mxu0
  %v1042 = vadd.f32 %v184, %v1041
  %v1043 = vpop.f32.mrb[0].mxu0
  %v1044 = vadd.f32 %v188, %v1043
  %1045 = vmatprep.mubr.bf16.mxu0 %v257
  %1046 = vmatmul.mubr.bf16.gmra.mrb[0].mxu0 %v256
  %v1047 = vpop.f32.mrb[0].mxu0
  %v1048 = vadd.f32 %v184, %v1047
  %v1049 = vpop.f32.mrb[0].mxu0
  %v1050 = vadd.f32 %v188, %v1049
  %v1051 = vpop.f32.mrb[0].mxu0
  %v1052 = vadd.f32 %v184, %v1051
  %v1053 = vpop.f32.mrb[0].mxu0
  %v1054 = vadd.f32 %v188, %v1053
  %1055 = vdwg.mxu0
  %1056 = vmatprep.subr.bf16.mxu0 %v748
  %1057 = vmatpush1.bf16.msra.mxu0 %v747
  %1058 = vmatprep.subr.bf16.mxu0 %v750
  %1059 = vmatpush1.bf16.msra.mxu0 %v749
  %1060 = vmatprep.subr.bf16.mxu0 %v752
  %1061 = vmatpush1.bf16.msra.mxu0 %v751
  %1062 = vmatprep.subr.bf16.mxu0 %v754
  %1063 = vmatpush1.bf16.msra.mxu0 %v753
  %1064 = vmatprep.subr.bf16.mxu0 %v756
  %1065 = vmatpush1.bf16.msra.mxu0 %v755
  %1066 = vmatprep.subr.bf16.mxu0 %v758
  %1067 = vmatpush1.bf16.msra.mxu0 %v757
  %1068 = vmatprep.subr.bf16.mxu0 %v760
  %1069 = vmatpush1.bf16.msra.mxu0 %v759
  %1070 = vmatprep.subr.bf16.mxu0 %v762
  %1071 = vmatpush1.bf16.msra.mxu0 %v761
  %1072 = vmatprep.subr.bf16.mxu0 %v764
  %1073 = vmatpush1.bf16.msra.mxu0 %v763
  %1074 = vmatprep.subr.bf16.mxu0 %v766
  %1075 = vmatpush1.bf16.msra.mxu0 %v765
  %1076 = vmatprep.subr.bf16.mxu0 %v768
  %1077 = vmatpush1.bf16.msra.mxu0 %v767
  %1078 = vmatprep.subr.bf16.mxu0 %v770
  %1079 = vmatpush1.bf16.msra.mxu0 %v769
  %1080 = vmatprep.subr.bf16.mxu0 %v772
  %1081 = vmatpush1.bf16.msra.mxu0 %v771
  %1082 = vmatprep.subr.bf16.mxu0 %v774
  %1083 = vmatpush1.bf16.msra.mxu0 %v773
  %1084 = vmatprep.subr.bf16.mxu0 %v776
  %1085 = vmatpush1.bf16.msra.mxu0 %v775
  %1086 = vmatprep.subr.bf16.mxu0 %v778
  %1087 = vmatpush1.bf16.msra.mxu0 %v777
  %1088 = vmatprep.mubr.bf16.mxu0 %v250
  %1089 = vmatmul.mubr.bf16.gmra.mrb[0].mxu0 %v249
  %v1090 = vpop.f32.mrb[0].mxu0
  %v1091 = vadd.f32 %v1038, %v1090
  %v1092 = vpop.f32.mrb[0].mxu0
  %v1093 = vadd.f32 %v1040, %v1092
  %v1094 = vpop.f32.mrb[0].mxu0
  %v1095 = vadd.f32 %v1042, %v1094
  %v1096 = vpop.f32.mrb[0].mxu0
  %v1097 = vadd.f32 %v1044, %v1096
  %1098 = vmatprep.mubr.bf16.mxu0 %v259
  %1099 = vmatmul.mubr.bf16.gmra.mrb[0].mxu0 %v258
  %v1100 = vpop.f32.mrb[0].mxu0
  %v1101 = vadd.f32 %v1048, %v1100
  %v1102 = vpop.f32.mrb[0].mxu0
  %v1103 = vadd.f32 %v1050, %v1102
  %v1104 = vpop.f32.mrb[0].mxu0
  %v1105 = vadd.f32 %v1052, %v1104
  %v1106 = vpop.f32.mrb[0].mxu0
  %v1107 = vadd.f32 %v1054, %v1106
  %1108 = vdwg.mxu0
  %1109 = vmatprep.subr.bf16.mxu0 %v780
  %1110 = vmatpush1.bf16.msra.mxu0 %v779
  %1111 = vmatprep.subr.bf16.mxu0 %v782
  %1112 = vmatpush1.bf16.msra.mxu0 %v781
  %1113 = vmatprep.subr.bf16.mxu0 %v784
  %1114 = vmatpush1.bf16.msra.mxu0 %v783
  %1115 = vmatprep.subr.bf16.mxu0 %v786
  %1116 = vmatpush1.bf16.msra.mxu0 %v785
  %1117 = vmatprep.subr.bf16.mxu0 %v788
  %1118 = vmatpush1.bf16.msra.mxu0 %v787
  %1119 = vmatprep.subr.bf16.mxu0 %v790
  %1120 = vmatpush1.bf16.msra.mxu0 %v789
  %1121 = vmatprep.subr.bf16.mxu0 %v792
  %1122 = vmatpush1.bf16.msra.mxu0 %v791
  %1123 = vmatprep.subr.bf16.mxu0 %v794
  %1124 = vmatpush1.bf16.msra.mxu0 %v793
  %1125 = vmatprep.subr.bf16.mxu0 %v796
  %1126 = vmatpush1.bf16.msra.mxu0 %v795
  %1127 = vmatprep.subr.bf16.mxu0 %v798
  %1128 = vmatpush1.bf16.msra.mxu0 %v797
  %1129 = vmatprep.subr.bf16.mxu0 %v800
  %1130 = vmatpush1.bf16.msra.mxu0 %v799
  %1131 = vmatprep.subr.bf16.mxu0 %v802
  %1132 = vmatpush1.bf16.msra.mxu0 %v801
  %1133 = vmatprep.subr.bf16.mxu0 %v804
  %1134 = vmatpush1.bf16.msra.mxu0 %v803
  %1135 = vmatprep.subr.bf16.mxu0 %v806
  %1136 = vmatpush1.bf16.msra.mxu0 %v805
  %1137 = vmatprep.subr.bf16.mxu0 %v808
  %1138 = vmatpush1.bf16.msra.mxu0 %v807
  %1139 = vmatprep.subr.bf16.mxu0 %v810
  %1140 = vmatpush1.bf16.msra.mxu0 %v809
  %1141 = vmatprep.mubr.bf16.mxu0 %v252
  %1142 = vmatmul.mubr.bf16.gmra.mrb[0].mxu0 %v251
  %v1143 = vpop.f32.mrb[0].mxu0
  %v1144 = vadd.f32 %v1091, %v1143
  %v1145 = vpop.f32.mrb[0].mxu0
  %v1146 = vadd.f32 %v1093, %v1145
  %v1147 = vpop.f32.mrb[0].mxu0
  %v1148 = vadd.f32 %v1095, %v1147
  %v1149 = vpop.f32.mrb[0].mxu0
  %v1150 = vadd.f32 %v1097, %v1149
  %1151 = vmatprep.mubr.bf16.mxu0 %v261
  %1152 = vmatmul.mubr.bf16.gmra.mrb[0].mxu0 %v260
  %v1153 = vpop.f32.mrb[0].mxu0
  %v1154 = vadd.f32 %v1101, %v1153
  %v1155 = vpop.f32.mrb[0].mxu0
  %v1156 = vadd.f32 %v1103, %v1155
  %v1157 = vpop.f32.mrb[0].mxu0
  %v1158 = vadd.f32 %v1105, %v1157
  %v1159 = vpop.f32.mrb[0].mxu0
  %v1160 = vadd.f32 %v1107, %v1159
  %1161 = vdwg.mxu0
  %1162 = vmatprep.subr.bf16.mxu0 %v812
  %1163 = vmatpush1.bf16.msra.mxu0 %v811
  %1164 = vmatprep.subr.bf16.mxu0 %v814
  %1165 = vmatpush1.bf16.msra.mxu0 %v813
  %1166 = vmatprep.subr.bf16.mxu0 %v816
  %1167 = vmatpush1.bf16.msra.mxu0 %v815
  %1168 = vmatprep.subr.bf16.mxu0 %v818
  %1169 = vmatpush1.bf16.msra.mxu0 %v817
  %1170 = vmatprep.subr.bf16.mxu0 %v820
  %1171 = vmatpush1.bf16.msra.mxu0 %v819
  %1172 = vmatprep.subr.bf16.mxu0 %v822
  %1173 = vmatpush1.bf16.msra.mxu0 %v821
  %1174 = vmatprep.subr.bf16.mxu0 %v824
  %1175 = vmatpush1.bf16.msra.mxu0 %v823
  %1176 = vmatprep.subr.bf16.mxu0 %v826
  %1177 = vmatpush1.bf16.msra.mxu0 %v825
  %1178 = vmatprep.subr.bf16.mxu0 %v828
  %1179 = vmatpush1.bf16.msra.mxu0 %v827
  %1180 = vmatprep.subr.bf16.mxu0 %v830
  %1181 = vmatpush1.bf16.msra.mxu0 %v829
  %1182 = vmatprep.subr.bf16.mxu0 %v832
  %1183 = vmatpush1.bf16.msra.mxu0 %v831
  %1184 = vmatprep.subr.bf16.mxu0 %v834
  %1185 = vmatpush1.bf16.msra.mxu0 %v833
  %1186 = vmatprep.subr.bf16.mxu0 %v836
  %1187 = vmatpush1.bf16.msra.mxu0 %v835
  %1188 = vmatprep.subr.bf16.mxu0 %v838
  %1189 = vmatpush1.bf16.msra.mxu0 %v837
  %1190 = vmatprep.subr.bf16.mxu0 %v840
  %1191 = vmatpush1.bf16.msra.mxu0 %v839
  %1192 = vmatprep.subr.bf16.mxu0 %v842
  %1193 = vmatpush1.bf16.msra.mxu0 %v841
  %1194 = vmatprep.mubr.bf16.mxu0 %v254
  %1195 = vmatmul.mubr.bf16.gmra.mrb[0].mxu0 %v253
  %v1196 = vpop.f32.mrb[0].mxu0
  %v1197 = vadd.f32 %v1144, %v1196
  %v1198 = vpop.f32.mrb[0].mxu0
  %v1199 = vadd.f32 %v1146, %v1198
  %v1200 = vpop.f32.mrb[0].mxu0
  %v1201 = vadd.f32 %v1148, %v1200
  %v1202 = vpop.f32.mrb[0].mxu0
  %v1203 = vadd.f32 %v1150, %v1202
  %1204 = vmatprep.mubr.bf16.mxu0 %v263
  %1205 = vmatmul.mubr.bf16.gmra.mrb[0].mxu0 %v262
  %v1206 = vpop.f32.mrb[0].mxu0
  %v1207 = vadd.f32 %v1154, %v1206
  %v1208 = vpop.f32.mrb[0].mxu0
  %v1209 = vadd.f32 %v1156, %v1208
  %v1210 = vpop.f32.mrb[0].mxu0
  %v1211 = vadd.f32 %v1158, %v1210
  %v1212 = vpop.f32.mrb[0].mxu0
  %v1213 = vadd.f32 %v1160, %v1212
  %1214 = vdwg.mxu0
  %1215 = vmatprep.subr.bf16.mxu0 %v844
  %1216 = vmatpush1.bf16.msra.mxu0 %v843
  %1217 = vmatprep.subr.bf16.mxu0 %v846
  %1218 = vmatpush1.bf16.msra.mxu0 %v845
  %1219 = vmatprep.subr.bf16.mxu0 %v848
  %1220 = vmatpush1.bf16.msra.mxu0 %v847
  %1221 = vmatprep.subr.bf16.mxu0 %v850
  %1222 = vmatpush1.bf16.msra.mxu0 %v849
  %1223 = vmatprep.subr.bf16.mxu0 %v852
  %1224 = vmatpush1.bf16.msra.mxu0 %v851
  %1225 = vmatprep.subr.bf16.mxu0 %v854
  %1226 = vmatpush1.bf16.msra.mxu0 %v853
  %1227 = vmatprep.subr.bf16.mxu0 %v856
  %1228 = vmatpush1.bf16.msra.mxu0 %v855
  %1229 = vmatprep.subr.bf16.mxu0 %v858
  %1230 = vmatpush1.bf16.msra.mxu0 %v857
  %1231 = vmatprep.subr.bf16.mxu0 0
  %1232 = vmatpush1.bf16.msra.mxu0 0
  %1233 = vmatprep.subr.bf16.mxu0 0
  %1234 = vmatpush1.bf16.msra.mxu0 0
  %1235 = vmatprep.subr.bf16.mxu0 0
  %1236 = vmatpush1.bf16.msra.mxu0 0
  %1237 = vmatprep.subr.bf16.mxu0 0
  %1238 = vmatpush1.bf16.msra.mxu0 0
  %1239 = vmatprep.subr.bf16.mxu0 0
  %1240 = vmatpush1.bf16.msra.mxu0 0
  %1241 = vmatprep.subr.bf16.mxu0 0
  %1242 = vmatpush1.bf16.msra.mxu0 0
  %1243 = vmatprep.subr.bf16.mxu0 0
  %1244 = vmatpush1.bf16.msra.mxu0 0
  %1245 = vmatprep.subr.bf16.mxu0 0
  %1246 = vmatpush1.bf16.msra.mxu0 0
  %1247 = vmatprep.mubr.bf16.mxu0 0
  %1248 = vmatmul.mubr.bf16.gmra.mrb[0].mxu0 %v255
  %v1249 = vpop.f32.mrb[0].mxu0
  %v1250 = vadd.f32 %v1197, %v1249
  %v1251 = vpop.f32.mrb[0].mxu0
  %v1252 = vadd.f32 %v1199, %v1251
  %v1253 = vpop.f32.mrb[0].mxu0
  %v1254 = vadd.f32 %v1201, %v1253
  %v1255 = vpop.f32.mrb[0].mxu0
  %v1256 = vadd.f32 %v1203, %v1255
  %1257 = vmatprep.mubr.bf16.mxu0 0
  %1258 = vmatmul.mubr.bf16.gmra.mrb[0].mxu0 %v264
  %v1259 = vpop.f32.mrb[0].mxu0
  %v1260 = vadd.f32 %v1207, %v1259
  %v1261 = vpop.f32.mrb[0].mxu0
  %v1262 = vadd.f32 %v1209, %v1261
  %v1263 = vpop.f32.mrb[0].mxu0
  %v1264 = vadd.f32 %v1211, %v1263
  %v1265 = vpop.f32.mrb[0].mxu0
  %v1266 = vadd.f32 %v1213, %v1265
  %1267 = vdwg.mxu0
  %vm1268 = vcmp.ge.f32.partialorder %v1250, 0.0
  %vm1269 = vcmp.ge.f32.partialorder %v1252, 0.0
  %vm1270 = vcmp.ge.f32.partialorder %v1254, 0.0
  %vm1271 = vcmp.ge.f32.partialorder %v1256, 0.0
  %vm1272 = vcmp.ge.f32.partialorder %v1260, 0.0
  %vm1273 = vcmp.ge.f32.partialorder %v1262, 0.0
  %vm1274 = vcmp.ge.f32.partialorder %v1264, 0.0
  %vm1275 = vcmp.ge.f32.partialorder %v1266, 0.0
  %v1276 = vmul.f32 %v1250, 0.2
  %v1277 = vmul.f32 %v1252, 0.2
  %v1278 = vmul.f32 %v1254, 0.2
  %v1279 = vmul.f32 %v1256, 0.2
  %v1280 = vmul.f32 %v1260, 0.2
  %v1281 = vmul.f32 %v1262, 0.2
  %v1282 = vmul.f32 %v1264, 0.2
  %v1283 = vmul.f32 %v1266, 0.2
  %v1284 = vsel %vm1268, %v1250, %v1276
  %v1285 = vsel %vm1269, %v1252, %v1277
  %v1286 = vsel %vm1270, %v1254, %v1278
  %v1287 = vsel %vm1271, %v1256, %v1279
  %v1288 = vsel %vm1272, %v1260, %v1280
  %v1289 = vsel %vm1273, %v1262, %v1281
  %v1290 = vsel %vm1274, %v1264, %v1282
  %v1291 = vsel %vm1275, %v1266, %v1283
  %v1292 = vpack.c.bf16 %v1286, %v1284
  %v1293 = vpack.c.bf16 %v1287, %v1285
  %v1294 = vpack.c.bf16 %v1290, %v1288
  %v1295 = vpack.c.bf16 %v1291, %v1289
  %v1300 = vunpack.c.l.b16 %v1292
  %v1301 = vunpack.c.l.b16 %v1293
  %v1302 = vunpack.c.h.b16 %v1292
  %v1303 = vunpack.c.h.b16 %v1293
  %v1304 = vunpack.c.l.b16 %v1294
  %v1305 = vunpack.c.l.b16 %v1295
  %v1306 = vunpack.c.h.b16 %v1294
  %v1307 = vunpack.c.h.b16 %v1295
  %v1308 = vpack.c.b16 %v1301, %v1300
  %v1309 = vpack.c.b16 %v1303, %v1302
  %v1310 = vpack.c.b16 %v1305, %v1304
  %v1311 = vpack.c.b16 %v1307, %v1306
  %1316 = vst [vmem:[%s3] sm:$0xff] %v1308
  %1317 = vst [vmem:[%s3 + $0x8] sm:$0xff] %v1309
  %1318 = vst [vmem:[%s3 + $0x10] sm:$0xff] %v1310
  %1319 = vst [vmem:[%s3 + $0x18] sm:$0xff] %v1311
  // Predicated region
  $region14: #{discriminator_forward.7} parent=0 // pred_check
    _
  $region15: #{discriminator_forward.7} parent=0 // pred_check_branch
    %1321 = sbr.rel (0) target = $region17
  $region16: #{discriminator_forward.7} parent=0 // pred_region
    _
  $region17: #{discriminator_forward.7} parent=0 // pred_fallthru
    _
  // Predicated region
  $region18: #{discriminator_forward.7} parent=0 // pred_check
    _
  $region19: #{discriminator_forward.7} parent=0 // pred_check_branch
    %1323 = sbr.rel (0) target = $region21
  $region20: #{discriminator_forward.7} parent=0 // pred_region
    _
  $region21: #{discriminator_forward.7} parent=0 // pred_fallthru
    _

// kernel: discriminator_forward.9
$region0: #{discriminator_forward.9}
  #allocation0 [shape = 'u32[]', space=smem, size = 0x4, offset = 0x4, fixed_abs, tag = 'smem constant byte address 0x4 - core index']
  #allocation1 [shape = 'u32[144,128]{1,0:T(1,128)}', space=vmem, size = 0x12000, scoped, tag = 'internal scratch']
  #allocation2 [shape = 'f32[1,1]{1,0:T(1,128)S(1)}', space=vmem, size = 0x200, scoped, tag = 'scoped memory for discriminator_forward.9']
  %s0 = inlined_call_operand.vmem [shape: bf16[2,4,512], index: 0, kind: input, shape index: {}]
  %s1 = inlined_call_operand.vmem [shape: bf16[512,1024], index: 1, kind: input, shape index: {}]
  %s2 = inlined_call_operand.vmem [shape: f32[1,1024], index: 2, kind: input, shape index: {}]
  %s3 = inlined_call_operand.vmem [shape: bf16[1024,1], index: 3, kind: input, shape index: {}]
  %s4 = inlined_call_operand.<no memory space> [shape: f32[1,1], index: 4, kind: input, shape index: {}]
  %s5 = inlined_call_operand.vmem [shape: f32[2,1], index: 5, kind: output, shape index: {}]
  %s6 = sld [smem:[#allocation0]]
  $region30: #{discriminator_forward.9} parent=0
    _
  %s8 = ssub.s32 1, %s6
  %s9 = scalar_select 0, %s8, %s6
  %v10 = vstv %s4
  %11 = vst [vmem:[#allocation2] sm:$0x1] %v10
  // Predicated region
  $region2: #{discriminator_forward.9} parent=0 // pred_check
    _
  $region3: #{discriminator_forward.9} parent=0 // pred_check_branch
    %13 = sbr.rel (0) target = $region5
  $region4: #{discriminator_forward.9} parent=0 // pred_region
    _
  $region5: #{discriminator_forward.9} parent=0 // pred_fallthru
    _
  // Predicated region
  $region6: #{discriminator_forward.9} parent=0 // pred_check
    _
  $region7: #{discriminator_forward.9} parent=0 // pred_check_branch
    %15 = sbr.rel (0) target = $region9
  $region8: #{discriminator_forward.9} parent=0 // pred_region
    _
  $region9: #{discriminator_forward.9} parent=0 // pred_fallthru
    _
  // Predicated region
  $region10: #{discriminator_forward.9} parent=0 // pred_check
    _
  $region11: #{discriminator_forward.9} parent=0 // pred_check_branch
    %17 = sbr.rel (0) target = $region13
  $region12: #{discriminator_forward.9} parent=0 // pred_region
    _
  $region13: #{discriminator_forward.9} parent=0 // pred_fallthru
    _
  // Predicated region
  $region14: #{discriminator_forward.9} parent=0 // pred_check
    _
  $region15: #{discriminator_forward.9} parent=0 // pred_check_branch
    %19 = sbr.rel (0) target = $region17
  $region16: #{discriminator_forward.9} parent=0 // pred_region
    _
  $region17: #{discriminator_forward.9} parent=0 // pred_fallthru
    _
  // Predicated region
  $region18: #{discriminator_forward.9} parent=0 // pred_check
    _
  $region19: #{discriminator_forward.9} parent=0 // pred_check_branch
    %21 = sbr.rel (0) target = $region21
  $region20: #{discriminator_forward.9} parent=0 // pred_region
    _
  $region21: #{discriminator_forward.9} parent=0 // pred_fallthru
    _
  %v23 = vld [vmem:[%s0] sm:$0xff]
  %v24 = vld [vmem:[%s0 + $0x8] sm:$0xff]
  %v25 = vunpack.c.l.bf16 %v23
  %v26 = vunpack.c.h.bf16 %v23
  %v27 = vunpack.c.l.bf16 %v24
  %v28 = vunpack.c.h.bf16 %v24
  %v33 = vcombine.high %v25, %v25
  %v34 = vcombine.high %v26, %v26
  %v35 = vcombine.high %v27, %v27
  %v36 = vcombine.high %v28, %v28
  %vm41 = vcmask 1043456
  %v42 = vsel %vm41, %v25, 0.0
  %v43 = vrot.slane %v42, 4
  %v44 = vadd.f32 %v42, %v43
  %v45 = vrot.slane %v44, 2
  %v46 = vadd.f32 %v44, %v45
  %v47 = vrot.slane %v46, 1
  %v48 = vadd.f32 %v46, %v47
  %v49 = vsel %vm41, %v33, 0.0
  %v50 = vrot.slane %v49, 4
  %v51 = vadd.f32 %v49, %v50
  %v52 = vrot.slane %v51, 2
  %v53 = vadd.f32 %v51, %v52
  %v54 = vrot.slane %v53, 1
  %v55 = vadd.f32 %v53, %v54
  %v56 = vsel %vm41, %v26, 0.0
  %v57 = vrot.slane %v56, 4
  %v58 = vadd.f32 %v56, %v57
  %v59 = vrot.slane %v58, 2
  %v60 = vadd.f32 %v58, %v59
  %v61 = vrot.slane %v60, 1
  %v62 = vadd.f32 %v60, %v61
  %v63 = vsel %vm41, %v34, 0.0
  %v64 = vrot.slane %v63, 4
  %v65 = vadd.f32 %v63, %v64
  %v66 = vrot.slane %v65, 2
  %v67 = vadd.f32 %v65, %v66
  %v68 = vrot.slane %v67, 1
  %v69 = vadd.f32 %v67, %v68
  %v70 = vsel %vm41, %v27, 0.0
  %v71 = vrot.slane %v70, 4
  %v72 = vadd.f32 %v70, %v71
  %v73 = vrot.slane %v72, 2
  %v74 = vadd.f32 %v72, %v73
  %v75 = vrot.slane %v74, 1
  %v76 = vadd.f32 %v74, %v75
  %v77 = vsel %vm41, %v35, 0.0
  %v78 = vrot.slane %v77, 4
  %v79 = vadd.f32 %v77, %v78
  %v80 = vrot.slane %v79, 2
  %v81 = vadd.f32 %v79, %v80
  %v82 = vrot.slane %v81, 1
  %v83 = vadd.f32 %v81, %v82
  %v84 = vsel %vm41, %v28, 0.0
  %v85 = vrot.slane %v84, 4
  %v86 = vadd.f32 %v84, %v85
  %v87 = vrot.slane %v86, 2
  %v88 = vadd.f32 %v86, %v87
  %v89 = vrot.slane %v88, 1
  %v90 = vadd.f32 %v88, %v89
  %v91 = vsel %vm41, %v36, 0.0
  %v92 = vrot.slane %v91, 4
  %v93 = vadd.f32 %v91, %v92
  %v94 = vrot.slane %v93, 2
  %v95 = vadd.f32 %v93, %v94
  %v96 = vrot.slane %v95, 1
  %v97 = vadd.f32 %v95, %v96
  %v98 = vmul.f32 %v48, 0.25
  %v99 = vmul.f32 %v55, 0.25
  %v100 = vmul.f32 %v62, 0.25
  %v101 = vmul.f32 %v69, 0.25
  %v102 = vmul.f32 %v76, 0.25
  %v103 = vmul.f32 %v83, 0.25
  %v104 = vmul.f32 %v90, 0.25
  %v105 = vmul.f32 %v97, 0.25
  %v106 = vpack.c.bf16 %v98, %v98
  %v107 = vpack.c.bf16 %v99, %v99
  %v108 = vpack.c.bf16 %v100, %v100
  %v109 = vpack.c.bf16 %v101, %v101
  %v110 = vpack.c.bf16 %v102, %v102
  %v111 = vpack.c.bf16 %v103, %v103
  %v112 = vpack.c.bf16 %v104, %v104
  %v113 = vpack.c.bf16 %v105, %v105
  %v114 = vld [vmem:[%s1] sm:$0xff]
  %v115 = vld [vmem:[%s1 + $0x8] sm:$0xff]
  %v116 = vld [vmem:[%s1 + $0x10] sm:$0xff]
  %v117 = vld [vmem:[%s1 + $0x18] sm:$0xff]
  %v118 = vld [vmem:[%s1 + $0x20] sm:$0xff]
  %v119 = vld [vmem:[%s1 + $0x28] sm:$0xff]
  %v120 = vld [vmem:[%s1 + $0x30] sm:$0xff]
  %v121 = vld [vmem:[%s1 + $0x38] sm:$0xff]
  %v122 = vld [vmem:[%s1 + $0x40] sm:$0xff]
  %v123 = vld [vmem:[%s1 + $0x48] sm:$0xff]
  %v124 = vld [vmem:[%s1 + $0x50] sm:$0xff]
  %v125 = vld [vmem:[%s1 + $0x58] sm:$0xff]
  %v126 = vld [vmem:[%s1 + $0x60] sm:$0xff]
  %v127 = vld [vmem:[%s1 + $0x68] sm:$0xff]
  %v128 = vld [vmem:[%s1 + $0x70] sm:$0xff]
  %v129 = vld [vmem:[%s1 + $0x78] sm:$0xff]
  %v130 = vld [vmem:[%s1 + $0x80] sm:$0xff]
  %v131 = vld [vmem:[%s1 + $0x88] sm:$0xff]
  %v132 = vld [vmem:[%s1 + $0x90] sm:$0xff]
  %v133 = vld [vmem:[%s1 + $0x98] sm:$0xff]
  %v134 = vld [vmem:[%s1 + $0xa0] sm:$0xff]
  %v135 = vld [vmem:[%s1 + $0xa8] sm:$0xff]
  %v136 = vld [vmem:[%s1 + $0xb0] sm:$0xff]
  %v137 = vld [vmem:[%s1 + $0xb8] sm:$0xff]
  %v138 = vld [vmem:[%s1 + $0xc0] sm:$0xff]
  %v139 = vld [vmem:[%s1 + $0xc8] sm:$0xff]
  %v140 = vld [vmem:[%s1 + $0xd0] sm:$0xff]
  %v141 = vld [vmem:[%s1 + $0xd8] sm:$0xff]
  %v142 = vld [vmem:[%s1 + $0xe0] sm:$0xff]
  %v143 = vld [vmem:[%s1 + $0xe8] sm:$0xff]
  %v144 = vld [vmem:[%s1 + $0xf0] sm:$0xff]
  %v145 = vld [vmem:[%s1 + $0xf8] sm:$0xff]
  %v146 = vld [vmem:[%s1 + $0x100] sm:$0xff]
  %v147 = vld [vmem:[%s1 + $0x108] sm:$0xff]
  %v148 = vld [vmem:[%s1 + $0x110] sm:$0xff]
  %v149 = vld [vmem:[%s1 + $0x118] sm:$0xff]
  %v150 = vld [vmem:[%s1 + $0x120] sm:$0xff]
  %v151 = vld [vmem:[%s1 + $0x128] sm:$0xff]
  %v152 = vld [vmem:[%s1 + $0x130] sm:$0xff]
  %v153 = vld [vmem:[%s1 + $0x138] sm:$0xff]
  %v154 = vld [vmem:[%s1 + $0x140] sm:$0xff]
  %v155 = vld [vmem:[%s1 + $0x148] sm:$0xff]
  %v156 = vld [vmem:[%s1 + $0x150] sm:$0xff]
  %v157 = vld [vmem:[%s1 + $0x158] sm:$0xff]
  %v158 = vld [vmem:[%s1 + $0x160] sm:$0xff]
  %v159 = vld [vmem:[%s1 + $0x168] sm:$0xff]
  %v160 = vld [vmem:[%s1 + $0x170] sm:$0xff]
  %v161 = vld [vmem:[%s1 + $0x178] sm:$0xff]
  %v162 = vld [vmem:[%s1 + $0x180] sm:$0xff]
  %v163 = vld [vmem:[%s1 + $0x188] sm:$0xff]
  %v164 = vld [vmem:[%s1 + $0x190] sm:$0xff]
  %v165 = vld [vmem:[%s1 + $0x198] sm:$0xff]
  %v166 = vld [vmem:[%s1 + $0x1a0] sm:$0xff]
  %v167 = vld [vmem:[%s1 + $0x1a8] sm:$0xff]
  %v168 = vld [vmem:[%s1 + $0x1b0] sm:$0xff]
  %v169 = vld [vmem:[%s1 + $0x1b8] sm:$0xff]
  %v170 = vld [vmem:[%s1 + $0x1c0] sm:$0xff]
  %v171 = vld [vmem:[%s1 + $0x1c8] sm:$0xff]
  %v172 = vld [vmem:[%s1 + $0x1d0] sm:$0xff]
  %v173 = vld [vmem:[%s1 + $0x1d8] sm:$0xff]
  %v174 = vld [vmem:[%s1 + $0x1e0] sm:$0xff]
  %v175 = vld [vmem:[%s1 + $0x1e8] sm:$0xff]
  %v176 = vld [vmem:[%s1 + $0x1f0] sm:$0xff]
  %v177 = vld [vmem:[%s1 + $0x1f8] sm:$0xff]
  %v178 = vld [vmem:[%s1 + $0x200] sm:$0xff]
  %v179 = vld [vmem:[%s1 + $0x208] sm:$0xff]
  %v180 = vld [vmem:[%s1 + $0x210] sm:$0xff]
  %v181 = vld [vmem:[%s1 + $0x218] sm:$0xff]
  %v182 = vld [vmem:[%s1 + $0x220] sm:$0xff]
  %v183 = vld [vmem:[%s1 + $0x228] sm:$0xff]
  %v184 = vld [vmem:[%s1 + $0x230] sm:$0xff]
  %v185 = vld [vmem:[%s1 + $0x238] sm:$0xff]
  %v186 = vld [vmem:[%s1 + $0x240] sm:$0xff]
  %v187 = vld [vmem:[%s1 + $0x248] sm:$0xff]
  %v188 = vld [vmem:[%s1 + $0x250] sm:$0xff]
  %v189 = vld [vmem:[%s1 + $0x258] sm:$0xff]
  %v190 = vld [vmem:[%s1 + $0x260] sm:$0xff]
  %v191 = vld [vmem:[%s1 + $0x268] sm:$0xff]
  %v192 = vld [vmem:[%s1 + $0x270] sm:$0xff]
  %v193 = vld [vmem:[%s1 + $0x278] sm:$0xff]
  %v194 = vld [vmem:[%s1 + $0x280] sm:$0xff]
  %v195 = vld [vmem:[%s1 + $0x288] sm:$0xff]
  %v196 = vld [vmem:[%s1 + $0x290] sm:$0xff]
  %v197 = vld [vmem:[%s1 + $0x298] sm:$0xff]
  %v198 = vld [vmem:[%s1 + $0x2a0] sm:$0xff]
  %v199 = vld [vmem:[%s1 + $0x2a8] sm:$0xff]
  %v200 = vld [vmem:[%s1 + $0x2b0] sm:$0xff]
  %v201 = vld [vmem:[%s1 + $0x2b8] sm:$0xff]
  %v202 = vld [vmem:[%s1 + $0x2c0] sm:$0xff]
  %v203 = vld [vmem:[%s1 + $0x2c8] sm:$0xff]
  %v204 = vld [vmem:[%s1 + $0x2d0] sm:$0xff]
  %v205 = vld [vmem:[%s1 + $0x2d8] sm:$0xff]
  %v206 = vld [vmem:[%s1 + $0x2e0] sm:$0xff]
  %v207 = vld [vmem:[%s1 + $0x2e8] sm:$0xff]
  %v208 = vld [vmem:[%s1 + $0x2f0] sm:$0xff]
  %v209 = vld [vmem:[%s1 + $0x2f8] sm:$0xff]
  %v210 = vld [vmem:[%s1 + $0x300] sm:$0xff]
  %v211 = vld [vmem:[%s1 + $0x308] sm:$0xff]
  %v212 = vld [vmem:[%s1 + $0x310] sm:$0xff]
  %v213 = vld [vmem:[%s1 + $0x318] sm:$0xff]
  %v214 = vld [vmem:[%s1 + $0x320] sm:$0xff]
  %v215 = vld [vmem:[%s1 + $0x328] sm:$0xff]
  %v216 = vld [vmem:[%s1 + $0x330] sm:$0xff]
  %v217 = vld [vmem:[%s1 + $0x338] sm:$0xff]
  %v218 = vld [vmem:[%s1 + $0x340] sm:$0xff]
  %v219 = vld [vmem:[%s1 + $0x348] sm:$0xff]
  %v220 = vld [vmem:[%s1 + $0x350] sm:$0xff]
  %v221 = vld [vmem:[%s1 + $0x358] sm:$0xff]
  %v222 = vld [vmem:[%s1 + $0x360] sm:$0xff]
  %v223 = vld [vmem:[%s1 + $0x368] sm:$0xff]
  %v224 = vld [vmem:[%s1 + $0x370] sm:$0xff]
  %v225 = vld [vmem:[%s1 + $0x378] sm:$0xff]
  %v226 = vld [vmem:[%s1 + $0x380] sm:$0xff]
  %v227 = vld [vmem:[%s1 + $0x388] sm:$0xff]
  %v228 = vld [vmem:[%s1 + $0x390] sm:$0xff]
  %v229 = vld [vmem:[%s1 + $0x398] sm:$0xff]
  %v230 = vld [vmem:[%s1 + $0x3a0] sm:$0xff]
  %v231 = vld [vmem:[%s1 + $0x3a8] sm:$0xff]
  %v232 = vld [vmem:[%s1 + $0x3b0] sm:$0xff]
  %v233 = vld [vmem:[%s1 + $0x3b8] sm:$0xff]
  %v234 = vld [vmem:[%s1 + $0x3c0] sm:$0xff]
  %v235 = vld [vmem:[%s1 + $0x3c8] sm:$0xff]
  %v236 = vld [vmem:[%s1 + $0x3d0] sm:$0xff]
  %v237 = vld [vmem:[%s1 + $0x3d8] sm:$0xff]
  %v238 = vld [vmem:[%s1 + $0x3e0] sm:$0xff]
  %v239 = vld [vmem:[%s1 + $0x3e8] sm:$0xff]
  %v240 = vld [vmem:[%s1 + $0x3f0] sm:$0xff]
  %v241 = vld [vmem:[%s1 + $0x3f8] sm:$0xff]
  %v242 = vld [vmem:[%s1 + $0x400] sm:$0xff]
  %v243 = vld [vmem:[%s1 + $0x408] sm:$0xff]
  %v244 = vld [vmem:[%s1 + $0x410] sm:$0xff]
  %v245 = vld [vmem:[%s1 + $0x418] sm:$0xff]
  %v246 = vld [vmem:[%s1 + $0x420] sm:$0xff]
  %v247 = vld [vmem:[%s1 + $0x428] sm:$0xff]
  %v248 = vld [vmem:[%s1 + $0x430] sm:$0xff]
  %v249 = vld [vmem:[%s1 + $0x438] sm:$0xff]
  %v250 = vld [vmem:[%s1 + $0x440] sm:$0xff]
  %v251 = vld [vmem:[%s1 + $0x448] sm:$0xff]
  %v252 = vld [vmem:[%s1 + $0x450] sm:$0xff]
  %v253 = vld [vmem:[%s1 + $0x458] sm:$0xff]
  %v254 = vld [vmem:[%s1 + $0x460] sm:$0xff]
  %v255 = vld [vmem:[%s1 + $0x468] sm:$0xff]
  %v256 = vld [vmem:[%s1 + $0x470] sm:$0xff]
  %v257 = vld [vmem:[%s1 + $0x478] sm:$0xff]
  %v258 = vld [vmem:[%s1 + $0x480] sm:$0xff]
  %v259 = vld [vmem:[%s1 + $0x488] sm:$0xff]
  %v260 = vld [vmem:[%s1 + $0x490] sm:$0xff]
  %v261 = vld [vmem:[%s1 + $0x498] sm:$0xff]
  %v262 = vld [vmem:[%s1 + $0x4a0] sm:$0xff]
  %v263 = vld [vmem:[%s1 + $0x4a8] sm:$0xff]
  %v264 = vld [vmem:[%s1 + $0x4b0] sm:$0xff]
  %v265 = vld [vmem:[%s1 + $0x4b8] sm:$0xff]
  %v266 = vld [vmem:[%s1 + $0x4c0] sm:$0xff]
  %v267 = vld [vmem:[%s1 + $0x4c8] sm:$0xff]
  %v268 = vld [vmem:[%s1 + $0x4d0] sm:$0xff]
  %v269 = vld [vmem:[%s1 + $0x4d8] sm:$0xff]
  %v270 = vld [vmem:[%s1 + $0x4e0] sm:$0xff]
  %v271 = vld [vmem:[%s1 + $0x4e8] sm:$0xff]
  %v272 = vld [vmem:[%s1 + $0x4f0] sm:$0xff]
  %v273 = vld [vmem:[%s1 + $0x4f8] sm:$0xff]
  %v274 = vld [vmem:[%s1 + $0x500] sm:$0xff]
  %v275 = vld [vmem:[%s1 + $0x508] sm:$0xff]
  %v276 = vld [vmem:[%s1 + $0x510] sm:$0xff]
  %v277 = vld [vmem:[%s1 + $0x518] sm:$0xff]
  %v278 = vld [vmem:[%s1 + $0x520] sm:$0xff]
  %v279 = vld [vmem:[%s1 + $0x528] sm:$0xff]
  %v280 = vld [vmem:[%s1 + $0x530] sm:$0xff]
  %v281 = vld [vmem:[%s1 + $0x538] sm:$0xff]
  %v282 = vld [vmem:[%s1 + $0x540] sm:$0xff]
  %v283 = vld [vmem:[%s1 + $0x548] sm:$0xff]
  %v284 = vld [vmem:[%s1 + $0x550] sm:$0xff]
  %v285 = vld [vmem:[%s1 + $0x558] sm:$0xff]
  %v286 = vld [vmem:[%s1 + $0x560] sm:$0xff]
  %v287 = vld [vmem:[%s1 + $0x568] sm:$0xff]
  %v288 = vld [vmem:[%s1 + $0x570] sm:$0xff]
  %v289 = vld [vmem:[%s1 + $0x578] sm:$0xff]
  %v290 = vld [vmem:[%s1 + $0x580] sm:$0xff]
  %v291 = vld [vmem:[%s1 + $0x588] sm:$0xff]
  %v292 = vld [vmem:[%s1 + $0x590] sm:$0xff]
  %v293 = vld [vmem:[%s1 + $0x598] sm:$0xff]
  %v294 = vld [vmem:[%s1 + $0x5a0] sm:$0xff]
  %v295 = vld [vmem:[%s1 + $0x5a8] sm:$0xff]
  %v296 = vld [vmem:[%s1 + $0x5b0] sm:$0xff]
  %v297 = vld [vmem:[%s1 + $0x5b8] sm:$0xff]
  %v298 = vld [vmem:[%s1 + $0x5c0] sm:$0xff]
  %v299 = vld [vmem:[%s1 + $0x5c8] sm:$0xff]
  %v300 = vld [vmem:[%s1 + $0x5d0] sm:$0xff]
  %v301 = vld [vmem:[%s1 + $0x5d8] sm:$0xff]
  %v302 = vld [vmem:[%s1 + $0x5e0] sm:$0xff]
  %v303 = vld [vmem:[%s1 + $0x5e8] sm:$0xff]
  %v304 = vld [vmem:[%s1 + $0x5f0] sm:$0xff]
  %v305 = vld [vmem:[%s1 + $0x5f8] sm:$0xff]
  %v306 = vld [vmem:[%s1 + $0x600] sm:$0xff]
  %v307 = vld [vmem:[%s1 + $0x608] sm:$0xff]
  %v308 = vld [vmem:[%s1 + $0x610] sm:$0xff]
  %v309 = vld [vmem:[%s1 + $0x618] sm:$0xff]
  %v310 = vld [vmem:[%s1 + $0x620] sm:$0xff]
  %v311 = vld [vmem:[%s1 + $0x628] sm:$0xff]
  %v312 = vld [vmem:[%s1 + $0x630] sm:$0xff]
  %v313 = vld [vmem:[%s1 + $0x638] sm:$0xff]
  %v314 = vld [vmem:[%s1 + $0x640] sm:$0xff]
  %v315 = vld [vmem:[%s1 + $0x648] sm:$0xff]
  %v316 = vld [vmem:[%s1 + $0x650] sm:$0xff]
  %v317 = vld [vmem:[%s1 + $0x658] sm:$0xff]
  %v318 = vld [vmem:[%s1 + $0x660] sm:$0xff]
  %v319 = vld [vmem:[%s1 + $0x668] sm:$0xff]
  %v320 = vld [vmem:[%s1 + $0x670] sm:$0xff]
  %v321 = vld [vmem:[%s1 + $0x678] sm:$0xff]
  %v322 = vld [vmem:[%s1 + $0x680] sm:$0xff]
  %v323 = vld [vmem:[%s1 + $0x688] sm:$0xff]
  %v324 = vld [vmem:[%s1 + $0x690] sm:$0xff]
  %v325 = vld [vmem:[%s1 + $0x698] sm:$0xff]
  %v326 = vld [vmem:[%s1 + $0x6a0] sm:$0xff]
  %v327 = vld [vmem:[%s1 + $0x6a8] sm:$0xff]
  %v328 = vld [vmem:[%s1 + $0x6b0] sm:$0xff]
  %v329 = vld [vmem:[%s1 + $0x6b8] sm:$0xff]
  %v330 = vld [vmem:[%s1 + $0x6c0] sm:$0xff]
  %v331 = vld [vmem:[%s1 + $0x6c8] sm:$0xff]
  %v332 = vld [vmem:[%s1 + $0x6d0] sm:$0xff]
  %v333 = vld [vmem:[%s1 + $0x6d8] sm:$0xff]
  %v334 = vld [vmem:[%s1 + $0x6e0] sm:$0xff]
  %v335 = vld [vmem:[%s1 + $0x6e8] sm:$0xff]
  %v336 = vld [vmem:[%s1 + $0x6f0] sm:$0xff]
  %v337 = vld [vmem:[%s1 + $0x6f8] sm:$0xff]
  %v338 = vld [vmem:[%s1 + $0x700] sm:$0xff]
  %v339 = vld [vmem:[%s1 + $0x708] sm:$0xff]
  %v340 = vld [vmem:[%s1 + $0x710] sm:$0xff]
  %v341 = vld [vmem:[%s1 + $0x718] sm:$0xff]
  %v342 = vld [vmem:[%s1 + $0x720] sm:$0xff]
  %v343 = vld [vmem:[%s1 + $0x728] sm:$0xff]
  %v344 = vld [vmem:[%s1 + $0x730] sm:$0xff]
  %v345 = vld [vmem:[%s1 + $0x738] sm:$0xff]
  %v346 = vld [vmem:[%s1 + $0x740] sm:$0xff]
  %v347 = vld [vmem:[%s1 + $0x748] sm:$0xff]
  %v348 = vld [vmem:[%s1 + $0x750] sm:$0xff]
  %v349 = vld [vmem:[%s1 + $0x758] sm:$0xff]
  %v350 = vld [vmem:[%s1 + $0x760] sm:$0xff]
  %v351 = vld [vmem:[%s1 + $0x768] sm:$0xff]
  %v352 = vld [vmem:[%s1 + $0x770] sm:$0xff]
  %v353 = vld [vmem:[%s1 + $0x778] sm:$0xff]
  %v354 = vld [vmem:[%s1 + $0x780] sm:$0xff]
  %v355 = vld [vmem:[%s1 + $0x788] sm:$0xff]
  %v356 = vld [vmem:[%s1 + $0x790] sm:$0xff]
  %v357 = vld [vmem:[%s1 + $0x798] sm:$0xff]
  %v358 = vld [vmem:[%s1 + $0x7a0] sm:$0xff]
  %v359 = vld [vmem:[%s1 + $0x7a8] sm:$0xff]
  %v360 = vld [vmem:[%s1 + $0x7b0] sm:$0xff]
  %v361 = vld [vmem:[%s1 + $0x7b8] sm:$0xff]
  %v362 = vld [vmem:[%s1 + $0x7c0] sm:$0xff]
  %v363 = vld [vmem:[%s1 + $0x7c8] sm:$0xff]
  %v364 = vld [vmem:[%s1 + $0x7d0] sm:$0xff]
  %v365 = vld [vmem:[%s1 + $0x7d8] sm:$0xff]
  %v366 = vld [vmem:[%s1 + $0x7e0] sm:$0xff]
  %v367 = vld [vmem:[%s1 + $0x7e8] sm:$0xff]
  %v368 = vld [vmem:[%s1 + $0x7f0] sm:$0xff]
  %v369 = vld [vmem:[%s1 + $0x7f8] sm:$0xff]
  %v370 = vld [vmem:[%s2] sm:$0xff]
  %v372 = vlaneseq
  %v373 = vshrl.u32 %v372, 7
  %v374 = vsub.s32 0, %v373
  %v375 = vrot.slane %v370, %v374
  %v376 = vlaneseq
  %v377 = vshrl.u32 %v376, 7
  %v378 = vsub.s32 1, %v377
  %v379 = vrot.slane %v370, %v378
  %v380 = vlaneseq
  %v381 = vshrl.u32 %v380, 7
  %v382 = vsub.s32 2, %v381
  %v383 = vrot.slane %v370, %v382
  %v384 = vlaneseq
  %v385 = vshrl.u32 %v384, 7
  %v386 = vsub.s32 3, %v385
  %v387 = vrot.slane %v370, %v386
  %v388 = vlaneseq
  %v389 = vshrl.u32 %v388, 7
  %v390 = vsub.s32 4, %v389
  %v391 = vrot.slane %v370, %v390
  %v392 = vlaneseq
  %v393 = vshrl.u32 %v392, 7
  %v394 = vsub.s32 5, %v393
  %v395 = vrot.slane %v370, %v394
  %v396 = vlaneseq
  %v397 = vshrl.u32 %v396, 7
  %v398 = vsub.s32 6, %v397
  %v399 = vrot.slane %v370, %v398
  %v400 = vlaneseq
  %v401 = vshrl.u32 %v400, 7
  %v402 = vsub.s32 7, %v401
  %v403 = vrot.slane %v370, %v402
  %v420 = vunpack.c.l.b16 %v106
  %v421 = vunpack.c.l.b16 %v107
  %v422 = vunpack.c.l.b16 %v108
  %v423 = vunpack.c.l.b16 %v109
  %v424 = vunpack.c.l.b16 %v110
  %v425 = vunpack.c.l.b16 %v111
  %v426 = vunpack.c.l.b16 %v112
  %v427 = vunpack.c.l.b16 %v113
  %vm428 = vcmask 1041409
  %v429 = vsel %vm428, %v424, %v420
  %v430 = vsel %vm428, %v425, %v421
  %v431 = vsel %vm428, %v426, %v422
  %v432 = vsel %vm428, %v427, %v423
  %v433 = vpack.c.b16 %v429, %v429
  %v434 = vpack.c.b16 %v430, %v430
  %v435 = vpack.c.b16 %v431, %v431
  %v436 = vpack.c.b16 %v432, %v432
  %v697 = vunpack.c.l.b16 %v114
  %v698 = vunpack.c.h.b16 %v114
  %v699 = vunpack.c.l.b16 %v115
  %v700 = vunpack.c.h.b16 %v115
  %v701 = vunpack.c.l.b16 %v116
  %v702 = vunpack.c.h.b16 %v116
  %v703 = vunpack.c.l.b16 %v117
  %v704 = vunpack.c.h.b16 %v117
  %v705 = vunpack.c.l.b16 %v118
  %v706 = vunpack.c.h.b16 %v118
  %v707 = vunpack.c.l.b16 %v119
  %v708 = vunpack.c.h.b16 %v119
  %v709 = vunpack.c.l.b16 %v120
  %v710 = vunpack.c.h.b16 %v120
  %v711 = vunpack.c.l.b16 %v121
  %v712 = vunpack.c.h.b16 %v121
  %v713 = vunpack.c.l.b16 %v122
  %v714 = vunpack.c.h.b16 %v122
  %v715 = vunpack.c.l.b16 %v123
  %v716 = vunpack.c.h.b16 %v123
  %v717 = vunpack.c.l.b16 %v124
  %v718 = vunpack.c.h.b16 %v124
  %v719 = vunpack.c.l.b16 %v125
  %v720 = vunpack.c.h.b16 %v125
  %v721 = vunpack.c.l.b16 %v126
  %v722 = vunpack.c.h.b16 %v126
  %v723 = vunpack.c.l.b16 %v127
  %v724 = vunpack.c.h.b16 %v127
  %v725 = vunpack.c.l.b16 %v128
  %v726 = vunpack.c.h.b16 %v128
  %v727 = vunpack.c.l.b16 %v129
  %v728 = vunpack.c.h.b16 %v129
  %v729 = vunpack.c.l.b16 %v130
  %v730 = vunpack.c.h.b16 %v130
  %v731 = vunpack.c.l.b16 %v131
  %v732 = vunpack.c.h.b16 %v131
  %v733 = vunpack.c.l.b16 %v132
  %v734 = vunpack.c.h.b16 %v132
  %v735 = vunpack.c.l.b16 %v133
  %v736 = vunpack.c.h.b16 %v133
  %v737 = vunpack.c.l.b16 %v134
  %v738 = vunpack.c.h.b16 %v134
  %v739 = vunpack.c.l.b16 %v135
  %v740 = vunpack.c.h.b16 %v135
  %v741 = vunpack.c.l.b16 %v136
  %v742 = vunpack.c.h.b16 %v136
  %v743 = vunpack.c.l.b16 %v137
  %v744 = vunpack.c.h.b16 %v137
  %v745 = vunpack.c.l.b16 %v138
  %v746 = vunpack.c.h.b16 %v138
  %v747 = vunpack.c.l.b16 %v139
  %v748 = vunpack.c.h.b16 %v139
  %v749 = vunpack.c.l.b16 %v140
  %v750 = vunpack.c.h.b16 %v140
  %v751 = vunpack.c.l.b16 %v141
  %v752 = vunpack.c.h.b16 %v141
  %v753 = vunpack.c.l.b16 %v142
  %v754 = vunpack.c.h.b16 %v142
  %v755 = vunpack.c.l.b16 %v143
  %v756 = vunpack.c.h.b16 %v143
  %v757 = vunpack.c.l.b16 %v144
  %v758 = vunpack.c.h.b16 %v144
  %v759 = vunpack.c.l.b16 %v145
  %v760 = vunpack.c.h.b16 %v145
  %v761 = vunpack.c.l.b16 %v146
  %v762 = vunpack.c.h.b16 %v146
  %v763 = vunpack.c.l.b16 %v147
  %v764 = vunpack.c.h.b16 %v147
  %v765 = vunpack.c.l.b16 %v148
  %v766 = vunpack.c.h.b16 %v148
  %v767 = vunpack.c.l.b16 %v149
  %v768 = vunpack.c.h.b16 %v149
  %v769 = vunpack.c.l.b16 %v150
  %v770 = vunpack.c.h.b16 %v150
  %v771 = vunpack.c.l.b16 %v151
  %v772 = vunpack.c.h.b16 %v151
  %v773 = vunpack.c.l.b16 %v152
  %v774 = vunpack.c.h.b16 %v152
  %v775 = vunpack.c.l.b16 %v153
  %v776 = vunpack.c.h.b16 %v153
  %v777 = vunpack.c.l.b16 %v154
  %v778 = vunpack.c.h.b16 %v154
  %v779 = vunpack.c.l.b16 %v155
  %v780 = vunpack.c.h.b16 %v155
  %v781 = vunpack.c.l.b16 %v156
  %v782 = vunpack.c.h.b16 %v156
  %v783 = vunpack.c.l.b16 %v157
  %v784 = vunpack.c.h.b16 %v157
  %v785 = vunpack.c.l.b16 %v158
  %v786 = vunpack.c.h.b16 %v158
  %v787 = vunpack.c.l.b16 %v159
  %v788 = vunpack.c.h.b16 %v159
  %v789 = vunpack.c.l.b16 %v160
  %v790 = vunpack.c.h.b16 %v160
  %v791 = vunpack.c.l.b16 %v161
  %v792 = vunpack.c.h.b16 %v161
  %v793 = vunpack.c.l.b16 %v162
  %v794 = vunpack.c.h.b16 %v162
  %v795 = vunpack.c.l.b16 %v163
  %v796 = vunpack.c.h.b16 %v163
  %v797 = vunpack.c.l.b16 %v164
  %v798 = vunpack.c.h.b16 %v164
  %v799 = vunpack.c.l.b16 %v165
  %v800 = vunpack.c.h.b16 %v165
  %v801 = vunpack.c.l.b16 %v166
  %v802 = vunpack.c.h.b16 %v166
  %v803 = vunpack.c.l.b16 %v167
  %v804 = vunpack.c.h.b16 %v167
  %v805 = vunpack.c.l.b16 %v168
  %v806 = vunpack.c.h.b16 %v168
  %v807 = vunpack.c.l.b16 %v169
  %v808 = vunpack.c.h.b16 %v169
  %v809 = vunpack.c.l.b16 %v170
  %v810 = vunpack.c.h.b16 %v170
  %v811 = vunpack.c.l.b16 %v171
  %v812 = vunpack.c.h.b16 %v171
  %v813 = vunpack.c.l.b16 %v172
  %v814 = vunpack.c.h.b16 %v172
  %v815 = vunpack.c.l.b16 %v173
  %v816 = vunpack.c.h.b16 %v173
  %v817 = vunpack.c.l.b16 %v174
  %v818 = vunpack.c.h.b16 %v174
  %v819 = vunpack.c.l.b16 %v175
  %v820 = vunpack.c.h.b16 %v175
  %v821 = vunpack.c.l.b16 %v176
  %v822 = vunpack.c.h.b16 %v176
  %v823 = vunpack.c.l.b16 %v177
  %v824 = vunpack.c.h.b16 %v177
  %v825 = vunpack.c.l.b16 %v178
  %v826 = vunpack.c.h.b16 %v178
  %v827 = vunpack.c.l.b16 %v179
  %v828 = vunpack.c.h.b16 %v179
  %v829 = vunpack.c.l.b16 %v180
  %v830 = vunpack.c.h.b16 %v180
  %v831 = vunpack.c.l.b16 %v181
  %v832 = vunpack.c.h.b16 %v181
  %v833 = vunpack.c.l.b16 %v182
  %v834 = vunpack.c.h.b16 %v182
  %v835 = vunpack.c.l.b16 %v183
  %v836 = vunpack.c.h.b16 %v183
  %v837 = vunpack.c.l.b16 %v184
  %v838 = vunpack.c.h.b16 %v184
  %v839 = vunpack.c.l.b16 %v185
  %v840 = vunpack.c.h.b16 %v185
  %v841 = vunpack.c.l.b16 %v186
  %v842 = vunpack.c.h.b16 %v186
  %v843 = vunpack.c.l.b16 %v187
  %v844 = vunpack.c.h.b16 %v187
  %v845 = vunpack.c.l.b16 %v188
  %v846 = vunpack.c.h.b16 %v188
  %v847 = vunpack.c.l.b16 %v189
  %v848 = vunpack.c.h.b16 %v189
  %v849 = vunpack.c.l.b16 %v190
  %v850 = vunpack.c.h.b16 %v190
  %v851 = vunpack.c.l.b16 %v191
  %v852 = vunpack.c.h.b16 %v191
  %v853 = vunpack.c.l.b16 %v192
  %v854 = vunpack.c.h.b16 %v192
  %v855 = vunpack.c.l.b16 %v193
  %v856 = vunpack.c.h.b16 %v193
  %v857 = vunpack.c.l.b16 %v194
  %v858 = vunpack.c.h.b16 %v194
  %v859 = vunpack.c.l.b16 %v195
  %v860 = vunpack.c.h.b16 %v195
  %v861 = vunpack.c.l.b16 %v196
  %v862 = vunpack.c.h.b16 %v196
  %v863 = vunpack.c.l.b16 %v197
  %v864 = vunpack.c.h.b16 %v197
  %v865 = vunpack.c.l.b16 %v198
  %v866 = vunpack.c.h.b16 %v198
  %v867 = vunpack.c.l.b16 %v199
  %v868 = vunpack.c.h.b16 %v199
  %v869 = vunpack.c.l.b16 %v200
  %v870 = vunpack.c.h.b16 %v200
  %v871 = vunpack.c.l.b16 %v201
  %v872 = vunpack.c.h.b16 %v201
  %v873 = vunpack.c.l.b16 %v202
  %v874 = vunpack.c.h.b16 %v202
  %v875 = vunpack.c.l.b16 %v203
  %v876 = vunpack.c.h.b16 %v203
  %v877 = vunpack.c.l.b16 %v204
  %v878 = vunpack.c.h.b16 %v204
  %v879 = vunpack.c.l.b16 %v205
  %v880 = vunpack.c.h.b16 %v205
  %v881 = vunpack.c.l.b16 %v206
  %v882 = vunpack.c.h.b16 %v206
  %v883 = vunpack.c.l.b16 %v207
  %v884 = vunpack.c.h.b16 %v207
  %v885 = vunpack.c.l.b16 %v208
  %v886 = vunpack.c.h.b16 %v208
  %v887 = vunpack.c.l.b16 %v209
  %v888 = vunpack.c.h.b16 %v209
  %v889 = vunpack.c.l.b16 %v210
  %v890 = vunpack.c.h.b16 %v210
  %v891 = vunpack.c.l.b16 %v211
  %v892 = vunpack.c.h.b16 %v211
  %v893 = vunpack.c.l.b16 %v212
  %v894 = vunpack.c.h.b16 %v212
  %v895 = vunpack.c.l.b16 %v213
  %v896 = vunpack.c.h.b16 %v213
  %v897 = vunpack.c.l.b16 %v214
  %v898 = vunpack.c.h.b16 %v214
  %v899 = vunpack.c.l.b16 %v215
  %v900 = vunpack.c.h.b16 %v215
  %v901 = vunpack.c.l.b16 %v216
  %v902 = vunpack.c.h.b16 %v216
  %v903 = vunpack.c.l.b16 %v217
  %v904 = vunpack.c.h.b16 %v217
  %v905 = vunpack.c.l.b16 %v218
  %v906 = vunpack.c.h.b16 %v218
  %v907 = vunpack.c.l.b16 %v219
  %v908 = vunpack.c.h.b16 %v219
  %v909 = vunpack.c.l.b16 %v220
  %v910 = vunpack.c.h.b16 %v220
  %v911 = vunpack.c.l.b16 %v221
  %v912 = vunpack.c.h.b16 %v221
  %v913 = vunpack.c.l.b16 %v222
  %v914 = vunpack.c.h.b16 %v222
  %v915 = vunpack.c.l.b16 %v223
  %v916 = vunpack.c.h.b16 %v223
  %v917 = vunpack.c.l.b16 %v224
  %v918 = vunpack.c.h.b16 %v224
  %v919 = vunpack.c.l.b16 %v225
  %v920 = vunpack.c.h.b16 %v225
  %v921 = vunpack.c.l.b16 %v226
  %v922 = vunpack.c.h.b16 %v226
  %v923 = vunpack.c.l.b16 %v227
  %v924 = vunpack.c.h.b16 %v227
  %v925 = vunpack.c.l.b16 %v228
  %v926 = vunpack.c.h.b16 %v228
  %v927 = vunpack.c.l.b16 %v229
  %v928 = vunpack.c.h.b16 %v229
  %v929 = vunpack.c.l.b16 %v230
  %v930 = vunpack.c.h.b16 %v230
  %v931 = vunpack.c.l.b16 %v231
  %v932 = vunpack.c.h.b16 %v231
  %v933 = vunpack.c.l.b16 %v232
  %v934 = vunpack.c.h.b16 %v232
  %v935 = vunpack.c.l.b16 %v233
  %v936 = vunpack.c.h.b16 %v233
  %v937 = vunpack.c.l.b16 %v234
  %v938 = vunpack.c.h.b16 %v234
  %v939 = vunpack.c.l.b16 %v235
  %v940 = vunpack.c.h.b16 %v235
  %v941 = vunpack.c.l.b16 %v236
  %v942 = vunpack.c.h.b16 %v236
  %v943 = vunpack.c.l.b16 %v237
  %v944 = vunpack.c.h.b16 %v237
  %v945 = vunpack.c.l.b16 %v238
  %v946 = vunpack.c.h.b16 %v238
  %v947 = vunpack.c.l.b16 %v239
  %v948 = vunpack.c.h.b16 %v239
  %v949 = vunpack.c.l.b16 %v240
  %v950 = vunpack.c.h.b16 %v240
  %v951 = vunpack.c.l.b16 %v241
  %v952 = vunpack.c.h.b16 %v241
  %v953 = vunpack.c.l.b16 %v242
  %v954 = vunpack.c.h.b16 %v242
  %v955 = vunpack.c.l.b16 %v243
  %v956 = vunpack.c.h.b16 %v243
  %v957 = vunpack.c.l.b16 %v244
  %v958 = vunpack.c.h.b16 %v244
  %v959 = vunpack.c.l.b16 %v245
  %v960 = vunpack.c.h.b16 %v245
  %v961 = vunpack.c.l.b16 %v246
  %v962 = vunpack.c.h.b16 %v246
  %v963 = vunpack.c.l.b16 %v247
  %v964 = vunpack.c.h.b16 %v247
  %v965 = vunpack.c.l.b16 %v248
  %v966 = vunpack.c.h.b16 %v248
  %v967 = vunpack.c.l.b16 %v249
  %v968 = vunpack.c.h.b16 %v249
  %v969 = vunpack.c.l.b16 %v250
  %v970 = vunpack.c.h.b16 %v250
  %v971 = vunpack.c.l.b16 %v251
  %v972 = vunpack.c.h.b16 %v251
  %v973 = vunpack.c.l.b16 %v252
  %v974 = vunpack.c.h.b16 %v252
  %v975 = vunpack.c.l.b16 %v253
  %v976 = vunpack.c.h.b16 %v253
  %v977 = vunpack.c.l.b16 %v254
  %v978 = vunpack.c.h.b16 %v254
  %v979 = vunpack.c.l.b16 %v255
  %v980 = vunpack.c.h.b16 %v255
  %v981 = vunpack.c.l.b16 %v256
  %v982 = vunpack.c.h.b16 %v256
  %v983 = vunpack.c.l.b16 %v257
  %v984 = vunpack.c.h.b16 %v257
  %v985 = vunpack.c.l.b16 %v258
  %v986 = vunpack.c.h.b16 %v258
  %v987 = vunpack.c.l.b16 %v259
  %v988 = vunpack.c.h.b16 %v259
  %v989 = vunpack.c.l.b16 %v260
  %v990 = vunpack.c.h.b16 %v260
  %v991 = vunpack.c.l.b16 %v261
  %v992 = vunpack.c.h.b16 %v261
  %v993 = vunpack.c.l.b16 %v262
  %v994 = vunpack.c.h.b16 %v262
  %v995 = vunpack.c.l.b16 %v263
  %v996 = vunpack.c.h.b16 %v263
  %v997 = vunpack.c.l.b16 %v264
  %v998 = vunpack.c.h.b16 %v264
  %v999 = vunpack.c.l.b16 %v265
  %v1000 = vunpack.c.h.b16 %v265
  %v1001 = vunpack.c.l.b16 %v266
  %v1002 = vunpack.c.h.b16 %v266
  %v1003 = vunpack.c.l.b16 %v267
  %v1004 = vunpack.c.h.b16 %v267
  %v1005 = vunpack.c.l.b16 %v268
  %v1006 = vunpack.c.h.b16 %v268
  %v1007 = vunpack.c.l.b16 %v269
  %v1008 = vunpack.c.h.b16 %v269
  %v1009 = vunpack.c.l.b16 %v270
  %v1010 = vunpack.c.h.b16 %v270
  %v1011 = vunpack.c.l.b16 %v271
  %v1012 = vunpack.c.h.b16 %v271
  %v1013 = vunpack.c.l.b16 %v272
  %v1014 = vunpack.c.h.b16 %v272
  %v1015 = vunpack.c.l.b16 %v273
  %v1016 = vunpack.c.h.b16 %v273
  %v1017 = vunpack.c.l.b16 %v274
  %v1018 = vunpack.c.h.b16 %v274
  %v1019 = vunpack.c.l.b16 %v275
  %v1020 = vunpack.c.h.b16 %v275
  %v1021 = vunpack.c.l.b16 %v276
  %v1022 = vunpack.c.h.b16 %v276
  %v1023 = vunpack.c.l.b16 %v277
  %v1024 = vunpack.c.h.b16 %v277
  %v1025 = vunpack.c.l.b16 %v278
  %v1026 = vunpack.c.h.b16 %v278
  %v1027 = vunpack.c.l.b16 %v279
  %v1028 = vunpack.c.h.b16 %v279
  %v1029 = vunpack.c.l.b16 %v280
  %v1030 = vunpack.c.h.b16 %v280
  %v1031 = vunpack.c.l.b16 %v281
  %v1032 = vunpack.c.h.b16 %v281
  %v1033 = vunpack.c.l.b16 %v282
  %v1034 = vunpack.c.h.b16 %v282
  %v1035 = vunpack.c.l.b16 %v283
  %v1036 = vunpack.c.h.b16 %v283
  %v1037 = vunpack.c.l.b16 %v284
  %v1038 = vunpack.c.h.b16 %v284
  %v1039 = vunpack.c.l.b16 %v285
  %v1040 = vunpack.c.h.b16 %v285
  %v1041 = vunpack.c.l.b16 %v286
  %v1042 = vunpack.c.h.b16 %v286
  %v1043 = vunpack.c.l.b16 %v287
  %v1044 = vunpack.c.h.b16 %v287
  %v1045 = vunpack.c.l.b16 %v288
  %v1046 = vunpack.c.h.b16 %v288
  %v1047 = vunpack.c.l.b16 %v289
  %v1048 = vunpack.c.h.b16 %v289
  %v1049 = vunpack.c.l.b16 %v290
  %v1050 = vunpack.c.h.b16 %v290
  %v1051 = vunpack.c.l.b16 %v291
  %v1052 = vunpack.c.h.b16 %v291
  %v1053 = vunpack.c.l.b16 %v292
  %v1054 = vunpack.c.h.b16 %v292
  %v1055 = vunpack.c.l.b16 %v293
  %v1056 = vunpack.c.h.b16 %v293
  %v1057 = vunpack.c.l.b16 %v294
  %v1058 = vunpack.c.h.b16 %v294
  %v1059 = vunpack.c.l.b16 %v295
  %v1060 = vunpack.c.h.b16 %v295
  %v1061 = vunpack.c.l.b16 %v296
  %v1062 = vunpack.c.h.b16 %v296
  %v1063 = vunpack.c.l.b16 %v297
  %v1064 = vunpack.c.h.b16 %v297
  %v1065 = vunpack.c.l.b16 %v298
  %v1066 = vunpack.c.h.b16 %v298
  %v1067 = vunpack.c.l.b16 %v299
  %v1068 = vunpack.c.h.b16 %v299
  %v1069 = vunpack.c.l.b16 %v300
  %v1070 = vunpack.c.h.b16 %v300
  %v1071 = vunpack.c.l.b16 %v301
  %v1072 = vunpack.c.h.b16 %v301
  %v1073 = vunpack.c.l.b16 %v302
  %v1074 = vunpack.c.h.b16 %v302
  %v1075 = vunpack.c.l.b16 %v303
  %v1076 = vunpack.c.h.b16 %v303
  %v1077 = vunpack.c.l.b16 %v304
  %v1078 = vunpack.c.h.b16 %v304
  %v1079 = vunpack.c.l.b16 %v305
  %v1080 = vunpack.c.h.b16 %v305
  %v1081 = vunpack.c.l.b16 %v306
  %v1082 = vunpack.c.h.b16 %v306
  %v1083 = vunpack.c.l.b16 %v307
  %v1084 = vunpack.c.h.b16 %v307
  %v1085 = vunpack.c.l.b16 %v308
  %v1086 = vunpack.c.h.b16 %v308
  %v1087 = vunpack.c.l.b16 %v309
  %v1088 = vunpack.c.h.b16 %v309
  %v1089 = vunpack.c.l.b16 %v310
  %v1090 = vunpack.c.h.b16 %v310
  %v1091 = vunpack.c.l.b16 %v311
  %v1092 = vunpack.c.h.b16 %v311
  %v1093 = vunpack.c.l.b16 %v312
  %v1094 = vunpack.c.h.b16 %v312
  %v1095 = vunpack.c.l.b16 %v313
  %v1096 = vunpack.c.h.b16 %v313
  %v1097 = vunpack.c.l.b16 %v314
  %v1098 = vunpack.c.h.b16 %v314
  %v1099 = vunpack.c.l.b16 %v315
  %v1100 = vunpack.c.h.b16 %v315
  %v1101 = vunpack.c.l.b16 %v316
  %v1102 = vunpack.c.h.b16 %v316
  %v1103 = vunpack.c.l.b16 %v317
  %v1104 = vunpack.c.h.b16 %v317
  %v1105 = vunpack.c.l.b16 %v318
  %v1106 = vunpack.c.h.b16 %v318
  %v1107 = vunpack.c.l.b16 %v319
  %v1108 = vunpack.c.h.b16 %v319
  %v1109 = vunpack.c.l.b16 %v320
  %v1110 = vunpack.c.h.b16 %v320
  %v1111 = vunpack.c.l.b16 %v321
  %v1112 = vunpack.c.h.b16 %v321
  %v1113 = vunpack.c.l.b16 %v322
  %v1114 = vunpack.c.h.b16 %v322
  %v1115 = vunpack.c.l.b16 %v323
  %v1116 = vunpack.c.h.b16 %v323
  %v1117 = vunpack.c.l.b16 %v324
  %v1118 = vunpack.c.h.b16 %v324
  %v1119 = vunpack.c.l.b16 %v325
  %v1120 = vunpack.c.h.b16 %v325
  %v1121 = vunpack.c.l.b16 %v326
  %v1122 = vunpack.c.h.b16 %v326
  %v1123 = vunpack.c.l.b16 %v327
  %v1124 = vunpack.c.h.b16 %v327
  %v1125 = vunpack.c.l.b16 %v328
  %v1126 = vunpack.c.h.b16 %v328
  %v1127 = vunpack.c.l.b16 %v329
  %v1128 = vunpack.c.h.b16 %v329
  %v1129 = vunpack.c.l.b16 %v330
  %v1130 = vunpack.c.h.b16 %v330
  %v1131 = vunpack.c.l.b16 %v331
  %v1132 = vunpack.c.h.b16 %v331
  %v1133 = vunpack.c.l.b16 %v332
  %v1134 = vunpack.c.h.b16 %v332
  %v1135 = vunpack.c.l.b16 %v333
  %v1136 = vunpack.c.h.b16 %v333
  %v1137 = vunpack.c.l.b16 %v334
  %v1138 = vunpack.c.h.b16 %v334
  %v1139 = vunpack.c.l.b16 %v335
  %v1140 = vunpack.c.h.b16 %v335
  %v1141 = vunpack.c.l.b16 %v336
  %v1142 = vunpack.c.h.b16 %v336
  %v1143 = vunpack.c.l.b16 %v337
  %v1144 = vunpack.c.h.b16 %v337
  %v1145 = vunpack.c.l.b16 %v338
  %v1146 = vunpack.c.h.b16 %v338
  %v1147 = vunpack.c.l.b16 %v339
  %v1148 = vunpack.c.h.b16 %v339
  %v1149 = vunpack.c.l.b16 %v340
  %v1150 = vunpack.c.h.b16 %v340
  %v1151 = vunpack.c.l.b16 %v341
  %v1152 = vunpack.c.h.b16 %v341
  %v1153 = vunpack.c.l.b16 %v342
  %v1154 = vunpack.c.h.b16 %v342
  %v1155 = vunpack.c.l.b16 %v343
  %v1156 = vunpack.c.h.b16 %v343
  %v1157 = vunpack.c.l.b16 %v344
  %v1158 = vunpack.c.h.b16 %v344
  %v1159 = vunpack.c.l.b16 %v345
  %v1160 = vunpack.c.h.b16 %v345
  %v1161 = vunpack.c.l.b16 %v346
  %v1162 = vunpack.c.h.b16 %v346
  %v1163 = vunpack.c.l.b16 %v347
  %v1164 = vunpack.c.h.b16 %v347
  %v1165 = vunpack.c.l.b16 %v348
  %v1166 = vunpack.c.h.b16 %v348
  %v1167 = vunpack.c.l.b16 %v349
  %v1168 = vunpack.c.h.b16 %v349
  %v1169 = vunpack.c.l.b16 %v350
  %v1170 = vunpack.c.h.b16 %v350
  %v1171 = vunpack.c.l.b16 %v351
  %v1172 = vunpack.c.h.b16 %v351
  %v1173 = vunpack.c.l.b16 %v352
  %v1174 = vunpack.c.h.b16 %v352
  %v1175 = vunpack.c.l.b16 %v353
  %v1176 = vunpack.c.h.b16 %v353
  %v1177 = vunpack.c.l.b16 %v354
  %v1178 = vunpack.c.h.b16 %v354
  %v1179 = vunpack.c.l.b16 %v355
  %v1180 = vunpack.c.h.b16 %v355
  %v1181 = vunpack.c.l.b16 %v356
  %v1182 = vunpack.c.h.b16 %v356
  %v1183 = vunpack.c.l.b16 %v357
  %v1184 = vunpack.c.h.b16 %v357
  %v1185 = vunpack.c.l.b16 %v358
  %v1186 = vunpack.c.h.b16 %v358
  %v1187 = vunpack.c.l.b16 %v359
  %v1188 = vunpack.c.h.b16 %v359
  %v1189 = vunpack.c.l.b16 %v360
  %v1190 = vunpack.c.h.b16 %v360
  %v1191 = vunpack.c.l.b16 %v361
  %v1192 = vunpack.c.h.b16 %v361
  %v1193 = vunpack.c.l.b16 %v362
  %v1194 = vunpack.c.h.b16 %v362
  %v1195 = vunpack.c.l.b16 %v363
  %v1196 = vunpack.c.h.b16 %v363
  %v1197 = vunpack.c.l.b16 %v364
  %v1198 = vunpack.c.h.b16 %v364
  %v1199 = vunpack.c.l.b16 %v365
  %v1200 = vunpack.c.h.b16 %v365
  %v1201 = vunpack.c.l.b16 %v366
  %v1202 = vunpack.c.h.b16 %v366
  %v1203 = vunpack.c.l.b16 %v367
  %v1204 = vunpack.c.h.b16 %v367
  %v1205 = vunpack.c.l.b16 %v368
  %v1206 = vunpack.c.h.b16 %v368
  %v1207 = vunpack.c.l.b16 %v369
  %v1208 = vunpack.c.h.b16 %v369
  %v1209 = vpack.c.b16 %v705, %v697
  %v1210 = vpack.c.b16 %v706, %v698
  %v1211 = vpack.c.b16 %v707, %v699
  %v1212 = vpack.c.b16 %v708, %v700
  %v1213 = vpack.c.b16 %v709, %v701
  %v1214 = vpack.c.b16 %v710, %v702
  %v1215 = vpack.c.b16 %v711, %v703
  %v1216 = vpack.c.b16 %v712, %v704
  %v1217 = vpack.c.b16 %v721, %v713
  %v1218 = vpack.c.b16 %v722, %v714
  %v1219 = vpack.c.b16 %v723, %v715
  %v1220 = vpack.c.b16 %v724, %v716
  %v1221 = vpack.c.b16 %v725, %v717
  %v1222 = vpack.c.b16 %v726, %v718
  %v1223 = vpack.c.b16 %v727, %v719
  %v1224 = vpack.c.b16 %v728, %v720
  %v1225 = vpack.c.b16 %v737, %v729
  %v1226 = vpack.c.b16 %v738, %v730
  %v1227 = vpack.c.b16 %v739, %v731
  %v1228 = vpack.c.b16 %v740, %v732
  %v1229 = vpack.c.b16 %v741, %v733
  %v1230 = vpack.c.b16 %v742, %v734
  %v1231 = vpack.c.b16 %v743, %v735
  %v1232 = vpack.c.b16 %v744, %v736
  %v1233 = vpack.c.b16 %v753, %v745
  %v1234 = vpack.c.b16 %v754, %v746
  %v1235 = vpack.c.b16 %v755, %v747
  %v1236 = vpack.c.b16 %v756, %v748
  %v1237 = vpack.c.b16 %v757, %v749
  %v1238 = vpack.c.b16 %v758, %v750
  %v1239 = vpack.c.b16 %v759, %v751
  %v1240 = vpack.c.b16 %v760, %v752
  %v1241 = vpack.c.b16 %v769, %v761
  %v1242 = vpack.c.b16 %v770, %v762
  %v1243 = vpack.c.b16 %v771, %v763
  %v1244 = vpack.c.b16 %v772, %v764
  %v1245 = vpack.c.b16 %v773, %v765
  %v1246 = vpack.c.b16 %v774, %v766
  %v1247 = vpack.c.b16 %v775, %v767
  %v1248 = vpack.c.b16 %v776, %v768
  %v1249 = vpack.c.b16 %v785, %v777
  %v1250 = vpack.c.b16 %v786, %v778
  %v1251 = vpack.c.b16 %v787, %v779
  %v1252 = vpack.c.b16 %v788, %v780
  %v1253 = vpack.c.b16 %v789, %v781
  %v1254 = vpack.c.b16 %v790, %v782
  %v1255 = vpack.c.b16 %v791, %v783
  %v1256 = vpack.c.b16 %v792, %v784
  %v1257 = vpack.c.b16 %v801, %v793
  %v1258 = vpack.c.b16 %v802, %v794
  %v1259 = vpack.c.b16 %v803, %v795
  %v1260 = vpack.c.b16 %v804, %v796
  %v1261 = vpack.c.b16 %v805, %v797
  %v1262 = vpack.c.b16 %v806, %v798
  %v1263 = vpack.c.b16 %v807, %v799
  %v1264 = vpack.c.b16 %v808, %v800
  %v1265 = vpack.c.b16 %v817, %v809
  %v1266 = vpack.c.b16 %v818, %v810
  %v1267 = vpack.c.b16 %v819, %v811
  %v1268 = vpack.c.b16 %v820, %v812
  %v1269 = vpack.c.b16 %v821, %v813
  %v1270 = vpack.c.b16 %v822, %v814
  %v1271 = vpack.c.b16 %v823, %v815
  %v1272 = vpack.c.b16 %v824, %v816
  %v1273 = vpack.c.b16 %v833, %v825
  %v1274 = vpack.c.b16 %v834, %v826
  %v1275 = vpack.c.b16 %v835, %v827
  %v1276 = vpack.c.b16 %v836, %v828
  %v1277 = vpack.c.b16 %v837, %v829
  %v1278 = vpack.c.b16 %v838, %v830
  %v1279 = vpack.c.b16 %v839, %v831
  %v1280 = vpack.c.b16 %v840, %v832
  %v1281 = vpack.c.b16 %v849, %v841
  %v1282 = vpack.c.b16 %v850, %v842
  %v1283 = vpack.c.b16 %v851, %v843
  %v1284 = vpack.c.b16 %v852, %v844
  %v1285 = vpack.c.b16 %v853, %v845
  %v1286 = vpack.c.b16 %v854, %v846
  %v1287 = vpack.c.b16 %v855, %v847
  %v1288 = vpack.c.b16 %v856, %v848
  %v1289 = vpack.c.b16 %v865, %v857
  %v1290 = vpack.c.b16 %v866, %v858
  %v1291 = vpack.c.b16 %v867, %v859
  %v1292 = vpack.c.b16 %v868, %v860
  %v1293 = vpack.c.b16 %v869, %v861
  %v1294 = vpack.c.b16 %v870, %v862
  %v1295 = vpack.c.b16 %v871, %v863
  %v1296 = vpack.c.b16 %v872, %v864
  %v1297 = vpack.c.b16 %v881, %v873
  %v1298 = vpack.c.b16 %v882, %v874
  %v1299 = vpack.c.b16 %v883, %v875
  %v1300 = vpack.c.b16 %v884, %v876
  %v1301 = vpack.c.b16 %v885, %v877
  %v1302 = vpack.c.b16 %v886, %v878
  %v1303 = vpack.c.b16 %v887, %v879
  %v1304 = vpack.c.b16 %v888, %v880
  %v1305 = vpack.c.b16 %v897, %v889
  %v1306 = vpack.c.b16 %v898, %v890
  %v1307 = vpack.c.b16 %v899, %v891
  %v1308 = vpack.c.b16 %v900, %v892
  %v1309 = vpack.c.b16 %v901, %v893
  %v1310 = vpack.c.b16 %v902, %v894
  %v1311 = vpack.c.b16 %v903, %v895
  %v1312 = vpack.c.b16 %v904, %v896
  %v1313 = vpack.c.b16 %v913, %v905
  %v1314 = vpack.c.b16 %v914, %v906
  %v1315 = vpack.c.b16 %v915, %v907
  %v1316 = vpack.c.b16 %v916, %v908
  %v1317 = vpack.c.b16 %v917, %v909
  %v1318 = vpack.c.b16 %v918, %v910
  %v1319 = vpack.c.b16 %v919, %v911
  %v1320 = vpack.c.b16 %v920, %v912
  %v1321 = vpack.c.b16 %v929, %v921
  %v1322 = vpack.c.b16 %v930, %v922
  %v1323 = vpack.c.b16 %v931, %v923
  %v1324 = vpack.c.b16 %v932, %v924
  %v1325 = vpack.c.b16 %v933, %v925
  %v1326 = vpack.c.b16 %v934, %v926
  %v1327 = vpack.c.b16 %v935, %v927
  %v1328 = vpack.c.b16 %v936, %v928
  %v1329 = vpack.c.b16 %v945, %v937
  %v1330 = vpack.c.b16 %v946, %v938
  %v1331 = vpack.c.b16 %v947, %v939
  %v1332 = vpack.c.b16 %v948, %v940
  %v1333 = vpack.c.b16 %v949, %v941
  %v1334 = vpack.c.b16 %v950, %v942
  %v1335 = vpack.c.b16 %v951, %v943
  %v1336 = vpack.c.b16 %v952, %v944
  %v1337 = vpack.c.b16 %v961, %v953
  %v1338 = vpack.c.b16 %v962, %v954
  %v1339 = vpack.c.b16 %v963, %v955
  %v1340 = vpack.c.b16 %v964, %v956
  %v1341 = vpack.c.b16 %v965, %v957
  %v1342 = vpack.c.b16 %v966, %v958
  %v1343 = vpack.c.b16 %v967, %v959
  %v1344 = vpack.c.b16 %v968, %v960
  %v1345 = vpack.c.b16 %v977, %v969
  %v1346 = vpack.c.b16 %v978, %v970
  %v1347 = vpack.c.b16 %v979, %v971
  %v1348 = vpack.c.b16 %v980, %v972
  %v1349 = vpack.c.b16 %v981, %v973
  %v1350 = vpack.c.b16 %v982, %v974
  %v1351 = vpack.c.b16 %v983, %v975
  %v1352 = vpack.c.b16 %v984, %v976
  %v1353 = vpack.c.b16 %v993, %v985
  %v1354 = vpack.c.b16 %v994, %v986
  %v1355 = vpack.c.b16 %v995, %v987
  %v1356 = vpack.c.b16 %v996, %v988
  %v1357 = vpack.c.b16 %v997, %v989
  %v1358 = vpack.c.b16 %v998, %v990
  %v1359 = vpack.c.b16 %v999, %v991
  %v1360 = vpack.c.b16 %v1000, %v992
  %v1361 = vpack.c.b16 %v1009, %v1001
  %v1362 = vpack.c.b16 %v1010, %v1002
  %v1363 = vpack.c.b16 %v1011, %v1003
  %v1364 = vpack.c.b16 %v1012, %v1004
  %v1365 = vpack.c.b16 %v1013, %v1005
  %v1366 = vpack.c.b16 %v1014, %v1006
  %v1367 = vpack.c.b16 %v1015, %v1007
  %v1368 = vpack.c.b16 %v1016, %v1008
  %v1369 = vpack.c.b16 %v1025, %v1017
  %v1370 = vpack.c.b16 %v1026, %v1018
  %v1371 = vpack.c.b16 %v1027, %v1019
  %v1372 = vpack.c.b16 %v1028, %v1020
  %v1373 = vpack.c.b16 %v1029, %v1021
  %v1374 = vpack.c.b16 %v1030, %v1022
  %v1375 = vpack.c.b16 %v1031, %v1023
  %v1376 = vpack.c.b16 %v1032, %v1024
  %v1377 = vpack.c.b16 %v1041, %v1033
  %v1378 = vpack.c.b16 %v1042, %v1034
  %v1379 = vpack.c.b16 %v1043, %v1035
  %v1380 = vpack.c.b16 %v1044, %v1036
  %v1381 = vpack.c.b16 %v1045, %v1037
  %v1382 = vpack.c.b16 %v1046, %v1038
  %v1383 = vpack.c.b16 %v1047, %v1039
  %v1384 = vpack.c.b16 %v1048, %v1040
  %v1385 = vpack.c.b16 %v1057, %v1049
  %v1386 = vpack.c.b16 %v1058, %v1050
  %v1387 = vpack.c.b16 %v1059, %v1051
  %v1388 = vpack.c.b16 %v1060, %v1052
  %v1389 = vpack.c.b16 %v1061, %v1053
  %v1390 = vpack.c.b16 %v1062, %v1054
  %v1391 = vpack.c.b16 %v1063, %v1055
  %v1392 = vpack.c.b16 %v1064, %v1056
  %v1393 = vpack.c.b16 %v1073, %v1065
  %v1394 = vpack.c.b16 %v1074, %v1066
  %v1395 = vpack.c.b16 %v1075, %v1067
  %v1396 = vpack.c.b16 %v1076, %v1068
  %v1397 = vpack.c.b16 %v1077, %v1069
  %v1398 = vpack.c.b16 %v1078, %v1070
  %v1399 = vpack.c.b16 %v1079, %v1071
  %v1400 = vpack.c.b16 %v1080, %v1072
  %v1401 = vpack.c.b16 %v1089, %v1081
  %v1402 = vpack.c.b16 %v1090, %v1082
  %v1403 = vpack.c.b16 %v1091, %v1083
  %v1404 = vpack.c.b16 %v1092, %v1084
  %v1405 = vpack.c.b16 %v1093, %v1085
  %v1406 = vpack.c.b16 %v1094, %v1086
  %v1407 = vpack.c.b16 %v1095, %v1087
  %v1408 = vpack.c.b16 %v1096, %v1088
  %v1409 = vpack.c.b16 %v1105, %v1097
  %v1410 = vpack.c.b16 %v1106, %v1098
  %v1411 = vpack.c.b16 %v1107, %v1099
  %v1412 = vpack.c.b16 %v1108, %v1100
  %v1413 = vpack.c.b16 %v1109, %v1101
  %v1414 = vpack.c.b16 %v1110, %v1102
  %v1415 = vpack.c.b16 %v1111, %v1103
  %v1416 = vpack.c.b16 %v1112, %v1104
  %v1417 = vpack.c.b16 %v1121, %v1113
  %v1418 = vpack.c.b16 %v1122, %v1114
  %v1419 = vpack.c.b16 %v1123, %v1115
  %v1420 = vpack.c.b16 %v1124, %v1116
  %v1421 = vpack.c.b16 %v1125, %v1117
  %v1422 = vpack.c.b16 %v1126, %v1118
  %v1423 = vpack.c.b16 %v1127, %v1119
  %v1424 = vpack.c.b16 %v1128, %v1120
  %v1425 = vpack.c.b16 %v1137, %v1129
  %v1426 = vpack.c.b16 %v1138, %v1130
  %v1427 = vpack.c.b16 %v1139, %v1131
  %v1428 = vpack.c.b16 %v1140, %v1132
  %v1429 = vpack.c.b16 %v1141, %v1133
  %v1430 = vpack.c.b16 %v1142, %v1134
  %v1431 = vpack.c.b16 %v1143, %v1135
  %v1432 = vpack.c.b16 %v1144, %v1136
  %v1433 = vpack.c.b16 %v1153, %v1145
  %v1434 = vpack.c.b16 %v1154, %v1146
  %v1435 = vpack.c.b16 %v1155, %v1147
  %v1436 = vpack.c.b16 %v1156, %v1148
  %v1437 = vpack.c.b16 %v1157, %v1149
  %v1438 = vpack.c.b16 %v1158, %v1150
  %v1439 = vpack.c.b16 %v1159, %v1151
  %v1440 = vpack.c.b16 %v1160, %v1152
  %v1441 = vpack.c.b16 %v1169, %v1161
  %v1442 = vpack.c.b16 %v1170, %v1162
  %v1443 = vpack.c.b16 %v1171, %v1163
  %v1444 = vpack.c.b16 %v1172, %v1164
  %v1445 = vpack.c.b16 %v1173, %v1165
  %v1446 = vpack.c.b16 %v1174, %v1166
  %v1447 = vpack.c.b16 %v1175, %v1167
  %v1448 = vpack.c.b16 %v1176, %v1168
  %v1449 = vpack.c.b16 %v1185, %v1177
  %v1450 = vpack.c.b16 %v1186, %v1178
  %v1451 = vpack.c.b16 %v1187, %v1179
  %v1452 = vpack.c.b16 %v1188, %v1180
  %v1453 = vpack.c.b16 %v1189, %v1181
  %v1454 = vpack.c.b16 %v1190, %v1182
  %v1455 = vpack.c.b16 %v1191, %v1183
  %v1456 = vpack.c.b16 %v1192, %v1184
  %v1457 = vpack.c.b16 %v1201, %v1193
  %v1458 = vpack.c.b16 %v1202, %v1194
  %v1459 = vpack.c.b16 %v1203, %v1195
  %v1460 = vpack.c.b16 %v1204, %v1196
  %v1461 = vpack.c.b16 %v1205, %v1197
  %v1462 = vpack.c.b16 %v1206, %v1198
  %v1463 = vpack.c.b16 %v1207, %v1199
  %v1464 = vpack.c.b16 %v1208, %v1200
  %1721 = vmatprep.subr.bf16.mxu0 %v1210
  %1722 = vmatpush1.bf16.msra.mxu0 %v1209
  %1723 = vmatprep.subr.bf16.mxu0 %v1218
  %1724 = vmatpush1.bf16.msra.mxu0 %v1217
  %1725 = vmatprep.subr.bf16.mxu0 %v1226
  %1726 = vmatpush1.bf16.msra.mxu0 %v1225
  %1727 = vmatprep.subr.bf16.mxu0 %v1234
  %1728 = vmatpush1.bf16.msra.mxu0 %v1233
  %1729 = vmatprep.subr.bf16.mxu0 %v1242
  %1730 = vmatpush1.bf16.msra.mxu0 %v1241
  %1731 = vmatprep.subr.bf16.mxu0 %v1250
  %1732 = vmatpush1.bf16.msra.mxu0 %v1249
  %1733 = vmatprep.subr.bf16.mxu0 %v1258
  %1734 = vmatpush1.bf16.msra.mxu0 %v1257
  %1735 = vmatprep.subr.bf16.mxu0 %v1266
  %1736 = vmatpush1.bf16.msra.mxu0 %v1265
  %1737 = vmatprep.subr.bf16.mxu0 %v1274
  %1738 = vmatpush1.bf16.msra.mxu0 %v1273
  %1739 = vmatprep.subr.bf16.mxu0 %v1282
  %1740 = vmatpush1.bf16.msra.mxu0 %v1281
  %1741 = vmatprep.subr.bf16.mxu0 %v1290
  %1742 = vmatpush1.bf16.msra.mxu0 %v1289
  %1743 = vmatprep.subr.bf16.mxu0 %v1298
  %1744 = vmatpush1.bf16.msra.mxu0 %v1297
  %1745 = vmatprep.subr.bf16.mxu0 %v1306
  %1746 = vmatpush1.bf16.msra.mxu0 %v1305
  %1747 = vmatprep.subr.bf16.mxu0 %v1314
  %1748 = vmatpush1.bf16.msra.mxu0 %v1313
  %1749 = vmatprep.subr.bf16.mxu0 %v1322
  %1750 = vmatpush1.bf16.msra.mxu0 %v1321
  %1751 = vmatprep.subr.bf16.mxu0 %v1330
  %1752 = vmatpush1.bf16.msra.mxu0 %v1329
  %1753 = vmatprep.mubr.bf16.mxu0 %v434
  %1754 = vmatmul.mubr.bf16.gmra.mrb[0].mxu0 %v433
  %v1755 = vpop.f32.mrb[0].mxu0
  %v1756 = vadd.f32 %v375, %v1755
  %v1757 = vpop.f32.mrb[0].mxu0
  %v1758 = vadd.f32 %v379, %v1757
  %v1759 = vpop.f32.mrb[0].mxu0
  %v1760 = vpop.f32.mrb[0].mxu0
  %1761 = vdwg.mxu0
  %1762 = vmatprep.subr.bf16.mxu0 %v1338
  %1763 = vmatpush1.bf16.msra.mxu0 %v1337
  %1764 = vmatprep.subr.bf16.mxu0 %v1346
  %1765 = vmatpush1.bf16.msra.mxu0 %v1345
  %1766 = vmatprep.subr.bf16.mxu0 %v1354
  %1767 = vmatpush1.bf16.msra.mxu0 %v1353
  %1768 = vmatprep.subr.bf16.mxu0 %v1362
  %1769 = vmatpush1.bf16.msra.mxu0 %v1361
  %1770 = vmatprep.subr.bf16.mxu0 %v1370
  %1771 = vmatpush1.bf16.msra.mxu0 %v1369
  %1772 = vmatprep.subr.bf16.mxu0 %v1378
  %1773 = vmatpush1.bf16.msra.mxu0 %v1377
  %1774 = vmatprep.subr.bf16.mxu0 %v1386
  %1775 = vmatpush1.bf16.msra.mxu0 %v1385
  %1776 = vmatprep.subr.bf16.mxu0 %v1394
  %1777 = vmatpush1.bf16.msra.mxu0 %v1393
  %1778 = vmatprep.subr.bf16.mxu0 %v1402
  %1779 = vmatpush1.bf16.msra.mxu0 %v1401
  %1780 = vmatprep.subr.bf16.mxu0 %v1410
  %1781 = vmatpush1.bf16.msra.mxu0 %v1409
  %1782 = vmatprep.subr.bf16.mxu0 %v1418
  %1783 = vmatpush1.bf16.msra.mxu0 %v1417
  %1784 = vmatprep.subr.bf16.mxu0 %v1426
  %1785 = vmatpush1.bf16.msra.mxu0 %v1425
  %1786 = vmatprep.subr.bf16.mxu0 %v1434
  %1787 = vmatpush1.bf16.msra.mxu0 %v1433
  %1788 = vmatprep.subr.bf16.mxu0 %v1442
  %1789 = vmatpush1.bf16.msra.mxu0 %v1441
  %1790 = vmatprep.subr.bf16.mxu0 %v1450
  %1791 = vmatpush1.bf16.msra.mxu0 %v1449
  %1792 = vmatprep.subr.bf16.mxu0 %v1458
  %1793 = vmatpush1.bf16.msra.mxu0 %v1457
  %1794 = vmatprep.mubr.bf16.mxu0 %v436
  %1795 = vmatmul.mubr.bf16.gmra.mrb[0].mxu0 %v435
  %v1796 = vpop.f32.mrb[0].mxu0
  %v1797 = vadd.f32 %v1756, %v1796
  %v1798 = vpop.f32.mrb[0].mxu0
  %v1799 = vadd.f32 %v1758, %v1798
  %v1800 = vpop.f32.mrb[0].mxu0
  %v1801 = vpop.f32.mrb[0].mxu0
  %1802 = vdwg.mxu0
  %1803 = vmatprep.subr.bf16.mxu0 %v1212
  %1804 = vmatpush1.bf16.msra.mxu0 %v1211
  %1805 = vmatprep.subr.bf16.mxu0 %v1220
  %1806 = vmatpush1.bf16.msra.mxu0 %v1219
  %1807 = vmatprep.subr.bf16.mxu0 %v1228
  %1808 = vmatpush1.bf16.msra.mxu0 %v1227
  %1809 = vmatprep.subr.bf16.mxu0 %v1236
  %1810 = vmatpush1.bf16.msra.mxu0 %v1235
  %1811 = vmatprep.subr.bf16.mxu0 %v1244
  %1812 = vmatpush1.bf16.msra.mxu0 %v1243
  %1813 = vmatprep.subr.bf16.mxu0 %v1252
  %1814 = vmatpush1.bf16.msra.mxu0 %v1251
  %1815 = vmatprep.subr.bf16.mxu0 %v1260
  %1816 = vmatpush1.bf16.msra.mxu0 %v1259
  %1817 = vmatprep.subr.bf16.mxu0 %v1268
  %1818 = vmatpush1.bf16.msra.mxu0 %v1267
  %1819 = vmatprep.subr.bf16.mxu0 %v1276
  %1820 = vmatpush1.bf16.msra.mxu0 %v1275
  %1821 = vmatprep.subr.bf16.mxu0 %v1284
  %1822 = vmatpush1.bf16.msra.mxu0 %v1283
  %1823 = vmatprep.subr.bf16.mxu0 %v1292
  %1824 = vmatpush1.bf16.msra.mxu0 %v1291
  %1825 = vmatprep.subr.bf16.mxu0 %v1300
  %1826 = vmatpush1.bf16.msra.mxu0 %v1299
  %1827 = vmatprep.subr.bf16.mxu0 %v1308
  %1828 = vmatpush1.bf16.msra.mxu0 %v1307
  %1829 = vmatprep.subr.bf16.mxu0 %v1316
  %1830 = vmatpush1.bf16.msra.mxu0 %v1315
  %1831 = vmatprep.subr.bf16.mxu0 %v1324
  %1832 = vmatpush1.bf16.msra.mxu0 %v1323
  %1833 = vmatprep.subr.bf16.mxu0 %v1332
  %1834 = vmatpush1.bf16.msra.mxu0 %v1331
  %1835 = vmatprep.mubr.bf16.mxu0 %v434
  %1836 = vmatmul.mubr.bf16.gmra.mrb[0].mxu0 %v433
  %v1837 = vpop.f32.mrb[0].mxu0
  %v1838 = vadd.f32 %v383, %v1837
  %v1839 = vpop.f32.mrb[0].mxu0
  %v1840 = vadd.f32 %v387, %v1839
  %v1841 = vpop.f32.mrb[0].mxu0
  %v1842 = vpop.f32.mrb[0].mxu0
  %1843 = vdwg.mxu0
  %1844 = vmatprep.subr.bf16.mxu0 %v1340
  %1845 = vmatpush1.bf16.msra.mxu0 %v1339
  %1846 = vmatprep.subr.bf16.mxu0 %v1348
  %1847 = vmatpush1.bf16.msra.mxu0 %v1347
  %1848 = vmatprep.subr.bf16.mxu0 %v1356
  %1849 = vmatpush1.bf16.msra.mxu0 %v1355
  %1850 = vmatprep.subr.bf16.mxu0 %v1364
  %1851 = vmatpush1.bf16.msra.mxu0 %v1363
  %1852 = vmatprep.subr.bf16.mxu0 %v1372
  %1853 = vmatpush1.bf16.msra.mxu0 %v1371
  %1854 = vmatprep.subr.bf16.mxu0 %v1380
  %1855 = vmatpush1.bf16.msra.mxu0 %v1379
  %1856 = vmatprep.subr.bf16.mxu0 %v1388
  %1857 = vmatpush1.bf16.msra.mxu0 %v1387
  %1858 = vmatprep.subr.bf16.mxu0 %v1396
  %1859 = vmatpush1.bf16.msra.mxu0 %v1395
  %1860 = vmatprep.subr.bf16.mxu0 %v1404
  %1861 = vmatpush1.bf16.msra.mxu0 %v1403
  %1862 = vmatprep.subr.bf16.mxu0 %v1412
  %1863 = vmatpush1.bf16.msra.mxu0 %v1411
  %1864 = vmatprep.subr.bf16.mxu0 %v1420
  %1865 = vmatpush1.bf16.msra.mxu0 %v1419
  %1866 = vmatprep.subr.bf16.mxu0 %v1428
  %1867 = vmatpush1.bf16.msra.mxu0 %v1427
  %1868 = vmatprep.subr.bf16.mxu0 %v1436
  %1869 = vmatpush1.bf16.msra.mxu0 %v1435
  %1870 = vmatprep.subr.bf16.mxu0 %v1444
  %1871 = vmatpush1.bf16.msra.mxu0 %v1443
  %1872 = vmatprep.subr.bf16.mxu0 %v1452
  %1873 = vmatpush1.bf16.msra.mxu0 %v1451
  %1874 = vmatprep.subr.bf16.mxu0 %v1460
  %1875 = vmatpush1.bf16.msra.mxu0 %v1459
  %1876 = vmatprep.mubr.bf16.mxu0 %v436
  %1877 = vmatmul.mubr.bf16.gmra.mrb[0].mxu0 %v435
  %v1878 = vpop.f32.mrb[0].mxu0
  %v1879 = vadd.f32 %v1838, %v1878
  %v1880 = vpop.f32.mrb[0].mxu0
  %v1881 = vadd.f32 %v1840, %v1880
  %v1882 = vpop.f32.mrb[0].mxu0
  %v1883 = vpop.f32.mrb[0].mxu0
  %1884 = vdwg.mxu0
  %1885 = vmatprep.subr.bf16.mxu0 %v1214
  %1886 = vmatpush1.bf16.msra.mxu0 %v1213
  %1887 = vmatprep.subr.bf16.mxu0 %v1222
  %1888 = vmatpush1.bf16.msra.mxu0 %v1221
  %1889 = vmatprep.subr.bf16.mxu0 %v1230
  %1890 = vmatpush1.bf16.msra.mxu0 %v1229
  %1891 = vmatprep.subr.bf16.mxu0 %v1238
  %1892 = vmatpush1.bf16.msra.mxu0 %v1237
  %1893 = vmatprep.subr.bf16.mxu0 %v1246
  %1894 = vmatpush1.bf16.msra.mxu0 %v1245
  %1895 = vmatprep.subr.bf16.mxu0 %v1254
  %1896 = vmatpush1.bf16.msra.mxu0 %v1253
  %1897 = vmatprep.subr.bf16.mxu0 %v1262
  %1898 = vmatpush1.bf16.msra.mxu0 %v1261
  %1899 = vmatprep.subr.bf16.mxu0 %v1270
  %1900 = vmatpush1.bf16.msra.mxu0 %v1269
  %1901 = vmatprep.subr.bf16.mxu0 %v1278
  %1902 = vmatpush1.bf16.msra.mxu0 %v1277
  %1903 = vmatprep.subr.bf16.mxu0 %v1286
  %1904 = vmatpush1.bf16.msra.mxu0 %v1285
  %1905 = vmatprep.subr.bf16.mxu0 %v1294
  %1906 = vmatpush1.bf16.msra.mxu0 %v1293
  %1907 = vmatprep.subr.bf16.mxu0 %v1302
  %1908 = vmatpush1.bf16.msra.mxu0 %v1301
  %1909 = vmatprep.subr.bf16.mxu0 %v1310
  %1910 = vmatpush1.bf16.msra.mxu0 %v1309
  %1911 = vmatprep.subr.bf16.mxu0 %v1318
  %1912 = vmatpush1.bf16.msra.mxu0 %v1317
  %1913 = vmatprep.subr.bf16.mxu0 %v1326
  %1914 = vmatpush1.bf16.msra.mxu0 %v1325
  %1915 = vmatprep.subr.bf16.mxu0 %v1334
  %1916 = vmatpush1.bf16.msra.mxu0 %v1333
  %1917 = vmatprep.mubr.bf16.mxu0 %v434
  %1918 = vmatmul.mubr.bf16.gmra.mrb[0].mxu0 %v433
  %v1919 = vpop.f32.mrb[0].mxu0
  %v1920 = vadd.f32 %v391, %v1919
  %v1921 = vpop.f32.mrb[0].mxu0
  %v1922 = vadd.f32 %v395, %v1921
  %v1923 = vpop.f32.mrb[0].mxu0
  %v1924 = vpop.f32.mrb[0].mxu0
  %1925 = vdwg.mxu0
  %1926 = vmatprep.subr.bf16.mxu0 %v1342
  %1927 = vmatpush1.bf16.msra.mxu0 %v1341
  %1928 = vmatprep.subr.bf16.mxu0 %v1350
  %1929 = vmatpush1.bf16.msra.mxu0 %v1349
  %1930 = vmatprep.subr.bf16.mxu0 %v1358
  %1931 = vmatpush1.bf16.msra.mxu0 %v1357
  %1932 = vmatprep.subr.bf16.mxu0 %v1366
  %1933 = vmatpush1.bf16.msra.mxu0 %v1365
  %1934 = vmatprep.subr.bf16.mxu0 %v1374
  %1935 = vmatpush1.bf16.msra.mxu0 %v1373
  %1936 = vmatprep.subr.bf16.mxu0 %v1382
  %1937 = vmatpush1.bf16.msra.mxu0 %v1381
  %1938 = vmatprep.subr.bf16.mxu0 %v1390
  %1939 = vmatpush1.bf16.msra.mxu0 %v1389
  %1940 = vmatprep.subr.bf16.mxu0 %v1398
  %1941 = vmatpush1.bf16.msra.mxu0 %v1397
  %1942 = vmatprep.subr.bf16.mxu0 %v1406
  %1943 = vmatpush1.bf16.msra.mxu0 %v1405
  %1944 = vmatprep.subr.bf16.mxu0 %v1414
  %1945 = vmatpush1.bf16.msra.mxu0 %v1413
  %1946 = vmatprep.subr.bf16.mxu0 %v1422
  %1947 = vmatpush1.bf16.msra.mxu0 %v1421
  %1948 = vmatprep.subr.bf16.mxu0 %v1430
  %1949 = vmatpush1.bf16.msra.mxu0 %v1429
  %1950 = vmatprep.subr.bf16.mxu0 %v1438
  %1951 = vmatpush1.bf16.msra.mxu0 %v1437
  %1952 = vmatprep.subr.bf16.mxu0 %v1446
  %1953 = vmatpush1.bf16.msra.mxu0 %v1445
  %1954 = vmatprep.subr.bf16.mxu0 %v1454
  %1955 = vmatpush1.bf16.msra.mxu0 %v1453
  %1956 = vmatprep.subr.bf16.mxu0 %v1462
  %1957 = vmatpush1.bf16.msra.mxu0 %v1461
  %1958 = vmatprep.mubr.bf16.mxu0 %v436
  %1959 = vmatmul.mubr.bf16.gmra.mrb[0].mxu0 %v435
  %v1960 = vpop.f32.mrb[0].mxu0
  %v1961 = vadd.f32 %v1920, %v1960
  %v1962 = vpop.f32.mrb[0].mxu0
  %v1963 = vadd.f32 %v1922, %v1962
  %v1964 = vpop.f32.mrb[0].mxu0
  %v1965 = vpop.f32.mrb[0].mxu0
  %1966 = vdwg.mxu0
  %1967 = vmatprep.subr.bf16.mxu0 %v1216
  %1968 = vmatpush1.bf16.msra.mxu0 %v1215
  %1969 = vmatprep.subr.bf16.mxu0 %v1224
  %1970 = vmatpush1.bf16.msra.mxu0 %v1223
  %1971 = vmatprep.subr.bf16.mxu0 %v1232
  %1972 = vmatpush1.bf16.msra.mxu0 %v1231
  %1973 = vmatprep.subr.bf16.mxu0 %v1240
  %1974 = vmatpush1.bf16.msra.mxu0 %v1239
  %1975 = vmatprep.subr.bf16.mxu0 %v1248
  %1976 = vmatpush1.bf16.msra.mxu0 %v1247
  %1977 = vmatprep.subr.bf16.mxu0 %v1256
  %1978 = vmatpush1.bf16.msra.mxu0 %v1255
  %1979 = vmatprep.subr.bf16.mxu0 %v1264
  %1980 = vmatpush1.bf16.msra.mxu0 %v1263
  %1981 = vmatprep.subr.bf16.mxu0 %v1272
  %1982 = vmatpush1.bf16.msra.mxu0 %v1271
  %1983 = vmatprep.subr.bf16.mxu0 %v1280
  %1984 = vmatpush1.bf16.msra.mxu0 %v1279
  %1985 = vmatprep.subr.bf16.mxu0 %v1288
  %1986 = vmatpush1.bf16.msra.mxu0 %v1287
  %1987 = vmatprep.subr.bf16.mxu0 %v1296
  %1988 = vmatpush1.bf16.msra.mxu0 %v1295
  %1989 = vmatprep.subr.bf16.mxu0 %v1304
  %1990 = vmatpush1.bf16.msra.mxu0 %v1303
  %1991 = vmatprep.subr.bf16.mxu0 %v1312
  %1992 = vmatpush1.bf16.msra.mxu0 %v1311
  %1993 = vmatprep.subr.bf16.mxu0 %v1320
  %1994 = vmatpush1.bf16.msra.mxu0 %v1319
  %1995 = vmatprep.subr.bf16.mxu0 %v1328
  %1996 = vmatpush1.bf16.msra.mxu0 %v1327
  %1997 = vmatprep.subr.bf16.mxu0 %v1336
  %1998 = vmatpush1.bf16.msra.mxu0 %v1335
  %1999 = vmatprep.mubr.bf16.mxu0 %v434
  %2000 = vmatmul.mubr.bf16.gmra.mrb[0].mxu0 %v433
  %v2001 = vpop.f32.mrb[0].mxu0
  %v2002 = vadd.f32 %v399, %v2001
  %v2003 = vpop.f32.mrb[0].mxu0
  %v2004 = vadd.f32 %v403, %v2003
  %v2005 = vpop.f32.mrb[0].mxu0
  %v2006 = vpop.f32.mrb[0].mxu0
  %2007 = vdwg.mxu0
  %2008 = vmatprep.subr.bf16.mxu0 %v1344
  %2009 = vmatpush1.bf16.msra.mxu0 %v1343
  %2010 = vmatprep.subr.bf16.mxu0 %v1352
  %2011 = vmatpush1.bf16.msra.mxu0 %v1351
  %2012 = vmatprep.subr.bf16.mxu0 %v1360
  %2013 = vmatpush1.bf16.msra.mxu0 %v1359
  %2014 = vmatprep.subr.bf16.mxu0 %v1368
  %2015 = vmatpush1.bf16.msra.mxu0 %v1367
  %2016 = vmatprep.subr.bf16.mxu0 %v1376
  %2017 = vmatpush1.bf16.msra.mxu0 %v1375
  %2018 = vmatprep.subr.bf16.mxu0 %v1384
  %2019 = vmatpush1.bf16.msra.mxu0 %v1383
  %2020 = vmatprep.subr.bf16.mxu0 %v1392
  %2021 = vmatpush1.bf16.msra.mxu0 %v1391
  %2022 = vmatprep.subr.bf16.mxu0 %v1400
  %2023 = vmatpush1.bf16.msra.mxu0 %v1399
  %2024 = vmatprep.subr.bf16.mxu0 %v1408
  %2025 = vmatpush1.bf16.msra.mxu0 %v1407
  %2026 = vmatprep.subr.bf16.mxu0 %v1416
  %2027 = vmatpush1.bf16.msra.mxu0 %v1415
  %2028 = vmatprep.subr.bf16.mxu0 %v1424
  %2029 = vmatpush1.bf16.msra.mxu0 %v1423
  %2030 = vmatprep.subr.bf16.mxu0 %v1432
  %2031 = vmatpush1.bf16.msra.mxu0 %v1431
  %2032 = vmatprep.subr.bf16.mxu0 %v1440
  %2033 = vmatpush1.bf16.msra.mxu0 %v1439
  %2034 = vmatprep.subr.bf16.mxu0 %v1448
  %2035 = vmatpush1.bf16.msra.mxu0 %v1447
  %2036 = vmatprep.subr.bf16.mxu0 %v1456
  %2037 = vmatpush1.bf16.msra.mxu0 %v1455
  %2038 = vmatprep.subr.bf16.mxu0 %v1464
  %2039 = vmatpush1.bf16.msra.mxu0 %v1463
  %2040 = vmatprep.mubr.bf16.mxu0 %v436
  %2041 = vmatmul.mubr.bf16.gmra.mrb[0].mxu0 %v435
  %v2042 = vpop.f32.mrb[0].mxu0
  %v2043 = vadd.f32 %v2002, %v2042
  %v2044 = vpop.f32.mrb[0].mxu0
  %v2045 = vadd.f32 %v2004, %v2044
  %v2046 = vpop.f32.mrb[0].mxu0
  %v2047 = vpop.f32.mrb[0].mxu0
  %2048 = vdwg.mxu0
  %vm2049 = vcmp.ge.f32.partialorder %v1797, 0.0
  %vm2050 = vcmp.ge.f32.partialorder %v1799, 0.0
  %vm2051 = vcmp.ge.f32.partialorder %v1879, 0.0
  %vm2052 = vcmp.ge.f32.partialorder %v1881, 0.0
  %vm2053 = vcmp.ge.f32.partialorder %v1961, 0.0
  %vm2054 = vcmp.ge.f32.partialorder %v1963, 0.0
  %vm2055 = vcmp.ge.f32.partialorder %v2043, 0.0
  %vm2056 = vcmp.ge.f32.partialorder %v2045, 0.0
  %v2057 = vmul.f32 %v1797, 0.2
  %v2058 = vmul.f32 %v1799, 0.2
  %v2059 = vmul.f32 %v1879, 0.2
  %v2060 = vmul.f32 %v1881, 0.2
  %v2061 = vmul.f32 %v1961, 0.2
  %v2062 = vmul.f32 %v1963, 0.2
  %v2063 = vmul.f32 %v2043, 0.2
  %v2064 = vmul.f32 %v2045, 0.2
  %v2065 = vsel %vm2049, %v1797, %v2057
  %v2066 = vsel %vm2050, %v1799, %v2058
  %v2067 = vsel %vm2051, %v1879, %v2059
  %v2068 = vsel %vm2052, %v1881, %v2060
  %v2069 = vsel %vm2053, %v1961, %v2061
  %v2070 = vsel %vm2054, %v1963, %v2062
  %v2071 = vsel %vm2055, %v2043, %v2063
  %v2072 = vsel %vm2056, %v2045, %v2064
  %v2073 = vpack.c.bf16 %v2065, %v2065
  %v2074 = vpack.c.bf16 %v2066, %v2066
  %v2075 = vpack.c.bf16 %v2067, %v2067
  %v2076 = vpack.c.bf16 %v2068, %v2068
  %v2077 = vpack.c.bf16 %v2069, %v2069
  %v2078 = vpack.c.bf16 %v2070, %v2070
  %v2079 = vpack.c.bf16 %v2071, %v2071
  %v2080 = vpack.c.bf16 %v2072, %v2072
  %v2081 = vld [vmem:[%s3] sm:$0xf]
  %v2082 = vld [vmem:[%s3 + $0x4] sm:$0xf]
  %v2083 = vld [vmem:[%s3 + $0x8] sm:$0xf]
  %v2084 = vld [vmem:[%s3 + $0xc] sm:$0xf]
  %v2085 = vld [vmem:[%s3 + $0x10] sm:$0xf]
  %v2086 = vld [vmem:[%s3 + $0x14] sm:$0xf]
  %v2087 = vld [vmem:[%s3 + $0x18] sm:$0xf]
  %v2088 = vld [vmem:[%s3 + $0x1c] sm:$0xf]
  %v2089 = vld [vmem:[%s3 + $0x20] sm:$0xf]
  %v2090 = vld [vmem:[%s3 + $0x24] sm:$0xf]
  %v2091 = vld [vmem:[%s3 + $0x28] sm:$0xf]
  %v2092 = vld [vmem:[%s3 + $0x2c] sm:$0xf]
  %v2093 = vld [vmem:[%s3 + $0x30] sm:$0xf]
  %v2094 = vld [vmem:[%s3 + $0x34] sm:$0xf]
  %v2095 = vld [vmem:[%s3 + $0x38] sm:$0xf]
  %v2096 = vld [vmem:[%s3 + $0x3c] sm:$0xf]
  %v2097 = vld [vmem:[%s3 + $0x40] sm:$0xf]
  %v2098 = vld [vmem:[%s3 + $0x44] sm:$0xf]
  %v2099 = vld [vmem:[%s3 + $0x48] sm:$0xf]
  %v2100 = vld [vmem:[%s3 + $0x4c] sm:$0xf]
  %v2101 = vld [vmem:[%s3 + $0x50] sm:$0xf]
  %v2102 = vld [vmem:[%s3 + $0x54] sm:$0xf]
  %v2103 = vld [vmem:[%s3 + $0x58] sm:$0xf]
  %v2104 = vld [vmem:[%s3 + $0x5c] sm:$0xf]
  %v2105 = vld [vmem:[%s3 + $0x60] sm:$0xf]
  %v2106 = vld [vmem:[%s3 + $0x64] sm:$0xf]
  %v2107 = vld [vmem:[%s3 + $0x68] sm:$0xf]
  %v2108 = vld [vmem:[%s3 + $0x6c] sm:$0xf]
  %v2109 = vld [vmem:[%s3 + $0x70] sm:$0xf]
  %v2110 = vld [vmem:[%s3 + $0x74] sm:$0xf]
  %v2111 = vld [vmem:[%s3 + $0x78] sm:$0xf]
  %v2112 = vld [vmem:[%s3 + $0x7c] sm:$0xf]
  %v2113 = vld [vmem:[%s3 + $0x80] sm:$0xf]
  %v2114 = vld [vmem:[%s3 + $0x84] sm:$0xf]
  %v2115 = vld [vmem:[%s3 + $0x88] sm:$0xf]
  %v2116 = vld [vmem:[%s3 + $0x8c] sm:$0xf]
  %v2117 = vld [vmem:[%s3 + $0x90] sm:$0xf]
  %v2118 = vld [vmem:[%s3 + $0x94] sm:$0xf]
  %v2119 = vld [vmem:[%s3 + $0x98] sm:$0xf]
  %v2120 = vld [vmem:[%s3 + $0x9c] sm:$0xf]
  %v2121 = vld [vmem:[%s3 + $0xa0] sm:$0xf]
  %v2122 = vld [vmem:[%s3 + $0xa4] sm:$0xf]
  %v2123 = vld [vmem:[%s3 + $0xa8] sm:$0xf]
  %v2124 = vld [vmem:[%s3 + $0xac] sm:$0xf]
  %v2125 = vld [vmem:[%s3 + $0xb0] sm:$0xf]
  %v2126 = vld [vmem:[%s3 + $0xb4] sm:$0xf]
  %v2127 = vld [vmem:[%s3 + $0xb8] sm:$0xf]
  %v2128 = vld [vmem:[%s3 + $0xbc] sm:$0xf]
  %v2129 = vld [vmem:[%s3 + $0xc0] sm:$0xf]
  %v2130 = vld [vmem:[%s3 + $0xc4] sm:$0xf]
  %v2131 = vld [vmem:[%s3 + $0xc8] sm:$0xf]
  %v2132 = vld [vmem:[%s3 + $0xcc] sm:$0xf]
  %v2133 = vld [vmem:[%s3 + $0xd0] sm:$0xf]
  %v2134 = vld [vmem:[%s3 + $0xd4] sm:$0xf]
  %v2135 = vld [vmem:[%s3 + $0xd8] sm:$0xf]
  %v2136 = vld [vmem:[%s3 + $0xdc] sm:$0xf]
  %v2137 = vld [vmem:[%s3 + $0xe0] sm:$0xf]
  %v2138 = vld [vmem:[%s3 + $0xe4] sm:$0xf]
  %v2139 = vld [vmem:[%s3 + $0xe8] sm:$0xf]
  %v2140 = vld [vmem:[%s3 + $0xec] sm:$0xf]
  %v2141 = vld [vmem:[%s3 + $0xf0] sm:$0xf]
  %v2142 = vld [vmem:[%s3 + $0xf4] sm:$0xf]
  %v2143 = vld [vmem:[%s3 + $0xf8] sm:$0xf]
  %v2144 = vld [vmem:[%s3 + $0xfc] sm:$0xf]
  %v2145 = vld [vmem:[%s3 + $0x100] sm:$0xf]
  %v2146 = vld [vmem:[%s3 + $0x104] sm:$0xf]
  %v2147 = vld [vmem:[%s3 + $0x108] sm:$0xf]
  %v2148 = vld [vmem:[%s3 + $0x10c] sm:$0xf]
  %v2149 = vld [vmem:[%s3 + $0x110] sm:$0xf]
  %v2150 = vld [vmem:[%s3 + $0x114] sm:$0xf]
  %v2151 = vld [vmem:[%s3 + $0x118] sm:$0xf]
  %v2152 = vld [vmem:[%s3 + $0x11c] sm:$0xf]
  %v2153 = vld [vmem:[%s3 + $0x120] sm:$0xf]
  %v2154 = vld [vmem:[%s3 + $0x124] sm:$0xf]
  %v2155 = vld [vmem:[%s3 + $0x128] sm:$0xf]
  %v2156 = vld [vmem:[%s3 + $0x12c] sm:$0xf]
  %v2157 = vld [vmem:[%s3 + $0x130] sm:$0xf]
  %v2158 = vld [vmem:[%s3 + $0x134] sm:$0xf]
  %v2159 = vld [vmem:[%s3 + $0x138] sm:$0xf]
  %v2160 = vld [vmem:[%s3 + $0x13c] sm:$0xf]
  %v2161 = vld [vmem:[%s3 + $0x140] sm:$0xf]
  %v2162 = vld [vmem:[%s3 + $0x144] sm:$0xf]
  %v2163 = vld [vmem:[%s3 + $0x148] sm:$0xf]
  %v2164 = vld [vmem:[%s3 + $0x14c] sm:$0xf]
  %v2165 = vld [vmem:[%s3 + $0x150] sm:$0xf]
  %v2166 = vld [vmem:[%s3 + $0x154] sm:$0xf]
  %v2167 = vld [vmem:[%s3 + $0x158] sm:$0xf]
  %v2168 = vld [vmem:[%s3 + $0x15c] sm:$0xf]
  %v2169 = vld [vmem:[%s3 + $0x160] sm:$0xf]
  %v2170 = vld [vmem:[%s3 + $0x164] sm:$0xf]
  %v2171 = vld [vmem:[%s3 + $0x168] sm:$0xf]
  %v2172 = vld [vmem:[%s3 + $0x16c] sm:$0xf]
  %v2173 = vld [vmem:[%s3 + $0x170] sm:$0xf]
  %v2174 = vld [vmem:[%s3 + $0x174] sm:$0xf]
  %v2175 = vld [vmem:[%s3 + $0x178] sm:$0xf]
  %v2176 = vld [vmem:[%s3 + $0x17c] sm:$0xf]
  %v2177 = vld [vmem:[%s3 + $0x180] sm:$0xf]
  %v2178 = vld [vmem:[%s3 + $0x184] sm:$0xf]
  %v2179 = vld [vmem:[%s3 + $0x188] sm:$0xf]
  %v2180 = vld [vmem:[%s3 + $0x18c] sm:$0xf]
  %v2181 = vld [vmem:[%s3 + $0x190] sm:$0xf]
  %v2182 = vld [vmem:[%s3 + $0x194] sm:$0xf]
  %v2183 = vld [vmem:[%s3 + $0x198] sm:$0xf]
  %v2184 = vld [vmem:[%s3 + $0x19c] sm:$0xf]
  %v2185 = vld [vmem:[%s3 + $0x1a0] sm:$0xf]
  %v2186 = vld [vmem:[%s3 + $0x1a4] sm:$0xf]
  %v2187 = vld [vmem:[%s3 + $0x1a8] sm:$0xf]
  %v2188 = vld [vmem:[%s3 + $0x1ac] sm:$0xf]
  %v2189 = vld [vmem:[%s3 + $0x1b0] sm:$0xf]
  %v2190 = vld [vmem:[%s3 + $0x1b4] sm:$0xf]
  %v2191 = vld [vmem:[%s3 + $0x1b8] sm:$0xf]
  %v2192 = vld [vmem:[%s3 + $0x1bc] sm:$0xf]
  %v2193 = vld [vmem:[%s3 + $0x1c0] sm:$0xf]
  %v2194 = vld [vmem:[%s3 + $0x1c4] sm:$0xf]
  %v2195 = vld [vmem:[%s3 + $0x1c8] sm:$0xf]
  %v2196 = vld [vmem:[%s3 + $0x1cc] sm:$0xf]
  %v2197 = vld [vmem:[%s3 + $0x1d0] sm:$0xf]
  %v2198 = vld [vmem:[%s3 + $0x1d4] sm:$0xf]
  %v2199 = vld [vmem:[%s3 + $0x1d8] sm:$0xf]
  %v2200 = vld [vmem:[%s3 + $0x1dc] sm:$0xf]
  %v2201 = vld [vmem:[%s3 + $0x1e0] sm:$0xf]
  %v2202 = vld [vmem:[%s3 + $0x1e4] sm:$0xf]
  %v2203 = vld [vmem:[%s3 + $0x1e8] sm:$0xf]
  %v2204 = vld [vmem:[%s3 + $0x1ec] sm:$0xf]
  %v2205 = vld [vmem:[%s3 + $0x1f0] sm:$0xf]
  %v2206 = vld [vmem:[%s3 + $0x1f4] sm:$0xf]
  %v2207 = vld [vmem:[%s3 + $0x1f8] sm:$0xf]
  %v2208 = vld [vmem:[%s3 + $0x1fc] sm:$0xf]
  %v2209 = vld [vmem:[#allocation2] sm:$0x1]
  %v2211 = vlaneseq
  %v2212 = vshrl.u32 %v2211, 7
  %v2213 = vsub.s32 0, %v2212
  %v2214 = vrot.slane %v2209, %v2213
  %v2344 = vunpack.c.l.b16 %v2081
  %v2345 = vunpack.c.l.b16 %v2082
  %v2346 = vunpack.c.l.b16 %v2083
  %v2347 = vunpack.c.l.b16 %v2084
  %v2348 = vunpack.c.l.b16 %v2085
  %v2349 = vunpack.c.l.b16 %v2086
  %v2350 = vunpack.c.l.b16 %v2087
  %v2351 = vunpack.c.l.b16 %v2088
  %v2352 = vunpack.c.l.b16 %v2089
  %v2353 = vunpack.c.l.b16 %v2090
  %v2354 = vunpack.c.l.b16 %v2091
  %v2355 = vunpack.c.l.b16 %v2092
  %v2356 = vunpack.c.l.b16 %v2093
  %v2357 = vunpack.c.l.b16 %v2094
  %v2358 = vunpack.c.l.b16 %v2095
  %v2359 = vunpack.c.l.b16 %v2096
  %v2360 = vunpack.c.l.b16 %v2097
  %v2361 = vunpack.c.l.b16 %v2098
  %v2362 = vunpack.c.l.b16 %v2099
  %v2363 = vunpack.c.l.b16 %v2100
  %v2364 = vunpack.c.l.b16 %v2101
  %v2365 = vunpack.c.l.b16 %v2102
  %v2366 = vunpack.c.l.b16 %v2103
  %v2367 = vunpack.c.l.b16 %v2104
  %v2368 = vunpack.c.l.b16 %v2105
  %v2369 = vunpack.c.l.b16 %v2106
  %v2370 = vunpack.c.l.b16 %v2107
  %v2371 = vunpack.c.l.b16 %v2108
  %v2372 = vunpack.c.l.b16 %v2109
  %v2373 = vunpack.c.l.b16 %v2110
  %v2374 = vunpack.c.l.b16 %v2111
  %v2375 = vunpack.c.l.b16 %v2112
  %v2376 = vunpack.c.l.b16 %v2113
  %v2377 = vunpack.c.l.b16 %v2114
  %v2378 = vunpack.c.l.b16 %v2115
  %v2379 = vunpack.c.l.b16 %v2116
  %v2380 = vunpack.c.l.b16 %v2117
  %v2381 = vunpack.c.l.b16 %v2118
  %v2382 = vunpack.c.l.b16 %v2119
  %v2383 = vunpack.c.l.b16 %v2120
  %v2384 = vunpack.c.l.b16 %v2121
  %v2385 = vunpack.c.l.b16 %v2122
  %v2386 = vunpack.c.l.b16 %v2123
  %v2387 = vunpack.c.l.b16 %v2124
  %v2388 = vunpack.c.l.b16 %v2125
  %v2389 = vunpack.c.l.b16 %v2126
  %v2390 = vunpack.c.l.b16 %v2127
  %v2391 = vunpack.c.l.b16 %v2128
  %v2392 = vunpack.c.l.b16 %v2129
  %v2393 = vunpack.c.l.b16 %v2130
  %v2394 = vunpack.c.l.b16 %v2131
  %v2395 = vunpack.c.l.b16 %v2132
  %v2396 = vunpack.c.l.b16 %v2133
  %v2397 = vunpack.c.l.b16 %v2134
  %v2398 = vunpack.c.l.b16 %v2135
  %v2399 = vunpack.c.l.b16 %v2136
  %v2400 = vunpack.c.l.b16 %v2137
  %v2401 = vunpack.c.l.b16 %v2138
  %v2402 = vunpack.c.l.b16 %v2139
  %v2403 = vunpack.c.l.b16 %v2140
  %v2404 = vunpack.c.l.b16 %v2141
  %v2405 = vunpack.c.l.b16 %v2142
  %v2406 = vunpack.c.l.b16 %v2143
  %v2407 = vunpack.c.l.b16 %v2144
  %v2408 = vunpack.c.l.b16 %v2145
  %v2409 = vunpack.c.l.b16 %v2146
  %v2410 = vunpack.c.l.b16 %v2147
  %v2411 = vunpack.c.l.b16 %v2148
  %v2412 = vunpack.c.l.b16 %v2149
  %v2413 = vunpack.c.l.b16 %v2150
  %v2414 = vunpack.c.l.b16 %v2151
  %v2415 = vunpack.c.l.b16 %v2152
  %v2416 = vunpack.c.l.b16 %v2153
  %v2417 = vunpack.c.l.b16 %v2154
  %v2418 = vunpack.c.l.b16 %v2155
  %v2419 = vunpack.c.l.b16 %v2156
  %v2420 = vunpack.c.l.b16 %v2157
  %v2421 = vunpack.c.l.b16 %v2158
  %v2422 = vunpack.c.l.b16 %v2159
  %v2423 = vunpack.c.l.b16 %v2160
  %v2424 = vunpack.c.l.b16 %v2161
  %v2425 = vunpack.c.l.b16 %v2162
  %v2426 = vunpack.c.l.b16 %v2163
  %v2427 = vunpack.c.l.b16 %v2164
  %v2428 = vunpack.c.l.b16 %v2165
  %v2429 = vunpack.c.l.b16 %v2166
  %v2430 = vunpack.c.l.b16 %v2167
  %v2431 = vunpack.c.l.b16 %v2168
  %v2432 = vunpack.c.l.b16 %v2169
  %v2433 = vunpack.c.l.b16 %v2170
  %v2434 = vunpack.c.l.b16 %v2171
  %v2435 = vunpack.c.l.b16 %v2172
  %v2436 = vunpack.c.l.b16 %v2173
  %v2437 = vunpack.c.l.b16 %v2174
  %v2438 = vunpack.c.l.b16 %v2175
  %v2439 = vunpack.c.l.b16 %v2176
  %v2440 = vunpack.c.l.b16 %v2177
  %v2441 = vunpack.c.l.b16 %v2178
  %v2442 = vunpack.c.l.b16 %v2179
  %v2443 = vunpack.c.l.b16 %v2180
  %v2444 = vunpack.c.l.b16 %v2181
  %v2445 = vunpack.c.l.b16 %v2182
  %v2446 = vunpack.c.l.b16 %v2183
  %v2447 = vunpack.c.l.b16 %v2184
  %v2448 = vunpack.c.l.b16 %v2185
  %v2449 = vunpack.c.l.b16 %v2186
  %v2450 = vunpack.c.l.b16 %v2187
  %v2451 = vunpack.c.l.b16 %v2188
  %v2452 = vunpack.c.l.b16 %v2189
  %v2453 = vunpack.c.l.b16 %v2190
  %v2454 = vunpack.c.l.b16 %v2191
  %v2455 = vunpack.c.l.b16 %v2192
  %v2456 = vunpack.c.l.b16 %v2193
  %v2457 = vunpack.c.l.b16 %v2194
  %v2458 = vunpack.c.l.b16 %v2195
  %v2459 = vunpack.c.l.b16 %v2196
  %v2460 = vunpack.c.l.b16 %v2197
  %v2461 = vunpack.c.l.b16 %v2198
  %v2462 = vunpack.c.l.b16 %v2199
  %v2463 = vunpack.c.l.b16 %v2200
  %v2464 = vunpack.c.l.b16 %v2201
  %v2465 = vunpack.c.l.b16 %v2202
  %v2466 = vunpack.c.l.b16 %v2203
  %v2467 = vunpack.c.l.b16 %v2204
  %v2468 = vunpack.c.l.b16 %v2205
  %v2469 = vunpack.c.l.b16 %v2206
  %v2470 = vunpack.c.l.b16 %v2207
  %v2471 = vunpack.c.l.b16 %v2208
  %v2472 = vpack.c.b16 %v2345, %v2344
  %v2473 = vpack.c.b16 %v2347, %v2346
  %v2474 = vpack.c.b16 %v2349, %v2348
  %v2475 = vpack.c.b16 %v2351, %v2350
  %v2476 = vpack.c.b16 %v2353, %v2352
  %v2477 = vpack.c.b16 %v2355, %v2354
  %v2478 = vpack.c.b16 %v2357, %v2356
  %v2479 = vpack.c.b16 %v2359, %v2358
  %v2480 = vpack.c.b16 %v2361, %v2360
  %v2481 = vpack.c.b16 %v2363, %v2362
  %v2482 = vpack.c.b16 %v2365, %v2364
  %v2483 = vpack.c.b16 %v2367, %v2366
  %v2484 = vpack.c.b16 %v2369, %v2368
  %v2485 = vpack.c.b16 %v2371, %v2370
  %v2486 = vpack.c.b16 %v2373, %v2372
  %v2487 = vpack.c.b16 %v2375, %v2374
  %v2488 = vpack.c.b16 %v2377, %v2376
  %v2489 = vpack.c.b16 %v2379, %v2378
  %v2490 = vpack.c.b16 %v2381, %v2380
  %v2491 = vpack.c.b16 %v2383, %v2382
  %v2492 = vpack.c.b16 %v2385, %v2384
  %v2493 = vpack.c.b16 %v2387, %v2386
  %v2494 = vpack.c.b16 %v2389, %v2388
  %v2495 = vpack.c.b16 %v2391, %v2390
  %v2496 = vpack.c.b16 %v2393, %v2392
  %v2497 = vpack.c.b16 %v2395, %v2394
  %v2498 = vpack.c.b16 %v2397, %v2396
  %v2499 = vpack.c.b16 %v2399, %v2398
  %v2500 = vpack.c.b16 %v2401, %v2400
  %v2501 = vpack.c.b16 %v2403, %v2402
  %v2502 = vpack.c.b16 %v2405, %v2404
  %v2503 = vpack.c.b16 %v2407, %v2406
  %v2504 = vpack.c.b16 %v2409, %v2408
  %v2505 = vpack.c.b16 %v2411, %v2410
  %v2506 = vpack.c.b16 %v2413, %v2412
  %v2507 = vpack.c.b16 %v2415, %v2414
  %v2508 = vpack.c.b16 %v2417, %v2416
  %v2509 = vpack.c.b16 %v2419, %v2418
  %v2510 = vpack.c.b16 %v2421, %v2420
  %v2511 = vpack.c.b16 %v2423, %v2422
  %v2512 = vpack.c.b16 %v2425, %v2424
  %v2513 = vpack.c.b16 %v2427, %v2426
  %v2514 = vpack.c.b16 %v2429, %v2428
  %v2515 = vpack.c.b16 %v2431, %v2430
  %v2516 = vpack.c.b16 %v2433, %v2432
  %v2517 = vpack.c.b16 %v2435, %v2434
  %v2518 = vpack.c.b16 %v2437, %v2436
  %v2519 = vpack.c.b16 %v2439, %v2438
  %v2520 = vpack.c.b16 %v2441, %v2440
  %v2521 = vpack.c.b16 %v2443, %v2442
  %v2522 = vpack.c.b16 %v2445, %v2444
  %v2523 = vpack.c.b16 %v2447, %v2446
  %v2524 = vpack.c.b16 %v2449, %v2448
  %v2525 = vpack.c.b16 %v2451, %v2450
  %v2526 = vpack.c.b16 %v2453, %v2452
  %v2527 = vpack.c.b16 %v2455, %v2454
  %v2528 = vpack.c.b16 %v2457, %v2456
  %v2529 = vpack.c.b16 %v2459, %v2458
  %v2530 = vpack.c.b16 %v2461, %v2460
  %v2531 = vpack.c.b16 %v2463, %v2462
  %v2532 = vpack.c.b16 %v2465, %v2464
  %v2533 = vpack.c.b16 %v2467, %v2466
  %v2534 = vpack.c.b16 %v2469, %v2468
  %v2535 = vpack.c.b16 %v2471, %v2470
  %2600 = vmatprep.subr.bf16.mxu0 0
  %2601 = vmatpush1.bf16.msra.mxu0 %v2472
  %2602 = vmatprep.subr.bf16.mxu0 0
  %2603 = vmatpush1.bf16.msra.mxu0 %v2473
  %2604 = vmatprep.subr.bf16.mxu0 0
  %2605 = vmatpush1.bf16.msra.mxu0 %v2474
  %2606 = vmatprep.subr.bf16.mxu0 0
  %2607 = vmatpush1.bf16.msra.mxu0 %v2475
  %2608 = vmatprep.subr.bf16.mxu0 0
  %2609 = vmatpush1.bf16.msra.mxu0 %v2476
  %2610 = vmatprep.subr.bf16.mxu0 0
  %2611 = vmatpush1.bf16.msra.mxu0 %v2477
  %2612 = vmatprep.subr.bf16.mxu0 0
  %2613 = vmatpush1.bf16.msra.mxu0 %v2478
  %2614 = vmatprep.subr.bf16.mxu0 0
  %2615 = vmatpush1.bf16.msra.mxu0 %v2479
  %2616 = vmatprep.subr.bf16.mxu0 0
  %2617 = vmatpush1.bf16.msra.mxu0 %v2480
  %2618 = vmatprep.subr.bf16.mxu0 0
  %2619 = vmatpush1.bf16.msra.mxu0 %v2481
  %2620 = vmatprep.subr.bf16.mxu0 0
  %2621 = vmatpush1.bf16.msra.mxu0 %v2482
  %2622 = vmatprep.subr.bf16.mxu0 0
  %2623 = vmatpush1.bf16.msra.mxu0 %v2483
  %2624 = vmatprep.subr.bf16.mxu0 0
  %2625 = vmatpush1.bf16.msra.mxu0 %v2484
  %2626 = vmatprep.subr.bf16.mxu0 0
  %2627 = vmatpush1.bf16.msra.mxu0 %v2485
  %2628 = vmatprep.subr.bf16.mxu0 0
  %2629 = vmatpush1.bf16.msra.mxu0 %v2486
  %2630 = vmatprep.subr.bf16.mxu0 0
  %2631 = vmatpush1.bf16.msra.mxu0 %v2487
  %2632 = vmatprep.mubr.bf16.mxu0 %v2074
  %2633 = vmatmul.mubr.bf16.gmra.mrb[0].mxu0 %v2073
  %v2634 = vpop.f32.mrb[0].mxu0
  %v2635 = vadd.f32 %v2214, %v2634
  %v2636 = vpop.f32.mrb[0].mxu0
  %v2637 = vpop.f32.mrb[0].mxu0
  %v2638 = vpop.f32.mrb[0].mxu0
  %2639 = vdwg.mxu0
  %2640 = vmatprep.subr.bf16.mxu0 0
  %2641 = vmatpush1.bf16.msra.mxu0 %v2488
  %2642 = vmatprep.subr.bf16.mxu0 0
  %2643 = vmatpush1.bf16.msra.mxu0 %v2489
  %2644 = vmatprep.subr.bf16.mxu0 0
  %2645 = vmatpush1.bf16.msra.mxu0 %v2490
  %2646 = vmatprep.subr.bf16.mxu0 0
  %2647 = vmatpush1.bf16.msra.mxu0 %v2491
  %2648 = vmatprep.subr.bf16.mxu0 0
  %2649 = vmatpush1.bf16.msra.mxu0 %v2492
  %2650 = vmatprep.subr.bf16.mxu0 0
  %2651 = vmatpush1.bf16.msra.mxu0 %v2493
  %2652 = vmatprep.subr.bf16.mxu0 0
  %2653 = vmatpush1.bf16.msra.mxu0 %v2494
  %2654 = vmatprep.subr.bf16.mxu0 0
  %2655 = vmatpush1.bf16.msra.mxu0 %v2495
  %2656 = vmatprep.subr.bf16.mxu0 0
  %2657 = vmatpush1.bf16.msra.mxu0 %v2496
  %2658 = vmatprep.subr.bf16.mxu0 0
  %2659 = vmatpush1.bf16.msra.mxu0 %v2497
  %2660 = vmatprep.subr.bf16.mxu0 0
  %2661 = vmatpush1.bf16.msra.mxu0 %v2498
  %2662 = vmatprep.subr.bf16.mxu0 0
  %2663 = vmatpush1.bf16.msra.mxu0 %v2499
  %2664 = vmatprep.subr.bf16.mxu0 0
  %2665 = vmatpush1.bf16.msra.mxu0 %v2500
  %2666 = vmatprep.subr.bf16.mxu0 0
  %2667 = vmatpush1.bf16.msra.mxu0 %v2501
  %2668 = vmatprep.subr.bf16.mxu0 0
  %2669 = vmatpush1.bf16.msra.mxu0 %v2502
  %2670 = vmatprep.subr.bf16.mxu0 0
  %2671 = vmatpush1.bf16.msra.mxu0 %v2503
  %2672 = vmatprep.mubr.bf16.mxu0 %v2076
  %2673 = vmatmul.mubr.bf16.gmra.mrb[0].mxu0 %v2075
  %v2674 = vpop.f32.mrb[0].mxu0
  %v2675 = vadd.f32 %v2635, %v2674
  %v2676 = vpop.f32.mrb[0].mxu0
  %v2677 = vpop.f32.mrb[0].mxu0
  %v2678 = vpop.f32.mrb[0].mxu0
  %2679 = vdwg.mxu0
  %2680 = vmatprep.subr.bf16.mxu0 0
  %2681 = vmatpush1.bf16.msra.mxu0 %v2504
  %2682 = vmatprep.subr.bf16.mxu0 0
  %2683 = vmatpush1.bf16.msra.mxu0 %v2505
  %2684 = vmatprep.subr.bf16.mxu0 0
  %2685 = vmatpush1.bf16.msra.mxu0 %v2506
  %2686 = vmatprep.subr.bf16.mxu0 0
  %2687 = vmatpush1.bf16.msra.mxu0 %v2507
  %2688 = vmatprep.subr.bf16.mxu0 0
  %2689 = vmatpush1.bf16.msra.mxu0 %v2508
  %2690 = vmatprep.subr.bf16.mxu0 0
  %2691 = vmatpush1.bf16.msra.mxu0 %v2509
  %2692 = vmatprep.subr.bf16.mxu0 0
  %2693 = vmatpush1.bf16.msra.mxu0 %v2510
  %2694 = vmatprep.subr.bf16.mxu0 0
  %2695 = vmatpush1.bf16.msra.mxu0 %v2511
  %2696 = vmatprep.subr.bf16.mxu0 0
  %2697 = vmatpush1.bf16.msra.mxu0 %v2512
  %2698 = vmatprep.subr.bf16.mxu0 0
  %2699 = vmatpush1.bf16.msra.mxu0 %v2513
  %2700 = vmatprep.subr.bf16.mxu0 0
  %2701 = vmatpush1.bf16.msra.mxu0 %v2514
  %2702 = vmatprep.subr.bf16.mxu0 0
  %2703 = vmatpush1.bf16.msra.mxu0 %v2515
  %2704 = vmatprep.subr.bf16.mxu0 0
  %2705 = vmatpush1.bf16.msra.mxu0 %v2516
  %2706 = vmatprep.subr.bf16.mxu0 0
  %2707 = vmatpush1.bf16.msra.mxu0 %v2517
  %2708 = vmatprep.subr.bf16.mxu0 0
  %2709 = vmatpush1.bf16.msra.mxu0 %v2518
  %2710 = vmatprep.subr.bf16.mxu0 0
  %2711 = vmatpush1.bf16.msra.mxu0 %v2519
  %2712 = vmatprep.mubr.bf16.mxu0 %v2078
  %2713 = vmatmul.mubr.bf16.gmra.mrb[0].mxu0 %v2077
  %v2714 = vpop.f32.mrb[0].mxu0
  %v2715 = vadd.f32 %v2675, %v2714
  %v2716 = vpop.f32.mrb[0].mxu0
  %v2717 = vpop.f32.mrb[0].mxu0
  %v2718 = vpop.f32.mrb[0].mxu0
  %2719 = vdwg.mxu0
  %2720 = vmatprep.subr.bf16.mxu0 0
  %2721 = vmatpush1.bf16.msra.mxu0 %v2520
  %2722 = vmatprep.subr.bf16.mxu0 0
  %2723 = vmatpush1.bf16.msra.mxu0 %v2521
  %2724 = vmatprep.subr.bf16.mxu0 0
  %2725 = vmatpush1.bf16.msra.mxu0 %v2522
  %2726 = vmatprep.subr.bf16.mxu0 0
  %2727 = vmatpush1.bf16.msra.mxu0 %v2523
  %2728 = vmatprep.subr.bf16.mxu0 0
  %2729 = vmatpush1.bf16.msra.mxu0 %v2524
  %2730 = vmatprep.subr.bf16.mxu0 0
  %2731 = vmatpush1.bf16.msra.mxu0 %v2525
  %2732 = vmatprep.subr.bf16.mxu0 0
  %2733 = vmatpush1.bf16.msra.mxu0 %v2526
  %2734 = vmatprep.subr.bf16.mxu0 0
  %2735 = vmatpush1.bf16.msra.mxu0 %v2527
  %2736 = vmatprep.subr.bf16.mxu0 0
  %2737 = vmatpush1.bf16.msra.mxu0 %v2528
  %2738 = vmatprep.subr.bf16.mxu0 0
  %2739 = vmatpush1.bf16.msra.mxu0 %v2529
  %2740 = vmatprep.subr.bf16.mxu0 0
  %2741 = vmatpush1.bf16.msra.mxu0 %v2530
  %2742 = vmatprep.subr.bf16.mxu0 0
  %2743 = vmatpush1.bf16.msra.mxu0 %v2531
  %2744 = vmatprep.subr.bf16.mxu0 0
  %2745 = vmatpush1.bf16.msra.mxu0 %v2532
  %2746 = vmatprep.subr.bf16.mxu0 0
  %2747 = vmatpush1.bf16.msra.mxu0 %v2533
  %2748 = vmatprep.subr.bf16.mxu0 0
  %2749 = vmatpush1.bf16.msra.mxu0 %v2534
  %2750 = vmatprep.subr.bf16.mxu0 0
  %2751 = vmatpush1.bf16.msra.mxu0 %v2535
  %2752 = vmatprep.mubr.bf16.mxu0 %v2080
  %2753 = vmatmul.mubr.bf16.gmra.mrb[0].mxu0 %v2079
  %v2754 = vpop.f32.mrb[0].mxu0
  %v2755 = vadd.f32 %v2715, %v2754
  %v2756 = vpop.f32.mrb[0].mxu0
  %v2757 = vpop.f32.mrb[0].mxu0
  %v2758 = vpop.f32.mrb[0].mxu0
  %2759 = vdwg.mxu0
  %vm2760 = vcmask 1024
  %2761 = vst.msk [vmem:[%s5] sm:$0x3] %vm2760, %v2755
  // Predicated region
  $region22: #{discriminator_forward.9} parent=0 // pred_check
    _
  $region23: #{discriminator_forward.9} parent=0 // pred_check_branch
    %2763 = sbr.rel (0) target = $region25
  $region24: #{discriminator_forward.9} parent=0 // pred_region
    _
  $region25: #{discriminator_forward.9} parent=0 // pred_fallthru
    _
  // Predicated region
  $region26: #{discriminator_forward.9} parent=0 // pred_check
    _
  $region27: #{discriminator_forward.9} parent=0 // pred_check_branch
    %2765 = sbr.rel (0) target = $region29
  $region28: #{discriminator_forward.9} parent=0 // pred_region
    _
  $region29: #{discriminator_forward.9} parent=0 // pred_fallthru
    _

// kernel: discriminator_forward.8
$region0: #{discriminator_forward.8}
  #allocation0 [shape = 'u32[]', space=smem, size = 0x4, offset = 0x4, fixed_abs, tag = 'smem constant byte address 0x4 - core index']
  #allocation1 [shape = 'u32[144,128]{1,0:T(1,128)}', space=vmem, size = 0x12000, scoped, tag = 'internal scratch']
  %s0 = inlined_call_operand.vmem [shape: bf16[8,2304], index: 0, kind: input, shape index: {}]
  %s1 = inlined_call_operand.vmem [shape: bf16[2304,512], index: 1, kind: input, shape index: {}]
  %s2 = inlined_call_operand.vmem [shape: f32[1,512], index: 2, kind: input, shape index: {}]
  %s3 = inlined_call_operand.vmem [shape: bf16[8,512], index: 3, kind: output, shape index: {}]
  %s4 = sld [smem:[#allocation0]]
  $region22: #{discriminator_forward.8} parent=0
    _
  %s6 = ssub.s32 1, %s4
  %s7 = scalar_select 0, %s6, %s4
  // Predicated region
  $region2: #{discriminator_forward.8} parent=0 // pred_check
    _
  $region3: #{discriminator_forward.8} parent=0 // pred_check_branch
    %9 = sbr.rel (0) target = $region5
  $region4: #{discriminator_forward.8} parent=0 // pred_region
    _
  $region5: #{discriminator_forward.8} parent=0 // pred_fallthru
    _
  // Predicated region
  $region6: #{discriminator_forward.8} parent=0 // pred_check
    _
  $region7: #{discriminator_forward.8} parent=0 // pred_check_branch
    %11 = sbr.rel (0) target = $region9
  $region8: #{discriminator_forward.8} parent=0 // pred_region
    _
  $region9: #{discriminator_forward.8} parent=0 // pred_fallthru
    _
  // Predicated region
  $region10: #{discriminator_forward.8} parent=0 // pred_check
    _
  $region11: #{discriminator_forward.8} parent=0 // pred_check_branch
    %13 = sbr.rel (0) target = $region13
  $region12: #{discriminator_forward.8} parent=0 // pred_region
    _
  $region13: #{discriminator_forward.8} parent=0 // pred_fallthru
    _
  %v14 = vld [vmem:[%s0] sm:$0xff]
  %v15 = vld [vmem:[%s0 + $0x8] sm:$0xff]
  %v16 = vld [vmem:[%s0 + $0x10] sm:$0xff]
  %v17 = vld [vmem:[%s0 + $0x18] sm:$0xff]
  %v18 = vld [vmem:[%s0 + $0x20] sm:$0xff]
  %v19 = vld [vmem:[%s0 + $0x28] sm:$0xff]
  %v20 = vld [vmem:[%s0 + $0x30] sm:$0xff]
  %v21 = vld [vmem:[%s0 + $0x38] sm:$0xff]
  %v22 = vld [vmem:[%s0 + $0x40] sm:$0xff]
  %v23 = vld [vmem:[%s1] sm:$0xff]
  %v24 = vld [vmem:[%s1 + $0x8] sm:$0xff]
  %v25 = vld [vmem:[%s1 + $0x10] sm:$0xff]
  %v26 = vld [vmem:[%s1 + $0x18] sm:$0xff]
  %v27 = vld [vmem:[%s1 + $0x20] sm:$0xff]
  %v28 = vld [vmem:[%s1 + $0x28] sm:$0xff]
  %v29 = vld [vmem:[%s1 + $0x30] sm:$0xff]
  %v30 = vld [vmem:[%s1 + $0x38] sm:$0xff]
  %v31 = vld [vmem:[%s1 + $0x40] sm:$0xff]
  %v32 = vld [vmem:[%s1 + $0x48] sm:$0xff]
  %v33 = vld [vmem:[%s1 + $0x50] sm:$0xff]
  %v34 = vld [vmem:[%s1 + $0x58] sm:$0xff]
  %v35 = vld [vmem:[%s1 + $0x60] sm:$0xff]
  %v36 = vld [vmem:[%s1 + $0x68] sm:$0xff]
  %v37 = vld [vmem:[%s1 + $0x70] sm:$0xff]
  %v38 = vld [vmem:[%s1 + $0x78] sm:$0xff]
  %v39 = vld [vmem:[%s1 + $0x80] sm:$0xff]
  %v40 = vld [vmem:[%s1 + $0x88] sm:$0xff]
  %v41 = vld [vmem:[%s1 + $0x90] sm:$0xff]
  %v42 = vld [vmem:[%s1 + $0x98] sm:$0xff]
  %v43 = vld [vmem:[%s1 + $0xa0] sm:$0xff]
  %v44 = vld [vmem:[%s1 + $0xa8] sm:$0xff]
  %v45 = vld [vmem:[%s1 + $0xb0] sm:$0xff]
  %v46 = vld [vmem:[%s1 + $0xb8] sm:$0xff]
  %v47 = vld [vmem:[%s1 + $0xc0] sm:$0xff]
  %v48 = vld [vmem:[%s1 + $0xc8] sm:$0xff]
  %v49 = vld [vmem:[%s1 + $0xd0] sm:$0xff]
  %v50 = vld [vmem:[%s1 + $0xd8] sm:$0xff]
  %v51 = vld [vmem:[%s1 + $0xe0] sm:$0xff]
  %v52 = vld [vmem:[%s1 + $0xe8] sm:$0xff]
  %v53 = vld [vmem:[%s1 + $0xf0] sm:$0xff]
  %v54 = vld [vmem:[%s1 + $0xf8] sm:$0xff]
  %v55 = vld [vmem:[%s1 + $0x100] sm:$0xff]
  %v56 = vld [vmem:[%s1 + $0x108] sm:$0xff]
  %v57 = vld [vmem:[%s1 + $0x110] sm:$0xff]
  %v58 = vld [vmem:[%s1 + $0x118] sm:$0xff]
  %v59 = vld [vmem:[%s1 + $0x120] sm:$0xff]
  %v60 = vld [vmem:[%s1 + $0x128] sm:$0xff]
  %v61 = vld [vmem:[%s1 + $0x130] sm:$0xff]
  %v62 = vld [vmem:[%s1 + $0x138] sm:$0xff]
  %v63 = vld [vmem:[%s1 + $0x140] sm:$0xff]
  %v64 = vld [vmem:[%s1 + $0x148] sm:$0xff]
  %v65 = vld [vmem:[%s1 + $0x150] sm:$0xff]
  %v66 = vld [vmem:[%s1 + $0x158] sm:$0xff]
  %v67 = vld [vmem:[%s1 + $0x160] sm:$0xff]
  %v68 = vld [vmem:[%s1 + $0x168] sm:$0xff]
  %v69 = vld [vmem:[%s1 + $0x170] sm:$0xff]
  %v70 = vld [vmem:[%s1 + $0x178] sm:$0xff]
  %v71 = vld [vmem:[%s1 + $0x180] sm:$0xff]
  %v72 = vld [vmem:[%s1 + $0x188] sm:$0xff]
  %v73 = vld [vmem:[%s1 + $0x190] sm:$0xff]
  %v74 = vld [vmem:[%s1 + $0x198] sm:$0xff]
  %v75 = vld [vmem:[%s1 + $0x1a0] sm:$0xff]
  %v76 = vld [vmem:[%s1 + $0x1a8] sm:$0xff]
  %v77 = vld [vmem:[%s1 + $0x1b0] sm:$0xff]
  %v78 = vld [vmem:[%s1 + $0x1b8] sm:$0xff]
  %v79 = vld [vmem:[%s1 + $0x1c0] sm:$0xff]
  %v80 = vld [vmem:[%s1 + $0x1c8] sm:$0xff]
  %v81 = vld [vmem:[%s1 + $0x1d0] sm:$0xff]
  %v82 = vld [vmem:[%s1 + $0x1d8] sm:$0xff]
  %v83 = vld [vmem:[%s1 + $0x1e0] sm:$0xff]
  %v84 = vld [vmem:[%s1 + $0x1e8] sm:$0xff]
  %v85 = vld [vmem:[%s1 + $0x1f0] sm:$0xff]
  %v86 = vld [vmem:[%s1 + $0x1f8] sm:$0xff]
  %v87 = vld [vmem:[%s1 + $0x200] sm:$0xff]
  %v88 = vld [vmem:[%s1 + $0x208] sm:$0xff]
  %v89 = vld [vmem:[%s1 + $0x210] sm:$0xff]
  %v90 = vld [vmem:[%s1 + $0x218] sm:$0xff]
  %v91 = vld [vmem:[%s1 + $0x220] sm:$0xff]
  %v92 = vld [vmem:[%s1 + $0x228] sm:$0xff]
  %v93 = vld [vmem:[%s1 + $0x230] sm:$0xff]
  %v94 = vld [vmem:[%s1 + $0x238] sm:$0xff]
  %v95 = vld [vmem:[%s1 + $0x240] sm:$0xff]
  %v96 = vld [vmem:[%s1 + $0x248] sm:$0xff]
  %v97 = vld [vmem:[%s1 + $0x250] sm:$0xff]
  %v98 = vld [vmem:[%s1 + $0x258] sm:$0xff]
  %v99 = vld [vmem:[%s1 + $0x260] sm:$0xff]
  %v100 = vld [vmem:[%s1 + $0x268] sm:$0xff]
  %v101 = vld [vmem:[%s1 + $0x270] sm:$0xff]
  %v102 = vld [vmem:[%s1 + $0x278] sm:$0xff]
  %v103 = vld [vmem:[%s1 + $0x280] sm:$0xff]
  %v104 = vld [vmem:[%s1 + $0x288] sm:$0xff]
  %v105 = vld [vmem:[%s1 + $0x290] sm:$0xff]
  %v106 = vld [vmem:[%s1 + $0x298] sm:$0xff]
  %v107 = vld [vmem:[%s1 + $0x2a0] sm:$0xff]
  %v108 = vld [vmem:[%s1 + $0x2a8] sm:$0xff]
  %v109 = vld [vmem:[%s1 + $0x2b0] sm:$0xff]
  %v110 = vld [vmem:[%s1 + $0x2b8] sm:$0xff]
  %v111 = vld [vmem:[%s1 + $0x2c0] sm:$0xff]
  %v112 = vld [vmem:[%s1 + $0x2c8] sm:$0xff]
  %v113 = vld [vmem:[%s1 + $0x2d0] sm:$0xff]
  %v114 = vld [vmem:[%s1 + $0x2d8] sm:$0xff]
  %v115 = vld [vmem:[%s1 + $0x2e0] sm:$0xff]
  %v116 = vld [vmem:[%s1 + $0x2e8] sm:$0xff]
  %v117 = vld [vmem:[%s1 + $0x2f0] sm:$0xff]
  %v118 = vld [vmem:[%s1 + $0x2f8] sm:$0xff]
  %v119 = vld [vmem:[%s1 + $0x300] sm:$0xff]
  %v120 = vld [vmem:[%s1 + $0x308] sm:$0xff]
  %v121 = vld [vmem:[%s1 + $0x310] sm:$0xff]
  %v122 = vld [vmem:[%s1 + $0x318] sm:$0xff]
  %v123 = vld [vmem:[%s1 + $0x320] sm:$0xff]
  %v124 = vld [vmem:[%s1 + $0x328] sm:$0xff]
  %v125 = vld [vmem:[%s1 + $0x330] sm:$0xff]
  %v126 = vld [vmem:[%s1 + $0x338] sm:$0xff]
  %v127 = vld [vmem:[%s1 + $0x340] sm:$0xff]
  %v128 = vld [vmem:[%s1 + $0x348] sm:$0xff]
  %v129 = vld [vmem:[%s1 + $0x350] sm:$0xff]
  %v130 = vld [vmem:[%s1 + $0x358] sm:$0xff]
  %v131 = vld [vmem:[%s1 + $0x360] sm:$0xff]
  %v132 = vld [vmem:[%s1 + $0x368] sm:$0xff]
  %v133 = vld [vmem:[%s1 + $0x370] sm:$0xff]
  %v134 = vld [vmem:[%s1 + $0x378] sm:$0xff]
  %v135 = vld [vmem:[%s1 + $0x380] sm:$0xff]
  %v136 = vld [vmem:[%s1 + $0x388] sm:$0xff]
  %v137 = vld [vmem:[%s1 + $0x390] sm:$0xff]
  %v138 = vld [vmem:[%s1 + $0x398] sm:$0xff]
  %v139 = vld [vmem:[%s1 + $0x3a0] sm:$0xff]
  %v140 = vld [vmem:[%s1 + $0x3a8] sm:$0xff]
  %v141 = vld [vmem:[%s1 + $0x3b0] sm:$0xff]
  %v142 = vld [vmem:[%s1 + $0x3b8] sm:$0xff]
  %v143 = vld [vmem:[%s1 + $0x3c0] sm:$0xff]
  %v144 = vld [vmem:[%s1 + $0x3c8] sm:$0xff]
  %v145 = vld [vmem:[%s1 + $0x3d0] sm:$0xff]
  %v146 = vld [vmem:[%s1 + $0x3d8] sm:$0xff]
  %v147 = vld [vmem:[%s1 + $0x3e0] sm:$0xff]
  %v148 = vld [vmem:[%s1 + $0x3e8] sm:$0xff]
  %v149 = vld [vmem:[%s1 + $0x3f0] sm:$0xff]
  %v150 = vld [vmem:[%s1 + $0x3f8] sm:$0xff]
  %v151 = vld [vmem:[%s1 + $0x400] sm:$0xff]
  %v152 = vld [vmem:[%s1 + $0x408] sm:$0xff]
  %v153 = vld [vmem:[%s1 + $0x410] sm:$0xff]
  %v154 = vld [vmem:[%s1 + $0x418] sm:$0xff]
  %v155 = vld [vmem:[%s1 + $0x420] sm:$0xff]
  %v156 = vld [vmem:[%s1 + $0x428] sm:$0xff]
  %v157 = vld [vmem:[%s1 + $0x430] sm:$0xff]
  %v158 = vld [vmem:[%s1 + $0x438] sm:$0xff]
  %v159 = vld [vmem:[%s1 + $0x440] sm:$0xff]
  %v160 = vld [vmem:[%s1 + $0x448] sm:$0xff]
  %v161 = vld [vmem:[%s1 + $0x450] sm:$0xff]
  %v162 = vld [vmem:[%s1 + $0x458] sm:$0xff]
  %v163 = vld [vmem:[%s1 + $0x460] sm:$0xff]
  %v164 = vld [vmem:[%s1 + $0x468] sm:$0xff]
  %v165 = vld [vmem:[%s1 + $0x470] sm:$0xff]
  %v166 = vld [vmem:[%s1 + $0x478] sm:$0xff]
  %v167 = vld [vmem:[%s1 + $0x480] sm:$0xff]
  %v168 = vld [vmem:[%s1 + $0x488] sm:$0xff]
  %v169 = vld [vmem:[%s1 + $0x490] sm:$0xff]
  %v170 = vld [vmem:[%s1 + $0x498] sm:$0xff]
  %v171 = vld [vmem:[%s1 + $0x4a0] sm:$0xff]
  %v172 = vld [vmem:[%s1 + $0x4a8] sm:$0xff]
  %v173 = vld [vmem:[%s1 + $0x4b0] sm:$0xff]
  %v174 = vld [vmem:[%s1 + $0x4b8] sm:$0xff]
  %v175 = vld [vmem:[%s1 + $0x4c0] sm:$0xff]
  %v176 = vld [vmem:[%s1 + $0x4c8] sm:$0xff]
  %v177 = vld [vmem:[%s1 + $0x4d0] sm:$0xff]
  %v178 = vld [vmem:[%s1 + $0x4d8] sm:$0xff]
  %v179 = vld [vmem:[%s1 + $0x4e0] sm:$0xff]
  %v180 = vld [vmem:[%s1 + $0x4e8] sm:$0xff]
  %v181 = vld [vmem:[%s1 + $0x4f0] sm:$0xff]
  %v182 = vld [vmem:[%s1 + $0x4f8] sm:$0xff]
  %v183 = vld [vmem:[%s1 + $0x500] sm:$0xff]
  %v184 = vld [vmem:[%s1 + $0x508] sm:$0xff]
  %v185 = vld [vmem:[%s1 + $0x510] sm:$0xff]
  %v186 = vld [vmem:[%s1 + $0x518] sm:$0xff]
  %v187 = vld [vmem:[%s1 + $0x520] sm:$0xff]
  %v188 = vld [vmem:[%s1 + $0x528] sm:$0xff]
  %v189 = vld [vmem:[%s1 + $0x530] sm:$0xff]
  %v190 = vld [vmem:[%s1 + $0x538] sm:$0xff]
  %v191 = vld [vmem:[%s1 + $0x540] sm:$0xff]
  %v192 = vld [vmem:[%s1 + $0x548] sm:$0xff]
  %v193 = vld [vmem:[%s1 + $0x550] sm:$0xff]
  %v194 = vld [vmem:[%s1 + $0x558] sm:$0xff]
  %v195 = vld [vmem:[%s1 + $0x560] sm:$0xff]
  %v196 = vld [vmem:[%s1 + $0x568] sm:$0xff]
  %v197 = vld [vmem:[%s1 + $0x570] sm:$0xff]
  %v198 = vld [vmem:[%s1 + $0x578] sm:$0xff]
  %v199 = vld [vmem:[%s1 + $0x580] sm:$0xff]
  %v200 = vld [vmem:[%s1 + $0x588] sm:$0xff]
  %v201 = vld [vmem:[%s1 + $0x590] sm:$0xff]
  %v202 = vld [vmem:[%s1 + $0x598] sm:$0xff]
  %v203 = vld [vmem:[%s1 + $0x5a0] sm:$0xff]
  %v204 = vld [vmem:[%s1 + $0x5a8] sm:$0xff]
  %v205 = vld [vmem:[%s1 + $0x5b0] sm:$0xff]
  %v206 = vld [vmem:[%s1 + $0x5b8] sm:$0xff]
  %v207 = vld [vmem:[%s1 + $0x5c0] sm:$0xff]
  %v208 = vld [vmem:[%s1 + $0x5c8] sm:$0xff]
  %v209 = vld [vmem:[%s1 + $0x5d0] sm:$0xff]
  %v210 = vld [vmem:[%s1 + $0x5d8] sm:$0xff]
  %v211 = vld [vmem:[%s1 + $0x5e0] sm:$0xff]
  %v212 = vld [vmem:[%s1 + $0x5e8] sm:$0xff]
  %v213 = vld [vmem:[%s1 + $0x5f0] sm:$0xff]
  %v214 = vld [vmem:[%s1 + $0x5f8] sm:$0xff]
  %v215 = vld [vmem:[%s1 + $0x600] sm:$0xff]
  %v216 = vld [vmem:[%s1 + $0x608] sm:$0xff]
  %v217 = vld [vmem:[%s1 + $0x610] sm:$0xff]
  %v218 = vld [vmem:[%s1 + $0x618] sm:$0xff]
  %v219 = vld [vmem:[%s1 + $0x620] sm:$0xff]
  %v220 = vld [vmem:[%s1 + $0x628] sm:$0xff]
  %v221 = vld [vmem:[%s1 + $0x630] sm:$0xff]
  %v222 = vld [vmem:[%s1 + $0x638] sm:$0xff]
  %v223 = vld [vmem:[%s1 + $0x640] sm:$0xff]
  %v224 = vld [vmem:[%s1 + $0x648] sm:$0xff]
  %v225 = vld [vmem:[%s1 + $0x650] sm:$0xff]
  %v226 = vld [vmem:[%s1 + $0x658] sm:$0xff]
  %v227 = vld [vmem:[%s1 + $0x660] sm:$0xff]
  %v228 = vld [vmem:[%s1 + $0x668] sm:$0xff]
  %v229 = vld [vmem:[%s1 + $0x670] sm:$0xff]
  %v230 = vld [vmem:[%s1 + $0x678] sm:$0xff]
  %v231 = vld [vmem:[%s1 + $0x680] sm:$0xff]
  %v232 = vld [vmem:[%s1 + $0x688] sm:$0xff]
  %v233 = vld [vmem:[%s1 + $0x690] sm:$0xff]
  %v234 = vld [vmem:[%s1 + $0x698] sm:$0xff]
  %v235 = vld [vmem:[%s1 + $0x6a0] sm:$0xff]
  %v236 = vld [vmem:[%s1 + $0x6a8] sm:$0xff]
  %v237 = vld [vmem:[%s1 + $0x6b0] sm:$0xff]
  %v238 = vld [vmem:[%s1 + $0x6b8] sm:$0xff]
  %v239 = vld [vmem:[%s1 + $0x6c0] sm:$0xff]
  %v240 = vld [vmem:[%s1 + $0x6c8] sm:$0xff]
  %v241 = vld [vmem:[%s1 + $0x6d0] sm:$0xff]
  %v242 = vld [vmem:[%s1 + $0x6d8] sm:$0xff]
  %v243 = vld [vmem:[%s1 + $0x6e0] sm:$0xff]
  %v244 = vld [vmem:[%s1 + $0x6e8] sm:$0xff]
  %v245 = vld [vmem:[%s1 + $0x6f0] sm:$0xff]
  %v246 = vld [vmem:[%s1 + $0x6f8] sm:$0xff]
  %v247 = vld [vmem:[%s1 + $0x700] sm:$0xff]
  %v248 = vld [vmem:[%s1 + $0x708] sm:$0xff]
  %v249 = vld [vmem:[%s1 + $0x710] sm:$0xff]
  %v250 = vld [vmem:[%s1 + $0x718] sm:$0xff]
  %v251 = vld [vmem:[%s1 + $0x720] sm:$0xff]
  %v252 = vld [vmem:[%s1 + $0x728] sm:$0xff]
  %v253 = vld [vmem:[%s1 + $0x730] sm:$0xff]
  %v254 = vld [vmem:[%s1 + $0x738] sm:$0xff]
  %v255 = vld [vmem:[%s1 + $0x740] sm:$0xff]
  %v256 = vld [vmem:[%s1 + $0x748] sm:$0xff]
  %v257 = vld [vmem:[%s1 + $0x750] sm:$0xff]
  %v258 = vld [vmem:[%s1 + $0x758] sm:$0xff]
  %v259 = vld [vmem:[%s1 + $0x760] sm:$0xff]
  %v260 = vld [vmem:[%s1 + $0x768] sm:$0xff]
  %v261 = vld [vmem:[%s1 + $0x770] sm:$0xff]
  %v262 = vld [vmem:[%s1 + $0x778] sm:$0xff]
  %v263 = vld [vmem:[%s1 + $0x780] sm:$0xff]
  %v264 = vld [vmem:[%s1 + $0x788] sm:$0xff]
  %v265 = vld [vmem:[%s1 + $0x790] sm:$0xff]
  %v266 = vld [vmem:[%s1 + $0x798] sm:$0xff]
  %v267 = vld [vmem:[%s1 + $0x7a0] sm:$0xff]
  %v268 = vld [vmem:[%s1 + $0x7a8] sm:$0xff]
  %v269 = vld [vmem:[%s1 + $0x7b0] sm:$0xff]
  %v270 = vld [vmem:[%s1 + $0x7b8] sm:$0xff]
  %v271 = vld [vmem:[%s1 + $0x7c0] sm:$0xff]
  %v272 = vld [vmem:[%s1 + $0x7c8] sm:$0xff]
  %v273 = vld [vmem:[%s1 + $0x7d0] sm:$0xff]
  %v274 = vld [vmem:[%s1 + $0x7d8] sm:$0xff]
  %v275 = vld [vmem:[%s1 + $0x7e0] sm:$0xff]
  %v276 = vld [vmem:[%s1 + $0x7e8] sm:$0xff]
  %v277 = vld [vmem:[%s1 + $0x7f0] sm:$0xff]
  %v278 = vld [vmem:[%s1 + $0x7f8] sm:$0xff]
  %v279 = vld [vmem:[%s1 + $0x800] sm:$0xff]
  %v280 = vld [vmem:[%s1 + $0x808] sm:$0xff]
  %v281 = vld [vmem:[%s1 + $0x810] sm:$0xff]
  %v282 = vld [vmem:[%s1 + $0x818] sm:$0xff]
  %v283 = vld [vmem:[%s1 + $0x820] sm:$0xff]
  %v284 = vld [vmem:[%s1 + $0x828] sm:$0xff]
  %v285 = vld [vmem:[%s1 + $0x830] sm:$0xff]
  %v286 = vld [vmem:[%s1 + $0x838] sm:$0xff]
  %v287 = vld [vmem:[%s1 + $0x840] sm:$0xff]
  %v288 = vld [vmem:[%s1 + $0x848] sm:$0xff]
  %v289 = vld [vmem:[%s1 + $0x850] sm:$0xff]
  %v290 = vld [vmem:[%s1 + $0x858] sm:$0xff]
  %v291 = vld [vmem:[%s1 + $0x860] sm:$0xff]
  %v292 = vld [vmem:[%s1 + $0x868] sm:$0xff]
  %v293 = vld [vmem:[%s1 + $0x870] sm:$0xff]
  %v294 = vld [vmem:[%s1 + $0x878] sm:$0xff]
  %v295 = vld [vmem:[%s1 + $0x880] sm:$0xff]
  %v296 = vld [vmem:[%s1 + $0x888] sm:$0xff]
  %v297 = vld [vmem:[%s1 + $0x890] sm:$0xff]
  %v298 = vld [vmem:[%s1 + $0x898] sm:$0xff]
  %v299 = vld [vmem:[%s1 + $0x8a0] sm:$0xff]
  %v300 = vld [vmem:[%s1 + $0x8a8] sm:$0xff]
  %v301 = vld [vmem:[%s1 + $0x8b0] sm:$0xff]
  %v302 = vld [vmem:[%s1 + $0x8b8] sm:$0xff]
  %v303 = vld [vmem:[%s1 + $0x8c0] sm:$0xff]
  %v304 = vld [vmem:[%s1 + $0x8c8] sm:$0xff]
  %v305 = vld [vmem:[%s1 + $0x8d0] sm:$0xff]
  %v306 = vld [vmem:[%s1 + $0x8d8] sm:$0xff]
  %v307 = vld [vmem:[%s1 + $0x8e0] sm:$0xff]
  %v308 = vld [vmem:[%s1 + $0x8e8] sm:$0xff]
  %v309 = vld [vmem:[%s1 + $0x8f0] sm:$0xff]
  %v310 = vld [vmem:[%s1 + $0x8f8] sm:$0xff]
  %v311 = vld [vmem:[%s1 + $0x900] sm:$0xff]
  %v312 = vld [vmem:[%s1 + $0x908] sm:$0xff]
  %v313 = vld [vmem:[%s1 + $0x910] sm:$0xff]
  %v314 = vld [vmem:[%s1 + $0x918] sm:$0xff]
  %v315 = vld [vmem:[%s1 + $0x920] sm:$0xff]
  %v316 = vld [vmem:[%s1 + $0x928] sm:$0xff]
  %v317 = vld [vmem:[%s1 + $0x930] sm:$0xff]
  %v318 = vld [vmem:[%s1 + $0x938] sm:$0xff]
  %v319 = vld [vmem:[%s1 + $0x940] sm:$0xff]
  %v320 = vld [vmem:[%s1 + $0x948] sm:$0xff]
  %v321 = vld [vmem:[%s1 + $0x950] sm:$0xff]
  %v322 = vld [vmem:[%s1 + $0x958] sm:$0xff]
  %v323 = vld [vmem:[%s1 + $0x960] sm:$0xff]
  %v324 = vld [vmem:[%s1 + $0x968] sm:$0xff]
  %v325 = vld [vmem:[%s1 + $0x970] sm:$0xff]
  %v326 = vld [vmem:[%s1 + $0x978] sm:$0xff]
  %v327 = vld [vmem:[%s1 + $0x980] sm:$0xff]
  %v328 = vld [vmem:[%s1 + $0x988] sm:$0xff]
  %v329 = vld [vmem:[%s1 + $0x990] sm:$0xff]
  %v330 = vld [vmem:[%s1 + $0x998] sm:$0xff]
  %v331 = vld [vmem:[%s1 + $0x9a0] sm:$0xff]
  %v332 = vld [vmem:[%s1 + $0x9a8] sm:$0xff]
  %v333 = vld [vmem:[%s1 + $0x9b0] sm:$0xff]
  %v334 = vld [vmem:[%s1 + $0x9b8] sm:$0xff]
  %v335 = vld [vmem:[%s1 + $0x9c0] sm:$0xff]
  %v336 = vld [vmem:[%s1 + $0x9c8] sm:$0xff]
  %v337 = vld [vmem:[%s1 + $0x9d0] sm:$0xff]
  %v338 = vld [vmem:[%s1 + $0x9d8] sm:$0xff]
  %v339 = vld [vmem:[%s1 + $0x9e0] sm:$0xff]
  %v340 = vld [vmem:[%s1 + $0x9e8] sm:$0xff]
  %v341 = vld [vmem:[%s1 + $0x9f0] sm:$0xff]
  %v342 = vld [vmem:[%s1 + $0x9f8] sm:$0xff]
  %v343 = vld [vmem:[%s1 + $0xa00] sm:$0xff]
  %v344 = vld [vmem:[%s1 + $0xa08] sm:$0xff]
  %v345 = vld [vmem:[%s1 + $0xa10] sm:$0xff]
  %v346 = vld [vmem:[%s1 + $0xa18] sm:$0xff]
  %v347 = vld [vmem:[%s1 + $0xa20] sm:$0xff]
  %v348 = vld [vmem:[%s1 + $0xa28] sm:$0xff]
  %v349 = vld [vmem:[%s1 + $0xa30] sm:$0xff]
  %v350 = vld [vmem:[%s1 + $0xa38] sm:$0xff]
  %v351 = vld [vmem:[%s1 + $0xa40] sm:$0xff]
  %v352 = vld [vmem:[%s1 + $0xa48] sm:$0xff]
  %v353 = vld [vmem:[%s1 + $0xa50] sm:$0xff]
  %v354 = vld [vmem:[%s1 + $0xa58] sm:$0xff]
  %v355 = vld [vmem:[%s1 + $0xa60] sm:$0xff]
  %v356 = vld [vmem:[%s1 + $0xa68] sm:$0xff]
  %v357 = vld [vmem:[%s1 + $0xa70] sm:$0xff]
  %v358 = vld [vmem:[%s1 + $0xa78] sm:$0xff]
  %v359 = vld [vmem:[%s1 + $0xa80] sm:$0xff]
  %v360 = vld [vmem:[%s1 + $0xa88] sm:$0xff]
  %v361 = vld [vmem:[%s1 + $0xa90] sm:$0xff]
  %v362 = vld [vmem:[%s1 + $0xa98] sm:$0xff]
  %v363 = vld [vmem:[%s1 + $0xaa0] sm:$0xff]
  %v364 = vld [vmem:[%s1 + $0xaa8] sm:$0xff]
  %v365 = vld [vmem:[%s1 + $0xab0] sm:$0xff]
  %v366 = vld [vmem:[%s1 + $0xab8] sm:$0xff]
  %v367 = vld [vmem:[%s1 + $0xac0] sm:$0xff]
  %v368 = vld [vmem:[%s1 + $0xac8] sm:$0xff]
  %v369 = vld [vmem:[%s1 + $0xad0] sm:$0xff]
  %v370 = vld [vmem:[%s1 + $0xad8] sm:$0xff]
  %v371 = vld [vmem:[%s1 + $0xae0] sm:$0xff]
  %v372 = vld [vmem:[%s1 + $0xae8] sm:$0xff]
  %v373 = vld [vmem:[%s1 + $0xaf0] sm:$0xff]
  %v374 = vld [vmem:[%s1 + $0xaf8] sm:$0xff]
  %v375 = vld [vmem:[%s1 + $0xb00] sm:$0xff]
  %v376 = vld [vmem:[%s1 + $0xb08] sm:$0xff]
  %v377 = vld [vmem:[%s1 + $0xb10] sm:$0xff]
  %v378 = vld [vmem:[%s1 + $0xb18] sm:$0xff]
  %v379 = vld [vmem:[%s1 + $0xb20] sm:$0xff]
  %v380 = vld [vmem:[%s1 + $0xb28] sm:$0xff]
  %v381 = vld [vmem:[%s1 + $0xb30] sm:$0xff]
  %v382 = vld [vmem:[%s1 + $0xb38] sm:$0xff]
  %v383 = vld [vmem:[%s1 + $0xb40] sm:$0xff]
  %v384 = vld [vmem:[%s1 + $0xb48] sm:$0xff]
  %v385 = vld [vmem:[%s1 + $0xb50] sm:$0xff]
  %v386 = vld [vmem:[%s1 + $0xb58] sm:$0xff]
  %v387 = vld [vmem:[%s1 + $0xb60] sm:$0xff]
  %v388 = vld [vmem:[%s1 + $0xb68] sm:$0xff]
  %v389 = vld [vmem:[%s1 + $0xb70] sm:$0xff]
  %v390 = vld [vmem:[%s1 + $0xb78] sm:$0xff]
  %v391 = vld [vmem:[%s1 + $0xb80] sm:$0xff]
  %v392 = vld [vmem:[%s1 + $0xb88] sm:$0xff]
  %v393 = vld [vmem:[%s1 + $0xb90] sm:$0xff]
  %v394 = vld [vmem:[%s1 + $0xb98] sm:$0xff]
  %v395 = vld [vmem:[%s1 + $0xba0] sm:$0xff]
  %v396 = vld [vmem:[%s1 + $0xba8] sm:$0xff]
  %v397 = vld [vmem:[%s1 + $0xbb0] sm:$0xff]
  %v398 = vld [vmem:[%s1 + $0xbb8] sm:$0xff]
  %v399 = vld [vmem:[%s1 + $0xbc0] sm:$0xff]
  %v400 = vld [vmem:[%s1 + $0xbc8] sm:$0xff]
  %v401 = vld [vmem:[%s1 + $0xbd0] sm:$0xff]
  %v402 = vld [vmem:[%s1 + $0xbd8] sm:$0xff]
  %v403 = vld [vmem:[%s1 + $0xbe0] sm:$0xff]
  %v404 = vld [vmem:[%s1 + $0xbe8] sm:$0xff]
  %v405 = vld [vmem:[%s1 + $0xbf0] sm:$0xff]
  %v406 = vld [vmem:[%s1 + $0xbf8] sm:$0xff]
  %v407 = vld [vmem:[%s1 + $0xc00] sm:$0xff]
  %v408 = vld [vmem:[%s1 + $0xc08] sm:$0xff]
  %v409 = vld [vmem:[%s1 + $0xc10] sm:$0xff]
  %v410 = vld [vmem:[%s1 + $0xc18] sm:$0xff]
  %v411 = vld [vmem:[%s1 + $0xc20] sm:$0xff]
  %v412 = vld [vmem:[%s1 + $0xc28] sm:$0xff]
  %v413 = vld [vmem:[%s1 + $0xc30] sm:$0xff]
  %v414 = vld [vmem:[%s1 + $0xc38] sm:$0xff]
  %v415 = vld [vmem:[%s1 + $0xc40] sm:$0xff]
  %v416 = vld [vmem:[%s1 + $0xc48] sm:$0xff]
  %v417 = vld [vmem:[%s1 + $0xc50] sm:$0xff]
  %v418 = vld [vmem:[%s1 + $0xc58] sm:$0xff]
  %v419 = vld [vmem:[%s1 + $0xc60] sm:$0xff]
  %v420 = vld [vmem:[%s1 + $0xc68] sm:$0xff]
  %v421 = vld [vmem:[%s1 + $0xc70] sm:$0xff]
  %v422 = vld [vmem:[%s1 + $0xc78] sm:$0xff]
  %v423 = vld [vmem:[%s1 + $0xc80] sm:$0xff]
  %v424 = vld [vmem:[%s1 + $0xc88] sm:$0xff]
  %v425 = vld [vmem:[%s1 + $0xc90] sm:$0xff]
  %v426 = vld [vmem:[%s1 + $0xc98] sm:$0xff]
  %v427 = vld [vmem:[%s1 + $0xca0] sm:$0xff]
  %v428 = vld [vmem:[%s1 + $0xca8] sm:$0xff]
  %v429 = vld [vmem:[%s1 + $0xcb0] sm:$0xff]
  %v430 = vld [vmem:[%s1 + $0xcb8] sm:$0xff]
  %v431 = vld [vmem:[%s1 + $0xcc0] sm:$0xff]
  %v432 = vld [vmem:[%s1 + $0xcc8] sm:$0xff]
  %v433 = vld [vmem:[%s1 + $0xcd0] sm:$0xff]
  %v434 = vld [vmem:[%s1 + $0xcd8] sm:$0xff]
  %v435 = vld [vmem:[%s1 + $0xce0] sm:$0xff]
  %v436 = vld [vmem:[%s1 + $0xce8] sm:$0xff]
  %v437 = vld [vmem:[%s1 + $0xcf0] sm:$0xff]
  %v438 = vld [vmem:[%s1 + $0xcf8] sm:$0xff]
  %v439 = vld [vmem:[%s1 + $0xd00] sm:$0xff]
  %v440 = vld [vmem:[%s1 + $0xd08] sm:$0xff]
  %v441 = vld [vmem:[%s1 + $0xd10] sm:$0xff]
  %v442 = vld [vmem:[%s1 + $0xd18] sm:$0xff]
  %v443 = vld [vmem:[%s1 + $0xd20] sm:$0xff]
  %v444 = vld [vmem:[%s1 + $0xd28] sm:$0xff]
  %v445 = vld [vmem:[%s1 + $0xd30] sm:$0xff]
  %v446 = vld [vmem:[%s1 + $0xd38] sm:$0xff]
  %v447 = vld [vmem:[%s1 + $0xd40] sm:$0xff]
  %v448 = vld [vmem:[%s1 + $0xd48] sm:$0xff]
  %v449 = vld [vmem:[%s1 + $0xd50] sm:$0xff]
  %v450 = vld [vmem:[%s1 + $0xd58] sm:$0xff]
  %v451 = vld [vmem:[%s1 + $0xd60] sm:$0xff]
  %v452 = vld [vmem:[%s1 + $0xd68] sm:$0xff]
  %v453 = vld [vmem:[%s1 + $0xd70] sm:$0xff]
  %v454 = vld [vmem:[%s1 + $0xd78] sm:$0xff]
  %v455 = vld [vmem:[%s1 + $0xd80] sm:$0xff]
  %v456 = vld [vmem:[%s1 + $0xd88] sm:$0xff]
  %v457 = vld [vmem:[%s1 + $0xd90] sm:$0xff]
  %v458 = vld [vmem:[%s1 + $0xd98] sm:$0xff]
  %v459 = vld [vmem:[%s1 + $0xda0] sm:$0xff]
  %v460 = vld [vmem:[%s1 + $0xda8] sm:$0xff]
  %v461 = vld [vmem:[%s1 + $0xdb0] sm:$0xff]
  %v462 = vld [vmem:[%s1 + $0xdb8] sm:$0xff]
  %v463 = vld [vmem:[%s1 + $0xdc0] sm:$0xff]
  %v464 = vld [vmem:[%s1 + $0xdc8] sm:$0xff]
  %v465 = vld [vmem:[%s1 + $0xdd0] sm:$0xff]
  %v466 = vld [vmem:[%s1 + $0xdd8] sm:$0xff]
  %v467 = vld [vmem:[%s1 + $0xde0] sm:$0xff]
  %v468 = vld [vmem:[%s1 + $0xde8] sm:$0xff]
  %v469 = vld [vmem:[%s1 + $0xdf0] sm:$0xff]
  %v470 = vld [vmem:[%s1 + $0xdf8] sm:$0xff]
  %v471 = vld [vmem:[%s1 + $0xe00] sm:$0xff]
  %v472 = vld [vmem:[%s1 + $0xe08] sm:$0xff]
  %v473 = vld [vmem:[%s1 + $0xe10] sm:$0xff]
  %v474 = vld [vmem:[%s1 + $0xe18] sm:$0xff]
  %v475 = vld [vmem:[%s1 + $0xe20] sm:$0xff]
  %v476 = vld [vmem:[%s1 + $0xe28] sm:$0xff]
  %v477 = vld [vmem:[%s1 + $0xe30] sm:$0xff]
  %v478 = vld [vmem:[%s1 + $0xe38] sm:$0xff]
  %v479 = vld [vmem:[%s1 + $0xe40] sm:$0xff]
  %v480 = vld [vmem:[%s1 + $0xe48] sm:$0xff]
  %v481 = vld [vmem:[%s1 + $0xe50] sm:$0xff]
  %v482 = vld [vmem:[%s1 + $0xe58] sm:$0xff]
  %v483 = vld [vmem:[%s1 + $0xe60] sm:$0xff]
  %v484 = vld [vmem:[%s1 + $0xe68] sm:$0xff]
  %v485 = vld [vmem:[%s1 + $0xe70] sm:$0xff]
  %v486 = vld [vmem:[%s1 + $0xe78] sm:$0xff]
  %v487 = vld [vmem:[%s1 + $0xe80] sm:$0xff]
  %v488 = vld [vmem:[%s1 + $0xe88] sm:$0xff]
  %v489 = vld [vmem:[%s1 + $0xe90] sm:$0xff]
  %v490 = vld [vmem:[%s1 + $0xe98] sm:$0xff]
  %v491 = vld [vmem:[%s1 + $0xea0] sm:$0xff]
  %v492 = vld [vmem:[%s1 + $0xea8] sm:$0xff]
  %v493 = vld [vmem:[%s1 + $0xeb0] sm:$0xff]
  %v494 = vld [vmem:[%s1 + $0xeb8] sm:$0xff]
  %v495 = vld [vmem:[%s1 + $0xec0] sm:$0xff]
  %v496 = vld [vmem:[%s1 + $0xec8] sm:$0xff]
  %v497 = vld [vmem:[%s1 + $0xed0] sm:$0xff]
  %v498 = vld [vmem:[%s1 + $0xed8] sm:$0xff]
  %v499 = vld [vmem:[%s1 + $0xee0] sm:$0xff]
  %v500 = vld [vmem:[%s1 + $0xee8] sm:$0xff]
  %v501 = vld [vmem:[%s1 + $0xef0] sm:$0xff]
  %v502 = vld [vmem:[%s1 + $0xef8] sm:$0xff]
  %v503 = vld [vmem:[%s1 + $0xf00] sm:$0xff]
  %v504 = vld [vmem:[%s1 + $0xf08] sm:$0xff]
  %v505 = vld [vmem:[%s1 + $0xf10] sm:$0xff]
  %v506 = vld [vmem:[%s1 + $0xf18] sm:$0xff]
  %v507 = vld [vmem:[%s1 + $0xf20] sm:$0xff]
  %v508 = vld [vmem:[%s1 + $0xf28] sm:$0xff]
  %v509 = vld [vmem:[%s1 + $0xf30] sm:$0xff]
  %v510 = vld [vmem:[%s1 + $0xf38] sm:$0xff]
  %v511 = vld [vmem:[%s1 + $0xf40] sm:$0xff]
  %v512 = vld [vmem:[%s1 + $0xf48] sm:$0xff]
  %v513 = vld [vmem:[%s1 + $0xf50] sm:$0xff]
  %v514 = vld [vmem:[%s1 + $0xf58] sm:$0xff]
  %v515 = vld [vmem:[%s1 + $0xf60] sm:$0xff]
  %v516 = vld [vmem:[%s1 + $0xf68] sm:$0xff]
  %v517 = vld [vmem:[%s1 + $0xf70] sm:$0xff]
  %v518 = vld [vmem:[%s1 + $0xf78] sm:$0xff]
  %v519 = vld [vmem:[%s1 + $0xf80] sm:$0xff]
  %v520 = vld [vmem:[%s1 + $0xf88] sm:$0xff]
  %v521 = vld [vmem:[%s1 + $0xf90] sm:$0xff]
  %v522 = vld [vmem:[%s1 + $0xf98] sm:$0xff]
  %v523 = vld [vmem:[%s1 + $0xfa0] sm:$0xff]
  %v524 = vld [vmem:[%s1 + $0xfa8] sm:$0xff]
  %v525 = vld [vmem:[%s1 + $0xfb0] sm:$0xff]
  %v526 = vld [vmem:[%s1 + $0xfb8] sm:$0xff]
  %v527 = vld [vmem:[%s1 + $0xfc0] sm:$0xff]
  %v528 = vld [vmem:[%s1 + $0xfc8] sm:$0xff]
  %v529 = vld [vmem:[%s1 + $0xfd0] sm:$0xff]
  %v530 = vld [vmem:[%s1 + $0xfd8] sm:$0xff]
  %v531 = vld [vmem:[%s1 + $0xfe0] sm:$0xff]
  %v532 = vld [vmem:[%s1 + $0xfe8] sm:$0xff]
  %v533 = vld [vmem:[%s1 + $0xff0] sm:$0xff]
  %v534 = vld [vmem:[%s1 + $0xff8] sm:$0xff]
  %v535 = vld [vmem:[%s1 + $0x1000] sm:$0xff]
  %v536 = vld [vmem:[%s1 + $0x1008] sm:$0xff]
  %v537 = vld [vmem:[%s1 + $0x1010] sm:$0xff]
  %v538 = vld [vmem:[%s1 + $0x1018] sm:$0xff]
  %v539 = vld [vmem:[%s1 + $0x1020] sm:$0xff]
  %v540 = vld [vmem:[%s1 + $0x1028] sm:$0xff]
  %v541 = vld [vmem:[%s1 + $0x1030] sm:$0xff]
  %v542 = vld [vmem:[%s1 + $0x1038] sm:$0xff]
  %v543 = vld [vmem:[%s1 + $0x1040] sm:$0xff]
  %v544 = vld [vmem:[%s1 + $0x1048] sm:$0xff]
  %v545 = vld [vmem:[%s1 + $0x1050] sm:$0xff]
  %v546 = vld [vmem:[%s1 + $0x1058] sm:$0xff]
  %v547 = vld [vmem:[%s1 + $0x1060] sm:$0xff]
  %v548 = vld [vmem:[%s1 + $0x1068] sm:$0xff]
  %v549 = vld [vmem:[%s1 + $0x1070] sm:$0xff]
  %v550 = vld [vmem:[%s1 + $0x1078] sm:$0xff]
  %v551 = vld [vmem:[%s1 + $0x1080] sm:$0xff]
  %v552 = vld [vmem:[%s1 + $0x1088] sm:$0xff]
  %v553 = vld [vmem:[%s1 + $0x1090] sm:$0xff]
  %v554 = vld [vmem:[%s1 + $0x1098] sm:$0xff]
  %v555 = vld [vmem:[%s1 + $0x10a0] sm:$0xff]
  %v556 = vld [vmem:[%s1 + $0x10a8] sm:$0xff]
  %v557 = vld [vmem:[%s1 + $0x10b0] sm:$0xff]
  %v558 = vld [vmem:[%s1 + $0x10b8] sm:$0xff]
  %v559 = vld [vmem:[%s1 + $0x10c0] sm:$0xff]
  %v560 = vld [vmem:[%s1 + $0x10c8] sm:$0xff]
  %v561 = vld [vmem:[%s1 + $0x10d0] sm:$0xff]
  %v562 = vld [vmem:[%s1 + $0x10d8] sm:$0xff]
  %v563 = vld [vmem:[%s1 + $0x10e0] sm:$0xff]
  %v564 = vld [vmem:[%s1 + $0x10e8] sm:$0xff]
  %v565 = vld [vmem:[%s1 + $0x10f0] sm:$0xff]
  %v566 = vld [vmem:[%s1 + $0x10f8] sm:$0xff]
  %v567 = vld [vmem:[%s1 + $0x1100] sm:$0xff]
  %v568 = vld [vmem:[%s1 + $0x1108] sm:$0xff]
  %v569 = vld [vmem:[%s1 + $0x1110] sm:$0xff]
  %v570 = vld [vmem:[%s1 + $0x1118] sm:$0xff]
  %v571 = vld [vmem:[%s1 + $0x1120] sm:$0xff]
  %v572 = vld [vmem:[%s1 + $0x1128] sm:$0xff]
  %v573 = vld [vmem:[%s1 + $0x1130] sm:$0xff]
  %v574 = vld [vmem:[%s1 + $0x1138] sm:$0xff]
  %v575 = vld [vmem:[%s1 + $0x1140] sm:$0xff]
  %v576 = vld [vmem:[%s1 + $0x1148] sm:$0xff]
  %v577 = vld [vmem:[%s1 + $0x1150] sm:$0xff]
  %v578 = vld [vmem:[%s1 + $0x1158] sm:$0xff]
  %v579 = vld [vmem:[%s1 + $0x1160] sm:$0xff]
  %v580 = vld [vmem:[%s1 + $0x1168] sm:$0xff]
  %v581 = vld [vmem:[%s1 + $0x1170] sm:$0xff]
  %v582 = vld [vmem:[%s1 + $0x1178] sm:$0xff]
  %v583 = vld [vmem:[%s1 + $0x1180] sm:$0xff]
  %v584 = vld [vmem:[%s1 + $0x1188] sm:$0xff]
  %v585 = vld [vmem:[%s1 + $0x1190] sm:$0xff]
  %v586 = vld [vmem:[%s1 + $0x1198] sm:$0xff]
  %v587 = vld [vmem:[%s1 + $0x11a0] sm:$0xff]
  %v588 = vld [vmem:[%s1 + $0x11a8] sm:$0xff]
  %v589 = vld [vmem:[%s1 + $0x11b0] sm:$0xff]
  %v590 = vld [vmem:[%s1 + $0x11b8] sm:$0xff]
  %v591 = vld [vmem:[%s1 + $0x11c0] sm:$0xff]
  %v592 = vld [vmem:[%s1 + $0x11c8] sm:$0xff]
  %v593 = vld [vmem:[%s1 + $0x11d0] sm:$0xff]
  %v594 = vld [vmem:[%s1 + $0x11d8] sm:$0xff]
  %v595 = vld [vmem:[%s1 + $0x11e0] sm:$0xff]
  %v596 = vld [vmem:[%s1 + $0x11e8] sm:$0xff]
  %v597 = vld [vmem:[%s1 + $0x11f0] sm:$0xff]
  %v598 = vld [vmem:[%s1 + $0x11f8] sm:$0xff]
  %v599 = vld [vmem:[%s2] sm:$0xf]
  %v601 = vlaneseq
  %v602 = vshrl.u32 %v601, 7
  %v603 = vsub.s32 0, %v602
  %v604 = vrot.slane %v599, %v603
  %v605 = vlaneseq
  %v606 = vshrl.u32 %v605, 7
  %v607 = vsub.s32 1, %v606
  %v608 = vrot.slane %v599, %v607
  %v609 = vlaneseq
  %v610 = vshrl.u32 %v609, 7
  %v611 = vsub.s32 2, %v610
  %v612 = vrot.slane %v599, %v611
  %v613 = vlaneseq
  %v614 = vshrl.u32 %v613, 7
  %v615 = vsub.s32 3, %v614
  %v616 = vrot.slane %v599, %v615
  %v630 = vunpack.c.l.b16 %v14
  %v631 = vunpack.c.h.b16 %v14
  %v632 = vunpack.c.l.b16 %v15
  %v633 = vunpack.c.h.b16 %v15
  %v634 = vunpack.c.l.b16 %v16
  %v635 = vunpack.c.h.b16 %v16
  %v636 = vunpack.c.l.b16 %v17
  %v637 = vunpack.c.h.b16 %v17
  %v638 = vunpack.c.l.b16 %v18
  %v639 = vunpack.c.h.b16 %v18
  %v640 = vunpack.c.l.b16 %v19
  %v641 = vunpack.c.h.b16 %v19
  %v642 = vunpack.c.l.b16 %v20
  %v643 = vunpack.c.h.b16 %v20
  %v644 = vunpack.c.l.b16 %v21
  %v645 = vunpack.c.h.b16 %v21
  %v646 = vunpack.c.l.b16 %v22
  %v647 = vunpack.c.h.b16 %v22
  %v648 = vpack.c.b16 %v630, %v630
  %v649 = vpack.c.b16 %v631, %v631
  %v650 = vpack.c.b16 %v632, %v632
  %v651 = vpack.c.b16 %v633, %v633
  %v652 = vpack.c.b16 %v634, %v634
  %v653 = vpack.c.b16 %v635, %v635
  %v654 = vpack.c.b16 %v636, %v636
  %v655 = vpack.c.b16 %v637, %v637
  %v656 = vpack.c.b16 %v638, %v638
  %v657 = vpack.c.b16 %v639, %v639
  %v658 = vpack.c.b16 %v640, %v640
  %v659 = vpack.c.b16 %v641, %v641
  %v660 = vpack.c.b16 %v642, %v642
  %v661 = vpack.c.b16 %v643, %v643
  %v662 = vpack.c.b16 %v644, %v644
  %v663 = vpack.c.b16 %v645, %v645
  %v664 = vpack.c.b16 %v646, %v646
  %v665 = vpack.c.b16 %v647, %v647
  %v1260 = vunpack.c.l.b16 %v23
  %v1261 = vunpack.c.h.b16 %v23
  %v1262 = vunpack.c.l.b16 %v24
  %v1263 = vunpack.c.h.b16 %v24
  %v1264 = vunpack.c.l.b16 %v25
  %v1265 = vunpack.c.h.b16 %v25
  %v1266 = vunpack.c.l.b16 %v26
  %v1267 = vunpack.c.h.b16 %v26
  %v1268 = vunpack.c.l.b16 %v27
  %v1269 = vunpack.c.h.b16 %v27
  %v1270 = vunpack.c.l.b16 %v28
  %v1271 = vunpack.c.h.b16 %v28
  %v1272 = vunpack.c.l.b16 %v29
  %v1273 = vunpack.c.h.b16 %v29
  %v1274 = vunpack.c.l.b16 %v30
  %v1275 = vunpack.c.h.b16 %v30
  %v1276 = vunpack.c.l.b16 %v31
  %v1277 = vunpack.c.h.b16 %v31
  %v1278 = vunpack.c.l.b16 %v32
  %v1279 = vunpack.c.h.b16 %v32
  %v1280 = vunpack.c.l.b16 %v33
  %v1281 = vunpack.c.h.b16 %v33
  %v1282 = vunpack.c.l.b16 %v34
  %v1283 = vunpack.c.h.b16 %v34
  %v1284 = vunpack.c.l.b16 %v35
  %v1285 = vunpack.c.h.b16 %v35
  %v1286 = vunpack.c.l.b16 %v36
  %v1287 = vunpack.c.h.b16 %v36
  %v1288 = vunpack.c.l.b16 %v37
  %v1289 = vunpack.c.h.b16 %v37
  %v1290 = vunpack.c.l.b16 %v38
  %v1291 = vunpack.c.h.b16 %v38
  %v1292 = vunpack.c.l.b16 %v39
  %v1293 = vunpack.c.h.b16 %v39
  %v1294 = vunpack.c.l.b16 %v40
  %v1295 = vunpack.c.h.b16 %v40
  %v1296 = vunpack.c.l.b16 %v41
  %v1297 = vunpack.c.h.b16 %v41
  %v1298 = vunpack.c.l.b16 %v42
  %v1299 = vunpack.c.h.b16 %v42
  %v1300 = vunpack.c.l.b16 %v43
  %v1301 = vunpack.c.h.b16 %v43
  %v1302 = vunpack.c.l.b16 %v44
  %v1303 = vunpack.c.h.b16 %v44
  %v1304 = vunpack.c.l.b16 %v45
  %v1305 = vunpack.c.h.b16 %v45
  %v1306 = vunpack.c.l.b16 %v46
  %v1307 = vunpack.c.h.b16 %v46
  %v1308 = vunpack.c.l.b16 %v47
  %v1309 = vunpack.c.h.b16 %v47
  %v1310 = vunpack.c.l.b16 %v48
  %v1311 = vunpack.c.h.b16 %v48
  %v1312 = vunpack.c.l.b16 %v49
  %v1313 = vunpack.c.h.b16 %v49
  %v1314 = vunpack.c.l.b16 %v50
  %v1315 = vunpack.c.h.b16 %v50
  %v1316 = vunpack.c.l.b16 %v51
  %v1317 = vunpack.c.h.b16 %v51
  %v1318 = vunpack.c.l.b16 %v52
  %v1319 = vunpack.c.h.b16 %v52
  %v1320 = vunpack.c.l.b16 %v53
  %v1321 = vunpack.c.h.b16 %v53
  %v1322 = vunpack.c.l.b16 %v54
  %v1323 = vunpack.c.h.b16 %v54
  %v1324 = vunpack.c.l.b16 %v55
  %v1325 = vunpack.c.h.b16 %v55
  %v1326 = vunpack.c.l.b16 %v56
  %v1327 = vunpack.c.h.b16 %v56
  %v1328 = vunpack.c.l.b16 %v57
  %v1329 = vunpack.c.h.b16 %v57
  %v1330 = vunpack.c.l.b16 %v58
  %v1331 = vunpack.c.h.b16 %v58
  %v1332 = vunpack.c.l.b16 %v59
  %v1333 = vunpack.c.h.b16 %v59
  %v1334 = vunpack.c.l.b16 %v60
  %v1335 = vunpack.c.h.b16 %v60
  %v1336 = vunpack.c.l.b16 %v61
  %v1337 = vunpack.c.h.b16 %v61
  %v1338 = vunpack.c.l.b16 %v62
  %v1339 = vunpack.c.h.b16 %v62
  %v1340 = vunpack.c.l.b16 %v63
  %v1341 = vunpack.c.h.b16 %v63
  %v1342 = vunpack.c.l.b16 %v64
  %v1343 = vunpack.c.h.b16 %v64
  %v1344 = vunpack.c.l.b16 %v65
  %v1345 = vunpack.c.h.b16 %v65
  %v1346 = vunpack.c.l.b16 %v66
  %v1347 = vunpack.c.h.b16 %v66
  %v1348 = vunpack.c.l.b16 %v67
  %v1349 = vunpack.c.h.b16 %v67
  %v1350 = vunpack.c.l.b16 %v68
  %v1351 = vunpack.c.h.b16 %v68
  %v1352 = vunpack.c.l.b16 %v69
  %v1353 = vunpack.c.h.b16 %v69
  %v1354 = vunpack.c.l.b16 %v70
  %v1355 = vunpack.c.h.b16 %v70
  %v1356 = vunpack.c.l.b16 %v71
  %v1357 = vunpack.c.h.b16 %v71
  %v1358 = vunpack.c.l.b16 %v72
  %v1359 = vunpack.c.h.b16 %v72
  %v1360 = vunpack.c.l.b16 %v73
  %v1361 = vunpack.c.h.b16 %v73
  %v1362 = vunpack.c.l.b16 %v74
  %v1363 = vunpack.c.h.b16 %v74
  %v1364 = vunpack.c.l.b16 %v75
  %v1365 = vunpack.c.h.b16 %v75
  %v1366 = vunpack.c.l.b16 %v76
  %v1367 = vunpack.c.h.b16 %v76
  %v1368 = vunpack.c.l.b16 %v77
  %v1369 = vunpack.c.h.b16 %v77
  %v1370 = vunpack.c.l.b16 %v78
  %v1371 = vunpack.c.h.b16 %v78
  %v1372 = vunpack.c.l.b16 %v79
  %v1373 = vunpack.c.h.b16 %v79
  %v1374 = vunpack.c.l.b16 %v80
  %v1375 = vunpack.c.h.b16 %v80
  %v1376 = vunpack.c.l.b16 %v81
  %v1377 = vunpack.c.h.b16 %v81
  %v1378 = vunpack.c.l.b16 %v82
  %v1379 = vunpack.c.h.b16 %v82
  %v1380 = vunpack.c.l.b16 %v83
  %v1381 = vunpack.c.h.b16 %v83
  %v1382 = vunpack.c.l.b16 %v84
  %v1383 = vunpack.c.h.b16 %v84
  %v1384 = vunpack.c.l.b16 %v85
  %v1385 = vunpack.c.h.b16 %v85
  %v1386 = vunpack.c.l.b16 %v86
  %v1387 = vunpack.c.h.b16 %v86
  %v1388 = vunpack.c.l.b16 %v87
  %v1389 = vunpack.c.h.b16 %v87
  %v1390 = vunpack.c.l.b16 %v88
  %v1391 = vunpack.c.h.b16 %v88
  %v1392 = vunpack.c.l.b16 %v89
  %v1393 = vunpack.c.h.b16 %v89
  %v1394 = vunpack.c.l.b16 %v90
  %v1395 = vunpack.c.h.b16 %v90
  %v1396 = vunpack.c.l.b16 %v91
  %v1397 = vunpack.c.h.b16 %v91
  %v1398 = vunpack.c.l.b16 %v92
  %v1399 = vunpack.c.h.b16 %v92
  %v1400 = vunpack.c.l.b16 %v93
  %v1401 = vunpack.c.h.b16 %v93
  %v1402 = vunpack.c.l.b16 %v94
  %v1403 = vunpack.c.h.b16 %v94
  %v1404 = vunpack.c.l.b16 %v95
  %v1405 = vunpack.c.h.b16 %v95
  %v1406 = vunpack.c.l.b16 %v96
  %v1407 = vunpack.c.h.b16 %v96
  %v1408 = vunpack.c.l.b16 %v97
  %v1409 = vunpack.c.h.b16 %v97
  %v1410 = vunpack.c.l.b16 %v98
  %v1411 = vunpack.c.h.b16 %v98
  %v1412 = vunpack.c.l.b16 %v99
  %v1413 = vunpack.c.h.b16 %v99
  %v1414 = vunpack.c.l.b16 %v100
  %v1415 = vunpack.c.h.b16 %v100
  %v1416 = vunpack.c.l.b16 %v101
  %v1417 = vunpack.c.h.b16 %v101
  %v1418 = vunpack.c.l.b16 %v102
  %v1419 = vunpack.c.h.b16 %v102
  %v1420 = vunpack.c.l.b16 %v103
  %v1421 = vunpack.c.h.b16 %v103
  %v1422 = vunpack.c.l.b16 %v104
  %v1423 = vunpack.c.h.b16 %v104
  %v1424 = vunpack.c.l.b16 %v105
  %v1425 = vunpack.c.h.b16 %v105
  %v1426 = vunpack.c.l.b16 %v106
  %v1427 = vunpack.c.h.b16 %v106
  %v1428 = vunpack.c.l.b16 %v107
  %v1429 = vunpack.c.h.b16 %v107
  %v1430 = vunpack.c.l.b16 %v108
  %v1431 = vunpack.c.h.b16 %v108
  %v1432 = vunpack.c.l.b16 %v109
  %v1433 = vunpack.c.h.b16 %v109
  %v1434 = vunpack.c.l.b16 %v110
  %v1435 = vunpack.c.h.b16 %v110
  %v1436 = vunpack.c.l.b16 %v111
  %v1437 = vunpack.c.h.b16 %v111
  %v1438 = vunpack.c.l.b16 %v112
  %v1439 = vunpack.c.h.b16 %v112
  %v1440 = vunpack.c.l.b16 %v113
  %v1441 = vunpack.c.h.b16 %v113
  %v1442 = vunpack.c.l.b16 %v114
  %v1443 = vunpack.c.h.b16 %v114
  %v1444 = vunpack.c.l.b16 %v115
  %v1445 = vunpack.c.h.b16 %v115
  %v1446 = vunpack.c.l.b16 %v116
  %v1447 = vunpack.c.h.b16 %v116
  %v1448 = vunpack.c.l.b16 %v117
  %v1449 = vunpack.c.h.b16 %v117
  %v1450 = vunpack.c.l.b16 %v118
  %v1451 = vunpack.c.h.b16 %v118
  %v1452 = vunpack.c.l.b16 %v119
  %v1453 = vunpack.c.h.b16 %v119
  %v1454 = vunpack.c.l.b16 %v120
  %v1455 = vunpack.c.h.b16 %v120
  %v1456 = vunpack.c.l.b16 %v121
  %v1457 = vunpack.c.h.b16 %v121
  %v1458 = vunpack.c.l.b16 %v122
  %v1459 = vunpack.c.h.b16 %v122
  %v1460 = vunpack.c.l.b16 %v123
  %v1461 = vunpack.c.h.b16 %v123
  %v1462 = vunpack.c.l.b16 %v124
  %v1463 = vunpack.c.h.b16 %v124
  %v1464 = vunpack.c.l.b16 %v125
  %v1465 = vunpack.c.h.b16 %v125
  %v1466 = vunpack.c.l.b16 %v126
  %v1467 = vunpack.c.h.b16 %v126
  %v1468 = vunpack.c.l.b16 %v127
  %v1469 = vunpack.c.h.b16 %v127
  %v1470 = vunpack.c.l.b16 %v128
  %v1471 = vunpack.c.h.b16 %v128
  %v1472 = vunpack.c.l.b16 %v129
  %v1473 = vunpack.c.h.b16 %v129
  %v1474 = vunpack.c.l.b16 %v130
  %v1475 = vunpack.c.h.b16 %v130
  %v1476 = vunpack.c.l.b16 %v131
  %v1477 = vunpack.c.h.b16 %v131
  %v1478 = vunpack.c.l.b16 %v132
  %v1479 = vunpack.c.h.b16 %v132
  %v1480 = vunpack.c.l.b16 %v133
  %v1481 = vunpack.c.h.b16 %v133
  %v1482 = vunpack.c.l.b16 %v134
  %v1483 = vunpack.c.h.b16 %v134
  %v1484 = vunpack.c.l.b16 %v135
  %v1485 = vunpack.c.h.b16 %v135
  %v1486 = vunpack.c.l.b16 %v136
  %v1487 = vunpack.c.h.b16 %v136
  %v1488 = vunpack.c.l.b16 %v137
  %v1489 = vunpack.c.h.b16 %v137
  %v1490 = vunpack.c.l.b16 %v138
  %v1491 = vunpack.c.h.b16 %v138
  %v1492 = vunpack.c.l.b16 %v139
  %v1493 = vunpack.c.h.b16 %v139
  %v1494 = vunpack.c.l.b16 %v140
  %v1495 = vunpack.c.h.b16 %v140
  %v1496 = vunpack.c.l.b16 %v141
  %v1497 = vunpack.c.h.b16 %v141
  %v1498 = vunpack.c.l.b16 %v142
  %v1499 = vunpack.c.h.b16 %v142
  %v1500 = vunpack.c.l.b16 %v143
  %v1501 = vunpack.c.h.b16 %v143
  %v1502 = vunpack.c.l.b16 %v144
  %v1503 = vunpack.c.h.b16 %v144
  %v1504 = vunpack.c.l.b16 %v145
  %v1505 = vunpack.c.h.b16 %v145
  %v1506 = vunpack.c.l.b16 %v146
  %v1507 = vunpack.c.h.b16 %v146
  %v1508 = vunpack.c.l.b16 %v147
  %v1509 = vunpack.c.h.b16 %v147
  %v1510 = vunpack.c.l.b16 %v148
  %v1511 = vunpack.c.h.b16 %v148
  %v1512 = vunpack.c.l.b16 %v149
  %v1513 = vunpack.c.h.b16 %v149
  %v1514 = vunpack.c.l.b16 %v150
  %v1515 = vunpack.c.h.b16 %v150
  %v1516 = vunpack.c.l.b16 %v151
  %v1517 = vunpack.c.h.b16 %v151
  %v1518 = vunpack.c.l.b16 %v152
  %v1519 = vunpack.c.h.b16 %v152
  %v1520 = vunpack.c.l.b16 %v153
  %v1521 = vunpack.c.h.b16 %v153
  %v1522 = vunpack.c.l.b16 %v154
  %v1523 = vunpack.c.h.b16 %v154
  %v1524 = vunpack.c.l.b16 %v155
  %v1525 = vunpack.c.h.b16 %v155
  %v1526 = vunpack.c.l.b16 %v156
  %v1527 = vunpack.c.h.b16 %v156
  %v1528 = vunpack.c.l.b16 %v157
  %v1529 = vunpack.c.h.b16 %v157
  %v1530 = vunpack.c.l.b16 %v158
  %v1531 = vunpack.c.h.b16 %v158
  %v1532 = vunpack.c.l.b16 %v159
  %v1533 = vunpack.c.h.b16 %v159
  %v1534 = vunpack.c.l.b16 %v160
  %v1535 = vunpack.c.h.b16 %v160
  %v1536 = vunpack.c.l.b16 %v161
  %v1537 = vunpack.c.h.b16 %v161
  %v1538 = vunpack.c.l.b16 %v162
  %v1539 = vunpack.c.h.b16 %v162
  %v1540 = vunpack.c.l.b16 %v163
  %v1541 = vunpack.c.h.b16 %v163
  %v1542 = vunpack.c.l.b16 %v164
  %v1543 = vunpack.c.h.b16 %v164
  %v1544 = vunpack.c.l.b16 %v165
  %v1545 = vunpack.c.h.b16 %v165
  %v1546 = vunpack.c.l.b16 %v166
  %v1547 = vunpack.c.h.b16 %v166
  %v1548 = vunpack.c.l.b16 %v167
  %v1549 = vunpack.c.h.b16 %v167
  %v1550 = vunpack.c.l.b16 %v168
  %v1551 = vunpack.c.h.b16 %v168
  %v1552 = vunpack.c.l.b16 %v169
  %v1553 = vunpack.c.h.b16 %v169
  %v1554 = vunpack.c.l.b16 %v170
  %v1555 = vunpack.c.h.b16 %v170
  %v1556 = vunpack.c.l.b16 %v171
  %v1557 = vunpack.c.h.b16 %v171
  %v1558 = vunpack.c.l.b16 %v172
  %v1559 = vunpack.c.h.b16 %v172
  %v1560 = vunpack.c.l.b16 %v173
  %v1561 = vunpack.c.h.b16 %v173
  %v1562 = vunpack.c.l.b16 %v174
  %v1563 = vunpack.c.h.b16 %v174
  %v1564 = vunpack.c.l.b16 %v175
  %v1565 = vunpack.c.h.b16 %v175
  %v1566 = vunpack.c.l.b16 %v176
  %v1567 = vunpack.c.h.b16 %v176
  %v1568 = vunpack.c.l.b16 %v177
  %v1569 = vunpack.c.h.b16 %v177
  %v1570 = vunpack.c.l.b16 %v178
  %v1571 = vunpack.c.h.b16 %v178
  %v1572 = vunpack.c.l.b16 %v179
  %v1573 = vunpack.c.h.b16 %v179
  %v1574 = vunpack.c.l.b16 %v180
  %v1575 = vunpack.c.h.b16 %v180
  %v1576 = vunpack.c.l.b16 %v181
  %v1577 = vunpack.c.h.b16 %v181
  %v1578 = vunpack.c.l.b16 %v182
  %v1579 = vunpack.c.h.b16 %v182
  %v1580 = vunpack.c.l.b16 %v183
  %v1581 = vunpack.c.h.b16 %v183
  %v1582 = vunpack.c.l.b16 %v184
  %v1583 = vunpack.c.h.b16 %v184
  %v1584 = vunpack.c.l.b16 %v185
  %v1585 = vunpack.c.h.b16 %v185
  %v1586 = vunpack.c.l.b16 %v186
  %v1587 = vunpack.c.h.b16 %v186
  %v1588 = vunpack.c.l.b16 %v187
  %v1589 = vunpack.c.h.b16 %v187
  %v1590 = vunpack.c.l.b16 %v188
  %v1591 = vunpack.c.h.b16 %v188
  %v1592 = vunpack.c.l.b16 %v189
  %v1593 = vunpack.c.h.b16 %v189
  %v1594 = vunpack.c.l.b16 %v190
  %v1595 = vunpack.c.h.b16 %v190
  %v1596 = vunpack.c.l.b16 %v191
  %v1597 = vunpack.c.h.b16 %v191
  %v1598 = vunpack.c.l.b16 %v192
  %v1599 = vunpack.c.h.b16 %v192
  %v1600 = vunpack.c.l.b16 %v193
  %v1601 = vunpack.c.h.b16 %v193
  %v1602 = vunpack.c.l.b16 %v194
  %v1603 = vunpack.c.h.b16 %v194
  %v1604 = vunpack.c.l.b16 %v195
  %v1605 = vunpack.c.h.b16 %v195
  %v1606 = vunpack.c.l.b16 %v196
  %v1607 = vunpack.c.h.b16 %v196
  %v1608 = vunpack.c.l.b16 %v197
  %v1609 = vunpack.c.h.b16 %v197
  %v1610 = vunpack.c.l.b16 %v198
  %v1611 = vunpack.c.h.b16 %v198
  %v1612 = vunpack.c.l.b16 %v199
  %v1613 = vunpack.c.h.b16 %v199
  %v1614 = vunpack.c.l.b16 %v200
  %v1615 = vunpack.c.h.b16 %v200
  %v1616 = vunpack.c.l.b16 %v201
  %v1617 = vunpack.c.h.b16 %v201
  %v1618 = vunpack.c.l.b16 %v202
  %v1619 = vunpack.c.h.b16 %v202
  %v1620 = vunpack.c.l.b16 %v203
  %v1621 = vunpack.c.h.b16 %v203
  %v1622 = vunpack.c.l.b16 %v204
  %v1623 = vunpack.c.h.b16 %v204
  %v1624 = vunpack.c.l.b16 %v205
  %v1625 = vunpack.c.h.b16 %v205
  %v1626 = vunpack.c.l.b16 %v206
  %v1627 = vunpack.c.h.b16 %v206
  %v1628 = vunpack.c.l.b16 %v207
  %v1629 = vunpack.c.h.b16 %v207
  %v1630 = vunpack.c.l.b16 %v208
  %v1631 = vunpack.c.h.b16 %v208
  %v1632 = vunpack.c.l.b16 %v209
  %v1633 = vunpack.c.h.b16 %v209
  %v1634 = vunpack.c.l.b16 %v210
  %v1635 = vunpack.c.h.b16 %v210
  %v1636 = vunpack.c.l.b16 %v211
  %v1637 = vunpack.c.h.b16 %v211
  %v1638 = vunpack.c.l.b16 %v212
  %v1639 = vunpack.c.h.b16 %v212
  %v1640 = vunpack.c.l.b16 %v213
  %v1641 = vunpack.c.h.b16 %v213
  %v1642 = vunpack.c.l.b16 %v214
  %v1643 = vunpack.c.h.b16 %v214
  %v1644 = vunpack.c.l.b16 %v215
  %v1645 = vunpack.c.h.b16 %v215
  %v1646 = vunpack.c.l.b16 %v216
  %v1647 = vunpack.c.h.b16 %v216
  %v1648 = vunpack.c.l.b16 %v217
  %v1649 = vunpack.c.h.b16 %v217
  %v1650 = vunpack.c.l.b16 %v218
  %v1651 = vunpack.c.h.b16 %v218
  %v1652 = vunpack.c.l.b16 %v219
  %v1653 = vunpack.c.h.b16 %v219
  %v1654 = vunpack.c.l.b16 %v220
  %v1655 = vunpack.c.h.b16 %v220
  %v1656 = vunpack.c.l.b16 %v221
  %v1657 = vunpack.c.h.b16 %v221
  %v1658 = vunpack.c.l.b16 %v222
  %v1659 = vunpack.c.h.b16 %v222
  %v1660 = vunpack.c.l.b16 %v223
  %v1661 = vunpack.c.h.b16 %v223
  %v1662 = vunpack.c.l.b16 %v224
  %v1663 = vunpack.c.h.b16 %v224
  %v1664 = vunpack.c.l.b16 %v225
  %v1665 = vunpack.c.h.b16 %v225
  %v1666 = vunpack.c.l.b16 %v226
  %v1667 = vunpack.c.h.b16 %v226
  %v1668 = vunpack.c.l.b16 %v227
  %v1669 = vunpack.c.h.b16 %v227
  %v1670 = vunpack.c.l.b16 %v228
  %v1671 = vunpack.c.h.b16 %v228
  %v1672 = vunpack.c.l.b16 %v229
  %v1673 = vunpack.c.h.b16 %v229
  %v1674 = vunpack.c.l.b16 %v230
  %v1675 = vunpack.c.h.b16 %v230
  %v1676 = vunpack.c.l.b16 %v231
  %v1677 = vunpack.c.h.b16 %v231
  %v1678 = vunpack.c.l.b16 %v232
  %v1679 = vunpack.c.h.b16 %v232
  %v1680 = vunpack.c.l.b16 %v233
  %v1681 = vunpack.c.h.b16 %v233
  %v1682 = vunpack.c.l.b16 %v234
  %v1683 = vunpack.c.h.b16 %v234
  %v1684 = vunpack.c.l.b16 %v235
  %v1685 = vunpack.c.h.b16 %v235
  %v1686 = vunpack.c.l.b16 %v236
  %v1687 = vunpack.c.h.b16 %v236
  %v1688 = vunpack.c.l.b16 %v237
  %v1689 = vunpack.c.h.b16 %v237
  %v1690 = vunpack.c.l.b16 %v238
  %v1691 = vunpack.c.h.b16 %v238
  %v1692 = vunpack.c.l.b16 %v239
  %v1693 = vunpack.c.h.b16 %v239
  %v1694 = vunpack.c.l.b16 %v240
  %v1695 = vunpack.c.h.b16 %v240
  %v1696 = vunpack.c.l.b16 %v241
  %v1697 = vunpack.c.h.b16 %v241
  %v1698 = vunpack.c.l.b16 %v242
  %v1699 = vunpack.c.h.b16 %v242
  %v1700 = vunpack.c.l.b16 %v243
  %v1701 = vunpack.c.h.b16 %v243
  %v1702 = vunpack.c.l.b16 %v244
  %v1703 = vunpack.c.h.b16 %v244
  %v1704 = vunpack.c.l.b16 %v245
  %v1705 = vunpack.c.h.b16 %v245
  %v1706 = vunpack.c.l.b16 %v246
  %v1707 = vunpack.c.h.b16 %v246
  %v1708 = vunpack.c.l.b16 %v247
  %v1709 = vunpack.c.h.b16 %v247
  %v1710 = vunpack.c.l.b16 %v248
  %v1711 = vunpack.c.h.b16 %v248
  %v1712 = vunpack.c.l.b16 %v249
  %v1713 = vunpack.c.h.b16 %v249
  %v1714 = vunpack.c.l.b16 %v250
  %v1715 = vunpack.c.h.b16 %v250
  %v1716 = vunpack.c.l.b16 %v251
  %v1717 = vunpack.c.h.b16 %v251
  %v1718 = vunpack.c.l.b16 %v252
  %v1719 = vunpack.c.h.b16 %v252
  %v1720 = vunpack.c.l.b16 %v253
  %v1721 = vunpack.c.h.b16 %v253
  %v1722 = vunpack.c.l.b16 %v254
  %v1723 = vunpack.c.h.b16 %v254
  %v1724 = vunpack.c.l.b16 %v255
  %v1725 = vunpack.c.h.b16 %v255
  %v1726 = vunpack.c.l.b16 %v256
  %v1727 = vunpack.c.h.b16 %v256
  %v1728 = vunpack.c.l.b16 %v257
  %v1729 = vunpack.c.h.b16 %v257
  %v1730 = vunpack.c.l.b16 %v258
  %v1731 = vunpack.c.h.b16 %v258
  %v1732 = vunpack.c.l.b16 %v259
  %v1733 = vunpack.c.h.b16 %v259
  %v1734 = vunpack.c.l.b16 %v260
  %v1735 = vunpack.c.h.b16 %v260
  %v1736 = vunpack.c.l.b16 %v261
  %v1737 = vunpack.c.h.b16 %v261
  %v1738 = vunpack.c.l.b16 %v262
  %v1739 = vunpack.c.h.b16 %v262
  %v1740 = vunpack.c.l.b16 %v263
  %v1741 = vunpack.c.h.b16 %v263
  %v1742 = vunpack.c.l.b16 %v264
  %v1743 = vunpack.c.h.b16 %v264
  %v1744 = vunpack.c.l.b16 %v265
  %v1745 = vunpack.c.h.b16 %v265
  %v1746 = vunpack.c.l.b16 %v266
  %v1747 = vunpack.c.h.b16 %v266
  %v1748 = vunpack.c.l.b16 %v267
  %v1749 = vunpack.c.h.b16 %v267
  %v1750 = vunpack.c.l.b16 %v268
  %v1751 = vunpack.c.h.b16 %v268
  %v1752 = vunpack.c.l.b16 %v269
  %v1753 = vunpack.c.h.b16 %v269
  %v1754 = vunpack.c.l.b16 %v270
  %v1755 = vunpack.c.h.b16 %v270
  %v1756 = vunpack.c.l.b16 %v271
  %v1757 = vunpack.c.h.b16 %v271
  %v1758 = vunpack.c.l.b16 %v272
  %v1759 = vunpack.c.h.b16 %v272
  %v1760 = vunpack.c.l.b16 %v273
  %v1761 = vunpack.c.h.b16 %v273
  %v1762 = vunpack.c.l.b16 %v274
  %v1763 = vunpack.c.h.b16 %v274
  %v1764 = vunpack.c.l.b16 %v275
  %v1765 = vunpack.c.h.b16 %v275
  %v1766 = vunpack.c.l.b16 %v276
  %v1767 = vunpack.c.h.b16 %v276
  %v1768 = vunpack.c.l.b16 %v277
  %v1769 = vunpack.c.h.b16 %v277
  %v1770 = vunpack.c.l.b16 %v278
  %v1771 = vunpack.c.h.b16 %v278
  %v1772 = vunpack.c.l.b16 %v279
  %v1773 = vunpack.c.h.b16 %v279
  %v1774 = vunpack.c.l.b16 %v280
  %v1775 = vunpack.c.h.b16 %v280
  %v1776 = vunpack.c.l.b16 %v281
  %v1777 = vunpack.c.h.b16 %v281
  %v1778 = vunpack.c.l.b16 %v282
  %v1779 = vunpack.c.h.b16 %v282
  %v1780 = vunpack.c.l.b16 %v283
  %v1781 = vunpack.c.h.b16 %v283
  %v1782 = vunpack.c.l.b16 %v284
  %v1783 = vunpack.c.h.b16 %v284
  %v1784 = vunpack.c.l.b16 %v285
  %v1785 = vunpack.c.h.b16 %v285
  %v1786 = vunpack.c.l.b16 %v286
  %v1787 = vunpack.c.h.b16 %v286
  %v1788 = vunpack.c.l.b16 %v287
  %v1789 = vunpack.c.h.b16 %v287
  %v1790 = vunpack.c.l.b16 %v288
  %v1791 = vunpack.c.h.b16 %v288
  %v1792 = vunpack.c.l.b16 %v289
  %v1793 = vunpack.c.h.b16 %v289
  %v1794 = vunpack.c.l.b16 %v290
  %v1795 = vunpack.c.h.b16 %v290
  %v1796 = vunpack.c.l.b16 %v291
  %v1797 = vunpack.c.h.b16 %v291
  %v1798 = vunpack.c.l.b16 %v292
  %v1799 = vunpack.c.h.b16 %v292
  %v1800 = vunpack.c.l.b16 %v293
  %v1801 = vunpack.c.h.b16 %v293
  %v1802 = vunpack.c.l.b16 %v294
  %v1803 = vunpack.c.h.b16 %v294
  %v1804 = vunpack.c.l.b16 %v295
  %v1805 = vunpack.c.h.b16 %v295
  %v1806 = vunpack.c.l.b16 %v296
  %v1807 = vunpack.c.h.b16 %v296
  %v1808 = vunpack.c.l.b16 %v297
  %v1809 = vunpack.c.h.b16 %v297
  %v1810 = vunpack.c.l.b16 %v298
  %v1811 = vunpack.c.h.b16 %v298
  %v1812 = vunpack.c.l.b16 %v299
  %v1813 = vunpack.c.h.b16 %v299
  %v1814 = vunpack.c.l.b16 %v300
  %v1815 = vunpack.c.h.b16 %v300
  %v1816 = vunpack.c.l.b16 %v301
  %v1817 = vunpack.c.h.b16 %v301
  %v1818 = vunpack.c.l.b16 %v302
  %v1819 = vunpack.c.h.b16 %v302
  %v1820 = vunpack.c.l.b16 %v303
  %v1821 = vunpack.c.h.b16 %v303
  %v1822 = vunpack.c.l.b16 %v304
  %v1823 = vunpack.c.h.b16 %v304
  %v1824 = vunpack.c.l.b16 %v305
  %v1825 = vunpack.c.h.b16 %v305
  %v1826 = vunpack.c.l.b16 %v306
  %v1827 = vunpack.c.h.b16 %v306
  %v1828 = vunpack.c.l.b16 %v307
  %v1829 = vunpack.c.h.b16 %v307
  %v1830 = vunpack.c.l.b16 %v308
  %v1831 = vunpack.c.h.b16 %v308
  %v1832 = vunpack.c.l.b16 %v309
  %v1833 = vunpack.c.h.b16 %v309
  %v1834 = vunpack.c.l.b16 %v310
  %v1835 = vunpack.c.h.b16 %v310
  %v1836 = vunpack.c.l.b16 %v311
  %v1837 = vunpack.c.h.b16 %v311
  %v1838 = vunpack.c.l.b16 %v312
  %v1839 = vunpack.c.h.b16 %v312
  %v1840 = vunpack.c.l.b16 %v313
  %v1841 = vunpack.c.h.b16 %v313
  %v1842 = vunpack.c.l.b16 %v314
  %v1843 = vunpack.c.h.b16 %v314
  %v1844 = vunpack.c.l.b16 %v315
  %v1845 = vunpack.c.h.b16 %v315
  %v1846 = vunpack.c.l.b16 %v316
  %v1847 = vunpack.c.h.b16 %v316
  %v1848 = vunpack.c.l.b16 %v317
  %v1849 = vunpack.c.h.b16 %v317
  %v1850 = vunpack.c.l.b16 %v318
  %v1851 = vunpack.c.h.b16 %v318
  %v1852 = vunpack.c.l.b16 %v319
  %v1853 = vunpack.c.h.b16 %v319
  %v1854 = vunpack.c.l.b16 %v320
  %v1855 = vunpack.c.h.b16 %v320
  %v1856 = vunpack.c.l.b16 %v321
  %v1857 = vunpack.c.h.b16 %v321
  %v1858 = vunpack.c.l.b16 %v322
  %v1859 = vunpack.c.h.b16 %v322
  %v1860 = vunpack.c.l.b16 %v323
  %v1861 = vunpack.c.h.b16 %v323
  %v1862 = vunpack.c.l.b16 %v324
  %v1863 = vunpack.c.h.b16 %v324
  %v1864 = vunpack.c.l.b16 %v325
  %v1865 = vunpack.c.h.b16 %v325
  %v1866 = vunpack.c.l.b16 %v326
  %v1867 = vunpack.c.h.b16 %v326
  %v1868 = vunpack.c.l.b16 %v327
  %v1869 = vunpack.c.h.b16 %v327
  %v1870 = vunpack.c.l.b16 %v328
  %v1871 = vunpack.c.h.b16 %v328
  %v1872 = vunpack.c.l.b16 %v329
  %v1873 = vunpack.c.h.b16 %v329
  %v1874 = vunpack.c.l.b16 %v330
  %v1875 = vunpack.c.h.b16 %v330
  %v1876 = vunpack.c.l.b16 %v331
  %v1877 = vunpack.c.h.b16 %v331
  %v1878 = vunpack.c.l.b16 %v332
  %v1879 = vunpack.c.h.b16 %v332
  %v1880 = vunpack.c.l.b16 %v333
  %v1881 = vunpack.c.h.b16 %v333
  %v1882 = vunpack.c.l.b16 %v334
  %v1883 = vunpack.c.h.b16 %v334
  %v1884 = vunpack.c.l.b16 %v335
  %v1885 = vunpack.c.h.b16 %v335
  %v1886 = vunpack.c.l.b16 %v336
  %v1887 = vunpack.c.h.b16 %v336
  %v1888 = vunpack.c.l.b16 %v337
  %v1889 = vunpack.c.h.b16 %v337
  %v1890 = vunpack.c.l.b16 %v338
  %v1891 = vunpack.c.h.b16 %v338
  %v1892 = vunpack.c.l.b16 %v339
  %v1893 = vunpack.c.h.b16 %v339
  %v1894 = vunpack.c.l.b16 %v340
  %v1895 = vunpack.c.h.b16 %v340
  %v1896 = vunpack.c.l.b16 %v341
  %v1897 = vunpack.c.h.b16 %v341
  %v1898 = vunpack.c.l.b16 %v342
  %v1899 = vunpack.c.h.b16 %v342
  %v1900 = vunpack.c.l.b16 %v343
  %v1901 = vunpack.c.h.b16 %v343
  %v1902 = vunpack.c.l.b16 %v344
  %v1903 = vunpack.c.h.b16 %v344
  %v1904 = vunpack.c.l.b16 %v345
  %v1905 = vunpack.c.h.b16 %v345
  %v1906 = vunpack.c.l.b16 %v346
  %v1907 = vunpack.c.h.b16 %v346
  %v1908 = vunpack.c.l.b16 %v347
  %v1909 = vunpack.c.h.b16 %v347
  %v1910 = vunpack.c.l.b16 %v348
  %v1911 = vunpack.c.h.b16 %v348
  %v1912 = vunpack.c.l.b16 %v349
  %v1913 = vunpack.c.h.b16 %v349
  %v1914 = vunpack.c.l.b16 %v350
  %v1915 = vunpack.c.h.b16 %v350
  %v1916 = vunpack.c.l.b16 %v351
  %v1917 = vunpack.c.h.b16 %v351
  %v1918 = vunpack.c.l.b16 %v352
  %v1919 = vunpack.c.h.b16 %v352
  %v1920 = vunpack.c.l.b16 %v353
  %v1921 = vunpack.c.h.b16 %v353
  %v1922 = vunpack.c.l.b16 %v354
  %v1923 = vunpack.c.h.b16 %v354
  %v1924 = vunpack.c.l.b16 %v355
  %v1925 = vunpack.c.h.b16 %v355
  %v1926 = vunpack.c.l.b16 %v356
  %v1927 = vunpack.c.h.b16 %v356
  %v1928 = vunpack.c.l.b16 %v357
  %v1929 = vunpack.c.h.b16 %v357
  %v1930 = vunpack.c.l.b16 %v358
  %v1931 = vunpack.c.h.b16 %v358
  %v1932 = vunpack.c.l.b16 %v359
  %v1933 = vunpack.c.h.b16 %v359
  %v1934 = vunpack.c.l.b16 %v360
  %v1935 = vunpack.c.h.b16 %v360
  %v1936 = vunpack.c.l.b16 %v361
  %v1937 = vunpack.c.h.b16 %v361
  %v1938 = vunpack.c.l.b16 %v362
  %v1939 = vunpack.c.h.b16 %v362
  %v1940 = vunpack.c.l.b16 %v363
  %v1941 = vunpack.c.h.b16 %v363
  %v1942 = vunpack.c.l.b16 %v364
  %v1943 = vunpack.c.h.b16 %v364
  %v1944 = vunpack.c.l.b16 %v365
  %v1945 = vunpack.c.h.b16 %v365
  %v1946 = vunpack.c.l.b16 %v366
  %v1947 = vunpack.c.h.b16 %v366
  %v1948 = vunpack.c.l.b16 %v367
  %v1949 = vunpack.c.h.b16 %v367
  %v1950 = vunpack.c.l.b16 %v368
  %v1951 = vunpack.c.h.b16 %v368
  %v1952 = vunpack.c.l.b16 %v369
  %v1953 = vunpack.c.h.b16 %v369
  %v1954 = vunpack.c.l.b16 %v370
  %v1955 = vunpack.c.h.b16 %v370
  %v1956 = vunpack.c.l.b16 %v371
  %v1957 = vunpack.c.h.b16 %v371
  %v1958 = vunpack.c.l.b16 %v372
  %v1959 = vunpack.c.h.b16 %v372
  %v1960 = vunpack.c.l.b16 %v373
  %v1961 = vunpack.c.h.b16 %v373
  %v1962 = vunpack.c.l.b16 %v374
  %v1963 = vunpack.c.h.b16 %v374
  %v1964 = vunpack.c.l.b16 %v375
  %v1965 = vunpack.c.h.b16 %v375
  %v1966 = vunpack.c.l.b16 %v376
  %v1967 = vunpack.c.h.b16 %v376
  %v1968 = vunpack.c.l.b16 %v377
  %v1969 = vunpack.c.h.b16 %v377
  %v1970 = vunpack.c.l.b16 %v378
  %v1971 = vunpack.c.h.b16 %v378
  %v1972 = vunpack.c.l.b16 %v379
  %v1973 = vunpack.c.h.b16 %v379
  %v1974 = vunpack.c.l.b16 %v380
  %v1975 = vunpack.c.h.b16 %v380
  %v1976 = vunpack.c.l.b16 %v381
  %v1977 = vunpack.c.h.b16 %v381
  %v1978 = vunpack.c.l.b16 %v382
  %v1979 = vunpack.c.h.b16 %v382
  %v1980 = vunpack.c.l.b16 %v383
  %v1981 = vunpack.c.h.b16 %v383
  %v1982 = vunpack.c.l.b16 %v384
  %v1983 = vunpack.c.h.b16 %v384
  %v1984 = vunpack.c.l.b16 %v385
  %v1985 = vunpack.c.h.b16 %v385
  %v1986 = vunpack.c.l.b16 %v386
  %v1987 = vunpack.c.h.b16 %v386
  %v1988 = vunpack.c.l.b16 %v387
  %v1989 = vunpack.c.h.b16 %v387
  %v1990 = vunpack.c.l.b16 %v388
  %v1991 = vunpack.c.h.b16 %v388
  %v1992 = vunpack.c.l.b16 %v389
  %v1993 = vunpack.c.h.b16 %v389
  %v1994 = vunpack.c.l.b16 %v390
  %v1995 = vunpack.c.h.b16 %v390
  %v1996 = vunpack.c.l.b16 %v391
  %v1997 = vunpack.c.h.b16 %v391
  %v1998 = vunpack.c.l.b16 %v392
  %v1999 = vunpack.c.h.b16 %v392
  %v2000 = vunpack.c.l.b16 %v393
  %v2001 = vunpack.c.h.b16 %v393
  %v2002 = vunpack.c.l.b16 %v394
  %v2003 = vunpack.c.h.b16 %v394
  %v2004 = vunpack.c.l.b16 %v395
  %v2005 = vunpack.c.h.b16 %v395
  %v2006 = vunpack.c.l.b16 %v396
  %v2007 = vunpack.c.h.b16 %v396
  %v2008 = vunpack.c.l.b16 %v397
  %v2009 = vunpack.c.h.b16 %v397
  %v2010 = vunpack.c.l.b16 %v398
  %v2011 = vunpack.c.h.b16 %v398
  %v2012 = vunpack.c.l.b16 %v399
  %v2013 = vunpack.c.h.b16 %v399
  %v2014 = vunpack.c.l.b16 %v400
  %v2015 = vunpack.c.h.b16 %v400
  %v2016 = vunpack.c.l.b16 %v401
  %v2017 = vunpack.c.h.b16 %v401
  %v2018 = vunpack.c.l.b16 %v402
  %v2019 = vunpack.c.h.b16 %v402
  %v2020 = vunpack.c.l.b16 %v403
  %v2021 = vunpack.c.h.b16 %v403
  %v2022 = vunpack.c.l.b16 %v404
  %v2023 = vunpack.c.h.b16 %v404
  %v2024 = vunpack.c.l.b16 %v405
  %v2025 = vunpack.c.h.b16 %v405
  %v2026 = vunpack.c.l.b16 %v406
  %v2027 = vunpack.c.h.b16 %v406
  %v2028 = vunpack.c.l.b16 %v407
  %v2029 = vunpack.c.h.b16 %v407
  %v2030 = vunpack.c.l.b16 %v408
  %v2031 = vunpack.c.h.b16 %v408
  %v2032 = vunpack.c.l.b16 %v409
  %v2033 = vunpack.c.h.b16 %v409
  %v2034 = vunpack.c.l.b16 %v410
  %v2035 = vunpack.c.h.b16 %v410
  %v2036 = vunpack.c.l.b16 %v411
  %v2037 = vunpack.c.h.b16 %v411
  %v2038 = vunpack.c.l.b16 %v412
  %v2039 = vunpack.c.h.b16 %v412
  %v2040 = vunpack.c.l.b16 %v413
  %v2041 = vunpack.c.h.b16 %v413
  %v2042 = vunpack.c.l.b16 %v414
  %v2043 = vunpack.c.h.b16 %v414
  %v2044 = vunpack.c.l.b16 %v415
  %v2045 = vunpack.c.h.b16 %v415
  %v2046 = vunpack.c.l.b16 %v416
  %v2047 = vunpack.c.h.b16 %v416
  %v2048 = vunpack.c.l.b16 %v417
  %v2049 = vunpack.c.h.b16 %v417
  %v2050 = vunpack.c.l.b16 %v418
  %v2051 = vunpack.c.h.b16 %v418
  %v2052 = vunpack.c.l.b16 %v419
  %v2053 = vunpack.c.h.b16 %v419
  %v2054 = vunpack.c.l.b16 %v420
  %v2055 = vunpack.c.h.b16 %v420
  %v2056 = vunpack.c.l.b16 %v421
  %v2057 = vunpack.c.h.b16 %v421
  %v2058 = vunpack.c.l.b16 %v422
  %v2059 = vunpack.c.h.b16 %v422
  %v2060 = vunpack.c.l.b16 %v423
  %v2061 = vunpack.c.h.b16 %v423
  %v2062 = vunpack.c.l.b16 %v424
  %v2063 = vunpack.c.h.b16 %v424
  %v2064 = vunpack.c.l.b16 %v425
  %v2065 = vunpack.c.h.b16 %v425
  %v2066 = vunpack.c.l.b16 %v426
  %v2067 = vunpack.c.h.b16 %v426
  %v2068 = vunpack.c.l.b16 %v427
  %v2069 = vunpack.c.h.b16 %v427
  %v2070 = vunpack.c.l.b16 %v428
  %v2071 = vunpack.c.h.b16 %v428
  %v2072 = vunpack.c.l.b16 %v429
  %v2073 = vunpack.c.h.b16 %v429
  %v2074 = vunpack.c.l.b16 %v430
  %v2075 = vunpack.c.h.b16 %v430
  %v2076 = vunpack.c.l.b16 %v431
  %v2077 = vunpack.c.h.b16 %v431
  %v2078 = vunpack.c.l.b16 %v432
  %v2079 = vunpack.c.h.b16 %v432
  %v2080 = vunpack.c.l.b16 %v433
  %v2081 = vunpack.c.h.b16 %v433
  %v2082 = vunpack.c.l.b16 %v434
  %v2083 = vunpack.c.h.b16 %v434
  %v2084 = vunpack.c.l.b16 %v435
  %v2085 = vunpack.c.h.b16 %v435
  %v2086 = vunpack.c.l.b16 %v436
  %v2087 = vunpack.c.h.b16 %v436
  %v2088 = vunpack.c.l.b16 %v437
  %v2089 = vunpack.c.h.b16 %v437
  %v2090 = vunpack.c.l.b16 %v438
  %v2091 = vunpack.c.h.b16 %v438
  %v2092 = vunpack.c.l.b16 %v439
  %v2093 = vunpack.c.h.b16 %v439
  %v2094 = vunpack.c.l.b16 %v440
  %v2095 = vunpack.c.h.b16 %v440
  %v2096 = vunpack.c.l.b16 %v441
  %v2097 = vunpack.c.h.b16 %v441
  %v2098 = vunpack.c.l.b16 %v442
  %v2099 = vunpack.c.h.b16 %v442
  %v2100 = vunpack.c.l.b16 %v443
  %v2101 = vunpack.c.h.b16 %v443
  %v2102 = vunpack.c.l.b16 %v444
  %v2103 = vunpack.c.h.b16 %v444
  %v2104 = vunpack.c.l.b16 %v445
  %v2105 = vunpack.c.h.b16 %v445
  %v2106 = vunpack.c.l.b16 %v446
  %v2107 = vunpack.c.h.b16 %v446
  %v2108 = vunpack.c.l.b16 %v447
  %v2109 = vunpack.c.h.b16 %v447
  %v2110 = vunpack.c.l.b16 %v448
  %v2111 = vunpack.c.h.b16 %v448
  %v2112 = vunpack.c.l.b16 %v449
  %v2113 = vunpack.c.h.b16 %v449
  %v2114 = vunpack.c.l.b16 %v450
  %v2115 = vunpack.c.h.b16 %v450
  %v2116 = vunpack.c.l.b16 %v451
  %v2117 = vunpack.c.h.b16 %v451
  %v2118 = vunpack.c.l.b16 %v452
  %v2119 = vunpack.c.h.b16 %v452
  %v2120 = vunpack.c.l.b16 %v453
  %v2121 = vunpack.c.h.b16 %v453
  %v2122 = vunpack.c.l.b16 %v454
  %v2123 = vunpack.c.h.b16 %v454
  %v2124 = vunpack.c.l.b16 %v455
  %v2125 = vunpack.c.h.b16 %v455
  %v2126 = vunpack.c.l.b16 %v456
  %v2127 = vunpack.c.h.b16 %v456
  %v2128 = vunpack.c.l.b16 %v457
  %v2129 = vunpack.c.h.b16 %v457
  %v2130 = vunpack.c.l.b16 %v458
  %v2131 = vunpack.c.h.b16 %v458
  %v2132 = vunpack.c.l.b16 %v459
  %v2133 = vunpack.c.h.b16 %v459
  %v2134 = vunpack.c.l.b16 %v460
  %v2135 = vunpack.c.h.b16 %v460
  %v2136 = vunpack.c.l.b16 %v461
  %v2137 = vunpack.c.h.b16 %v461
  %v2138 = vunpack.c.l.b16 %v462
  %v2139 = vunpack.c.h.b16 %v462
  %v2140 = vunpack.c.l.b16 %v463
  %v2141 = vunpack.c.h.b16 %v463
  %v2142 = vunpack.c.l.b16 %v464
  %v2143 = vunpack.c.h.b16 %v464
  %v2144 = vunpack.c.l.b16 %v465
  %v2145 = vunpack.c.h.b16 %v465
  %v2146 = vunpack.c.l.b16 %v466
  %v2147 = vunpack.c.h.b16 %v466
  %v2148 = vunpack.c.l.b16 %v467
  %v2149 = vunpack.c.h.b16 %v467
  %v2150 = vunpack.c.l.b16 %v468
  %v2151 = vunpack.c.h.b16 %v468
  %v2152 = vunpack.c.l.b16 %v469
  %v2153 = vunpack.c.h.b16 %v469
  %v2154 = vunpack.c.l.b16 %v470
  %v2155 = vunpack.c.h.b16 %v470
  %v2156 = vunpack.c.l.b16 %v471
  %v2157 = vunpack.c.h.b16 %v471
  %v2158 = vunpack.c.l.b16 %v472
  %v2159 = vunpack.c.h.b16 %v472
  %v2160 = vunpack.c.l.b16 %v473
  %v2161 = vunpack.c.h.b16 %v473
  %v2162 = vunpack.c.l.b16 %v474
  %v2163 = vunpack.c.h.b16 %v474
  %v2164 = vunpack.c.l.b16 %v475
  %v2165 = vunpack.c.h.b16 %v475
  %v2166 = vunpack.c.l.b16 %v476
  %v2167 = vunpack.c.h.b16 %v476
  %v2168 = vunpack.c.l.b16 %v477
  %v2169 = vunpack.c.h.b16 %v477
  %v2170 = vunpack.c.l.b16 %v478
  %v2171 = vunpack.c.h.b16 %v478
  %v2172 = vunpack.c.l.b16 %v479
  %v2173 = vunpack.c.h.b16 %v479
  %v2174 = vunpack.c.l.b16 %v480
  %v2175 = vunpack.c.h.b16 %v480
  %v2176 = vunpack.c.l.b16 %v481
  %v2177 = vunpack.c.h.b16 %v481
  %v2178 = vunpack.c.l.b16 %v482
  %v2179 = vunpack.c.h.b16 %v482
  %v2180 = vunpack.c.l.b16 %v483
  %v2181 = vunpack.c.h.b16 %v483
  %v2182 = vunpack.c.l.b16 %v484
  %v2183 = vunpack.c.h.b16 %v484
  %v2184 = vunpack.c.l.b16 %v485
  %v2185 = vunpack.c.h.b16 %v485
  %v2186 = vunpack.c.l.b16 %v486
  %v2187 = vunpack.c.h.b16 %v486
  %v2188 = vunpack.c.l.b16 %v487
  %v2189 = vunpack.c.h.b16 %v487
  %v2190 = vunpack.c.l.b16 %v488
  %v2191 = vunpack.c.h.b16 %v488
  %v2192 = vunpack.c.l.b16 %v489
  %v2193 = vunpack.c.h.b16 %v489
  %v2194 = vunpack.c.l.b16 %v490
  %v2195 = vunpack.c.h.b16 %v490
  %v2196 = vunpack.c.l.b16 %v491
  %v2197 = vunpack.c.h.b16 %v491
  %v2198 = vunpack.c.l.b16 %v492
  %v2199 = vunpack.c.h.b16 %v492
  %v2200 = vunpack.c.l.b16 %v493
  %v2201 = vunpack.c.h.b16 %v493
  %v2202 = vunpack.c.l.b16 %v494
  %v2203 = vunpack.c.h.b16 %v494
  %v2204 = vunpack.c.l.b16 %v495
  %v2205 = vunpack.c.h.b16 %v495
  %v2206 = vunpack.c.l.b16 %v496
  %v2207 = vunpack.c.h.b16 %v496
  %v2208 = vunpack.c.l.b16 %v497
  %v2209 = vunpack.c.h.b16 %v497
  %v2210 = vunpack.c.l.b16 %v498
  %v2211 = vunpack.c.h.b16 %v498
  %v2212 = vunpack.c.l.b16 %v499
  %v2213 = vunpack.c.h.b16 %v499
  %v2214 = vunpack.c.l.b16 %v500
  %v2215 = vunpack.c.h.b16 %v500
  %v2216 = vunpack.c.l.b16 %v501
  %v2217 = vunpack.c.h.b16 %v501
  %v2218 = vunpack.c.l.b16 %v502
  %v2219 = vunpack.c.h.b16 %v502
  %v2220 = vunpack.c.l.b16 %v503
  %v2221 = vunpack.c.h.b16 %v503
  %v2222 = vunpack.c.l.b16 %v504
  %v2223 = vunpack.c.h.b16 %v504
  %v2224 = vunpack.c.l.b16 %v505
  %v2225 = vunpack.c.h.b16 %v505
  %v2226 = vunpack.c.l.b16 %v506
  %v2227 = vunpack.c.h.b16 %v506
  %v2228 = vunpack.c.l.b16 %v507
  %v2229 = vunpack.c.h.b16 %v507
  %v2230 = vunpack.c.l.b16 %v508
  %v2231 = vunpack.c.h.b16 %v508
  %v2232 = vunpack.c.l.b16 %v509
  %v2233 = vunpack.c.h.b16 %v509
  %v2234 = vunpack.c.l.b16 %v510
  %v2235 = vunpack.c.h.b16 %v510
  %v2236 = vunpack.c.l.b16 %v511
  %v2237 = vunpack.c.h.b16 %v511
  %v2238 = vunpack.c.l.b16 %v512
  %v2239 = vunpack.c.h.b16 %v512
  %v2240 = vunpack.c.l.b16 %v513
  %v2241 = vunpack.c.h.b16 %v513
  %v2242 = vunpack.c.l.b16 %v514
  %v2243 = vunpack.c.h.b16 %v514
  %v2244 = vunpack.c.l.b16 %v515
  %v2245 = vunpack.c.h.b16 %v515
  %v2246 = vunpack.c.l.b16 %v516
  %v2247 = vunpack.c.h.b16 %v516
  %v2248 = vunpack.c.l.b16 %v517
  %v2249 = vunpack.c.h.b16 %v517
  %v2250 = vunpack.c.l.b16 %v518
  %v2251 = vunpack.c.h.b16 %v518
  %v2252 = vunpack.c.l.b16 %v519
  %v2253 = vunpack.c.h.b16 %v519
  %v2254 = vunpack.c.l.b16 %v520
  %v2255 = vunpack.c.h.b16 %v520
  %v2256 = vunpack.c.l.b16 %v521
  %v2257 = vunpack.c.h.b16 %v521
  %v2258 = vunpack.c.l.b16 %v522
  %v2259 = vunpack.c.h.b16 %v522
  %v2260 = vunpack.c.l.b16 %v523
  %v2261 = vunpack.c.h.b16 %v523
  %v2262 = vunpack.c.l.b16 %v524
  %v2263 = vunpack.c.h.b16 %v524
  %v2264 = vunpack.c.l.b16 %v525
  %v2265 = vunpack.c.h.b16 %v525
  %v2266 = vunpack.c.l.b16 %v526
  %v2267 = vunpack.c.h.b16 %v526
  %v2268 = vunpack.c.l.b16 %v527
  %v2269 = vunpack.c.h.b16 %v527
  %v2270 = vunpack.c.l.b16 %v528
  %v2271 = vunpack.c.h.b16 %v528
  %v2272 = vunpack.c.l.b16 %v529
  %v2273 = vunpack.c.h.b16 %v529
  %v2274 = vunpack.c.l.b16 %v530
  %v2275 = vunpack.c.h.b16 %v530
  %v2276 = vunpack.c.l.b16 %v531
  %v2277 = vunpack.c.h.b16 %v531
  %v2278 = vunpack.c.l.b16 %v532
  %v2279 = vunpack.c.h.b16 %v532
  %v2280 = vunpack.c.l.b16 %v533
  %v2281 = vunpack.c.h.b16 %v533
  %v2282 = vunpack.c.l.b16 %v534
  %v2283 = vunpack.c.h.b16 %v534
  %v2284 = vunpack.c.l.b16 %v535
  %v2285 = vunpack.c.h.b16 %v535
  %v2286 = vunpack.c.l.b16 %v536
  %v2287 = vunpack.c.h.b16 %v536
  %v2288 = vunpack.c.l.b16 %v537
  %v2289 = vunpack.c.h.b16 %v537
  %v2290 = vunpack.c.l.b16 %v538
  %v2291 = vunpack.c.h.b16 %v538
  %v2292 = vunpack.c.l.b16 %v539
  %v2293 = vunpack.c.h.b16 %v539
  %v2294 = vunpack.c.l.b16 %v540
  %v2295 = vunpack.c.h.b16 %v540
  %v2296 = vunpack.c.l.b16 %v541
  %v2297 = vunpack.c.h.b16 %v541
  %v2298 = vunpack.c.l.b16 %v542
  %v2299 = vunpack.c.h.b16 %v542
  %v2300 = vunpack.c.l.b16 %v543
  %v2301 = vunpack.c.h.b16 %v543
  %v2302 = vunpack.c.l.b16 %v544
  %v2303 = vunpack.c.h.b16 %v544
  %v2304 = vunpack.c.l.b16 %v545
  %v2305 = vunpack.c.h.b16 %v545
  %v2306 = vunpack.c.l.b16 %v546
  %v2307 = vunpack.c.h.b16 %v546
  %v2308 = vunpack.c.l.b16 %v547
  %v2309 = vunpack.c.h.b16 %v547
  %v2310 = vunpack.c.l.b16 %v548
  %v2311 = vunpack.c.h.b16 %v548
  %v2312 = vunpack.c.l.b16 %v549
  %v2313 = vunpack.c.h.b16 %v549
  %v2314 = vunpack.c.l.b16 %v550
  %v2315 = vunpack.c.h.b16 %v550
  %v2316 = vunpack.c.l.b16 %v551
  %v2317 = vunpack.c.h.b16 %v551
  %v2318 = vunpack.c.l.b16 %v552
  %v2319 = vunpack.c.h.b16 %v552
  %v2320 = vunpack.c.l.b16 %v553
  %v2321 = vunpack.c.h.b16 %v553
  %v2322 = vunpack.c.l.b16 %v554
  %v2323 = vunpack.c.h.b16 %v554
  %v2324 = vunpack.c.l.b16 %v555
  %v2325 = vunpack.c.h.b16 %v555
  %v2326 = vunpack.c.l.b16 %v556
  %v2327 = vunpack.c.h.b16 %v556
  %v2328 = vunpack.c.l.b16 %v557
  %v2329 = vunpack.c.h.b16 %v557
  %v2330 = vunpack.c.l.b16 %v558
  %v2331 = vunpack.c.h.b16 %v558
  %v2332 = vunpack.c.l.b16 %v559
  %v2333 = vunpack.c.h.b16 %v559
  %v2334 = vunpack.c.l.b16 %v560
  %v2335 = vunpack.c.h.b16 %v560
  %v2336 = vunpack.c.l.b16 %v561
  %v2337 = vunpack.c.h.b16 %v561
  %v2338 = vunpack.c.l.b16 %v562
  %v2339 = vunpack.c.h.b16 %v562
  %v2340 = vunpack.c.l.b16 %v563
  %v2341 = vunpack.c.h.b16 %v563
  %v2342 = vunpack.c.l.b16 %v564
  %v2343 = vunpack.c.h.b16 %v564
  %v2344 = vunpack.c.l.b16 %v565
  %v2345 = vunpack.c.h.b16 %v565
  %v2346 = vunpack.c.l.b16 %v566
  %v2347 = vunpack.c.h.b16 %v566
  %v2348 = vunpack.c.l.b16 %v567
  %v2349 = vunpack.c.h.b16 %v567
  %v2350 = vunpack.c.l.b16 %v568
  %v2351 = vunpack.c.h.b16 %v568
  %v2352 = vunpack.c.l.b16 %v569
  %v2353 = vunpack.c.h.b16 %v569
  %v2354 = vunpack.c.l.b16 %v570
  %v2355 = vunpack.c.h.b16 %v570
  %v2356 = vunpack.c.l.b16 %v571
  %v2357 = vunpack.c.h.b16 %v571
  %v2358 = vunpack.c.l.b16 %v572
  %v2359 = vunpack.c.h.b16 %v572
  %v2360 = vunpack.c.l.b16 %v573
  %v2361 = vunpack.c.h.b16 %v573
  %v2362 = vunpack.c.l.b16 %v574
  %v2363 = vunpack.c.h.b16 %v574
  %v2364 = vunpack.c.l.b16 %v575
  %v2365 = vunpack.c.h.b16 %v575
  %v2366 = vunpack.c.l.b16 %v576
  %v2367 = vunpack.c.h.b16 %v576
  %v2368 = vunpack.c.l.b16 %v577
  %v2369 = vunpack.c.h.b16 %v577
  %v2370 = vunpack.c.l.b16 %v578
  %v2371 = vunpack.c.h.b16 %v578
  %v2372 = vunpack.c.l.b16 %v579
  %v2373 = vunpack.c.h.b16 %v579
  %v2374 = vunpack.c.l.b16 %v580
  %v2375 = vunpack.c.h.b16 %v580
  %v2376 = vunpack.c.l.b16 %v581
  %v2377 = vunpack.c.h.b16 %v581
  %v2378 = vunpack.c.l.b16 %v582
  %v2379 = vunpack.c.h.b16 %v582
  %v2380 = vunpack.c.l.b16 %v583
  %v2381 = vunpack.c.h.b16 %v583
  %v2382 = vunpack.c.l.b16 %v584
  %v2383 = vunpack.c.h.b16 %v584
  %v2384 = vunpack.c.l.b16 %v585
  %v2385 = vunpack.c.h.b16 %v585
  %v2386 = vunpack.c.l.b16 %v586
  %v2387 = vunpack.c.h.b16 %v586
  %v2388 = vunpack.c.l.b16 %v587
  %v2389 = vunpack.c.h.b16 %v587
  %v2390 = vunpack.c.l.b16 %v588
  %v2391 = vunpack.c.h.b16 %v588
  %v2392 = vunpack.c.l.b16 %v589
  %v2393 = vunpack.c.h.b16 %v589
  %v2394 = vunpack.c.l.b16 %v590
  %v2395 = vunpack.c.h.b16 %v590
  %v2396 = vunpack.c.l.b16 %v591
  %v2397 = vunpack.c.h.b16 %v591
  %v2398 = vunpack.c.l.b16 %v592
  %v2399 = vunpack.c.h.b16 %v592
  %v2400 = vunpack.c.l.b16 %v593
  %v2401 = vunpack.c.h.b16 %v593
  %v2402 = vunpack.c.l.b16 %v594
  %v2403 = vunpack.c.h.b16 %v594
  %v2404 = vunpack.c.l.b16 %v595
  %v2405 = vunpack.c.h.b16 %v595
  %v2406 = vunpack.c.l.b16 %v596
  %v2407 = vunpack.c.h.b16 %v596
  %v2408 = vunpack.c.l.b16 %v597
  %v2409 = vunpack.c.h.b16 %v597
  %v2410 = vunpack.c.l.b16 %v598
  %v2411 = vunpack.c.h.b16 %v598
  %v2412 = vpack.c.b16 %v1264, %v1260
  %v2413 = vpack.c.b16 %v1265, %v1261
  %v2414 = vpack.c.b16 %v1266, %v1262
  %v2415 = vpack.c.b16 %v1267, %v1263
  %v2416 = vpack.c.b16 %v1272, %v1268
  %v2417 = vpack.c.b16 %v1273, %v1269
  %v2418 = vpack.c.b16 %v1274, %v1270
  %v2419 = vpack.c.b16 %v1275, %v1271
  %v2420 = vpack.c.b16 %v1280, %v1276
  %v2421 = vpack.c.b16 %v1281, %v1277
  %v2422 = vpack.c.b16 %v1282, %v1278
  %v2423 = vpack.c.b16 %v1283, %v1279
  %v2424 = vpack.c.b16 %v1288, %v1284
  %v2425 = vpack.c.b16 %v1289, %v1285
  %v2426 = vpack.c.b16 %v1290, %v1286
  %v2427 = vpack.c.b16 %v1291, %v1287
  %v2428 = vpack.c.b16 %v1296, %v1292
  %v2429 = vpack.c.b16 %v1297, %v1293
  %v2430 = vpack.c.b16 %v1298, %v1294
  %v2431 = vpack.c.b16 %v1299, %v1295
  %v2432 = vpack.c.b16 %v1304, %v1300
  %v2433 = vpack.c.b16 %v1305, %v1301
  %v2434 = vpack.c.b16 %v1306, %v1302
  %v2435 = vpack.c.b16 %v1307, %v1303
  %v2436 = vpack.c.b16 %v1312, %v1308
  %v2437 = vpack.c.b16 %v1313, %v1309
  %v2438 = vpack.c.b16 %v1314, %v1310
  %v2439 = vpack.c.b16 %v1315, %v1311
  %v2440 = vpack.c.b16 %v1320, %v1316
  %v2441 = vpack.c.b16 %v1321, %v1317
  %v2442 = vpack.c.b16 %v1322, %v1318
  %v2443 = vpack.c.b16 %v1323, %v1319
  %v2444 = vpack.c.b16 %v1328, %v1324
  %v2445 = vpack.c.b16 %v1329, %v1325
  %v2446 = vpack.c.b16 %v1330, %v1326
  %v2447 = vpack.c.b16 %v1331, %v1327
  %v2448 = vpack.c.b16 %v1336, %v1332
  %v2449 = vpack.c.b16 %v1337, %v1333
  %v2450 = vpack.c.b16 %v1338, %v1334
  %v2451 = vpack.c.b16 %v1339, %v1335
  %v2452 = vpack.c.b16 %v1344, %v1340
  %v2453 = vpack.c.b16 %v1345, %v1341
  %v2454 = vpack.c.b16 %v1346, %v1342
  %v2455 = vpack.c.b16 %v1347, %v1343
  %v2456 = vpack.c.b16 %v1352, %v1348
  %v2457 = vpack.c.b16 %v1353, %v1349
  %v2458 = vpack.c.b16 %v1354, %v1350
  %v2459 = vpack.c.b16 %v1355, %v1351
  %v2460 = vpack.c.b16 %v1360, %v1356
  %v2461 = vpack.c.b16 %v1361, %v1357
  %v2462 = vpack.c.b16 %v1362, %v1358
  %v2463 = vpack.c.b16 %v1363, %v1359
  %v2464 = vpack.c.b16 %v1368, %v1364
  %v2465 = vpack.c.b16 %v1369, %v1365
  %v2466 = vpack.c.b16 %v1370, %v1366
  %v2467 = vpack.c.b16 %v1371, %v1367
  %v2468 = vpack.c.b16 %v1376, %v1372
  %v2469 = vpack.c.b16 %v1377, %v1373
  %v2470 = vpack.c.b16 %v1378, %v1374
  %v2471 = vpack.c.b16 %v1379, %v1375
  %v2472 = vpack.c.b16 %v1384, %v1380
  %v2473 = vpack.c.b16 %v1385, %v1381
  %v2474 = vpack.c.b16 %v1386, %v1382
  %v2475 = vpack.c.b16 %v1387, %v1383
  %v2476 = vpack.c.b16 %v1392, %v1388
  %v2477 = vpack.c.b16 %v1393, %v1389
  %v2478 = vpack.c.b16 %v1394, %v1390
  %v2479 = vpack.c.b16 %v1395, %v1391
  %v2480 = vpack.c.b16 %v1400, %v1396
  %v2481 = vpack.c.b16 %v1401, %v1397
  %v2482 = vpack.c.b16 %v1402, %v1398
  %v2483 = vpack.c.b16 %v1403, %v1399
  %v2484 = vpack.c.b16 %v1408, %v1404
  %v2485 = vpack.c.b16 %v1409, %v1405
  %v2486 = vpack.c.b16 %v1410, %v1406
  %v2487 = vpack.c.b16 %v1411, %v1407
  %v2488 = vpack.c.b16 %v1416, %v1412
  %v2489 = vpack.c.b16 %v1417, %v1413
  %v2490 = vpack.c.b16 %v1418, %v1414
  %v2491 = vpack.c.b16 %v1419, %v1415
  %v2492 = vpack.c.b16 %v1424, %v1420
  %v2493 = vpack.c.b16 %v1425, %v1421
  %v2494 = vpack.c.b16 %v1426, %v1422
  %v2495 = vpack.c.b16 %v1427, %v1423
  %v2496 = vpack.c.b16 %v1432, %v1428
  %v2497 = vpack.c.b16 %v1433, %v1429
  %v2498 = vpack.c.b16 %v1434, %v1430
  %v2499 = vpack.c.b16 %v1435, %v1431
  %v2500 = vpack.c.b16 %v1440, %v1436
  %v2501 = vpack.c.b16 %v1441, %v1437
  %v2502 = vpack.c.b16 %v1442, %v1438
  %v2503 = vpack.c.b16 %v1443, %v1439
  %v2504 = vpack.c.b16 %v1448, %v1444
  %v2505 = vpack.c.b16 %v1449, %v1445
  %v2506 = vpack.c.b16 %v1450, %v1446
  %v2507 = vpack.c.b16 %v1451, %v1447
  %v2508 = vpack.c.b16 %v1456, %v1452
  %v2509 = vpack.c.b16 %v1457, %v1453
  %v2510 = vpack.c.b16 %v1458, %v1454
  %v2511 = vpack.c.b16 %v1459, %v1455
  %v2512 = vpack.c.b16 %v1464, %v1460
  %v2513 = vpack.c.b16 %v1465, %v1461
  %v2514 = vpack.c.b16 %v1466, %v1462
  %v2515 = vpack.c.b16 %v1467, %v1463
  %v2516 = vpack.c.b16 %v1472, %v1468
  %v2517 = vpack.c.b16 %v1473, %v1469
  %v2518 = vpack.c.b16 %v1474, %v1470
  %v2519 = vpack.c.b16 %v1475, %v1471
  %v2520 = vpack.c.b16 %v1480, %v1476
  %v2521 = vpack.c.b16 %v1481, %v1477
  %v2522 = vpack.c.b16 %v1482, %v1478
  %v2523 = vpack.c.b16 %v1483, %v1479
  %v2524 = vpack.c.b16 %v1488, %v1484
  %v2525 = vpack.c.b16 %v1489, %v1485
  %v2526 = vpack.c.b16 %v1490, %v1486
  %v2527 = vpack.c.b16 %v1491, %v1487
  %v2528 = vpack.c.b16 %v1496, %v1492
  %v2529 = vpack.c.b16 %v1497, %v1493
  %v2530 = vpack.c.b16 %v1498, %v1494
  %v2531 = vpack.c.b16 %v1499, %v1495
  %v2532 = vpack.c.b16 %v1504, %v1500
  %v2533 = vpack.c.b16 %v1505, %v1501
  %v2534 = vpack.c.b16 %v1506, %v1502
  %v2535 = vpack.c.b16 %v1507, %v1503
  %v2536 = vpack.c.b16 %v1512, %v1508
  %v2537 = vpack.c.b16 %v1513, %v1509
  %v2538 = vpack.c.b16 %v1514, %v1510
  %v2539 = vpack.c.b16 %v1515, %v1511
  %v2540 = vpack.c.b16 %v1520, %v1516
  %v2541 = vpack.c.b16 %v1521, %v1517
  %v2542 = vpack.c.b16 %v1522, %v1518
  %v2543 = vpack.c.b16 %v1523, %v1519
  %v2544 = vpack.c.b16 %v1528, %v1524
  %v2545 = vpack.c.b16 %v1529, %v1525
  %v2546 = vpack.c.b16 %v1530, %v1526
  %v2547 = vpack.c.b16 %v1531, %v1527
  %v2548 = vpack.c.b16 %v1536, %v1532
  %v2549 = vpack.c.b16 %v1537, %v1533
  %v2550 = vpack.c.b16 %v1538, %v1534
  %v2551 = vpack.c.b16 %v1539, %v1535
  %v2552 = vpack.c.b16 %v1544, %v1540
  %v2553 = vpack.c.b16 %v1545, %v1541
  %v2554 = vpack.c.b16 %v1546, %v1542
  %v2555 = vpack.c.b16 %v1547, %v1543
  %v2556 = vpack.c.b16 %v1552, %v1548
  %v2557 = vpack.c.b16 %v1553, %v1549
  %v2558 = vpack.c.b16 %v1554, %v1550
  %v2559 = vpack.c.b16 %v1555, %v1551
  %v2560 = vpack.c.b16 %v1560, %v1556
  %v2561 = vpack.c.b16 %v1561, %v1557
  %v2562 = vpack.c.b16 %v1562, %v1558
  %v2563 = vpack.c.b16 %v1563, %v1559
  %v2564 = vpack.c.b16 %v1568, %v1564
  %v2565 = vpack.c.b16 %v1569, %v1565
  %v2566 = vpack.c.b16 %v1570, %v1566
  %v2567 = vpack.c.b16 %v1571, %v1567
  %v2568 = vpack.c.b16 %v1576, %v1572
  %v2569 = vpack.c.b16 %v1577, %v1573
  %v2570 = vpack.c.b16 %v1578, %v1574
  %v2571 = vpack.c.b16 %v1579, %v1575
  %v2572 = vpack.c.b16 %v1584, %v1580
  %v2573 = vpack.c.b16 %v1585, %v1581
  %v2574 = vpack.c.b16 %v1586, %v1582
  %v2575 = vpack.c.b16 %v1587, %v1583
  %v2576 = vpack.c.b16 %v1592, %v1588
  %v2577 = vpack.c.b16 %v1593, %v1589
  %v2578 = vpack.c.b16 %v1594, %v1590
  %v2579 = vpack.c.b16 %v1595, %v1591
  %v2580 = vpack.c.b16 %v1600, %v1596
  %v2581 = vpack.c.b16 %v1601, %v1597
  %v2582 = vpack.c.b16 %v1602, %v1598
  %v2583 = vpack.c.b16 %v1603, %v1599
  %v2584 = vpack.c.b16 %v1608, %v1604
  %v2585 = vpack.c.b16 %v1609, %v1605
  %v2586 = vpack.c.b16 %v1610, %v1606
  %v2587 = vpack.c.b16 %v1611, %v1607
  %v2588 = vpack.c.b16 %v1616, %v1612
  %v2589 = vpack.c.b16 %v1617, %v1613
  %v2590 = vpack.c.b16 %v1618, %v1614
  %v2591 = vpack.c.b16 %v1619, %v1615
  %v2592 = vpack.c.b16 %v1624, %v1620
  %v2593 = vpack.c.b16 %v1625, %v1621
  %v2594 = vpack.c.b16 %v1626, %v1622
  %v2595 = vpack.c.b16 %v1627, %v1623
  %v2596 = vpack.c.b16 %v1632, %v1628
  %v2597 = vpack.c.b16 %v1633, %v1629
  %v2598 = vpack.c.b16 %v1634, %v1630
  %v2599 = vpack.c.b16 %v1635, %v1631
  %v2600 = vpack.c.b16 %v1640, %v1636
  %v2601 = vpack.c.b16 %v1641, %v1637
  %v2602 = vpack.c.b16 %v1642, %v1638
  %v2603 = vpack.c.b16 %v1643, %v1639
  %v2604 = vpack.c.b16 %v1648, %v1644
  %v2605 = vpack.c.b16 %v1649, %v1645
  %v2606 = vpack.c.b16 %v1650, %v1646
  %v2607 = vpack.c.b16 %v1651, %v1647
  %v2608 = vpack.c.b16 %v1656, %v1652
  %v2609 = vpack.c.b16 %v1657, %v1653
  %v2610 = vpack.c.b16 %v1658, %v1654
  %v2611 = vpack.c.b16 %v1659, %v1655
  %v2612 = vpack.c.b16 %v1664, %v1660
  %v2613 = vpack.c.b16 %v1665, %v1661
  %v2614 = vpack.c.b16 %v1666, %v1662
  %v2615 = vpack.c.b16 %v1667, %v1663
  %v2616 = vpack.c.b16 %v1672, %v1668
  %v2617 = vpack.c.b16 %v1673, %v1669
  %v2618 = vpack.c.b16 %v1674, %v1670
  %v2619 = vpack.c.b16 %v1675, %v1671
  %v2620 = vpack.c.b16 %v1680, %v1676
  %v2621 = vpack.c.b16 %v1681, %v1677
  %v2622 = vpack.c.b16 %v1682, %v1678
  %v2623 = vpack.c.b16 %v1683, %v1679
  %v2624 = vpack.c.b16 %v1688, %v1684
  %v2625 = vpack.c.b16 %v1689, %v1685
  %v2626 = vpack.c.b16 %v1690, %v1686
  %v2627 = vpack.c.b16 %v1691, %v1687
  %v2628 = vpack.c.b16 %v1696, %v1692
  %v2629 = vpack.c.b16 %v1697, %v1693
  %v2630 = vpack.c.b16 %v1698, %v1694
  %v2631 = vpack.c.b16 %v1699, %v1695
  %v2632 = vpack.c.b16 %v1704, %v1700
  %v2633 = vpack.c.b16 %v1705, %v1701
  %v2634 = vpack.c.b16 %v1706, %v1702
  %v2635 = vpack.c.b16 %v1707, %v1703
  %v2636 = vpack.c.b16 %v1712, %v1708
  %v2637 = vpack.c.b16 %v1713, %v1709
  %v2638 = vpack.c.b16 %v1714, %v1710
  %v2639 = vpack.c.b16 %v1715, %v1711
  %v2640 = vpack.c.b16 %v1720, %v1716
  %v2641 = vpack.c.b16 %v1721, %v1717
  %v2642 = vpack.c.b16 %v1722, %v1718
  %v2643 = vpack.c.b16 %v1723, %v1719
  %v2644 = vpack.c.b16 %v1728, %v1724
  %v2645 = vpack.c.b16 %v1729, %v1725
  %v2646 = vpack.c.b16 %v1730, %v1726
  %v2647 = vpack.c.b16 %v1731, %v1727
  %v2648 = vpack.c.b16 %v1736, %v1732
  %v2649 = vpack.c.b16 %v1737, %v1733
  %v2650 = vpack.c.b16 %v1738, %v1734
  %v2651 = vpack.c.b16 %v1739, %v1735
  %v2652 = vpack.c.b16 %v1744, %v1740
  %v2653 = vpack.c.b16 %v1745, %v1741
  %v2654 = vpack.c.b16 %v1746, %v1742
  %v2655 = vpack.c.b16 %v1747, %v1743
  %v2656 = vpack.c.b16 %v1752, %v1748
  %v2657 = vpack.c.b16 %v1753, %v1749
  %v2658 = vpack.c.b16 %v1754, %v1750
  %v2659 = vpack.c.b16 %v1755, %v1751
  %v2660 = vpack.c.b16 %v1760, %v1756
  %v2661 = vpack.c.b16 %v1761, %v1757
  %v2662 = vpack.c.b16 %v1762, %v1758
  %v2663 = vpack.c.b16 %v1763, %v1759
  %v2664 = vpack.c.b16 %v1768, %v1764
  %v2665 = vpack.c.b16 %v1769, %v1765
  %v2666 = vpack.c.b16 %v1770, %v1766
  %v2667 = vpack.c.b16 %v1771, %v1767
  %v2668 = vpack.c.b16 %v1776, %v1772
  %v2669 = vpack.c.b16 %v1777, %v1773
  %v2670 = vpack.c.b16 %v1778, %v1774
  %v2671 = vpack.c.b16 %v1779, %v1775
  %v2672 = vpack.c.b16 %v1784, %v1780
  %v2673 = vpack.c.b16 %v1785, %v1781
  %v2674 = vpack.c.b16 %v1786, %v1782
  %v2675 = vpack.c.b16 %v1787, %v1783
  %v2676 = vpack.c.b16 %v1792, %v1788
  %v2677 = vpack.c.b16 %v1793, %v1789
  %v2678 = vpack.c.b16 %v1794, %v1790
  %v2679 = vpack.c.b16 %v1795, %v1791
  %v2680 = vpack.c.b16 %v1800, %v1796
  %v2681 = vpack.c.b16 %v1801, %v1797
  %v2682 = vpack.c.b16 %v1802, %v1798
  %v2683 = vpack.c.b16 %v1803, %v1799
  %v2684 = vpack.c.b16 %v1808, %v1804
  %v2685 = vpack.c.b16 %v1809, %v1805
  %v2686 = vpack.c.b16 %v1810, %v1806
  %v2687 = vpack.c.b16 %v1811, %v1807
  %v2688 = vpack.c.b16 %v1816, %v1812
  %v2689 = vpack.c.b16 %v1817, %v1813
  %v2690 = vpack.c.b16 %v1818, %v1814
  %v2691 = vpack.c.b16 %v1819, %v1815
  %v2692 = vpack.c.b16 %v1824, %v1820
  %v2693 = vpack.c.b16 %v1825, %v1821
  %v2694 = vpack.c.b16 %v1826, %v1822
  %v2695 = vpack.c.b16 %v1827, %v1823
  %v2696 = vpack.c.b16 %v1832, %v1828
  %v2697 = vpack.c.b16 %v1833, %v1829
  %v2698 = vpack.c.b16 %v1834, %v1830
  %v2699 = vpack.c.b16 %v1835, %v1831
  %v2700 = vpack.c.b16 %v1840, %v1836
  %v2701 = vpack.c.b16 %v1841, %v1837
  %v2702 = vpack.c.b16 %v1842, %v1838
  %v2703 = vpack.c.b16 %v1843, %v1839
  %v2704 = vpack.c.b16 %v1848, %v1844
  %v2705 = vpack.c.b16 %v1849, %v1845
  %v2706 = vpack.c.b16 %v1850, %v1846
  %v2707 = vpack.c.b16 %v1851, %v1847
  %v2708 = vpack.c.b16 %v1856, %v1852
  %v2709 = vpack.c.b16 %v1857, %v1853
  %v2710 = vpack.c.b16 %v1858, %v1854
  %v2711 = vpack.c.b16 %v1859, %v1855
  %v2712 = vpack.c.b16 %v1864, %v1860
  %v2713 = vpack.c.b16 %v1865, %v1861
  %v2714 = vpack.c.b16 %v1866, %v1862
  %v2715 = vpack.c.b16 %v1867, %v1863
  %v2716 = vpack.c.b16 %v1872, %v1868
  %v2717 = vpack.c.b16 %v1873, %v1869
  %v2718 = vpack.c.b16 %v1874, %v1870
  %v2719 = vpack.c.b16 %v1875, %v1871
  %v2720 = vpack.c.b16 %v1880, %v1876
  %v2721 = vpack.c.b16 %v1881, %v1877
  %v2722 = vpack.c.b16 %v1882, %v1878
  %v2723 = vpack.c.b16 %v1883, %v1879
  %v2724 = vpack.c.b16 %v1888, %v1884
  %v2725 = vpack.c.b16 %v1889, %v1885
  %v2726 = vpack.c.b16 %v1890, %v1886
  %v2727 = vpack.c.b16 %v1891, %v1887
  %v2728 = vpack.c.b16 %v1896, %v1892
  %v2729 = vpack.c.b16 %v1897, %v1893
  %v2730 = vpack.c.b16 %v1898, %v1894
  %v2731 = vpack.c.b16 %v1899, %v1895
  %v2732 = vpack.c.b16 %v1904, %v1900
  %v2733 = vpack.c.b16 %v1905, %v1901
  %v2734 = vpack.c.b16 %v1906, %v1902
  %v2735 = vpack.c.b16 %v1907, %v1903
  %v2736 = vpack.c.b16 %v1912, %v1908
  %v2737 = vpack.c.b16 %v1913, %v1909
  %v2738 = vpack.c.b16 %v1914, %v1910
  %v2739 = vpack.c.b16 %v1915, %v1911
  %v2740 = vpack.c.b16 %v1920, %v1916
  %v2741 = vpack.c.b16 %v1921, %v1917
  %v2742 = vpack.c.b16 %v1922, %v1918
  %v2743 = vpack.c.b16 %v1923, %v1919
  %v2744 = vpack.c.b16 %v1928, %v1924
  %v2745 = vpack.c.b16 %v1929, %v1925
  %v2746 = vpack.c.b16 %v1930, %v1926
  %v2747 = vpack.c.b16 %v1931, %v1927
  %v2748 = vpack.c.b16 %v1936, %v1932
  %v2749 = vpack.c.b16 %v1937, %v1933
  %v2750 = vpack.c.b16 %v1938, %v1934
  %v2751 = vpack.c.b16 %v1939, %v1935
  %v2752 = vpack.c.b16 %v1944, %v1940
  %v2753 = vpack.c.b16 %v1945, %v1941
  %v2754 = vpack.c.b16 %v1946, %v1942
  %v2755 = vpack.c.b16 %v1947, %v1943
  %v2756 = vpack.c.b16 %v1952, %v1948
  %v2757 = vpack.c.b16 %v1953, %v1949
  %v2758 = vpack.c.b16 %v1954, %v1950
  %v2759 = vpack.c.b16 %v1955, %v1951
  %v2760 = vpack.c.b16 %v1960, %v1956
  %v2761 = vpack.c.b16 %v1961, %v1957
  %v2762 = vpack.c.b16 %v1962, %v1958
  %v2763 = vpack.c.b16 %v1963, %v1959
  %v2764 = vpack.c.b16 %v1968, %v1964
  %v2765 = vpack.c.b16 %v1969, %v1965
  %v2766 = vpack.c.b16 %v1970, %v1966
  %v2767 = vpack.c.b16 %v1971, %v1967
  %v2768 = vpack.c.b16 %v1976, %v1972
  %v2769 = vpack.c.b16 %v1977, %v1973
  %v2770 = vpack.c.b16 %v1978, %v1974
  %v2771 = vpack.c.b16 %v1979, %v1975
  %v2772 = vpack.c.b16 %v1984, %v1980
  %v2773 = vpack.c.b16 %v1985, %v1981
  %v2774 = vpack.c.b16 %v1986, %v1982
  %v2775 = vpack.c.b16 %v1987, %v1983
  %v2776 = vpack.c.b16 %v1992, %v1988
  %v2777 = vpack.c.b16 %v1993, %v1989
  %v2778 = vpack.c.b16 %v1994, %v1990
  %v2779 = vpack.c.b16 %v1995, %v1991
  %v2780 = vpack.c.b16 %v2000, %v1996
  %v2781 = vpack.c.b16 %v2001, %v1997
  %v2782 = vpack.c.b16 %v2002, %v1998
  %v2783 = vpack.c.b16 %v2003, %v1999
  %v2784 = vpack.c.b16 %v2008, %v2004
  %v2785 = vpack.c.b16 %v2009, %v2005
  %v2786 = vpack.c.b16 %v2010, %v2006
  %v2787 = vpack.c.b16 %v2011, %v2007
  %v2788 = vpack.c.b16 %v2016, %v2012
  %v2789 = vpack.c.b16 %v2017, %v2013
  %v2790 = vpack.c.b16 %v2018, %v2014
  %v2791 = vpack.c.b16 %v2019, %v2015
  %v2792 = vpack.c.b16 %v2024, %v2020
  %v2793 = vpack.c.b16 %v2025, %v2021
  %v2794 = vpack.c.b16 %v2026, %v2022
  %v2795 = vpack.c.b16 %v2027, %v2023
  %v2796 = vpack.c.b16 %v2032, %v2028
  %v2797 = vpack.c.b16 %v2033, %v2029
  %v2798 = vpack.c.b16 %v2034, %v2030
  %v2799 = vpack.c.b16 %v2035, %v2031
  %v2800 = vpack.c.b16 %v2040, %v2036
  %v2801 = vpack.c.b16 %v2041, %v2037
  %v2802 = vpack.c.b16 %v2042, %v2038
  %v2803 = vpack.c.b16 %v2043, %v2039
  %v2804 = vpack.c.b16 %v2048, %v2044
  %v2805 = vpack.c.b16 %v2049, %v2045
  %v2806 = vpack.c.b16 %v2050, %v2046
  %v2807 = vpack.c.b16 %v2051, %v2047
  %v2808 = vpack.c.b16 %v2056, %v2052
  %v2809 = vpack.c.b16 %v2057, %v2053
  %v2810 = vpack.c.b16 %v2058, %v2054
  %v2811 = vpack.c.b16 %v2059, %v2055
  %v2812 = vpack.c.b16 %v2064, %v2060
  %v2813 = vpack.c.b16 %v2065, %v2061
  %v2814 = vpack.c.b16 %v2066, %v2062
  %v2815 = vpack.c.b16 %v2067, %v2063
  %v2816 = vpack.c.b16 %v2072, %v2068
  %v2817 = vpack.c.b16 %v2073, %v2069
  %v2818 = vpack.c.b16 %v2074, %v2070
  %v2819 = vpack.c.b16 %v2075, %v2071
  %v2820 = vpack.c.b16 %v2080, %v2076
  %v2821 = vpack.c.b16 %v2081, %v2077
  %v2822 = vpack.c.b16 %v2082, %v2078
  %v2823 = vpack.c.b16 %v2083, %v2079
  %v2824 = vpack.c.b16 %v2088, %v2084
  %v2825 = vpack.c.b16 %v2089, %v2085
  %v2826 = vpack.c.b16 %v2090, %v2086
  %v2827 = vpack.c.b16 %v2091, %v2087
  %v2828 = vpack.c.b16 %v2096, %v2092
  %v2829 = vpack.c.b16 %v2097, %v2093
  %v2830 = vpack.c.b16 %v2098, %v2094
  %v2831 = vpack.c.b16 %v2099, %v2095
  %v2832 = vpack.c.b16 %v2104, %v2100
  %v2833 = vpack.c.b16 %v2105, %v2101
  %v2834 = vpack.c.b16 %v2106, %v2102
  %v2835 = vpack.c.b16 %v2107, %v2103
  %v2836 = vpack.c.b16 %v2112, %v2108
  %v2837 = vpack.c.b16 %v2113, %v2109
  %v2838 = vpack.c.b16 %v2114, %v2110
  %v2839 = vpack.c.b16 %v2115, %v2111
  %v2840 = vpack.c.b16 %v2120, %v2116
  %v2841 = vpack.c.b16 %v2121, %v2117
  %v2842 = vpack.c.b16 %v2122, %v2118
  %v2843 = vpack.c.b16 %v2123, %v2119
  %v2844 = vpack.c.b16 %v2128, %v2124
  %v2845 = vpack.c.b16 %v2129, %v2125
  %v2846 = vpack.c.b16 %v2130, %v2126
  %v2847 = vpack.c.b16 %v2131, %v2127
  %v2848 = vpack.c.b16 %v2136, %v2132
  %v2849 = vpack.c.b16 %v2137, %v2133
  %v2850 = vpack.c.b16 %v2138, %v2134
  %v2851 = vpack.c.b16 %v2139, %v2135
  %v2852 = vpack.c.b16 %v2144, %v2140
  %v2853 = vpack.c.b16 %v2145, %v2141
  %v2854 = vpack.c.b16 %v2146, %v2142
  %v2855 = vpack.c.b16 %v2147, %v2143
  %v2856 = vpack.c.b16 %v2152, %v2148
  %v2857 = vpack.c.b16 %v2153, %v2149
  %v2858 = vpack.c.b16 %v2154, %v2150
  %v2859 = vpack.c.b16 %v2155, %v2151
  %v2860 = vpack.c.b16 %v2160, %v2156
  %v2861 = vpack.c.b16 %v2161, %v2157
  %v2862 = vpack.c.b16 %v2162, %v2158
  %v2863 = vpack.c.b16 %v2163, %v2159
  %v2864 = vpack.c.b16 %v2168, %v2164
  %v2865 = vpack.c.b16 %v2169, %v2165
  %v2866 = vpack.c.b16 %v2170, %v2166
  %v2867 = vpack.c.b16 %v2171, %v2167
  %v2868 = vpack.c.b16 %v2176, %v2172
  %v2869 = vpack.c.b16 %v2177, %v2173
  %v2870 = vpack.c.b16 %v2178, %v2174
  %v2871 = vpack.c.b16 %v2179, %v2175
  %v2872 = vpack.c.b16 %v2184, %v2180
  %v2873 = vpack.c.b16 %v2185, %v2181
  %v2874 = vpack.c.b16 %v2186, %v2182
  %v2875 = vpack.c.b16 %v2187, %v2183
  %v2876 = vpack.c.b16 %v2192, %v2188
  %v2877 = vpack.c.b16 %v2193, %v2189
  %v2878 = vpack.c.b16 %v2194, %v2190
  %v2879 = vpack.c.b16 %v2195, %v2191
  %v2880 = vpack.c.b16 %v2200, %v2196
  %v2881 = vpack.c.b16 %v2201, %v2197
  %v2882 = vpack.c.b16 %v2202, %v2198
  %v2883 = vpack.c.b16 %v2203, %v2199
  %v2884 = vpack.c.b16 %v2208, %v2204
  %v2885 = vpack.c.b16 %v2209, %v2205
  %v2886 = vpack.c.b16 %v2210, %v2206
  %v2887 = vpack.c.b16 %v2211, %v2207
  %v2888 = vpack.c.b16 %v2216, %v2212
  %v2889 = vpack.c.b16 %v2217, %v2213
  %v2890 = vpack.c.b16 %v2218, %v2214
  %v2891 = vpack.c.b16 %v2219, %v2215
  %v2892 = vpack.c.b16 %v2224, %v2220
  %v2893 = vpack.c.b16 %v2225, %v2221
  %v2894 = vpack.c.b16 %v2226, %v2222
  %v2895 = vpack.c.b16 %v2227, %v2223
  %v2896 = vpack.c.b16 %v2232, %v2228
  %v2897 = vpack.c.b16 %v2233, %v2229
  %v2898 = vpack.c.b16 %v2234, %v2230
  %v2899 = vpack.c.b16 %v2235, %v2231
  %v2900 = vpack.c.b16 %v2240, %v2236
  %v2901 = vpack.c.b16 %v2241, %v2237
  %v2902 = vpack.c.b16 %v2242, %v2238
  %v2903 = vpack.c.b16 %v2243, %v2239
  %v2904 = vpack.c.b16 %v2248, %v2244
  %v2905 = vpack.c.b16 %v2249, %v2245
  %v2906 = vpack.c.b16 %v2250, %v2246
  %v2907 = vpack.c.b16 %v2251, %v2247
  %v2908 = vpack.c.b16 %v2256, %v2252
  %v2909 = vpack.c.b16 %v2257, %v2253
  %v2910 = vpack.c.b16 %v2258, %v2254
  %v2911 = vpack.c.b16 %v2259, %v2255
  %v2912 = vpack.c.b16 %v2264, %v2260
  %v2913 = vpack.c.b16 %v2265, %v2261
  %v2914 = vpack.c.b16 %v2266, %v2262
  %v2915 = vpack.c.b16 %v2267, %v2263
  %v2916 = vpack.c.b16 %v2272, %v2268
  %v2917 = vpack.c.b16 %v2273, %v2269
  %v2918 = vpack.c.b16 %v2274, %v2270
  %v2919 = vpack.c.b16 %v2275, %v2271
  %v2920 = vpack.c.b16 %v2280, %v2276
  %v2921 = vpack.c.b16 %v2281, %v2277
  %v2922 = vpack.c.b16 %v2282, %v2278
  %v2923 = vpack.c.b16 %v2283, %v2279
  %v2924 = vpack.c.b16 %v2288, %v2284
  %v2925 = vpack.c.b16 %v2289, %v2285
  %v2926 = vpack.c.b16 %v2290, %v2286
  %v2927 = vpack.c.b16 %v2291, %v2287
  %v2928 = vpack.c.b16 %v2296, %v2292
  %v2929 = vpack.c.b16 %v2297, %v2293
  %v2930 = vpack.c.b16 %v2298, %v2294
  %v2931 = vpack.c.b16 %v2299, %v2295
  %v2932 = vpack.c.b16 %v2304, %v2300
  %v2933 = vpack.c.b16 %v2305, %v2301
  %v2934 = vpack.c.b16 %v2306, %v2302
  %v2935 = vpack.c.b16 %v2307, %v2303
  %v2936 = vpack.c.b16 %v2312, %v2308
  %v2937 = vpack.c.b16 %v2313, %v2309
  %v2938 = vpack.c.b16 %v2314, %v2310
  %v2939 = vpack.c.b16 %v2315, %v2311
  %v2940 = vpack.c.b16 %v2320, %v2316
  %v2941 = vpack.c.b16 %v2321, %v2317
  %v2942 = vpack.c.b16 %v2322, %v2318
  %v2943 = vpack.c.b16 %v2323, %v2319
  %v2944 = vpack.c.b16 %v2328, %v2324
  %v2945 = vpack.c.b16 %v2329, %v2325
  %v2946 = vpack.c.b16 %v2330, %v2326
  %v2947 = vpack.c.b16 %v2331, %v2327
  %v2948 = vpack.c.b16 %v2336, %v2332
  %v2949 = vpack.c.b16 %v2337, %v2333
  %v2950 = vpack.c.b16 %v2338, %v2334
  %v2951 = vpack.c.b16 %v2339, %v2335
  %v2952 = vpack.c.b16 %v2344, %v2340
  %v2953 = vpack.c.b16 %v2345, %v2341
  %v2954 = vpack.c.b16 %v2346, %v2342
  %v2955 = vpack.c.b16 %v2347, %v2343
  %v2956 = vpack.c.b16 %v2352, %v2348
  %v2957 = vpack.c.b16 %v2353, %v2349
  %v2958 = vpack.c.b16 %v2354, %v2350
  %v2959 = vpack.c.b16 %v2355, %v2351
  %v2960 = vpack.c.b16 %v2360, %v2356
  %v2961 = vpack.c.b16 %v2361, %v2357
  %v2962 = vpack.c.b16 %v2362, %v2358
  %v2963 = vpack.c.b16 %v2363, %v2359
  %v2964 = vpack.c.b16 %v2368, %v2364
  %v2965 = vpack.c.b16 %v2369, %v2365
  %v2966 = vpack.c.b16 %v2370, %v2366
  %v2967 = vpack.c.b16 %v2371, %v2367
  %v2968 = vpack.c.b16 %v2376, %v2372
  %v2969 = vpack.c.b16 %v2377, %v2373
  %v2970 = vpack.c.b16 %v2378, %v2374
  %v2971 = vpack.c.b16 %v2379, %v2375
  %v2972 = vpack.c.b16 %v2384, %v2380
  %v2973 = vpack.c.b16 %v2385, %v2381
  %v2974 = vpack.c.b16 %v2386, %v2382
  %v2975 = vpack.c.b16 %v2387, %v2383
  %v2976 = vpack.c.b16 %v2392, %v2388
  %v2977 = vpack.c.b16 %v2393, %v2389
  %v2978 = vpack.c.b16 %v2394, %v2390
  %v2979 = vpack.c.b16 %v2395, %v2391
  %v2980 = vpack.c.b16 %v2400, %v2396
  %v2981 = vpack.c.b16 %v2401, %v2397
  %v2982 = vpack.c.b16 %v2402, %v2398
  %v2983 = vpack.c.b16 %v2403, %v2399
  %v2984 = vpack.c.b16 %v2408, %v2404
  %v2985 = vpack.c.b16 %v2409, %v2405
  %v2986 = vpack.c.b16 %v2410, %v2406
  %v2987 = vpack.c.b16 %v2411, %v2407
  %3564 = vmatprep.subr.bf16.mxu0 %v2413
  %3565 = vmatpush1.bf16.msra.mxu0 %v2412
  %3566 = vmatprep.subr.bf16.mxu0 %v2417
  %3567 = vmatpush1.bf16.msra.mxu0 %v2416
  %3568 = vmatprep.subr.bf16.mxu0 %v2421
  %3569 = vmatpush1.bf16.msra.mxu0 %v2420
  %3570 = vmatprep.subr.bf16.mxu0 %v2425
  %3571 = vmatpush1.bf16.msra.mxu0 %v2424
  %3572 = vmatprep.subr.bf16.mxu0 %v2429
  %3573 = vmatpush1.bf16.msra.mxu0 %v2428
  %3574 = vmatprep.subr.bf16.mxu0 %v2433
  %3575 = vmatpush1.bf16.msra.mxu0 %v2432
  %3576 = vmatprep.subr.bf16.mxu0 %v2437
  %3577 = vmatpush1.bf16.msra.mxu0 %v2436
  %3578 = vmatprep.subr.bf16.mxu0 %v2441
  %3579 = vmatpush1.bf16.msra.mxu0 %v2440
  %3580 = vmatprep.subr.bf16.mxu0 %v2445
  %3581 = vmatpush1.bf16.msra.mxu0 %v2444
  %3582 = vmatprep.subr.bf16.mxu0 %v2449
  %3583 = vmatpush1.bf16.msra.mxu0 %v2448
  %3584 = vmatprep.subr.bf16.mxu0 %v2453
  %3585 = vmatpush1.bf16.msra.mxu0 %v2452
  %3586 = vmatprep.subr.bf16.mxu0 %v2457
  %3587 = vmatpush1.bf16.msra.mxu0 %v2456
  %3588 = vmatprep.subr.bf16.mxu0 %v2461
  %3589 = vmatpush1.bf16.msra.mxu0 %v2460
  %3590 = vmatprep.subr.bf16.mxu0 %v2465
  %3591 = vmatpush1.bf16.msra.mxu0 %v2464
  %3592 = vmatprep.subr.bf16.mxu0 %v2469
  %3593 = vmatpush1.bf16.msra.mxu0 %v2468
  %3594 = vmatprep.subr.bf16.mxu0 %v2473
  %3595 = vmatpush1.bf16.msra.mxu0 %v2472
  %3596 = vmatprep.mubr.bf16.mxu0 %v649
  %3597 = vmatmul.mubr.bf16.gmra.mrb[0].mxu0 %v648
  %v3598 = vpop.f32.mrb[0].mxu0
  %v3599 = vadd.f32 %v604, %v3598
  %v3600 = vpop.f32.mrb[0].mxu0
  %v3601 = vadd.f32 %v608, %v3600
  %v3602 = vpop.f32.mrb[0].mxu0
  %v3603 = vpop.f32.mrb[0].mxu0
  %3604 = vdwg.mxu0
  %3605 = vmatprep.subr.bf16.mxu0 %v2477
  %3606 = vmatpush1.bf16.msra.mxu0 %v2476
  %3607 = vmatprep.subr.bf16.mxu0 %v2481
  %3608 = vmatpush1.bf16.msra.mxu0 %v2480
  %3609 = vmatprep.subr.bf16.mxu0 %v2485
  %3610 = vmatpush1.bf16.msra.mxu0 %v2484
  %3611 = vmatprep.subr.bf16.mxu0 %v2489
  %3612 = vmatpush1.bf16.msra.mxu0 %v2488
  %3613 = vmatprep.subr.bf16.mxu0 %v2493
  %3614 = vmatpush1.bf16.msra.mxu0 %v2492
  %3615 = vmatprep.subr.bf16.mxu0 %v2497
  %3616 = vmatpush1.bf16.msra.mxu0 %v2496
  %3617 = vmatprep.subr.bf16.mxu0 %v2501
  %3618 = vmatpush1.bf16.msra.mxu0 %v2500
  %3619 = vmatprep.subr.bf16.mxu0 %v2505
  %3620 = vmatpush1.bf16.msra.mxu0 %v2504
  %3621 = vmatprep.subr.bf16.mxu0 %v2509
  %3622 = vmatpush1.bf16.msra.mxu0 %v2508
  %3623 = vmatprep.subr.bf16.mxu0 %v2513
  %3624 = vmatpush1.bf16.msra.mxu0 %v2512
  %3625 = vmatprep.subr.bf16.mxu0 %v2517
  %3626 = vmatpush1.bf16.msra.mxu0 %v2516
  %3627 = vmatprep.subr.bf16.mxu0 %v2521
  %3628 = vmatpush1.bf16.msra.mxu0 %v2520
  %3629 = vmatprep.subr.bf16.mxu0 %v2525
  %3630 = vmatpush1.bf16.msra.mxu0 %v2524
  %3631 = vmatprep.subr.bf16.mxu0 %v2529
  %3632 = vmatpush1.bf16.msra.mxu0 %v2528
  %3633 = vmatprep.subr.bf16.mxu0 %v2533
  %3634 = vmatpush1.bf16.msra.mxu0 %v2532
  %3635 = vmatprep.subr.bf16.mxu0 %v2537
  %3636 = vmatpush1.bf16.msra.mxu0 %v2536
  %3637 = vmatprep.mubr.bf16.mxu0 %v651
  %3638 = vmatmul.mubr.bf16.gmra.mrb[0].mxu0 %v650
  %v3639 = vpop.f32.mrb[0].mxu0
  %v3640 = vadd.f32 %v3599, %v3639
  %v3641 = vpop.f32.mrb[0].mxu0
  %v3642 = vadd.f32 %v3601, %v3641
  %v3643 = vpop.f32.mrb[0].mxu0
  %v3644 = vpop.f32.mrb[0].mxu0
  %3645 = vdwg.mxu0
  %3646 = vmatprep.subr.bf16.mxu0 %v2541
  %3647 = vmatpush1.bf16.msra.mxu0 %v2540
  %3648 = vmatprep.subr.bf16.mxu0 %v2545
  %3649 = vmatpush1.bf16.msra.mxu0 %v2544
  %3650 = vmatprep.subr.bf16.mxu0 %v2549
  %3651 = vmatpush1.bf16.msra.mxu0 %v2548
  %3652 = vmatprep.subr.bf16.mxu0 %v2553
  %3653 = vmatpush1.bf16.msra.mxu0 %v2552
  %3654 = vmatprep.subr.bf16.mxu0 %v2557
  %3655 = vmatpush1.bf16.msra.mxu0 %v2556
  %3656 = vmatprep.subr.bf16.mxu0 %v2561
  %3657 = vmatpush1.bf16.msra.mxu0 %v2560
  %3658 = vmatprep.subr.bf16.mxu0 %v2565
  %3659 = vmatpush1.bf16.msra.mxu0 %v2564
  %3660 = vmatprep.subr.bf16.mxu0 %v2569
  %3661 = vmatpush1.bf16.msra.mxu0 %v2568
  %3662 = vmatprep.subr.bf16.mxu0 %v2573
  %3663 = vmatpush1.bf16.msra.mxu0 %v2572
  %3664 = vmatprep.subr.bf16.mxu0 %v2577
  %3665 = vmatpush1.bf16.msra.mxu0 %v2576
  %3666 = vmatprep.subr.bf16.mxu0 %v2581
  %3667 = vmatpush1.bf16.msra.mxu0 %v2580
  %3668 = vmatprep.subr.bf16.mxu0 %v2585
  %3669 = vmatpush1.bf16.msra.mxu0 %v2584
  %3670 = vmatprep.subr.bf16.mxu0 %v2589
  %3671 = vmatpush1.bf16.msra.mxu0 %v2588
  %3672 = vmatprep.subr.bf16.mxu0 %v2593
  %3673 = vmatpush1.bf16.msra.mxu0 %v2592
  %3674 = vmatprep.subr.bf16.mxu0 %v2597
  %3675 = vmatpush1.bf16.msra.mxu0 %v2596
  %3676 = vmatprep.subr.bf16.mxu0 %v2601
  %3677 = vmatpush1.bf16.msra.mxu0 %v2600
  %3678 = vmatprep.mubr.bf16.mxu0 %v653
  %3679 = vmatmul.mubr.bf16.gmra.mrb[0].mxu0 %v652
  %v3680 = vpop.f32.mrb[0].mxu0
  %v3681 = vadd.f32 %v3640, %v3680
  %v3682 = vpop.f32.mrb[0].mxu0
  %v3683 = vadd.f32 %v3642, %v3682
  %v3684 = vpop.f32.mrb[0].mxu0
  %v3685 = vpop.f32.mrb[0].mxu0
  %3686 = vdwg.mxu0
  %3687 = vmatprep.subr.bf16.mxu0 %v2605
  %3688 = vmatpush1.bf16.msra.mxu0 %v2604
  %3689 = vmatprep.subr.bf16.mxu0 %v2609
  %3690 = vmatpush1.bf16.msra.mxu0 %v2608
  %3691 = vmatprep.subr.bf16.mxu0 %v2613
  %3692 = vmatpush1.bf16.msra.mxu0 %v2612
  %3693 = vmatprep.subr.bf16.mxu0 %v2617
  %3694 = vmatpush1.bf16.msra.mxu0 %v2616
  %3695 = vmatprep.subr.bf16.mxu0 %v2621
  %3696 = vmatpush1.bf16.msra.mxu0 %v2620
  %3697 = vmatprep.subr.bf16.mxu0 %v2625
  %3698 = vmatpush1.bf16.msra.mxu0 %v2624
  %3699 = vmatprep.subr.bf16.mxu0 %v2629
  %3700 = vmatpush1.bf16.msra.mxu0 %v2628
  %3701 = vmatprep.subr.bf16.mxu0 %v2633
  %3702 = vmatpush1.bf16.msra.mxu0 %v2632
  %3703 = vmatprep.subr.bf16.mxu0 %v2637
  %3704 = vmatpush1.bf16.msra.mxu0 %v2636
  %3705 = vmatprep.subr.bf16.mxu0 %v2641
  %3706 = vmatpush1.bf16.msra.mxu0 %v2640
  %3707 = vmatprep.subr.bf16.mxu0 %v2645
  %3708 = vmatpush1.bf16.msra.mxu0 %v2644
  %3709 = vmatprep.subr.bf16.mxu0 %v2649
  %3710 = vmatpush1.bf16.msra.mxu0 %v2648
  %3711 = vmatprep.subr.bf16.mxu0 %v2653
  %3712 = vmatpush1.bf16.msra.mxu0 %v2652
  %3713 = vmatprep.subr.bf16.mxu0 %v2657
  %3714 = vmatpush1.bf16.msra.mxu0 %v2656
  %3715 = vmatprep.subr.bf16.mxu0 %v2661
  %3716 = vmatpush1.bf16.msra.mxu0 %v2660
  %3717 = vmatprep.subr.bf16.mxu0 %v2665
  %3718 = vmatpush1.bf16.msra.mxu0 %v2664
  %3719 = vmatprep.mubr.bf16.mxu0 %v655
  %3720 = vmatmul.mubr.bf16.gmra.mrb[0].mxu0 %v654
  %v3721 = vpop.f32.mrb[0].mxu0
  %v3722 = vadd.f32 %v3681, %v3721
  %v3723 = vpop.f32.mrb[0].mxu0
  %v3724 = vadd.f32 %v3683, %v3723
  %v3725 = vpop.f32.mrb[0].mxu0
  %v3726 = vpop.f32.mrb[0].mxu0
  %3727 = vdwg.mxu0
  %3728 = vmatprep.subr.bf16.mxu0 %v2669
  %3729 = vmatpush1.bf16.msra.mxu0 %v2668
  %3730 = vmatprep.subr.bf16.mxu0 %v2673
  %3731 = vmatpush1.bf16.msra.mxu0 %v2672
  %3732 = vmatprep.subr.bf16.mxu0 %v2677
  %3733 = vmatpush1.bf16.msra.mxu0 %v2676
  %3734 = vmatprep.subr.bf16.mxu0 %v2681
  %3735 = vmatpush1.bf16.msra.mxu0 %v2680
  %3736 = vmatprep.subr.bf16.mxu0 %v2685
  %3737 = vmatpush1.bf16.msra.mxu0 %v2684
  %3738 = vmatprep.subr.bf16.mxu0 %v2689
  %3739 = vmatpush1.bf16.msra.mxu0 %v2688
  %3740 = vmatprep.subr.bf16.mxu0 %v2693
  %3741 = vmatpush1.bf16.msra.mxu0 %v2692
  %3742 = vmatprep.subr.bf16.mxu0 %v2697
  %3743 = vmatpush1.bf16.msra.mxu0 %v2696
  %3744 = vmatprep.subr.bf16.mxu0 %v2701
  %3745 = vmatpush1.bf16.msra.mxu0 %v2700
  %3746 = vmatprep.subr.bf16.mxu0 %v2705
  %3747 = vmatpush1.bf16.msra.mxu0 %v2704
  %3748 = vmatprep.subr.bf16.mxu0 %v2709
  %3749 = vmatpush1.bf16.msra.mxu0 %v2708
  %3750 = vmatprep.subr.bf16.mxu0 %v2713
  %3751 = vmatpush1.bf16.msra.mxu0 %v2712
  %3752 = vmatprep.subr.bf16.mxu0 %v2717
  %3753 = vmatpush1.bf16.msra.mxu0 %v2716
  %3754 = vmatprep.subr.bf16.mxu0 %v2721
  %3755 = vmatpush1.bf16.msra.mxu0 %v2720
  %3756 = vmatprep.subr.bf16.mxu0 %v2725
  %3757 = vmatpush1.bf16.msra.mxu0 %v2724
  %3758 = vmatprep.subr.bf16.mxu0 %v2729
  %3759 = vmatpush1.bf16.msra.mxu0 %v2728
  %3760 = vmatprep.mubr.bf16.mxu0 %v657
  %3761 = vmatmul.mubr.bf16.gmra.mrb[0].mxu0 %v656
  %v3762 = vpop.f32.mrb[0].mxu0
  %v3763 = vadd.f32 %v3722, %v3762
  %v3764 = vpop.f32.mrb[0].mxu0
  %v3765 = vadd.f32 %v3724, %v3764
  %v3766 = vpop.f32.mrb[0].mxu0
  %v3767 = vpop.f32.mrb[0].mxu0
  %3768 = vdwg.mxu0
  %3769 = vmatprep.subr.bf16.mxu0 %v2733
  %3770 = vmatpush1.bf16.msra.mxu0 %v2732
  %3771 = vmatprep.subr.bf16.mxu0 %v2737
  %3772 = vmatpush1.bf16.msra.mxu0 %v2736
  %3773 = vmatprep.subr.bf16.mxu0 %v2741
  %3774 = vmatpush1.bf16.msra.mxu0 %v2740
  %3775 = vmatprep.subr.bf16.mxu0 %v2745
  %3776 = vmatpush1.bf16.msra.mxu0 %v2744
  %3777 = vmatprep.subr.bf16.mxu0 %v2749
  %3778 = vmatpush1.bf16.msra.mxu0 %v2748
  %3779 = vmatprep.subr.bf16.mxu0 %v2753
  %3780 = vmatpush1.bf16.msra.mxu0 %v2752
  %3781 = vmatprep.subr.bf16.mxu0 %v2757
  %3782 = vmatpush1.bf16.msra.mxu0 %v2756
  %3783 = vmatprep.subr.bf16.mxu0 %v2761
  %3784 = vmatpush1.bf16.msra.mxu0 %v2760
  %3785 = vmatprep.subr.bf16.mxu0 %v2765
  %3786 = vmatpush1.bf16.msra.mxu0 %v2764
  %3787 = vmatprep.subr.bf16.mxu0 %v2769
  %3788 = vmatpush1.bf16.msra.mxu0 %v2768
  %3789 = vmatprep.subr.bf16.mxu0 %v2773
  %3790 = vmatpush1.bf16.msra.mxu0 %v2772
  %3791 = vmatprep.subr.bf16.mxu0 %v2777
  %3792 = vmatpush1.bf16.msra.mxu0 %v2776
  %3793 = vmatprep.subr.bf16.mxu0 %v2781
  %3794 = vmatpush1.bf16.msra.mxu0 %v2780
  %3795 = vmatprep.subr.bf16.mxu0 %v2785
  %3796 = vmatpush1.bf16.msra.mxu0 %v2784
  %3797 = vmatprep.subr.bf16.mxu0 %v2789
  %3798 = vmatpush1.bf16.msra.mxu0 %v2788
  %3799 = vmatprep.subr.bf16.mxu0 %v2793
  %3800 = vmatpush1.bf16.msra.mxu0 %v2792
  %3801 = vmatprep.mubr.bf16.mxu0 %v659
  %3802 = vmatmul.mubr.bf16.gmra.mrb[0].mxu0 %v658
  %v3803 = vpop.f32.mrb[0].mxu0
  %v3804 = vadd.f32 %v3763, %v3803
  %v3805 = vpop.f32.mrb[0].mxu0
  %v3806 = vadd.f32 %v3765, %v3805
  %v3807 = vpop.f32.mrb[0].mxu0
  %v3808 = vpop.f32.mrb[0].mxu0
  %3809 = vdwg.mxu0
  %3810 = vmatprep.subr.bf16.mxu0 %v2797
  %3811 = vmatpush1.bf16.msra.mxu0 %v2796
  %3812 = vmatprep.subr.bf16.mxu0 %v2801
  %3813 = vmatpush1.bf16.msra.mxu0 %v2800
  %3814 = vmatprep.subr.bf16.mxu0 %v2805
  %3815 = vmatpush1.bf16.msra.mxu0 %v2804
  %3816 = vmatprep.subr.bf16.mxu0 %v2809
  %3817 = vmatpush1.bf16.msra.mxu0 %v2808
  %3818 = vmatprep.subr.bf16.mxu0 %v2813
  %3819 = vmatpush1.bf16.msra.mxu0 %v2812
  %3820 = vmatprep.subr.bf16.mxu0 %v2817
  %3821 = vmatpush1.bf16.msra.mxu0 %v2816
  %3822 = vmatprep.subr.bf16.mxu0 %v2821
  %3823 = vmatpush1.bf16.msra.mxu0 %v2820
  %3824 = vmatprep.subr.bf16.mxu0 %v2825
  %3825 = vmatpush1.bf16.msra.mxu0 %v2824
  %3826 = vmatprep.subr.bf16.mxu0 %v2829
  %3827 = vmatpush1.bf16.msra.mxu0 %v2828
  %3828 = vmatprep.subr.bf16.mxu0 %v2833
  %3829 = vmatpush1.bf16.msra.mxu0 %v2832
  %3830 = vmatprep.subr.bf16.mxu0 %v2837
  %3831 = vmatpush1.bf16.msra.mxu0 %v2836
  %3832 = vmatprep.subr.bf16.mxu0 %v2841
  %3833 = vmatpush1.bf16.msra.mxu0 %v2840
  %3834 = vmatprep.subr.bf16.mxu0 %v2845
  %3835 = vmatpush1.bf16.msra.mxu0 %v2844
  %3836 = vmatprep.subr.bf16.mxu0 %v2849
  %3837 = vmatpush1.bf16.msra.mxu0 %v2848
  %3838 = vmatprep.subr.bf16.mxu0 %v2853
  %3839 = vmatpush1.bf16.msra.mxu0 %v2852
  %3840 = vmatprep.subr.bf16.mxu0 %v2857
  %3841 = vmatpush1.bf16.msra.mxu0 %v2856
  %3842 = vmatprep.mubr.bf16.mxu0 %v661
  %3843 = vmatmul.mubr.bf16.gmra.mrb[0].mxu0 %v660
  %v3844 = vpop.f32.mrb[0].mxu0
  %v3845 = vadd.f32 %v3804, %v3844
  %v3846 = vpop.f32.mrb[0].mxu0
  %v3847 = vadd.f32 %v3806, %v3846
  %v3848 = vpop.f32.mrb[0].mxu0
  %v3849 = vpop.f32.mrb[0].mxu0
  %3850 = vdwg.mxu0
  %3851 = vmatprep.subr.bf16.mxu0 %v2861
  %3852 = vmatpush1.bf16.msra.mxu0 %v2860
  %3853 = vmatprep.subr.bf16.mxu0 %v2865
  %3854 = vmatpush1.bf16.msra.mxu0 %v2864
  %3855 = vmatprep.subr.bf16.mxu0 %v2869
  %3856 = vmatpush1.bf16.msra.mxu0 %v2868
  %3857 = vmatprep.subr.bf16.mxu0 %v2873
  %3858 = vmatpush1.bf16.msra.mxu0 %v2872
  %3859 = vmatprep.subr.bf16.mxu0 %v2877
  %3860 = vmatpush1.bf16.msra.mxu0 %v2876
  %3861 = vmatprep.subr.bf16.mxu0 %v2881
  %3862 = vmatpush1.bf16.msra.mxu0 %v2880
  %3863 = vmatprep.subr.bf16.mxu0 %v2885
  %3864 = vmatpush1.bf16.msra.mxu0 %v2884
  %3865 = vmatprep.subr.bf16.mxu0 %v2889
  %3866 = vmatpush1.bf16.msra.mxu0 %v2888
  %3867 = vmatprep.subr.bf16.mxu0 %v2893
  %3868 = vmatpush1.bf16.msra.mxu0 %v2892
  %3869 = vmatprep.subr.bf16.mxu0 %v2897
  %3870 = vmatpush1.bf16.msra.mxu0 %v2896
  %3871 = vmatprep.subr.bf16.mxu0 %v2901
  %3872 = vmatpush1.bf16.msra.mxu0 %v2900
  %3873 = vmatprep.subr.bf16.mxu0 %v2905
  %3874 = vmatpush1.bf16.msra.mxu0 %v2904
  %3875 = vmatprep.subr.bf16.mxu0 %v2909
  %3876 = vmatpush1.bf16.msra.mxu0 %v2908
  %3877 = vmatprep.subr.bf16.mxu0 %v2913
  %3878 = vmatpush1.bf16.msra.mxu0 %v2912
  %3879 = vmatprep.subr.bf16.mxu0 %v2917
  %3880 = vmatpush1.bf16.msra.mxu0 %v2916
  %3881 = vmatprep.subr.bf16.mxu0 %v2921
  %3882 = vmatpush1.bf16.msra.mxu0 %v2920
  %3883 = vmatprep.mubr.bf16.mxu0 %v663
  %3884 = vmatmul.mubr.bf16.gmra.mrb[0].mxu0 %v662
  %v3885 = vpop.f32.mrb[0].mxu0
  %v3886 = vadd.f32 %v3845, %v3885
  %v3887 = vpop.f32.mrb[0].mxu0
  %v3888 = vadd.f32 %v3847, %v3887
  %v3889 = vpop.f32.mrb[0].mxu0
  %v3890 = vpop.f32.mrb[0].mxu0
  %3891 = vdwg.mxu0
  %3892 = vmatprep.subr.bf16.mxu0 %v2925
  %3893 = vmatpush1.bf16.msra.mxu0 %v2924
  %3894 = vmatprep.subr.bf16.mxu0 %v2929
  %3895 = vmatpush1.bf16.msra.mxu0 %v2928
  %3896 = vmatprep.subr.bf16.mxu0 %v2933
  %3897 = vmatpush1.bf16.msra.mxu0 %v2932
  %3898 = vmatprep.subr.bf16.mxu0 %v2937
  %3899 = vmatpush1.bf16.msra.mxu0 %v2936
  %3900 = vmatprep.subr.bf16.mxu0 %v2941
  %3901 = vmatpush1.bf16.msra.mxu0 %v2940
  %3902 = vmatprep.subr.bf16.mxu0 %v2945
  %3903 = vmatpush1.bf16.msra.mxu0 %v2944
  %3904 = vmatprep.subr.bf16.mxu0 %v2949
  %3905 = vmatpush1.bf16.msra.mxu0 %v2948
  %3906 = vmatprep.subr.bf16.mxu0 %v2953
  %3907 = vmatpush1.bf16.msra.mxu0 %v2952
  %3908 = vmatprep.subr.bf16.mxu0 %v2957
  %3909 = vmatpush1.bf16.msra.mxu0 %v2956
  %3910 = vmatprep.subr.bf16.mxu0 %v2961
  %3911 = vmatpush1.bf16.msra.mxu0 %v2960
  %3912 = vmatprep.subr.bf16.mxu0 %v2965
  %3913 = vmatpush1.bf16.msra.mxu0 %v2964
  %3914 = vmatprep.subr.bf16.mxu0 %v2969
  %3915 = vmatpush1.bf16.msra.mxu0 %v2968
  %3916 = vmatprep.subr.bf16.mxu0 %v2973
  %3917 = vmatpush1.bf16.msra.mxu0 %v2972
  %3918 = vmatprep.subr.bf16.mxu0 %v2977
  %3919 = vmatpush1.bf16.msra.mxu0 %v2976
  %3920 = vmatprep.subr.bf16.mxu0 %v2981
  %3921 = vmatpush1.bf16.msra.mxu0 %v2980
  %3922 = vmatprep.subr.bf16.mxu0 %v2985
  %3923 = vmatpush1.bf16.msra.mxu0 %v2984
  %3924 = vmatprep.mubr.bf16.mxu0 %v665
  %3925 = vmatmul.mubr.bf16.gmra.mrb[0].mxu0 %v664
  %v3926 = vpop.f32.mrb[0].mxu0
  %v3927 = vadd.f32 %v3886, %v3926
  %v3928 = vpop.f32.mrb[0].mxu0
  %v3929 = vadd.f32 %v3888, %v3928
  %v3930 = vpop.f32.mrb[0].mxu0
  %v3931 = vpop.f32.mrb[0].mxu0
  %3932 = vdwg.mxu0
  %3933 = vmatprep.subr.bf16.mxu0 %v2415
  %3934 = vmatpush1.bf16.msra.mxu0 %v2414
  %3935 = vmatprep.subr.bf16.mxu0 %v2419
  %3936 = vmatpush1.bf16.msra.mxu0 %v2418
  %3937 = vmatprep.subr.bf16.mxu0 %v2423
  %3938 = vmatpush1.bf16.msra.mxu0 %v2422
  %3939 = vmatprep.subr.bf16.mxu0 %v2427
  %3940 = vmatpush1.bf16.msra.mxu0 %v2426
  %3941 = vmatprep.subr.bf16.mxu0 %v2431
  %3942 = vmatpush1.bf16.msra.mxu0 %v2430
  %3943 = vmatprep.subr.bf16.mxu0 %v2435
  %3944 = vmatpush1.bf16.msra.mxu0 %v2434
  %3945 = vmatprep.subr.bf16.mxu0 %v2439
  %3946 = vmatpush1.bf16.msra.mxu0 %v2438
  %3947 = vmatprep.subr.bf16.mxu0 %v2443
  %3948 = vmatpush1.bf16.msra.mxu0 %v2442
  %3949 = vmatprep.subr.bf16.mxu0 %v2447
  %3950 = vmatpush1.bf16.msra.mxu0 %v2446
  %3951 = vmatprep.subr.bf16.mxu0 %v2451
  %3952 = vmatpush1.bf16.msra.mxu0 %v2450
  %3953 = vmatprep.subr.bf16.mxu0 %v2455
  %3954 = vmatpush1.bf16.msra.mxu0 %v2454
  %3955 = vmatprep.subr.bf16.mxu0 %v2459
  %3956 = vmatpush1.bf16.msra.mxu0 %v2458
  %3957 = vmatprep.subr.bf16.mxu0 %v2463
  %3958 = vmatpush1.bf16.msra.mxu0 %v2462
  %3959 = vmatprep.subr.bf16.mxu0 %v2467
  %3960 = vmatpush1.bf16.msra.mxu0 %v2466
  %3961 = vmatprep.subr.bf16.mxu0 %v2471
  %3962 = vmatpush1.bf16.msra.mxu0 %v2470
  %3963 = vmatprep.subr.bf16.mxu0 %v2475
  %3964 = vmatpush1.bf16.msra.mxu0 %v2474
  %3965 = vmatprep.mubr.bf16.mxu0 %v649
  %3966 = vmatmul.mubr.bf16.gmra.mrb[0].mxu0 %v648
  %v3967 = vpop.f32.mrb[0].mxu0
  %v3968 = vadd.f32 %v612, %v3967
  %v3969 = vpop.f32.mrb[0].mxu0
  %v3970 = vadd.f32 %v616, %v3969
  %v3971 = vpop.f32.mrb[0].mxu0
  %v3972 = vpop.f32.mrb[0].mxu0
  %3973 = vdwg.mxu0
  %3974 = vmatprep.subr.bf16.mxu0 %v2479
  %3975 = vmatpush1.bf16.msra.mxu0 %v2478
  %3976 = vmatprep.subr.bf16.mxu0 %v2483
  %3977 = vmatpush1.bf16.msra.mxu0 %v2482
  %3978 = vmatprep.subr.bf16.mxu0 %v2487
  %3979 = vmatpush1.bf16.msra.mxu0 %v2486
  %3980 = vmatprep.subr.bf16.mxu0 %v2491
  %3981 = vmatpush1.bf16.msra.mxu0 %v2490
  %3982 = vmatprep.subr.bf16.mxu0 %v2495
  %3983 = vmatpush1.bf16.msra.mxu0 %v2494
  %3984 = vmatprep.subr.bf16.mxu0 %v2499
  %3985 = vmatpush1.bf16.msra.mxu0 %v2498
  %3986 = vmatprep.subr.bf16.mxu0 %v2503
  %3987 = vmatpush1.bf16.msra.mxu0 %v2502
  %3988 = vmatprep.subr.bf16.mxu0 %v2507
  %3989 = vmatpush1.bf16.msra.mxu0 %v2506
  %3990 = vmatprep.subr.bf16.mxu0 %v2511
  %3991 = vmatpush1.bf16.msra.mxu0 %v2510
  %3992 = vmatprep.subr.bf16.mxu0 %v2515
  %3993 = vmatpush1.bf16.msra.mxu0 %v2514
  %3994 = vmatprep.subr.bf16.mxu0 %v2519
  %3995 = vmatpush1.bf16.msra.mxu0 %v2518
  %3996 = vmatprep.subr.bf16.mxu0 %v2523
  %3997 = vmatpush1.bf16.msra.mxu0 %v2522
  %3998 = vmatprep.subr.bf16.mxu0 %v2527
  %3999 = vmatpush1.bf16.msra.mxu0 %v2526
  %4000 = vmatprep.subr.bf16.mxu0 %v2531
  %4001 = vmatpush1.bf16.msra.mxu0 %v2530
  %4002 = vmatprep.subr.bf16.mxu0 %v2535
  %4003 = vmatpush1.bf16.msra.mxu0 %v2534
  %4004 = vmatprep.subr.bf16.mxu0 %v2539
  %4005 = vmatpush1.bf16.msra.mxu0 %v2538
  %4006 = vmatprep.mubr.bf16.mxu0 %v651
  %4007 = vmatmul.mubr.bf16.gmra.mrb[0].mxu0 %v650
  %v4008 = vpop.f32.mrb[0].mxu0
  %v4009 = vadd.f32 %v3968, %v4008
  %v4010 = vpop.f32.mrb[0].mxu0
  %v4011 = vadd.f32 %v3970, %v4010
  %v4012 = vpop.f32.mrb[0].mxu0
  %v4013 = vpop.f32.mrb[0].mxu0
  %4014 = vdwg.mxu0
  %4015 = vmatprep.subr.bf16.mxu0 %v2543
  %4016 = vmatpush1.bf16.msra.mxu0 %v2542
  %4017 = vmatprep.subr.bf16.mxu0 %v2547
  %4018 = vmatpush1.bf16.msra.mxu0 %v2546
  %4019 = vmatprep.subr.bf16.mxu0 %v2551
  %4020 = vmatpush1.bf16.msra.mxu0 %v2550
  %4021 = vmatprep.subr.bf16.mxu0 %v2555
  %4022 = vmatpush1.bf16.msra.mxu0 %v2554
  %4023 = vmatprep.subr.bf16.mxu0 %v2559
  %4024 = vmatpush1.bf16.msra.mxu0 %v2558
  %4025 = vmatprep.subr.bf16.mxu0 %v2563
  %4026 = vmatpush1.bf16.msra.mxu0 %v2562
  %4027 = vmatprep.subr.bf16.mxu0 %v2567
  %4028 = vmatpush1.bf16.msra.mxu0 %v2566
  %4029 = vmatprep.subr.bf16.mxu0 %v2571
  %4030 = vmatpush1.bf16.msra.mxu0 %v2570
  %4031 = vmatprep.subr.bf16.mxu0 %v2575
  %4032 = vmatpush1.bf16.msra.mxu0 %v2574
  %4033 = vmatprep.subr.bf16.mxu0 %v2579
  %4034 = vmatpush1.bf16.msra.mxu0 %v2578
  %4035 = vmatprep.subr.bf16.mxu0 %v2583
  %4036 = vmatpush1.bf16.msra.mxu0 %v2582
  %4037 = vmatprep.subr.bf16.mxu0 %v2587
  %4038 = vmatpush1.bf16.msra.mxu0 %v2586
  %4039 = vmatprep.subr.bf16.mxu0 %v2591
  %4040 = vmatpush1.bf16.msra.mxu0 %v2590
  %4041 = vmatprep.subr.bf16.mxu0 %v2595
  %4042 = vmatpush1.bf16.msra.mxu0 %v2594
  %4043 = vmatprep.subr.bf16.mxu0 %v2599
  %4044 = vmatpush1.bf16.msra.mxu0 %v2598
  %4045 = vmatprep.subr.bf16.mxu0 %v2603
  %4046 = vmatpush1.bf16.msra.mxu0 %v2602
  %4047 = vmatprep.mubr.bf16.mxu0 %v653
  %4048 = vmatmul.mubr.bf16.gmra.mrb[0].mxu0 %v652
  %v4049 = vpop.f32.mrb[0].mxu0
  %v4050 = vadd.f32 %v4009, %v4049
  %v4051 = vpop.f32.mrb[0].mxu0
  %v4052 = vadd.f32 %v4011, %v4051
  %v4053 = vpop.f32.mrb[0].mxu0
  %v4054 = vpop.f32.mrb[0].mxu0
  %4055 = vdwg.mxu0
  %4056 = vmatprep.subr.bf16.mxu0 %v2607
  %4057 = vmatpush1.bf16.msra.mxu0 %v2606
  %4058 = vmatprep.subr.bf16.mxu0 %v2611
  %4059 = vmatpush1.bf16.msra.mxu0 %v2610
  %4060 = vmatprep.subr.bf16.mxu0 %v2615
  %4061 = vmatpush1.bf16.msra.mxu0 %v2614
  %4062 = vmatprep.subr.bf16.mxu0 %v2619
  %4063 = vmatpush1.bf16.msra.mxu0 %v2618
  %4064 = vmatprep.subr.bf16.mxu0 %v2623
  %4065 = vmatpush1.bf16.msra.mxu0 %v2622
  %4066 = vmatprep.subr.bf16.mxu0 %v2627
  %4067 = vmatpush1.bf16.msra.mxu0 %v2626
  %4068 = vmatprep.subr.bf16.mxu0 %v2631
  %4069 = vmatpush1.bf16.msra.mxu0 %v2630
  %4070 = vmatprep.subr.bf16.mxu0 %v2635
  %4071 = vmatpush1.bf16.msra.mxu0 %v2634
  %4072 = vmatprep.subr.bf16.mxu0 %v2639
  %4073 = vmatpush1.bf16.msra.mxu0 %v2638
  %4074 = vmatprep.subr.bf16.mxu0 %v2643
  %4075 = vmatpush1.bf16.msra.mxu0 %v2642
  %4076 = vmatprep.subr.bf16.mxu0 %v2647
  %4077 = vmatpush1.bf16.msra.mxu0 %v2646
  %4078 = vmatprep.subr.bf16.mxu0 %v2651
  %4079 = vmatpush1.bf16.msra.mxu0 %v2650
  %4080 = vmatprep.subr.bf16.mxu0 %v2655
  %4081 = vmatpush1.bf16.msra.mxu0 %v2654
  %4082 = vmatprep.subr.bf16.mxu0 %v2659
  %4083 = vmatpush1.bf16.msra.mxu0 %v2658
  %4084 = vmatprep.subr.bf16.mxu0 %v2663
  %4085 = vmatpush1.bf16.msra.mxu0 %v2662
  %4086 = vmatprep.subr.bf16.mxu0 %v2667
  %4087 = vmatpush1.bf16.msra.mxu0 %v2666
  %4088 = vmatprep.mubr.bf16.mxu0 %v655
  %4089 = vmatmul.mubr.bf16.gmra.mrb[0].mxu0 %v654
  %v4090 = vpop.f32.mrb[0].mxu0
  %v4091 = vadd.f32 %v4050, %v4090
  %v4092 = vpop.f32.mrb[0].mxu0
  %v4093 = vadd.f32 %v4052, %v4092
  %v4094 = vpop.f32.mrb[0].mxu0
  %v4095 = vpop.f32.mrb[0].mxu0
  %4096 = vdwg.mxu0
  %4097 = vmatprep.subr.bf16.mxu0 %v2671
  %4098 = vmatpush1.bf16.msra.mxu0 %v2670
  %4099 = vmatprep.subr.bf16.mxu0 %v2675
  %4100 = vmatpush1.bf16.msra.mxu0 %v2674
  %4101 = vmatprep.subr.bf16.mxu0 %v2679
  %4102 = vmatpush1.bf16.msra.mxu0 %v2678
  %4103 = vmatprep.subr.bf16.mxu0 %v2683
  %4104 = vmatpush1.bf16.msra.mxu0 %v2682
  %4105 = vmatprep.subr.bf16.mxu0 %v2687
  %4106 = vmatpush1.bf16.msra.mxu0 %v2686
  %4107 = vmatprep.subr.bf16.mxu0 %v2691
  %4108 = vmatpush1.bf16.msra.mxu0 %v2690
  %4109 = vmatprep.subr.bf16.mxu0 %v2695
  %4110 = vmatpush1.bf16.msra.mxu0 %v2694
  %4111 = vmatprep.subr.bf16.mxu0 %v2699
  %4112 = vmatpush1.bf16.msra.mxu0 %v2698
  %4113 = vmatprep.subr.bf16.mxu0 %v2703
  %4114 = vmatpush1.bf16.msra.mxu0 %v2702
  %4115 = vmatprep.subr.bf16.mxu0 %v2707
  %4116 = vmatpush1.bf16.msra.mxu0 %v2706
  %4117 = vmatprep.subr.bf16.mxu0 %v2711
  %4118 = vmatpush1.bf16.msra.mxu0 %v2710
  %4119 = vmatprep.subr.bf16.mxu0 %v2715
  %4120 = vmatpush1.bf16.msra.mxu0 %v2714
  %4121 = vmatprep.subr.bf16.mxu0 %v2719
  %4122 = vmatpush1.bf16.msra.mxu0 %v2718
  %4123 = vmatprep.subr.bf16.mxu0 %v2723
  %4124 = vmatpush1.bf16.msra.mxu0 %v2722
  %4125 = vmatprep.subr.bf16.mxu0 %v2727
  %4126 = vmatpush1.bf16.msra.mxu0 %v2726
  %4127 = vmatprep.subr.bf16.mxu0 %v2731
  %4128 = vmatpush1.bf16.msra.mxu0 %v2730
  %4129 = vmatprep.mubr.bf16.mxu0 %v657
  %4130 = vmatmul.mubr.bf16.gmra.mrb[0].mxu0 %v656
  %v4131 = vpop.f32.mrb[0].mxu0
  %v4132 = vadd.f32 %v4091, %v4131
  %v4133 = vpop.f32.mrb[0].mxu0
  %v4134 = vadd.f32 %v4093, %v4133
  %v4135 = vpop.f32.mrb[0].mxu0
  %v4136 = vpop.f32.mrb[0].mxu0
  %4137 = vdwg.mxu0
  %4138 = vmatprep.subr.bf16.mxu0 %v2735
  %4139 = vmatpush1.bf16.msra.mxu0 %v2734
  %4140 = vmatprep.subr.bf16.mxu0 %v2739
  %4141 = vmatpush1.bf16.msra.mxu0 %v2738
  %4142 = vmatprep.subr.bf16.mxu0 %v2743
  %4143 = vmatpush1.bf16.msra.mxu0 %v2742
  %4144 = vmatprep.subr.bf16.mxu0 %v2747
  %4145 = vmatpush1.bf16.msra.mxu0 %v2746
  %4146 = vmatprep.subr.bf16.mxu0 %v2751
  %4147 = vmatpush1.bf16.msra.mxu0 %v2750
  %4148 = vmatprep.subr.bf16.mxu0 %v2755
  %4149 = vmatpush1.bf16.msra.mxu0 %v2754
  %4150 = vmatprep.subr.bf16.mxu0 %v2759
  %4151 = vmatpush1.bf16.msra.mxu0 %v2758
  %4152 = vmatprep.subr.bf16.mxu0 %v2763
  %4153 = vmatpush1.bf16.msra.mxu0 %v2762
  %4154 = vmatprep.subr.bf16.mxu0 %v2767
  %4155 = vmatpush1.bf16.msra.mxu0 %v2766
  %4156 = vmatprep.subr.bf16.mxu0 %v2771
  %4157 = vmatpush1.bf16.msra.mxu0 %v2770
  %4158 = vmatprep.subr.bf16.mxu0 %v2775
  %4159 = vmatpush1.bf16.msra.mxu0 %v2774
  %4160 = vmatprep.subr.bf16.mxu0 %v2779
  %4161 = vmatpush1.bf16.msra.mxu0 %v2778
  %4162 = vmatprep.subr.bf16.mxu0 %v2783
  %4163 = vmatpush1.bf16.msra.mxu0 %v2782
  %4164 = vmatprep.subr.bf16.mxu0 %v2787
  %4165 = vmatpush1.bf16.msra.mxu0 %v2786
  %4166 = vmatprep.subr.bf16.mxu0 %v2791
  %4167 = vmatpush1.bf16.msra.mxu0 %v2790
  %4168 = vmatprep.subr.bf16.mxu0 %v2795
  %4169 = vmatpush1.bf16.msra.mxu0 %v2794
  %4170 = vmatprep.mubr.bf16.mxu0 %v659
  %4171 = vmatmul.mubr.bf16.gmra.mrb[0].mxu0 %v658
  %v4172 = vpop.f32.mrb[0].mxu0
  %v4173 = vadd.f32 %v4132, %v4172
  %v4174 = vpop.f32.mrb[0].mxu0
  %v4175 = vadd.f32 %v4134, %v4174
  %v4176 = vpop.f32.mrb[0].mxu0
  %v4177 = vpop.f32.mrb[0].mxu0
  %4178 = vdwg.mxu0
  %4179 = vmatprep.subr.bf16.mxu0 %v2799
  %4180 = vmatpush1.bf16.msra.mxu0 %v2798
  %4181 = vmatprep.subr.bf16.mxu0 %v2803
  %4182 = vmatpush1.bf16.msra.mxu0 %v2802
  %4183 = vmatprep.subr.bf16.mxu0 %v2807
  %4184 = vmatpush1.bf16.msra.mxu0 %v2806
  %4185 = vmatprep.subr.bf16.mxu0 %v2811
  %4186 = vmatpush1.bf16.msra.mxu0 %v2810
  %4187 = vmatprep.subr.bf16.mxu0 %v2815
  %4188 = vmatpush1.bf16.msra.mxu0 %v2814
  %4189 = vmatprep.subr.bf16.mxu0 %v2819
  %4190 = vmatpush1.bf16.msra.mxu0 %v2818
  %4191 = vmatprep.subr.bf16.mxu0 %v2823
  %4192 = vmatpush1.bf16.msra.mxu0 %v2822
  %4193 = vmatprep.subr.bf16.mxu0 %v2827
  %4194 = vmatpush1.bf16.msra.mxu0 %v2826
  %4195 = vmatprep.subr.bf16.mxu0 %v2831
  %4196 = vmatpush1.bf16.msra.mxu0 %v2830
  %4197 = vmatprep.subr.bf16.mxu0 %v2835
  %4198 = vmatpush1.bf16.msra.mxu0 %v2834
  %4199 = vmatprep.subr.bf16.mxu0 %v2839
  %4200 = vmatpush1.bf16.msra.mxu0 %v2838
  %4201 = vmatprep.subr.bf16.mxu0 %v2843
  %4202 = vmatpush1.bf16.msra.mxu0 %v2842
  %4203 = vmatprep.subr.bf16.mxu0 %v2847
  %4204 = vmatpush1.bf16.msra.mxu0 %v2846
  %4205 = vmatprep.subr.bf16.mxu0 %v2851
  %4206 = vmatpush1.bf16.msra.mxu0 %v2850
  %4207 = vmatprep.subr.bf16.mxu0 %v2855
  %4208 = vmatpush1.bf16.msra.mxu0 %v2854
  %4209 = vmatprep.subr.bf16.mxu0 %v2859
  %4210 = vmatpush1.bf16.msra.mxu0 %v2858
  %4211 = vmatprep.mubr.bf16.mxu0 %v661
  %4212 = vmatmul.mubr.bf16.gmra.mrb[0].mxu0 %v660
  %v4213 = vpop.f32.mrb[0].mxu0
  %v4214 = vadd.f32 %v4173, %v4213
  %v4215 = vpop.f32.mrb[0].mxu0
  %v4216 = vadd.f32 %v4175, %v4215
  %v4217 = vpop.f32.mrb[0].mxu0
  %v4218 = vpop.f32.mrb[0].mxu0
  %4219 = vdwg.mxu0
  %4220 = vmatprep.subr.bf16.mxu0 %v2863
  %4221 = vmatpush1.bf16.msra.mxu0 %v2862
  %4222 = vmatprep.subr.bf16.mxu0 %v2867
  %4223 = vmatpush1.bf16.msra.mxu0 %v2866
  %4224 = vmatprep.subr.bf16.mxu0 %v2871
  %4225 = vmatpush1.bf16.msra.mxu0 %v2870
  %4226 = vmatprep.subr.bf16.mxu0 %v2875
  %4227 = vmatpush1.bf16.msra.mxu0 %v2874
  %4228 = vmatprep.subr.bf16.mxu0 %v2879
  %4229 = vmatpush1.bf16.msra.mxu0 %v2878
  %4230 = vmatprep.subr.bf16.mxu0 %v2883
  %4231 = vmatpush1.bf16.msra.mxu0 %v2882
  %4232 = vmatprep.subr.bf16.mxu0 %v2887
  %4233 = vmatpush1.bf16.msra.mxu0 %v2886
  %4234 = vmatprep.subr.bf16.mxu0 %v2891
  %4235 = vmatpush1.bf16.msra.mxu0 %v2890
  %4236 = vmatprep.subr.bf16.mxu0 %v2895
  %4237 = vmatpush1.bf16.msra.mxu0 %v2894
  %4238 = vmatprep.subr.bf16.mxu0 %v2899
  %4239 = vmatpush1.bf16.msra.mxu0 %v2898
  %4240 = vmatprep.subr.bf16.mxu0 %v2903
  %4241 = vmatpush1.bf16.msra.mxu0 %v2902
  %4242 = vmatprep.subr.bf16.mxu0 %v2907
  %4243 = vmatpush1.bf16.msra.mxu0 %v2906
  %4244 = vmatprep.subr.bf16.mxu0 %v2911
  %4245 = vmatpush1.bf16.msra.mxu0 %v2910
  %4246 = vmatprep.subr.bf16.mxu0 %v2915
  %4247 = vmatpush1.bf16.msra.mxu0 %v2914
  %4248 = vmatprep.subr.bf16.mxu0 %v2919
  %4249 = vmatpush1.bf16.msra.mxu0 %v2918
  %4250 = vmatprep.subr.bf16.mxu0 %v2923
  %4251 = vmatpush1.bf16.msra.mxu0 %v2922
  %4252 = vmatprep.mubr.bf16.mxu0 %v663
  %4253 = vmatmul.mubr.bf16.gmra.mrb[0].mxu0 %v662
  %v4254 = vpop.f32.mrb[0].mxu0
  %v4255 = vadd.f32 %v4214, %v4254
  %v4256 = vpop.f32.mrb[0].mxu0
  %v4257 = vadd.f32 %v4216, %v4256
  %v4258 = vpop.f32.mrb[0].mxu0
  %v4259 = vpop.f32.mrb[0].mxu0
  %4260 = vdwg.mxu0
  %4261 = vmatprep.subr.bf16.mxu0 %v2927
  %4262 = vmatpush1.bf16.msra.mxu0 %v2926
  %4263 = vmatprep.subr.bf16.mxu0 %v2931
  %4264 = vmatpush1.bf16.msra.mxu0 %v2930
  %4265 = vmatprep.subr.bf16.mxu0 %v2935
  %4266 = vmatpush1.bf16.msra.mxu0 %v2934
  %4267 = vmatprep.subr.bf16.mxu0 %v2939
  %4268 = vmatpush1.bf16.msra.mxu0 %v2938
  %4269 = vmatprep.subr.bf16.mxu0 %v2943
  %4270 = vmatpush1.bf16.msra.mxu0 %v2942
  %4271 = vmatprep.subr.bf16.mxu0 %v2947
  %4272 = vmatpush1.bf16.msra.mxu0 %v2946
  %4273 = vmatprep.subr.bf16.mxu0 %v2951
  %4274 = vmatpush1.bf16.msra.mxu0 %v2950
  %4275 = vmatprep.subr.bf16.mxu0 %v2955
  %4276 = vmatpush1.bf16.msra.mxu0 %v2954
  %4277 = vmatprep.subr.bf16.mxu0 %v2959
  %4278 = vmatpush1.bf16.msra.mxu0 %v2958
  %4279 = vmatprep.subr.bf16.mxu0 %v2963
  %4280 = vmatpush1.bf16.msra.mxu0 %v2962
  %4281 = vmatprep.subr.bf16.mxu0 %v2967
  %4282 = vmatpush1.bf16.msra.mxu0 %v2966
  %4283 = vmatprep.subr.bf16.mxu0 %v2971
  %4284 = vmatpush1.bf16.msra.mxu0 %v2970
  %4285 = vmatprep.subr.bf16.mxu0 %v2975
  %4286 = vmatpush1.bf16.msra.mxu0 %v2974
  %4287 = vmatprep.subr.bf16.mxu0 %v2979
  %4288 = vmatpush1.bf16.msra.mxu0 %v2978
  %4289 = vmatprep.subr.bf16.mxu0 %v2983
  %4290 = vmatpush1.bf16.msra.mxu0 %v2982
  %4291 = vmatprep.subr.bf16.mxu0 %v2987
  %4292 = vmatpush1.bf16.msra.mxu0 %v2986
  %4293 = vmatprep.mubr.bf16.mxu0 %v665
  %4294 = vmatmul.mubr.bf16.gmra.mrb[0].mxu0 %v664
  %v4295 = vpop.f32.mrb[0].mxu0
  %v4296 = vadd.f32 %v4255, %v4295
  %v4297 = vpop.f32.mrb[0].mxu0
  %v4298 = vadd.f32 %v4257, %v4297
  %v4299 = vpop.f32.mrb[0].mxu0
  %v4300 = vpop.f32.mrb[0].mxu0
  %4301 = vdwg.mxu0
  %vm4302 = vcmp.ge.f32.partialorder %v3927, 0.0
  %vm4303 = vcmp.ge.f32.partialorder %v3929, 0.0
  %vm4304 = vcmp.ge.f32.partialorder %v4296, 0.0
  %vm4305 = vcmp.ge.f32.partialorder %v4298, 0.0
  %v4306 = vmul.f32 %v3927, 0.2
  %v4307 = vmul.f32 %v3929, 0.2
  %v4308 = vmul.f32 %v4296, 0.2
  %v4309 = vmul.f32 %v4298, 0.2
  %v4310 = vsel %vm4302, %v3927, %v4306
  %v4311 = vsel %vm4303, %v3929, %v4307
  %v4312 = vsel %vm4304, %v4296, %v4308
  %v4313 = vsel %vm4305, %v4298, %v4309
  %v4314 = vpack.c.bf16 %v4310, %v4310
  %v4315 = vpack.c.bf16 %v4311, %v4311
  %v4316 = vpack.c.bf16 %v4312, %v4312
  %v4317 = vpack.c.bf16 %v4313, %v4313
  %v4322 = vunpack.c.l.b16 %v4314
  %v4323 = vunpack.c.l.b16 %v4315
  %v4324 = vunpack.c.l.b16 %v4316
  %v4325 = vunpack.c.l.b16 %v4317
  %v4326 = vpack.c.b16 %v4323, %v4322
  %v4327 = vpack.c.b16 %v4325, %v4324
  %4330 = vst [vmem:[%s3] sm:$0xff] %v4326
  %4331 = vst [vmem:[%s3 + $0x8] sm:$0xff] %v4327
  // Predicated region
  $region14: #{discriminator_forward.8} parent=0 // pred_check
    _
  $region15: #{discriminator_forward.8} parent=0 // pred_check_branch
    %4333 = sbr.rel (0) target = $region17
  $region16: #{discriminator_forward.8} parent=0 // pred_region
    _
  $region17: #{discriminator_forward.8} parent=0 // pred_fallthru
    _
  // Predicated region
  $region18: #{discriminator_forward.8} parent=0 // pred_check
    _
  $region19: #{discriminator_forward.8} parent=0 // pred_check_branch
    %4335 = sbr.rel (0) target = $region21
  $region20: #{discriminator_forward.8} parent=0 // pred_region
    _
  $region21: #{discriminator_forward.8} parent=0 // pred_fallthru
    _

</llo_original>
